<compile_context>
chip_gen: v7x
topology: tpu7x:2x2x1
jax: 0.10.0
libtpu: 0.0.40
codegen_flags: <defaults>
</compile_context>

<pallas_src>
import math
import functools

import jax
import jax.numpy as jnp
from jax import lax
from jax.experimental import pallas as pl
from jax.experimental.pallas import tpu as pltpu


# ----------------------------- shared math helpers ---------------------------

def _gelu(x):
    # OpenAI gelu: 0.5*x*(1+tanh(sqrt(2/pi)*(x+0.044715*x^3)))
    return 0.5 * x * (1.0 + jnp.tanh(math.sqrt(2.0 / math.pi) * (x + 0.044715 * x * x * x)))


def _layernorm(x, g, b, eps=1e-5):
    # OpenAI-style LayerNorm (epsilon inside the sqrt)
    u = jnp.mean(x, axis=-1, keepdims=True)
    s = jnp.mean((x - u) * (x - u), axis=-1, keepdims=True)
    return g * ((x - u) / jnp.sqrt(s + eps)) + b


# --------------------------- one block-core (in-kernel) -----------------------

def _block_core(h, params, mask, *, batch, seq, n_heads, head_dim):
    """Block / BlockReduce core: attn + res + LN1 + MLP + res + LN2 + proj.

    h: (B*S, D) activations with D = n_heads * head_dim (row index = b*S + s).
    Returns (B*S, dout) where dout = wout.shape[1].
    """
    (wqkv, bqkv, wap, bap, g1, b1, wfc, bfc, wp2, bp2, g2, b2, wout, bout) = params
    bs, d = h.shape
    scale = 1.0 / math.sqrt(head_dim)

    # qkv projection (Conv1D(nx, 3*nx)) — batch folded into the M dimension.
    qkv = jnp.dot(h, wqkv, preferred_element_type=jnp.float32) + bqkv
    q = qkv[:, 0:d] * scale                     # fold 1/sqrt(head_dim) into q
    k = qkv[:, d:2 * d]
    v = qkv[:, 2 * d:3 * d]

    # Head-batched attention: build (n_heads*B, S, head_dim), index n = head*B + b.
    def to_heads(x):
        return jnp.concatenate(
            [x[:, i * head_dim:(i + 1) * head_dim].reshape(batch, seq, head_dim)
             for i in range(n_heads)], axis=0)

    qb, kb, vb = to_heads(q), to_heads(k), to_heads(v)

    w = jnp.einsum('nqd,nkd->nqk', qb, kb, preferred_element_type=jnp.float32)
    w = jnp.where(mask[None, :, :], w, jnp.float32(-1e9))
    w = w - jnp.max(w, axis=-1, keepdims=True)          # numerically-stable softmax
    e = jnp.exp(w)
    p = e / jnp.sum(e, axis=-1, keepdims=True)
    ctx = jnp.einsum('nqk,nkd->nqd', p, vb, preferred_element_type=jnp.float32)

    # Merge heads back to (B*S, D): head i occupies lanes [i*hd, (i+1)*hd).
    a = jnp.concatenate(
        [ctx[i * batch:(i + 1) * batch].reshape(bs, head_dim) for i in range(n_heads)],
        axis=-1)

    # attention output projection (Conv1D(nx, nx))
    a = jnp.dot(a, wap, preferred_element_type=jnp.float32) + bap

    # residual + LN1
    n1 = _layernorm(h + a, g1, b1)

    # MLP: Conv1D(nx, 4nx) -> gelu -> Conv1D(4nx, nx)
    mid = _gelu(jnp.dot(n1, wfc, preferred_element_type=jnp.float32) + bfc)
    m = jnp.dot(mid, wp2, preferred_element_type=jnp.float32) + bp2

    # residual + LN2
    h2 = _layernorm(n1 + m, g2, b2)

    # final projection Conv1D(nx, dout)
    return jnp.dot(h2, wout, preferred_element_type=jnp.float32) + bout


# ------------------------------ fused kernel ---------------------------------

_N_PARAMS_PER_BLOCK = 14


def _fused_kernel(*refs, batch, seq, emsize, nlayers, out_width):
    h0_ref = refs[0]
    out_ref = refs[-1]
    prefs = refs[1:-1]

    # Causal mask built once per kernel (query i attends to keys j <= i).
    row = lax.broadcasted_iota(jnp.int32, (seq, seq), 0)
    col = lax.broadcasted_iota(jnp.int32, (seq, seq), 1)
    mask = col <= row

    h = h0_ref[...]                                  # (B*S, emsize)
    idx = 0

    # Growing blocks (grow_head=True): h <- concat([h, core(h)], lanes), all in VMEM.
    for i in range(nlayers):
        params = tuple(r[...] for r in prefs[idx:idx + _N_PARAMS_PER_BLOCK])
        idx += _N_PARAMS_PER_BLOCK
        d = emsize * (i + 1)
        core = _block_core(h, params, mask, batch=batch, seq=seq,
                           n_heads=d // emsize, head_dim=emsize)
        h = jnp.concatenate([h, core], axis=-1)

    # Reducing blocks: h <- core(h), output width D - emsize (encoded in wout).
    for i in range(nlayers):
        params = tuple(r[...] for r in prefs[idx:idx + _N_PARAMS_PER_BLOCK])
        idx += _N_PARAMS_PER_BLOCK
        d = emsize * (nlayers - i + 1)
        h = _block_core(h, params, mask, batch=batch, seq=seq,
                        n_heads=d // emsize, head_dim=emsize)

    # Lane-dense store: pad final (B*S, emsize) to out_width (multiple of 128) lanes.
    pad = out_width - h.shape[-1]
    if pad > 0:
        h = jnp.concatenate([h, jnp.zeros((h.shape[0], pad), h.dtype)], axis=-1)
    out_ref[...] = h


# ------------------------------- parameters ---------------------------------

def _conv1d_params(key, din, dout):
    w = jax.random.normal(key, (din, dout), jnp.float32) * 0.02
    b = jnp.zeros((1, dout), jnp.float32)
    return w, b


def _block_params(key, nx, dout):
    """Params for one Block / BlockReduce core (attention + MLP + LNs + proj)."""
    ks = jax.random.split(key, 5)
    wqkv, bqkv = _conv1d_params(ks[0], nx, 3 * nx)      # MultiHeadAttention.linear
    wap, bap = _conv1d_params(ks[1], nx, nx)            # MultiHeadAttention.proj
    g1 = jnp.ones((1, nx), jnp.float32)                 # ln_1
    b1 = jnp.zeros((1, nx), jnp.float32)
    wfc, bfc = _conv1d_params(ks[2], nx, 4 * nx)        # MLP.c_fc
    wp2, bp2 = _conv1d_params(ks[3], 4 * nx, nx)        # MLP.c_proj
    g2 = jnp.ones((1, nx), jnp.float32)                 # ln_2
    b2 = jnp.zeros((1, nx), jnp.float32)
    wout, bout = _conv1d_params(ks[4], nx, dout)        # Block.proj / BlockReduce.proj
    return (wqkv, bqkv, wap, bap, g1, b1, wfc, bfc, wp2, bp2, g2, b2, wout, bout)


# ------------------------------ full forward (Pallas) -------------------------

def transformer_forward(tokens, embed_w, params_h, params_hr, *, emsize, nlayers):
    """Full TransformerModel forward (eval mode). tokens: (B, S) int32."""
    B, S = tokens.shape
    # Embedding lookup (data-dependent gather) left to XLA; everything else fused.
    # TODO(synk): embedding gather could be an in-kernel DMA gather with scalar prefetch.
    h0 = jnp.take(embed_w, tokens.reshape(-1), axis=0).astype(jnp.float32)  # (B*S, emsize)

    flat_params = [t for blk in (list(params_h) + list(params_hr)) for t in blk]

    out_width = ((emsize + 127) // 128) * 128            # lane-dense (>= 128) output
    kernel = functools.partial(_fused_kernel, batch=B, seq=S, emsize=emsize,
                               nlayers=nlayers, out_width=out_width)

    vmem_spec = pl.BlockSpec(memory_space=pltpu.MemorySpace.VMEM)
    out = pl.pallas_call(
        kernel,
        out_shape=jax.ShapeDtypeStruct((B * S, out_width), jnp.float32),
        in_specs=[vmem_spec] * (1 + len(flat_params)),
        out_specs=vmem_spec,
    )(h0, *flat_params)

    return out[:, :emsize].reshape(B, S, emsize)


# --------------------------- pure-JAX reference ------------------------------

def _ref_block_core(x, params, *, n_heads, head_dim):
    """Reference Block/BlockReduce core mirroring the PyTorch code. x: (B, S, D)."""
    (wqkv, bqkv, wap, bap, g1, b1, wfc, bfc, wp2, bp2, g2, b2, wout, bout) = params
    B, S, D = x.shape
    qkv = x @ wqkv + bqkv
    q, k, v = qkv[..., :D], qkv[..., D:2 * D], qkv[..., 2 * D:]

    def split(t):  # (B,S,D) -> (B,H,S,hd)
        return t.reshape(B, S, n_heads, head_dim).transpose(0, 2, 1, 3)

    qh, kh, vh = split(q), split(k), split(v)
    w = jnp.einsum('bhqd,bhkd->bhqk', qh, kh) / math.sqrt(head_dim)
    alen = jnp.arange(S)
    mask = (alen[None, :] <= alen[:, None]).astype(jnp.float32)
    w = w * mask + (-1e9) * (1.0 - mask)
    p = jax.nn.softmax(w, axis=-1)
    ctx = jnp.einsum('bhqk,bhkd->bhqd', p, vh)
    a = ctx.transpose(0, 2, 1, 3).reshape(B, S, D)
    a = a @ wap + bap
    n1 = _layernorm(x + a, g1, b1)
    m = _gelu(n1 @ wfc + bfc) @ wp2 + bp2
    h2 = _layernorm(n1 + m, g2, b2)
    return h2 @ wout + bout


def transformer_reference(tokens, embed_w, params_h, params_hr, *, emsize, nlayers):
    B, S = tokens.shape
    h = jnp.take(embed_w, tokens.reshape(-1), axis=0).astype(jnp.float32).reshape(B, S, emsize)
    for i in range(nlayers):
        d = emsize * (i + 1)
        core = _ref_block_core(h, params_h[i], n_heads=d // emsize, head_dim=emsize)
        h = jnp.concatenate([h, core], axis=-1)          # grow_head concat (lane order)
    for i in range(nlayers):
        d = emsize * (nlayers - i + 1)
        h = _ref_block_core(h, params_hr[i], n_heads=d // emsize, head_dim=emsize)
    return h


# ----------------------------------- main ------------------------------------

if __name__ == "__main__":
    B, S = 2, 8
    emsize = 32
    nlayers = 2
    vocab = 10

    root = jax.random.PRNGKey(0)
    k_emb, k_tok, k_blocks = jax.random.split(root, 3)

    embed_w = jax.random.normal(k_emb, (vocab, emsize), jnp.float32) * 0.02
    tokens = jax.random.randint(k_tok, (B, S), 0, vocab, dtype=jnp.int32)

    block_keys = jax.random.split(k_blocks, 2 * nlayers)
    # Growing blocks: Block(cfg, i) has nx = emsize*(i+1), proj -> emsize.
    params_h = [_block_params(block_keys[i], emsize * (i + 1), emsize)
                for i in range(nlayers)]
    # Reducing blocks: BlockReduce(cfg, nlayers - i) has nx = emsize*(nlayers-i+1),
    # proj -> nx - emsize.
    params_hr = []
    for i in range(nlayers):
        nx = emsize * (nlayers - i + 1)
        params_hr.append(_block_params(block_keys[nlayers + i], nx, nx - emsize))

    out = transformer_forward(tokens, embed_w, params_h, params_hr,
                              emsize=emsize, nlayers=nlayers)
    out = jax.block_until_ready(out)
    assert out.shape == (B, S, emsize), out.shape

    # Correctness check against a pure-JAX reference of the PyTorch module.
    ref = jax.block_until_ready(
        transformer_reference(tokens, embed_w, params_h, params_hr,
                              emsize=emsize, nlayers=nlayers))
    max_err = float(jnp.max(jnp.abs(out - ref)))
    assert max_err < 1e-3, f"kernel mismatch vs reference: max abs err = {max_err}"

    print("KERNEL_OK")
</pallas_src>

<mosaic_0001>
module attributes {stable_mosaic.version = 11 : i64} {
  func.func @_fused_kernel(%arg0: memref<16x32xf32, #tpu.memory_space<vmem>>, %arg1: memref<32x96xf32, #tpu.memory_space<vmem>>, %arg2: memref<1x96xf32, #tpu.memory_space<vmem>>, %arg3: memref<32x32xf32, #tpu.memory_space<vmem>>, %arg4: memref<1x32xf32, #tpu.memory_space<vmem>>, %arg5: memref<1x32xf32, #tpu.memory_space<vmem>>, %arg6: memref<1x32xf32, #tpu.memory_space<vmem>>, %arg7: memref<32x128xf32, #tpu.memory_space<vmem>>, %arg8: memref<1x128xf32, #tpu.memory_space<vmem>>, %arg9: memref<128x32xf32, #tpu.memory_space<vmem>>, %arg10: memref<1x32xf32, #tpu.memory_space<vmem>>, %arg11: memref<1x32xf32, #tpu.memory_space<vmem>>, %arg12: memref<1x32xf32, #tpu.memory_space<vmem>>, %arg13: memref<32x32xf32, #tpu.memory_space<vmem>>, %arg14: memref<1x32xf32, #tpu.memory_space<vmem>>, %arg15: memref<64x192xf32, #tpu.memory_space<vmem>>, %arg16: memref<1x192xf32, #tpu.memory_space<vmem>>, %arg17: memref<64x64xf32, #tpu.memory_space<vmem>>, %arg18: memref<1x64xf32, #tpu.memory_space<vmem>>, %arg19: memref<1x64xf32, #tpu.memory_space<vmem>>, %arg20: memref<1x64xf32, #tpu.memory_space<vmem>>, %arg21: memref<64x256xf32, #tpu.memory_space<vmem>>, %arg22: memref<1x256xf32, #tpu.memory_space<vmem>>, %arg23: memref<256x64xf32, #tpu.memory_space<vmem>>, %arg24: memref<1x64xf32, #tpu.memory_space<vmem>>, %arg25: memref<1x64xf32, #tpu.memory_space<vmem>>, %arg26: memref<1x64xf32, #tpu.memory_space<vmem>>, %arg27: memref<64x32xf32, #tpu.memory_space<vmem>>, %arg28: memref<1x32xf32, #tpu.memory_space<vmem>>, %arg29: memref<96x288xf32, #tpu.memory_space<vmem>>, %arg30: memref<1x288xf32, #tpu.memory_space<vmem>>, %arg31: memref<96x96xf32, #tpu.memory_space<vmem>>, %arg32: memref<1x96xf32, #tpu.memory_space<vmem>>, %arg33: memref<1x96xf32, #tpu.memory_space<vmem>>, %arg34: memref<1x96xf32, #tpu.memory_space<vmem>>, %arg35: memref<96x384xf32, #tpu.memory_space<vmem>>, %arg36: memref<1x384xf32, #tpu.memory_space<vmem>>, %arg37: memref<384x96xf32, #tpu.memory_space<vmem>>, %arg38: memref<1x96xf32, #tpu.memory_space<vmem>>, %arg39: memref<1x96xf32, #tpu.memory_space<vmem>>, %arg40: memref<1x96xf32, #tpu.memory_space<vmem>>, %arg41: memref<96x64xf32, #tpu.memory_space<vmem>>, %arg42: memref<1x64xf32, #tpu.memory_space<vmem>>, %arg43: memref<64x192xf32, #tpu.memory_space<vmem>>, %arg44: memref<1x192xf32, #tpu.memory_space<vmem>>, %arg45: memref<64x64xf32, #tpu.memory_space<vmem>>, %arg46: memref<1x64xf32, #tpu.memory_space<vmem>>, %arg47: memref<1x64xf32, #tpu.memory_space<vmem>>, %arg48: memref<1x64xf32, #tpu.memory_space<vmem>>, %arg49: memref<64x256xf32, #tpu.memory_space<vmem>>, %arg50: memref<1x256xf32, #tpu.memory_space<vmem>>, %arg51: memref<256x64xf32, #tpu.memory_space<vmem>>, %arg52: memref<1x64xf32, #tpu.memory_space<vmem>>, %arg53: memref<1x64xf32, #tpu.memory_space<vmem>>, %arg54: memref<1x64xf32, #tpu.memory_space<vmem>>, %arg55: memref<64x32xf32, #tpu.memory_space<vmem>>, %arg56: memref<1x32xf32, #tpu.memory_space<vmem>>, %arg57: memref<16x128xf32, #tpu.memory_space<vmem>>) attributes {dimension_semantics = [], scalar_prefetch = 0 : i64, scratch_operands = 0 : i64, tpu.core_type = #tpu.core_type<tc>} {
    %0 = tpu.iota {dimensions = array<i32: 0>} : vector<8x8xi32>
    %1 = tpu.iota {dimensions = array<i32: 1>} : vector<8x8xi32>
    %2 = arith.cmpi sle, %1, %0 : vector<8x8xi32>
    %c0 = arith.constant 0 : index
    %c0_0 = arith.constant 0 : index
    %3 = vector.load %arg0[%c0, %c0_0] : memref<16x32xf32, #tpu.memory_space<vmem>>, vector<16x32xf32>
    %c0_1 = arith.constant 0 : index
    %c0_2 = arith.constant 0 : index
    %4 = vector.load %arg1[%c0_1, %c0_2] : memref<32x96xf32, #tpu.memory_space<vmem>>, vector<32x96xf32>
    %c0_3 = arith.constant 0 : index
    %c0_4 = arith.constant 0 : index
    %5 = vector.load %arg2[%c0_3, %c0_4] : memref<1x96xf32, #tpu.memory_space<vmem>>, vector<1x96xf32>
    %c0_5 = arith.constant 0 : index
    %c0_6 = arith.constant 0 : index
    %6 = vector.load %arg3[%c0_5, %c0_6] : memref<32x32xf32, #tpu.memory_space<vmem>>, vector<32x32xf32>
    %c0_7 = arith.constant 0 : index
    %c0_8 = arith.constant 0 : index
    %7 = vector.load %arg4[%c0_7, %c0_8] : memref<1x32xf32, #tpu.memory_space<vmem>>, vector<1x32xf32>
    %c0_9 = arith.constant 0 : index
    %c0_10 = arith.constant 0 : index
    %8 = vector.load %arg5[%c0_9, %c0_10] : memref<1x32xf32, #tpu.memory_space<vmem>>, vector<1x32xf32>
    %c0_11 = arith.constant 0 : index
    %c0_12 = arith.constant 0 : index
    %9 = vector.load %arg6[%c0_11, %c0_12] : memref<1x32xf32, #tpu.memory_space<vmem>>, vector<1x32xf32>
    %c0_13 = arith.constant 0 : index
    %c0_14 = arith.constant 0 : index
    %10 = vector.load %arg7[%c0_13, %c0_14] : memref<32x128xf32, #tpu.memory_space<vmem>>, vector<32x128xf32>
    %c0_15 = arith.constant 0 : index
    %c0_16 = arith.constant 0 : index
    %11 = vector.load %arg8[%c0_15, %c0_16] : memref<1x128xf32, #tpu.memory_space<vmem>>, vector<1x128xf32>
    %c0_17 = arith.constant 0 : index
    %c0_18 = arith.constant 0 : index
    %12 = vector.load %arg9[%c0_17, %c0_18] : memref<128x32xf32, #tpu.memory_space<vmem>>, vector<128x32xf32>
    %c0_19 = arith.constant 0 : index
    %c0_20 = arith.constant 0 : index
    %13 = vector.load %arg10[%c0_19, %c0_20] : memref<1x32xf32, #tpu.memory_space<vmem>>, vector<1x32xf32>
    %c0_21 = arith.constant 0 : index
    %c0_22 = arith.constant 0 : index
    %14 = vector.load %arg11[%c0_21, %c0_22] : memref<1x32xf32, #tpu.memory_space<vmem>>, vector<1x32xf32>
    %c0_23 = arith.constant 0 : index
    %c0_24 = arith.constant 0 : index
    %15 = vector.load %arg12[%c0_23, %c0_24] : memref<1x32xf32, #tpu.memory_space<vmem>>, vector<1x32xf32>
    %c0_25 = arith.constant 0 : index
    %c0_26 = arith.constant 0 : index
    %16 = vector.load %arg13[%c0_25, %c0_26] : memref<32x32xf32, #tpu.memory_space<vmem>>, vector<32x32xf32>
    %c0_27 = arith.constant 0 : index
    %c0_28 = arith.constant 0 : index
    %17 = vector.load %arg14[%c0_27, %c0_28] : memref<1x32xf32, #tpu.memory_space<vmem>>, vector<1x32xf32>
    %cst = arith.constant dense<0.000000e+00> : vector<16x96xf32>
    %18 = tpu.matmul %3, %4, %cst {dimension_numbers = #tpu.dot_dimension_numbers<[1], [0], [0], [1], [0, 0, 1, 1], [], []>} : vector<16x32xf32>, vector<32x96xf32>, vector<16x96xf32> -> vector<16x96xf32>
    %19 = vector.broadcast %5 : vector<1x96xf32> to vector<16x96xf32>
    %20 = arith.addf %18, %19 : vector<16x96xf32>
    %21 = vector.extract_strided_slice %20 {offsets = [0, 0], sizes = [16, 32], strides = [1, 1]} : vector<16x96xf32> to vector<16x32xf32>
    %cst_29 = arith.constant 0.176776692 : f32
    %22 = vector.broadcast %cst_29 : f32 to vector<16x32xf32>
    %23 = arith.mulf %21, %22 : vector<16x32xf32>
    %24 = vector.extract_strided_slice %20 {offsets = [0, 32], sizes = [16, 32], strides = [1, 1]} : vector<16x96xf32> to vector<16x32xf32>
    %25 = vector.extract_strided_slice %20 {offsets = [0, 64], sizes = [16, 32], strides = [1, 1]} : vector<16x96xf32> to vector<16x32xf32>
    %26 = vector.shape_cast %23 : vector<16x32xf32> to vector<2x8x32xf32>
    %27 = vector.shape_cast %24 : vector<16x32xf32> to vector<2x8x32xf32>
    %28 = vector.shape_cast %25 : vector<16x32xf32> to vector<2x8x32xf32>
    "tpu.trace_start"() <{level = 10 : i32, message = "nqd,nkd->nqk"}> : () -> ()
    %cst_30 = arith.constant dense<0.000000e+00> : vector<2x8x8xf32>
    %29 = tpu.matmul %26, %27, %cst_30 {dimension_numbers = #tpu.dot_dimension_numbers<[2], [2], [1], [1], [0, 0, 0, 1, 1, 1], [0], [0]>} : vector<2x8x32xf32>, vector<2x8x32xf32>, vector<2x8x8xf32> -> vector<2x8x8xf32>
    "tpu.trace_stop"() : () -> ()
    %30 = vector.shape_cast %2 : vector<8x8xi1> to vector<1x8x8xi1>
    %cst_31 = arith.constant -1.000000e+09 : f32
    %31 = vector.shape_cast %30 : vector<1x8x8xi1> to vector<1x8x8xi1>
    %32 = vector.broadcast %31 : vector<1x8x8xi1> to vector<2x8x8xi1>
    %33 = vector.broadcast %cst_31 : f32 to vector<2x8x8xf32>
    %34 = arith.select %32, %29, %33 : vector<2x8x8xi1>, vector<2x8x8xf32>
    %cst_32 = arith.constant dense<0xFF800000> : vector<2x8xf32>
    %35 = vector.multi_reduction <maximumf>, %34, %cst_32 [2] : vector<2x8x8xf32> to vector<2x8xf32>
    %36 = vector.shape_cast %35 : vector<2x8xf32> to vector<2x8x1xf32>
    %37 = vector.broadcast %36 : vector<2x8x1xf32> to vector<2x8x8xf32>
    %38 = arith.subf %34, %37 : vector<2x8x8xf32>
    %39 = math.exp %38 : vector<2x8x8xf32>
    %cst_33 = arith.constant dense<0.000000e+00> : vector<2x8xf32>
    %40 = vector.multi_reduction <add>, %39, %cst_33 [2] : vector<2x8x8xf32> to vector<2x8xf32>
    %41 = vector.shape_cast %40 : vector<2x8xf32> to vector<2x8x1xf32>
    %42 = vector.broadcast %41 : vector<2x8x1xf32> to vector<2x8x8xf32>
    %43 = arith.divf %39, %42 : vector<2x8x8xf32>
    "tpu.trace_start"() <{level = 10 : i32, message = "nqk,nkd->nqd"}> : () -> ()
    %cst_34 = arith.constant dense<0.000000e+00> : vector<2x8x32xf32>
    %44 = tpu.matmul %43, %28, %cst_34 {dimension_numbers = #tpu.dot_dimension_numbers<[2], [1], [1], [2], [0, 0, 0, 1, 1, 2], [0], [0]>} : vector<2x8x8xf32>, vector<2x8x32xf32>, vector<2x8x32xf32> -> vector<2x8x32xf32>
    "tpu.trace_stop"() : () -> ()
    %45 = vector.shape_cast %44 : vector<2x8x32xf32> to vector<16x32xf32>
    %cst_35 = arith.constant dense<0.000000e+00> : vector<16x32xf32>
    %46 = tpu.matmul %45, %6, %cst_35 {dimension_numbers = #tpu.dot_dimension_numbers<[1], [0], [0], [1], [0, 0, 1, 1], [], []>} : vector<16x32xf32>, vector<32x32xf32>, vector<16x32xf32> -> vector<16x32xf32>
    %47 = vector.broadcast %7 : vector<1x32xf32> to vector<16x32xf32>
    %48 = arith.addf %46, %47 : vector<16x32xf32>
    %49 = arith.addf %3, %48 : vector<16x32xf32>
    %cst_36 = arith.constant dense<0.000000e+00> : vector<16xf32>
    %50 = vector.multi_reduction <add>, %49, %cst_36 [1] : vector<16x32xf32> to vector<16xf32>
    %51 = vector.shape_cast %50 : vector<16xf32> to vector<16x1xf32>
    %cst_37 = arith.constant 3.200000e+01 : f32
    %52 = vector.broadcast %cst_37 : f32 to vector<16x1xf32>
    %53 = arith.divf %51, %52 : vector<16x1xf32>
    %54 = vector.broadcast %53 : vector<16x1xf32> to vector<16x32xf32>
    %55 = arith.subf %49, %54 : vector<16x32xf32>
    %56 = vector.broadcast %53 : vector<16x1xf32> to vector<16x32xf32>
    %57 = arith.subf %49, %56 : vector<16x32xf32>
    %58 = arith.mulf %55, %57 : vector<16x32xf32>
    %cst_38 = arith.constant dense<0.000000e+00> : vector<16xf32>
    %59 = vector.multi_reduction <add>, %58, %cst_38 [1] : vector<16x32xf32> to vector<16xf32>
    %60 = vector.shape_cast %59 : vector<16xf32> to vector<16x1xf32>
    %cst_39 = arith.constant 3.200000e+01 : f32
    %61 = vector.broadcast %cst_39 : f32 to vector<16x1xf32>
    %62 = arith.divf %60, %61 : vector<16x1xf32>
    %63 = vector.broadcast %53 : vector<16x1xf32> to vector<16x32xf32>
    %64 = arith.subf %49, %63 : vector<16x32xf32>
    %cst_40 = arith.constant 9.99999974E-6 : f32
    %65 = vector.broadcast %cst_40 : f32 to vector<16x1xf32>
    %66 = arith.addf %62, %65 : vector<16x1xf32>
    %67 = math.sqrt %66 : vector<16x1xf32>
    %68 = vector.broadcast %67 : vector<16x1xf32> to vector<16x32xf32>
    %69 = arith.divf %64, %68 : vector<16x32xf32>
    %70 = vector.broadcast %8 : vector<1x32xf32> to vector<16x32xf32>
    %71 = arith.mulf %70, %69 : vector<16x32xf32>
    %72 = vector.broadcast %9 : vector<1x32xf32> to vector<16x32xf32>
    %73 = arith.addf %71, %72 : vector<16x32xf32>
    %cst_41 = arith.constant dense<0.000000e+00> : vector<16x128xf32>
    %74 = tpu.matmul %73, %10, %cst_41 {dimension_numbers = #tpu.dot_dimension_numbers<[1], [0], [0], [1], [0, 0, 1, 1], [], []>} : vector<16x32xf32>, vector<32x128xf32>, vector<16x128xf32> -> vector<16x128xf32>
    %75 = vector.broadcast %11 : vector<1x128xf32> to vector<16x128xf32>
    %76 = arith.addf %74, %75 : vector<16x128xf32>
    %cst_42 = arith.constant 5.000000e-01 : f32
    %77 = vector.broadcast %cst_42 : f32 to vector<16x128xf32>
    %78 = arith.mulf %77, %76 : vector<16x128xf32>
    %cst_43 = arith.constant 4.471500e-02 : f32
    %79 = vector.broadcast %cst_43 : f32 to vector<16x128xf32>
    %80 = arith.mulf %79, %76 : vector<16x128xf32>
    %81 = arith.mulf %80, %76 : vector<16x128xf32>
    %82 = arith.mulf %81, %76 : vector<16x128xf32>
    %83 = arith.addf %76, %82 : vector<16x128xf32>
    %cst_44 = arith.constant 0.797884583 : f32
    %84 = vector.broadcast %cst_44 : f32 to vector<16x128xf32>
    %85 = arith.mulf %84, %83 : vector<16x128xf32>
    %86 = math.tanh %85 : vector<16x128xf32>
    %cst_45 = arith.constant 1.000000e+00 : f32
    %87 = vector.broadcast %cst_45 : f32 to vector<16x128xf32>
    %88 = arith.addf %87, %86 : vector<16x128xf32>
    %89 = arith.mulf %78, %88 : vector<16x128xf32>
    %cst_46 = arith.constant dense<0.000000e+00> : vector<16x32xf32>
    %90 = tpu.matmul %89, %12, %cst_46 {dimension_numbers = #tpu.dot_dimension_numbers<[1], [0], [0], [1], [0, 0, 1, 1], [], []>} : vector<16x128xf32>, vector<128x32xf32>, vector<16x32xf32> -> vector<16x32xf32>
    %91 = vector.broadcast %13 : vector<1x32xf32> to vector<16x32xf32>
    %92 = arith.addf %90, %91 : vector<16x32xf32>
    %93 = arith.addf %73, %92 : vector<16x32xf32>
    %cst_47 = arith.constant dense<0.000000e+00> : vector<16xf32>
    %94 = vector.multi_reduction <add>, %93, %cst_47 [1] : vector<16x32xf32> to vector<16xf32>
    %95 = vector.shape_cast %94 : vector<16xf32> to vector<16x1xf32>
    %cst_48 = arith.constant 3.200000e+01 : f32
    %96 = vector.broadcast %cst_48 : f32 to vector<16x1xf32>
    %97 = arith.divf %95, %96 : vector<16x1xf32>
    %98 = vector.broadcast %97 : vector<16x1xf32> to vector<16x32xf32>
    %99 = arith.subf %93, %98 : vector<16x32xf32>
    %100 = vector.broadcast %97 : vector<16x1xf32> to vector<16x32xf32>
    %101 = arith.subf %93, %100 : vector<16x32xf32>
    %102 = arith.mulf %99, %101 : vector<16x32xf32>
    %cst_49 = arith.constant dense<0.000000e+00> : vector<16xf32>
    %103 = vector.multi_reduction <add>, %102, %cst_49 [1] : vector<16x32xf32> to vector<16xf32>
    %104 = vector.shape_cast %103 : vector<16xf32> to vector<16x1xf32>
    %cst_50 = arith.constant 3.200000e+01 : f32
    %105 = vector.broadcast %cst_50 : f32 to vector<16x1xf32>
    %106 = arith.divf %104, %105 : vector<16x1xf32>
    %107 = vector.broadcast %97 : vector<16x1xf32> to vector<16x32xf32>
    %108 = arith.subf %93, %107 : vector<16x32xf32>
    %cst_51 = arith.constant 9.99999974E-6 : f32
    %109 = vector.broadcast %cst_51 : f32 to vector<16x1xf32>
    %110 = arith.addf %106, %109 : vector<16x1xf32>
    %111 = math.sqrt %110 : vector<16x1xf32>
    %112 = vector.broadcast %111 : vector<16x1xf32> to vector<16x32xf32>
    %113 = arith.divf %108, %112 : vector<16x32xf32>
    %114 = vector.broadcast %14 : vector<1x32xf32> to vector<16x32xf32>
    %115 = arith.mulf %114, %113 : vector<16x32xf32>
    %116 = vector.broadcast %15 : vector<1x32xf32> to vector<16x32xf32>
    %117 = arith.addf %115, %116 : vector<16x32xf32>
    %cst_52 = arith.constant dense<0.000000e+00> : vector<16x32xf32>
    %118 = tpu.matmul %117, %16, %cst_52 {dimension_numbers = #tpu.dot_dimension_numbers<[1], [0], [0], [1], [0, 0, 1, 1], [], []>} : vector<16x32xf32>, vector<32x32xf32>, vector<16x32xf32> -> vector<16x32xf32>
    %119 = vector.broadcast %17 : vector<1x32xf32> to vector<16x32xf32>
    %120 = arith.addf %118, %119 : vector<16x32xf32>
    %121 = tpu.concatenate %3, %120 in 1 : vector<16x32xf32>, vector<16x32xf32> -> vector<16x64xf32>
    %c0_53 = arith.constant 0 : index
    %c0_54 = arith.constant 0 : index
    %122 = vector.load %arg15[%c0_53, %c0_54] : memref<64x192xf32, #tpu.memory_space<vmem>>, vector<64x192xf32>
    %c0_55 = arith.constant 0 : index
    %c0_56 = arith.constant 0 : index
    %123 = vector.load %arg16[%c0_55, %c0_56] : memref<1x192xf32, #tpu.memory_space<vmem>>, vector<1x192xf32>
    %c0_57 = arith.constant 0 : index
    %c0_58 = arith.constant 0 : index
    %124 = vector.load %arg17[%c0_57, %c0_58] : memref<64x64xf32, #tpu.memory_space<vmem>>, vector<64x64xf32>
    %c0_59 = arith.constant 0 : index
    %c0_60 = arith.constant 0 : index
    %125 = vector.load %arg18[%c0_59, %c0_60] : memref<1x64xf32, #tpu.memory_space<vmem>>, vector<1x64xf32>
    %c0_61 = arith.constant 0 : index
    %c0_62 = arith.constant 0 : index
    %126 = vector.load %arg19[%c0_61, %c0_62] : memref<1x64xf32, #tpu.memory_space<vmem>>, vector<1x64xf32>
    %c0_63 = arith.constant 0 : index
    %c0_64 = arith.constant 0 : index
    %127 = vector.load %arg20[%c0_63, %c0_64] : memref<1x64xf32, #tpu.memory_space<vmem>>, vector<1x64xf32>
    %c0_65 = arith.constant 0 : index
    %c0_66 = arith.constant 0 : index
    %128 = vector.load %arg21[%c0_65, %c0_66] : memref<64x256xf32, #tpu.memory_space<vmem>>, vector<64x256xf32>
    %c0_67 = arith.constant 0 : index
    %c0_68 = arith.constant 0 : index
    %129 = vector.load %arg22[%c0_67, %c0_68] : memref<1x256xf32, #tpu.memory_space<vmem>>, vector<1x256xf32>
    %c0_69 = arith.constant 0 : index
    %c0_70 = arith.constant 0 : index
    %130 = vector.load %arg23[%c0_69, %c0_70] : memref<256x64xf32, #tpu.memory_space<vmem>>, vector<256x64xf32>
    %c0_71 = arith.constant 0 : index
    %c0_72 = arith.constant 0 : index
    %131 = vector.load %arg24[%c0_71, %c0_72] : memref<1x64xf32, #tpu.memory_space<vmem>>, vector<1x64xf32>
    %c0_73 = arith.constant 0 : index
    %c0_74 = arith.constant 0 : index
    %132 = vector.load %arg25[%c0_73, %c0_74] : memref<1x64xf32, #tpu.memory_space<vmem>>, vector<1x64xf32>
    %c0_75 = arith.constant 0 : index
    %c0_76 = arith.constant 0 : index
    %133 = vector.load %arg26[%c0_75, %c0_76] : memref<1x64xf32, #tpu.memory_space<vmem>>, vector<1x64xf32>
    %c0_77 = arith.constant 0 : index
    %c0_78 = arith.constant 0 : index
    %134 = vector.load %arg27[%c0_77, %c0_78] : memref<64x32xf32, #tpu.memory_space<vmem>>, vector<64x32xf32>
    %c0_79 = arith.constant 0 : index
    %c0_80 = arith.constant 0 : index
    %135 = vector.load %arg28[%c0_79, %c0_80] : memref<1x32xf32, #tpu.memory_space<vmem>>, vector<1x32xf32>
    %cst_81 = arith.constant dense<0.000000e+00> : vector<16x192xf32>
    %136 = tpu.matmul %121, %122, %cst_81 {dimension_numbers = #tpu.dot_dimension_numbers<[1], [0], [0], [1], [0, 0, 1, 1], [], []>} : vector<16x64xf32>, vector<64x192xf32>, vector<16x192xf32> -> vector<16x192xf32>
    %137 = vector.broadcast %123 : vector<1x192xf32> to vector<16x192xf32>
    %138 = arith.addf %136, %137 : vector<16x192xf32>
    %139 = vector.extract_strided_slice %138 {offsets = [0, 0], sizes = [16, 64], strides = [1, 1]} : vector<16x192xf32> to vector<16x64xf32>
    %cst_82 = arith.constant 0.176776692 : f32
    %140 = vector.broadcast %cst_82 : f32 to vector<16x64xf32>
    %141 = arith.mulf %139, %140 : vector<16x64xf32>
    %142 = vector.extract_strided_slice %138 {offsets = [0, 64], sizes = [16, 64], strides = [1, 1]} : vector<16x192xf32> to vector<16x64xf32>
    %143 = vector.extract_strided_slice %138 {offsets = [0, 128], sizes = [16, 64], strides = [1, 1]} : vector<16x192xf32> to vector<16x64xf32>
    %144 = vector.extract_strided_slice %141 {offsets = [0, 0], sizes = [16, 32], strides = [1, 1]} : vector<16x64xf32> to vector<16x32xf32>
    %145 = vector.shape_cast %144 : vector<16x32xf32> to vector<2x8x32xf32>
    %146 = vector.extract_strided_slice %141 {offsets = [0, 32], sizes = [16, 32], strides = [1, 1]} : vector<16x64xf32> to vector<16x32xf32>
    %147 = vector.shape_cast %146 : vector<16x32xf32> to vector<2x8x32xf32>
    %148 = tpu.concatenate %145, %147 in 0 : vector<2x8x32xf32>, vector<2x8x32xf32> -> vector<4x8x32xf32>
    %149 = vector.extract_strided_slice %142 {offsets = [0, 0], sizes = [16, 32], strides = [1, 1]} : vector<16x64xf32> to vector<16x32xf32>
    %150 = vector.shape_cast %149 : vector<16x32xf32> to vector<2x8x32xf32>
    %151 = vector.extract_strided_slice %142 {offsets = [0, 32], sizes = [16, 32], strides = [1, 1]} : vector<16x64xf32> to vector<16x32xf32>
    %152 = vector.shape_cast %151 : vector<16x32xf32> to vector<2x8x32xf32>
    %153 = tpu.concatenate %150, %152 in 0 : vector<2x8x32xf32>, vector<2x8x32xf32> -> vector<4x8x32xf32>
    %154 = vector.extract_strided_slice %143 {offsets = [0, 0], sizes = [16, 32], strides = [1, 1]} : vector<16x64xf32> to vector<16x32xf32>
    %155 = vector.shape_cast %154 : vector<16x32xf32> to vector<2x8x32xf32>
    %156 = vector.extract_strided_slice %143 {offsets = [0, 32], sizes = [16, 32], strides = [1, 1]} : vector<16x64xf32> to vector<16x32xf32>
    %157 = vector.shape_cast %156 : vector<16x32xf32> to vector<2x8x32xf32>
    %158 = tpu.concatenate %155, %157 in 0 : vector<2x8x32xf32>, vector<2x8x32xf32> -> vector<4x8x32xf32>
    "tpu.trace_start"() <{level = 10 : i32, message = "nqd,nkd->nqk"}> : () -> ()
    %cst_83 = arith.constant dense<0.000000e+00> : vector<4x8x8xf32>
    %159 = tpu.matmul %148, %153, %cst_83 {dimension_numbers = #tpu.dot_dimension_numbers<[2], [2], [1], [1], [0, 0, 0, 1, 1, 1], [0], [0]>} : vector<4x8x32xf32>, vector<4x8x32xf32>, vector<4x8x8xf32> -> vector<4x8x8xf32>
    "tpu.trace_stop"() : () -> ()
    %160 = vector.shape_cast %2 : vector<8x8xi1> to vector<1x8x8xi1>
    %cst_84 = arith.constant -1.000000e+09 : f32
    %161 = vector.shape_cast %160 : vector<1x8x8xi1> to vector<1x8x8xi1>
    %162 = vector.broadcast %161 : vector<1x8x8xi1> to vector<4x8x8xi1>
    %163 = vector.broadcast %cst_84 : f32 to vector<4x8x8xf32>
    %164 = arith.select %162, %159, %163 : vector<4x8x8xi1>, vector<4x8x8xf32>
    %cst_85 = arith.constant dense<0xFF800000> : vector<4x8xf32>
    %165 = vector.multi_reduction <maximumf>, %164, %cst_85 [2] : vector<4x8x8xf32> to vector<4x8xf32>
    %166 = vector.shape_cast %165 : vector<4x8xf32> to vector<4x8x1xf32>
    %167 = vector.broadcast %166 : vector<4x8x1xf32> to vector<4x8x8xf32>
    %168 = arith.subf %164, %167 : vector<4x8x8xf32>
    %169 = math.exp %168 : vector<4x8x8xf32>
    %cst_86 = arith.constant dense<0.000000e+00> : vector<4x8xf32>
    %170 = vector.multi_reduction <add>, %169, %cst_86 [2] : vector<4x8x8xf32> to vector<4x8xf32>
    %171 = vector.shape_cast %170 : vector<4x8xf32> to vector<4x8x1xf32>
    %172 = vector.broadcast %171 : vector<4x8x1xf32> to vector<4x8x8xf32>
    %173 = arith.divf %169, %172 : vector<4x8x8xf32>
    "tpu.trace_start"() <{level = 10 : i32, message = "nqk,nkd->nqd"}> : () -> ()
    %cst_87 = arith.constant dense<0.000000e+00> : vector<4x8x32xf32>
    %174 = tpu.matmul %173, %158, %cst_87 {dimension_numbers = #tpu.dot_dimension_numbers<[2], [1], [1], [2], [0, 0, 0, 1, 1, 2], [0], [0]>} : vector<4x8x8xf32>, vector<4x8x32xf32>, vector<4x8x32xf32> -> vector<4x8x32xf32>
    "tpu.trace_stop"() : () -> ()
    %175 = vector.extract_strided_slice %174 {offsets = [0, 0, 0], sizes = [2, 8, 32], strides = [1, 1, 1]} : vector<4x8x32xf32> to vector<2x8x32xf32>
    %176 = vector.shape_cast %175 : vector<2x8x32xf32> to vector<16x32xf32>
    %177 = vector.extract_strided_slice %174 {offsets = [2, 0, 0], sizes = [2, 8, 32], strides = [1, 1, 1]} : vector<4x8x32xf32> to vector<2x8x32xf32>
    %178 = vector.shape_cast %177 : vector<2x8x32xf32> to vector<16x32xf32>
    %179 = tpu.concatenate %176, %178 in 1 : vector<16x32xf32>, vector<16x32xf32> -> vector<16x64xf32>
    %cst_88 = arith.constant dense<0.000000e+00> : vector<16x64xf32>
    %180 = tpu.matmul %179, %124, %cst_88 {dimension_numbers = #tpu.dot_dimension_numbers<[1], [0], [0], [1], [0, 0, 1, 1], [], []>} : vector<16x64xf32>, vector<64x64xf32>, vector<16x64xf32> -> vector<16x64xf32>
    %181 = vector.broadcast %125 : vector<1x64xf32> to vector<16x64xf32>
    %182 = arith.addf %180, %181 : vector<16x64xf32>
    %183 = arith.addf %121, %182 : vector<16x64xf32>
    %cst_89 = arith.constant dense<0.000000e+00> : vector<16xf32>
    %184 = vector.multi_reduction <add>, %183, %cst_89 [1] : vector<16x64xf32> to vector<16xf32>
    %185 = vector.shape_cast %184 : vector<16xf32> to vector<16x1xf32>
    %cst_90 = arith.constant 6.400000e+01 : f32
    %186 = vector.broadcast %cst_90 : f32 to vector<16x1xf32>
    %187 = arith.divf %185, %186 : vector<16x1xf32>
    %188 = vector.broadcast %187 : vector<16x1xf32> to vector<16x64xf32>
    %189 = arith.subf %183, %188 : vector<16x64xf32>
    %190 = vector.broadcast %187 : vector<16x1xf32> to vector<16x64xf32>
    %191 = arith.subf %183, %190 : vector<16x64xf32>
    %192 = arith.mulf %189, %191 : vector<16x64xf32>
    %cst_91 = arith.constant dense<0.000000e+00> : vector<16xf32>
    %193 = vector.multi_reduction <add>, %192, %cst_91 [1] : vector<16x64xf32> to vector<16xf32>
    %194 = vector.shape_cast %193 : vector<16xf32> to vector<16x1xf32>
    %cst_92 = arith.constant 6.400000e+01 : f32
    %195 = vector.broadcast %cst_92 : f32 to vector<16x1xf32>
    %196 = arith.divf %194, %195 : vector<16x1xf32>
    %197 = vector.broadcast %187 : vector<16x1xf32> to vector<16x64xf32>
    %198 = arith.subf %183, %197 : vector<16x64xf32>
    %cst_93 = arith.constant 9.99999974E-6 : f32
    %199 = vector.broadcast %cst_93 : f32 to vector<16x1xf32>
    %200 = arith.addf %196, %199 : vector<16x1xf32>
    %201 = math.sqrt %200 : vector<16x1xf32>
    %202 = vector.broadcast %201 : vector<16x1xf32> to vector<16x64xf32>
    %203 = arith.divf %198, %202 : vector<16x64xf32>
    %204 = vector.broadcast %126 : vector<1x64xf32> to vector<16x64xf32>
    %205 = arith.mulf %204, %203 : vector<16x64xf32>
    %206 = vector.broadcast %127 : vector<1x64xf32> to vector<16x64xf32>
    %207 = arith.addf %205, %206 : vector<16x64xf32>
    %cst_94 = arith.constant dense<0.000000e+00> : vector<16x256xf32>
    %208 = tpu.matmul %207, %128, %cst_94 {dimension_numbers = #tpu.dot_dimension_numbers<[1], [0], [0], [1], [0, 0, 1, 1], [], []>} : vector<16x64xf32>, vector<64x256xf32>, vector<16x256xf32> -> vector<16x256xf32>
    %209 = vector.broadcast %129 : vector<1x256xf32> to vector<16x256xf32>
    %210 = arith.addf %208, %209 : vector<16x256xf32>
    %cst_95 = arith.constant 5.000000e-01 : f32
    %211 = vector.broadcast %cst_95 : f32 to vector<16x256xf32>
    %212 = arith.mulf %211, %210 : vector<16x256xf32>
    %cst_96 = arith.constant 4.471500e-02 : f32
    %213 = vector.broadcast %cst_96 : f32 to vector<16x256xf32>
    %214 = arith.mulf %213, %210 : vector<16x256xf32>
    %215 = arith.mulf %214, %210 : vector<16x256xf32>
    %216 = arith.mulf %215, %210 : vector<16x256xf32>
    %217 = arith.addf %210, %216 : vector<16x256xf32>
    %cst_97 = arith.constant 0.797884583 : f32
    %218 = vector.broadcast %cst_97 : f32 to vector<16x256xf32>
    %219 = arith.mulf %218, %217 : vector<16x256xf32>
    %220 = math.tanh %219 : vector<16x256xf32>
    %cst_98 = arith.constant 1.000000e+00 : f32
    %221 = vector.broadcast %cst_98 : f32 to vector<16x256xf32>
    %222 = arith.addf %221, %220 : vector<16x256xf32>
    %223 = arith.mulf %212, %222 : vector<16x256xf32>
    %cst_99 = arith.constant dense<0.000000e+00> : vector<16x64xf32>
    %224 = tpu.matmul %223, %130, %cst_99 {dimension_numbers = #tpu.dot_dimension_numbers<[1], [0], [0], [1], [0, 0, 1, 1], [], []>} : vector<16x256xf32>, vector<256x64xf32>, vector<16x64xf32> -> vector<16x64xf32>
    %225 = vector.broadcast %131 : vector<1x64xf32> to vector<16x64xf32>
    %226 = arith.addf %224, %225 : vector<16x64xf32>
    %227 = arith.addf %207, %226 : vector<16x64xf32>
    %cst_100 = arith.constant dense<0.000000e+00> : vector<16xf32>
    %228 = vector.multi_reduction <add>, %227, %cst_100 [1] : vector<16x64xf32> to vector<16xf32>
    %229 = vector.shape_cast %228 : vector<16xf32> to vector<16x1xf32>
    %cst_101 = arith.constant 6.400000e+01 : f32
    %230 = vector.broadcast %cst_101 : f32 to vector<16x1xf32>
    %231 = arith.divf %229, %230 : vector<16x1xf32>
    %232 = vector.broadcast %231 : vector<16x1xf32> to vector<16x64xf32>
    %233 = arith.subf %227, %232 : vector<16x64xf32>
    %234 = vector.broadcast %231 : vector<16x1xf32> to vector<16x64xf32>
    %235 = arith.subf %227, %234 : vector<16x64xf32>
    %236 = arith.mulf %233, %235 : vector<16x64xf32>
    %cst_102 = arith.constant dense<0.000000e+00> : vector<16xf32>
    %237 = vector.multi_reduction <add>, %236, %cst_102 [1] : vector<16x64xf32> to vector<16xf32>
    %238 = vector.shape_cast %237 : vector<16xf32> to vector<16x1xf32>
    %cst_103 = arith.constant 6.400000e+01 : f32
    %239 = vector.broadcast %cst_103 : f32 to vector<16x1xf32>
    %240 = arith.divf %238, %239 : vector<16x1xf32>
    %241 = vector.broadcast %231 : vector<16x1xf32> to vector<16x64xf32>
    %242 = arith.subf %227, %241 : vector<16x64xf32>
    %cst_104 = arith.constant 9.99999974E-6 : f32
    %243 = vector.broadcast %cst_104 : f32 to vector<16x1xf32>
    %244 = arith.addf %240, %243 : vector<16x1xf32>
    %245 = math.sqrt %244 : vector<16x1xf32>
    %246 = vector.broadcast %245 : vector<16x1xf32> to vector<16x64xf32>
    %247 = arith.divf %242, %246 : vector<16x64xf32>
    %248 = vector.broadcast %132 : vector<1x64xf32> to vector<16x64xf32>
    %249 = arith.mulf %248, %247 : vector<16x64xf32>
    %250 = vector.broadcast %133 : vector<1x64xf32> to vector<16x64xf32>
    %251 = arith.addf %249, %250 : vector<16x64xf32>
    %cst_105 = arith.constant dense<0.000000e+00> : vector<16x32xf32>
    %252 = tpu.matmul %251, %134, %cst_105 {dimension_numbers = #tpu.dot_dimension_numbers<[1], [0], [0], [1], [0, 0, 1, 1], [], []>} : vector<16x64xf32>, vector<64x32xf32>, vector<16x32xf32> -> vector<16x32xf32>
    %253 = vector.broadcast %135 : vector<1x32xf32> to vector<16x32xf32>
    %254 = arith.addf %252, %253 : vector<16x32xf32>
    %255 = tpu.concatenate %121, %254 in 1 : vector<16x64xf32>, vector<16x32xf32> -> vector<16x96xf32>
    %c0_106 = arith.constant 0 : index
    %c0_107 = arith.constant 0 : index
    %256 = vector.load %arg29[%c0_106, %c0_107] : memref<96x288xf32, #tpu.memory_space<vmem>>, vector<96x288xf32>
    %c0_108 = arith.constant 0 : index
    %c0_109 = arith.constant 0 : index
    %257 = vector.load %arg30[%c0_108, %c0_109] : memref<1x288xf32, #tpu.memory_space<vmem>>, vector<1x288xf32>
    %c0_110 = arith.constant 0 : index
    %c0_111 = arith.constant 0 : index
    %258 = vector.load %arg31[%c0_110, %c0_111] : memref<96x96xf32, #tpu.memory_space<vmem>>, vector<96x96xf32>
    %c0_112 = arith.constant 0 : index
    %c0_113 = arith.constant 0 : index
    %259 = vector.load %arg32[%c0_112, %c0_113] : memref<1x96xf32, #tpu.memory_space<vmem>>, vector<1x96xf32>
    %c0_114 = arith.constant 0 : index
    %c0_115 = arith.constant 0 : index
    %260 = vector.load %arg33[%c0_114, %c0_115] : memref<1x96xf32, #tpu.memory_space<vmem>>, vector<1x96xf32>
    %c0_116 = arith.constant 0 : index
    %c0_117 = arith.constant 0 : index
    %261 = vector.load %arg34[%c0_116, %c0_117] : memref<1x96xf32, #tpu.memory_space<vmem>>, vector<1x96xf32>
    %c0_118 = arith.constant 0 : index
    %c0_119 = arith.constant 0 : index
    %262 = vector.load %arg35[%c0_118, %c0_119] : memref<96x384xf32, #tpu.memory_space<vmem>>, vector<96x384xf32>
    %c0_120 = arith.constant 0 : index
    %c0_121 = arith.constant 0 : index
    %263 = vector.load %arg36[%c0_120, %c0_121] : memref<1x384xf32, #tpu.memory_space<vmem>>, vector<1x384xf32>
    %c0_122 = arith.constant 0 : index
    %c0_123 = arith.constant 0 : index
    %264 = vector.load %arg37[%c0_122, %c0_123] : memref<384x96xf32, #tpu.memory_space<vmem>>, vector<384x96xf32>
    %c0_124 = arith.constant 0 : index
    %c0_125 = arith.constant 0 : index
    %265 = vector.load %arg38[%c0_124, %c0_125] : memref<1x96xf32, #tpu.memory_space<vmem>>, vector<1x96xf32>
    %c0_126 = arith.constant 0 : index
    %c0_127 = arith.constant 0 : index
    %266 = vector.load %arg39[%c0_126, %c0_127] : memref<1x96xf32, #tpu.memory_space<vmem>>, vector<1x96xf32>
    %c0_128 = arith.constant 0 : index
    %c0_129 = arith.constant 0 : index
    %267 = vector.load %arg40[%c0_128, %c0_129] : memref<1x96xf32, #tpu.memory_space<vmem>>, vector<1x96xf32>
    %c0_130 = arith.constant 0 : index
    %c0_131 = arith.constant 0 : index
    %268 = vector.load %arg41[%c0_130, %c0_131] : memref<96x64xf32, #tpu.memory_space<vmem>>, vector<96x64xf32>
    %c0_132 = arith.constant 0 : index
    %c0_133 = arith.constant 0 : index
    %269 = vector.load %arg42[%c0_132, %c0_133] : memref<1x64xf32, #tpu.memory_space<vmem>>, vector<1x64xf32>
    %cst_134 = arith.constant dense<0.000000e+00> : vector<16x288xf32>
    %270 = tpu.matmul %255, %256, %cst_134 {dimension_numbers = #tpu.dot_dimension_numbers<[1], [0], [0], [1], [0, 0, 1, 1], [], []>} : vector<16x96xf32>, vector<96x288xf32>, vector<16x288xf32> -> vector<16x288xf32>
    %271 = vector.broadcast %257 : vector<1x288xf32> to vector<16x288xf32>
    %272 = arith.addf %270, %271 : vector<16x288xf32>
    %273 = vector.extract_strided_slice %272 {offsets = [0, 0], sizes = [16, 96], strides = [1, 1]} : vector<16x288xf32> to vector<16x96xf32>
    %cst_135 = arith.constant 0.176776692 : f32
    %274 = vector.broadcast %cst_135 : f32 to vector<16x96xf32>
    %275 = arith.mulf %273, %274 : vector<16x96xf32>
    %276 = vector.extract_strided_slice %272 {offsets = [0, 96], sizes = [16, 96], strides = [1, 1]} : vector<16x288xf32> to vector<16x96xf32>
    %277 = vector.extract_strided_slice %272 {offsets = [0, 192], sizes = [16, 96], strides = [1, 1]} : vector<16x288xf32> to vector<16x96xf32>
    %278 = vector.extract_strided_slice %275 {offsets = [0, 0], sizes = [16, 32], strides = [1, 1]} : vector<16x96xf32> to vector<16x32xf32>
    %279 = vector.shape_cast %278 : vector<16x32xf32> to vector<2x8x32xf32>
    %280 = vector.extract_strided_slice %275 {offsets = [0, 32], sizes = [16, 32], strides = [1, 1]} : vector<16x96xf32> to vector<16x32xf32>
    %281 = vector.shape_cast %280 : vector<16x32xf32> to vector<2x8x32xf32>
    %282 = vector.extract_strided_slice %275 {offsets = [0, 64], sizes = [16, 32], strides = [1, 1]} : vector<16x96xf32> to vector<16x32xf32>
    %283 = vector.shape_cast %282 : vector<16x32xf32> to vector<2x8x32xf32>
    %284 = tpu.concatenate %279, %281, %283 in 0 : vector<2x8x32xf32>, vector<2x8x32xf32>, vector<2x8x32xf32> -> vector<6x8x32xf32>
    %285 = vector.extract_strided_slice %276 {offsets = [0, 0], sizes = [16, 32], strides = [1, 1]} : vector<16x96xf32> to vector<16x32xf32>
    %286 = vector.shape_cast %285 : vector<16x32xf32> to vector<2x8x32xf32>
    %287 = vector.extract_strided_slice %276 {offsets = [0, 32], sizes = [16, 32], strides = [1, 1]} : vector<16x96xf32> to vector<16x32xf32>
    %288 = vector.shape_cast %287 : vector<16x32xf32> to vector<2x8x32xf32>
    %289 = vector.extract_strided_slice %276 {offsets = [0, 64], sizes = [16, 32], strides = [1, 1]} : vector<16x96xf32> to vector<16x32xf32>
    %290 = vector.shape_cast %289 : vector<16x32xf32> to vector<2x8x32xf32>
    %291 = tpu.concatenate %286, %288, %290 in 0 : vector<2x8x32xf32>, vector<2x8x32xf32>, vector<2x8x32xf32> -> vector<6x8x32xf32>
    %292 = vector.extract_strided_slice %277 {offsets = [0, 0], sizes = [16, 32], strides = [1, 1]} : vector<16x96xf32> to vector<16x32xf32>
    %293 = vector.shape_cast %292 : vector<16x32xf32> to vector<2x8x32xf32>
    %294 = vector.extract_strided_slice %277 {offsets = [0, 32], sizes = [16, 32], strides = [1, 1]} : vector<16x96xf32> to vector<16x32xf32>
    %295 = vector.shape_cast %294 : vector<16x32xf32> to vector<2x8x32xf32>
    %296 = vector.extract_strided_slice %277 {offsets = [0, 64], sizes = [16, 32], strides = [1, 1]} : vector<16x96xf32> to vector<16x32xf32>
    %297 = vector.shape_cast %296 : vector<16x32xf32> to vector<2x8x32xf32>
    %298 = tpu.concatenate %293, %295, %297 in 0 : vector<2x8x32xf32>, vector<2x8x32xf32>, vector<2x8x32xf32> -> vector<6x8x32xf32>
    "tpu.trace_start"() <{level = 10 : i32, message = "nqd,nkd->nqk"}> : () -> ()
    %cst_136 = arith.constant dense<0.000000e+00> : vector<6x8x8xf32>
    %299 = tpu.matmul %284, %291, %cst_136 {dimension_numbers = #tpu.dot_dimension_numbers<[2], [2], [1], [1], [0, 0, 0, 1, 1, 1], [0], [0]>} : vector<6x8x32xf32>, vector<6x8x32xf32>, vector<6x8x8xf32> -> vector<6x8x8xf32>
    "tpu.trace_stop"() : () -> ()
    %300 = vector.shape_cast %2 : vector<8x8xi1> to vector<1x8x8xi1>
    %cst_137 = arith.constant -1.000000e+09 : f32
    %301 = vector.shape_cast %300 : vector<1x8x8xi1> to vector<1x8x8xi1>
    %302 = vector.broadcast %301 : vector<1x8x8xi1> to vector<6x8x8xi1>
    %303 = vector.broadcast %cst_137 : f32 to vector<6x8x8xf32>
    %304 = arith.select %302, %299, %303 : vector<6x8x8xi1>, vector<6x8x8xf32>
    %cst_138 = arith.constant dense<0xFF800000> : vector<6x8xf32>
    %305 = vector.multi_reduction <maximumf>, %304, %cst_138 [2] : vector<6x8x8xf32> to vector<6x8xf32>
    %306 = vector.shape_cast %305 : vector<6x8xf32> to vector<6x8x1xf32>
    %307 = vector.broadcast %306 : vector<6x8x1xf32> to vector<6x8x8xf32>
    %308 = arith.subf %304, %307 : vector<6x8x8xf32>
    %309 = math.exp %308 : vector<6x8x8xf32>
    %cst_139 = arith.constant dense<0.000000e+00> : vector<6x8xf32>
    %310 = vector.multi_reduction <add>, %309, %cst_139 [2] : vector<6x8x8xf32> to vector<6x8xf32>
    %311 = vector.shape_cast %310 : vector<6x8xf32> to vector<6x8x1xf32>
    %312 = vector.broadcast %311 : vector<6x8x1xf32> to vector<6x8x8xf32>
    %313 = arith.divf %309, %312 : vector<6x8x8xf32>
    "tpu.trace_start"() <{level = 10 : i32, message = "nqk,nkd->nqd"}> : () -> ()
    %cst_140 = arith.constant dense<0.000000e+00> : vector<6x8x32xf32>
    %314 = tpu.matmul %313, %298, %cst_140 {dimension_numbers = #tpu.dot_dimension_numbers<[2], [1], [1], [2], [0, 0, 0, 1, 1, 2], [0], [0]>} : vector<6x8x8xf32>, vector<6x8x32xf32>, vector<6x8x32xf32> -> vector<6x8x32xf32>
    "tpu.trace_stop"() : () -> ()
    %315 = vector.extract_strided_slice %314 {offsets = [0, 0, 0], sizes = [2, 8, 32], strides = [1, 1, 1]} : vector<6x8x32xf32> to vector<2x8x32xf32>
    %316 = vector.shape_cast %315 : vector<2x8x32xf32> to vector<16x32xf32>
    %317 = vector.extract_strided_slice %314 {offsets = [2, 0, 0], sizes = [2, 8, 32], strides = [1, 1, 1]} : vector<6x8x32xf32> to vector<2x8x32xf32>
    %318 = vector.shape_cast %317 : vector<2x8x32xf32> to vector<16x32xf32>
    %319 = vector.extract_strided_slice %314 {offsets = [4, 0, 0], sizes = [2, 8, 32], strides = [1, 1, 1]} : vector<6x8x32xf32> to vector<2x8x32xf32>
    %320 = vector.shape_cast %319 : vector<2x8x32xf32> to vector<16x32xf32>
    %321 = tpu.concatenate %316, %318, %320 in 1 : vector<16x32xf32>, vector<16x32xf32>, vector<16x32xf32> -> vector<16x96xf32>
    %cst_141 = arith.constant dense<0.000000e+00> : vector<16x96xf32>
    %322 = tpu.matmul %321, %258, %cst_141 {dimension_numbers = #tpu.dot_dimension_numbers<[1], [0], [0], [1], [0, 0, 1, 1], [], []>} : vector<16x96xf32>, vector<96x96xf32>, vector<16x96xf32> -> vector<16x96xf32>
    %323 = vector.broadcast %259 : vector<1x96xf32> to vector<16x96xf32>
    %324 = arith.addf %322, %323 : vector<16x96xf32>
    %325 = arith.addf %255, %324 : vector<16x96xf32>
    %cst_142 = arith.constant dense<0.000000e+00> : vector<16xf32>
    %326 = vector.multi_reduction <add>, %325, %cst_142 [1] : vector<16x96xf32> to vector<16xf32>
    %327 = vector.shape_cast %326 : vector<16xf32> to vector<16x1xf32>
    %cst_143 = arith.constant 9.600000e+01 : f32
    %328 = vector.broadcast %cst_143 : f32 to vector<16x1xf32>
    %329 = arith.divf %327, %328 : vector<16x1xf32>
    %330 = vector.broadcast %329 : vector<16x1xf32> to vector<16x96xf32>
    %331 = arith.subf %325, %330 : vector<16x96xf32>
    %332 = vector.broadcast %329 : vector<16x1xf32> to vector<16x96xf32>
    %333 = arith.subf %325, %332 : vector<16x96xf32>
    %334 = arith.mulf %331, %333 : vector<16x96xf32>
    %cst_144 = arith.constant dense<0.000000e+00> : vector<16xf32>
    %335 = vector.multi_reduction <add>, %334, %cst_144 [1] : vector<16x96xf32> to vector<16xf32>
    %336 = vector.shape_cast %335 : vector<16xf32> to vector<16x1xf32>
    %cst_145 = arith.constant 9.600000e+01 : f32
    %337 = vector.broadcast %cst_145 : f32 to vector<16x1xf32>
    %338 = arith.divf %336, %337 : vector<16x1xf32>
    %339 = vector.broadcast %329 : vector<16x1xf32> to vector<16x96xf32>
    %340 = arith.subf %325, %339 : vector<16x96xf32>
    %cst_146 = arith.constant 9.99999974E-6 : f32
    %341 = vector.broadcast %cst_146 : f32 to vector<16x1xf32>
    %342 = arith.addf %338, %341 : vector<16x1xf32>
    %343 = math.sqrt %342 : vector<16x1xf32>
    %344 = vector.broadcast %343 : vector<16x1xf32> to vector<16x96xf32>
    %345 = arith.divf %340, %344 : vector<16x96xf32>
    %346 = vector.broadcast %260 : vector<1x96xf32> to vector<16x96xf32>
    %347 = arith.mulf %346, %345 : vector<16x96xf32>
    %348 = vector.broadcast %261 : vector<1x96xf32> to vector<16x96xf32>
    %349 = arith.addf %347, %348 : vector<16x96xf32>
    %cst_147 = arith.constant dense<0.000000e+00> : vector<16x384xf32>
    %350 = tpu.matmul %349, %262, %cst_147 {dimension_numbers = #tpu.dot_dimension_numbers<[1], [0], [0], [1], [0, 0, 1, 1], [], []>} : vector<16x96xf32>, vector<96x384xf32>, vector<16x384xf32> -> vector<16x384xf32>
    %351 = vector.broadcast %263 : vector<1x384xf32> to vector<16x384xf32>
    %352 = arith.addf %350, %351 : vector<16x384xf32>
    %cst_148 = arith.constant 5.000000e-01 : f32
    %353 = vector.broadcast %cst_148 : f32 to vector<16x384xf32>
    %354 = arith.mulf %353, %352 : vector<16x384xf32>
    %cst_149 = arith.constant 4.471500e-02 : f32
    %355 = vector.broadcast %cst_149 : f32 to vector<16x384xf32>
    %356 = arith.mulf %355, %352 : vector<16x384xf32>
    %357 = arith.mulf %356, %352 : vector<16x384xf32>
    %358 = arith.mulf %357, %352 : vector<16x384xf32>
    %359 = arith.addf %352, %358 : vector<16x384xf32>
    %cst_150 = arith.constant 0.797884583 : f32
    %360 = vector.broadcast %cst_150 : f32 to vector<16x384xf32>
    %361 = arith.mulf %360, %359 : vector<16x384xf32>
    %362 = math.tanh %361 : vector<16x384xf32>
    %cst_151 = arith.constant 1.000000e+00 : f32
    %363 = vector.broadcast %cst_151 : f32 to vector<16x384xf32>
    %364 = arith.addf %363, %362 : vector<16x384xf32>
    %365 = arith.mulf %354, %364 : vector<16x384xf32>
    %cst_152 = arith.constant dense<0.000000e+00> : vector<16x96xf32>
    %366 = tpu.matmul %365, %264, %cst_152 {dimension_numbers = #tpu.dot_dimension_numbers<[1], [0], [0], [1], [0, 0, 1, 1], [], []>} : vector<16x384xf32>, vector<384x96xf32>, vector<16x96xf32> -> vector<16x96xf32>
    %367 = vector.broadcast %265 : vector<1x96xf32> to vector<16x96xf32>
    %368 = arith.addf %366, %367 : vector<16x96xf32>
    %369 = arith.addf %349, %368 : vector<16x96xf32>
    %cst_153 = arith.constant dense<0.000000e+00> : vector<16xf32>
    %370 = vector.multi_reduction <add>, %369, %cst_153 [1] : vector<16x96xf32> to vector<16xf32>
    %371 = vector.shape_cast %370 : vector<16xf32> to vector<16x1xf32>
    %cst_154 = arith.constant 9.600000e+01 : f32
    %372 = vector.broadcast %cst_154 : f32 to vector<16x1xf32>
    %373 = arith.divf %371, %372 : vector<16x1xf32>
    %374 = vector.broadcast %373 : vector<16x1xf32> to vector<16x96xf32>
    %375 = arith.subf %369, %374 : vector<16x96xf32>
    %376 = vector.broadcast %373 : vector<16x1xf32> to vector<16x96xf32>
    %377 = arith.subf %369, %376 : vector<16x96xf32>
    %378 = arith.mulf %375, %377 : vector<16x96xf32>
    %cst_155 = arith.constant dense<0.000000e+00> : vector<16xf32>
    %379 = vector.multi_reduction <add>, %378, %cst_155 [1] : vector<16x96xf32> to vector<16xf32>
    %380 = vector.shape_cast %379 : vector<16xf32> to vector<16x1xf32>
    %cst_156 = arith.constant 9.600000e+01 : f32
    %381 = vector.broadcast %cst_156 : f32 to vector<16x1xf32>
    %382 = arith.divf %380, %381 : vector<16x1xf32>
    %383 = vector.broadcast %373 : vector<16x1xf32> to vector<16x96xf32>
    %384 = arith.subf %369, %383 : vector<16x96xf32>
    %cst_157 = arith.constant 9.99999974E-6 : f32
    %385 = vector.broadcast %cst_157 : f32 to vector<16x1xf32>
    %386 = arith.addf %382, %385 : vector<16x1xf32>
    %387 = math.sqrt %386 : vector<16x1xf32>
    %388 = vector.broadcast %387 : vector<16x1xf32> to vector<16x96xf32>
    %389 = arith.divf %384, %388 : vector<16x96xf32>
    %390 = vector.broadcast %266 : vector<1x96xf32> to vector<16x96xf32>
    %391 = arith.mulf %390, %389 : vector<16x96xf32>
    %392 = vector.broadcast %267 : vector<1x96xf32> to vector<16x96xf32>
    %393 = arith.addf %391, %392 : vector<16x96xf32>
    %cst_158 = arith.constant dense<0.000000e+00> : vector<16x64xf32>
    %394 = tpu.matmul %393, %268, %cst_158 {dimension_numbers = #tpu.dot_dimension_numbers<[1], [0], [0], [1], [0, 0, 1, 1], [], []>} : vector<16x96xf32>, vector<96x64xf32>, vector<16x64xf32> -> vector<16x64xf32>
    %395 = vector.broadcast %269 : vector<1x64xf32> to vector<16x64xf32>
    %396 = arith.addf %394, %395 : vector<16x64xf32>
    %c0_159 = arith.constant 0 : index
    %c0_160 = arith.constant 0 : index
    %397 = vector.load %arg43[%c0_159, %c0_160] : memref<64x192xf32, #tpu.memory_space<vmem>>, vector<64x192xf32>
    %c0_161 = arith.constant 0 : index
    %c0_162 = arith.constant 0 : index
    %398 = vector.load %arg44[%c0_161, %c0_162] : memref<1x192xf32, #tpu.memory_space<vmem>>, vector<1x192xf32>
    %c0_163 = arith.constant 0 : index
    %c0_164 = arith.constant 0 : index
    %399 = vector.load %arg45[%c0_163, %c0_164] : memref<64x64xf32, #tpu.memory_space<vmem>>, vector<64x64xf32>
    %c0_165 = arith.constant 0 : index
    %c0_166 = arith.constant 0 : index
    %400 = vector.load %arg46[%c0_165, %c0_166] : memref<1x64xf32, #tpu.memory_space<vmem>>, vector<1x64xf32>
    %c0_167 = arith.constant 0 : index
    %c0_168 = arith.constant 0 : index
    %401 = vector.load %arg47[%c0_167, %c0_168] : memref<1x64xf32, #tpu.memory_space<vmem>>, vector<1x64xf32>
    %c0_169 = arith.constant 0 : index
    %c0_170 = arith.constant 0 : index
    %402 = vector.load %arg48[%c0_169, %c0_170] : memref<1x64xf32, #tpu.memory_space<vmem>>, vector<1x64xf32>
    %c0_171 = arith.constant 0 : index
    %c0_172 = arith.constant 0 : index
    %403 = vector.load %arg49[%c0_171, %c0_172] : memref<64x256xf32, #tpu.memory_space<vmem>>, vector<64x256xf32>
    %c0_173 = arith.constant 0 : index
    %c0_174 = arith.constant 0 : index
    %404 = vector.load %arg50[%c0_173, %c0_174] : memref<1x256xf32, #tpu.memory_space<vmem>>, vector<1x256xf32>
    %c0_175 = arith.constant 0 : index
    %c0_176 = arith.constant 0 : index
    %405 = vector.load %arg51[%c0_175, %c0_176] : memref<256x64xf32, #tpu.memory_space<vmem>>, vector<256x64xf32>
    %c0_177 = arith.constant 0 : index
    %c0_178 = arith.constant 0 : index
    %406 = vector.load %arg52[%c0_177, %c0_178] : memref<1x64xf32, #tpu.memory_space<vmem>>, vector<1x64xf32>
    %c0_179 = arith.constant 0 : index
    %c0_180 = arith.constant 0 : index
    %407 = vector.load %arg53[%c0_179, %c0_180] : memref<1x64xf32, #tpu.memory_space<vmem>>, vector<1x64xf32>
    %c0_181 = arith.constant 0 : index
    %c0_182 = arith.constant 0 : index
    %408 = vector.load %arg54[%c0_181, %c0_182] : memref<1x64xf32, #tpu.memory_space<vmem>>, vector<1x64xf32>
    %c0_183 = arith.constant 0 : index
    %c0_184 = arith.constant 0 : index
    %409 = vector.load %arg55[%c0_183, %c0_184] : memref<64x32xf32, #tpu.memory_space<vmem>>, vector<64x32xf32>
    %c0_185 = arith.constant 0 : index
    %c0_186 = arith.constant 0 : index
    %410 = vector.load %arg56[%c0_185, %c0_186] : memref<1x32xf32, #tpu.memory_space<vmem>>, vector<1x32xf32>
    %cst_187 = arith.constant dense<0.000000e+00> : vector<16x192xf32>
    %411 = tpu.matmul %396, %397, %cst_187 {dimension_numbers = #tpu.dot_dimension_numbers<[1], [0], [0], [1], [0, 0, 1, 1], [], []>} : vector<16x64xf32>, vector<64x192xf32>, vector<16x192xf32> -> vector<16x192xf32>
    %412 = vector.broadcast %398 : vector<1x192xf32> to vector<16x192xf32>
    %413 = arith.addf %411, %412 : vector<16x192xf32>
    %414 = vector.extract_strided_slice %413 {offsets = [0, 0], sizes = [16, 64], strides = [1, 1]} : vector<16x192xf32> to vector<16x64xf32>
    %cst_188 = arith.constant 0.176776692 : f32
    %415 = vector.broadcast %cst_188 : f32 to vector<16x64xf32>
    %416 = arith.mulf %414, %415 : vector<16x64xf32>
    %417 = vector.extract_strided_slice %413 {offsets = [0, 64], sizes = [16, 64], strides = [1, 1]} : vector<16x192xf32> to vector<16x64xf32>
    %418 = vector.extract_strided_slice %413 {offsets = [0, 128], sizes = [16, 64], strides = [1, 1]} : vector<16x192xf32> to vector<16x64xf32>
    %419 = vector.extract_strided_slice %416 {offsets = [0, 0], sizes = [16, 32], strides = [1, 1]} : vector<16x64xf32> to vector<16x32xf32>
    %420 = vector.shape_cast %419 : vector<16x32xf32> to vector<2x8x32xf32>
    %421 = vector.extract_strided_slice %416 {offsets = [0, 32], sizes = [16, 32], strides = [1, 1]} : vector<16x64xf32> to vector<16x32xf32>
    %422 = vector.shape_cast %421 : vector<16x32xf32> to vector<2x8x32xf32>
    %423 = tpu.concatenate %420, %422 in 0 : vector<2x8x32xf32>, vector<2x8x32xf32> -> vector<4x8x32xf32>
    %424 = vector.extract_strided_slice %417 {offsets = [0, 0], sizes = [16, 32], strides = [1, 1]} : vector<16x64xf32> to vector<16x32xf32>
    %425 = vector.shape_cast %424 : vector<16x32xf32> to vector<2x8x32xf32>
    %426 = vector.extract_strided_slice %417 {offsets = [0, 32], sizes = [16, 32], strides = [1, 1]} : vector<16x64xf32> to vector<16x32xf32>
    %427 = vector.shape_cast %426 : vector<16x32xf32> to vector<2x8x32xf32>
    %428 = tpu.concatenate %425, %427 in 0 : vector<2x8x32xf32>, vector<2x8x32xf32> -> vector<4x8x32xf32>
    %429 = vector.extract_strided_slice %418 {offsets = [0, 0], sizes = [16, 32], strides = [1, 1]} : vector<16x64xf32> to vector<16x32xf32>
    %430 = vector.shape_cast %429 : vector<16x32xf32> to vector<2x8x32xf32>
    %431 = vector.extract_strided_slice %418 {offsets = [0, 32], sizes = [16, 32], strides = [1, 1]} : vector<16x64xf32> to vector<16x32xf32>
    %432 = vector.shape_cast %431 : vector<16x32xf32> to vector<2x8x32xf32>
    %433 = tpu.concatenate %430, %432 in 0 : vector<2x8x32xf32>, vector<2x8x32xf32> -> vector<4x8x32xf32>
    "tpu.trace_start"() <{level = 10 : i32, message = "nqd,nkd->nqk"}> : () -> ()
    %cst_189 = arith.constant dense<0.000000e+00> : vector<4x8x8xf32>
    %434 = tpu.matmul %423, %428, %cst_189 {dimension_numbers = #tpu.dot_dimension_numbers<[2], [2], [1], [1], [0, 0, 0, 1, 1, 1], [0], [0]>} : vector<4x8x32xf32>, vector<4x8x32xf32>, vector<4x8x8xf32> -> vector<4x8x8xf32>
    "tpu.trace_stop"() : () -> ()
    %435 = vector.shape_cast %2 : vector<8x8xi1> to vector<1x8x8xi1>
    %cst_190 = arith.constant -1.000000e+09 : f32
    %436 = vector.shape_cast %435 : vector<1x8x8xi1> to vector<1x8x8xi1>
    %437 = vector.broadcast %436 : vector<1x8x8xi1> to vector<4x8x8xi1>
    %438 = vector.broadcast %cst_190 : f32 to vector<4x8x8xf32>
    %439 = arith.select %437, %434, %438 : vector<4x8x8xi1>, vector<4x8x8xf32>
    %cst_191 = arith.constant dense<0xFF800000> : vector<4x8xf32>
    %440 = vector.multi_reduction <maximumf>, %439, %cst_191 [2] : vector<4x8x8xf32> to vector<4x8xf32>
    %441 = vector.shape_cast %440 : vector<4x8xf32> to vector<4x8x1xf32>
    %442 = vector.broadcast %441 : vector<4x8x1xf32> to vector<4x8x8xf32>
    %443 = arith.subf %439, %442 : vector<4x8x8xf32>
    %444 = math.exp %443 : vector<4x8x8xf32>
    %cst_192 = arith.constant dense<0.000000e+00> : vector<4x8xf32>
    %445 = vector.multi_reduction <add>, %444, %cst_192 [2] : vector<4x8x8xf32> to vector<4x8xf32>
    %446 = vector.shape_cast %445 : vector<4x8xf32> to vector<4x8x1xf32>
    %447 = vector.broadcast %446 : vector<4x8x1xf32> to vector<4x8x8xf32>
    %448 = arith.divf %444, %447 : vector<4x8x8xf32>
    "tpu.trace_start"() <{level = 10 : i32, message = "nqk,nkd->nqd"}> : () -> ()
    %cst_193 = arith.constant dense<0.000000e+00> : vector<4x8x32xf32>
    %449 = tpu.matmul %448, %433, %cst_193 {dimension_numbers = #tpu.dot_dimension_numbers<[2], [1], [1], [2], [0, 0, 0, 1, 1, 2], [0], [0]>} : vector<4x8x8xf32>, vector<4x8x32xf32>, vector<4x8x32xf32> -> vector<4x8x32xf32>
    "tpu.trace_stop"() : () -> ()
    %450 = vector.extract_strided_slice %449 {offsets = [0, 0, 0], sizes = [2, 8, 32], strides = [1, 1, 1]} : vector<4x8x32xf32> to vector<2x8x32xf32>
    %451 = vector.shape_cast %450 : vector<2x8x32xf32> to vector<16x32xf32>
    %452 = vector.extract_strided_slice %449 {offsets = [2, 0, 0], sizes = [2, 8, 32], strides = [1, 1, 1]} : vector<4x8x32xf32> to vector<2x8x32xf32>
    %453 = vector.shape_cast %452 : vector<2x8x32xf32> to vector<16x32xf32>
    %454 = tpu.concatenate %451, %453 in 1 : vector<16x32xf32>, vector<16x32xf32> -> vector<16x64xf32>
    %cst_194 = arith.constant dense<0.000000e+00> : vector<16x64xf32>
    %455 = tpu.matmul %454, %399, %cst_194 {dimension_numbers = #tpu.dot_dimension_numbers<[1], [0], [0], [1], [0, 0, 1, 1], [], []>} : vector<16x64xf32>, vector<64x64xf32>, vector<16x64xf32> -> vector<16x64xf32>
    %456 = vector.broadcast %400 : vector<1x64xf32> to vector<16x64xf32>
    %457 = arith.addf %455, %456 : vector<16x64xf32>
    %458 = arith.addf %396, %457 : vector<16x64xf32>
    %cst_195 = arith.constant dense<0.000000e+00> : vector<16xf32>
    %459 = vector.multi_reduction <add>, %458, %cst_195 [1] : vector<16x64xf32> to vector<16xf32>
    %460 = vector.shape_cast %459 : vector<16xf32> to vector<16x1xf32>
    %cst_196 = arith.constant 6.400000e+01 : f32
    %461 = vector.broadcast %cst_196 : f32 to vector<16x1xf32>
    %462 = arith.divf %460, %461 : vector<16x1xf32>
    %463 = vector.broadcast %462 : vector<16x1xf32> to vector<16x64xf32>
    %464 = arith.subf %458, %463 : vector<16x64xf32>
    %465 = vector.broadcast %462 : vector<16x1xf32> to vector<16x64xf32>
    %466 = arith.subf %458, %465 : vector<16x64xf32>
    %467 = arith.mulf %464, %466 : vector<16x64xf32>
    %cst_197 = arith.constant dense<0.000000e+00> : vector<16xf32>
    %468 = vector.multi_reduction <add>, %467, %cst_197 [1] : vector<16x64xf32> to vector<16xf32>
    %469 = vector.shape_cast %468 : vector<16xf32> to vector<16x1xf32>
    %cst_198 = arith.constant 6.400000e+01 : f32
    %470 = vector.broadcast %cst_198 : f32 to vector<16x1xf32>
    %471 = arith.divf %469, %470 : vector<16x1xf32>
    %472 = vector.broadcast %462 : vector<16x1xf32> to vector<16x64xf32>
    %473 = arith.subf %458, %472 : vector<16x64xf32>
    %cst_199 = arith.constant 9.99999974E-6 : f32
    %474 = vector.broadcast %cst_199 : f32 to vector<16x1xf32>
    %475 = arith.addf %471, %474 : vector<16x1xf32>
    %476 = math.sqrt %475 : vector<16x1xf32>
    %477 = vector.broadcast %476 : vector<16x1xf32> to vector<16x64xf32>
    %478 = arith.divf %473, %477 : vector<16x64xf32>
    %479 = vector.broadcast %401 : vector<1x64xf32> to vector<16x64xf32>
    %480 = arith.mulf %479, %478 : vector<16x64xf32>
    %481 = vector.broadcast %402 : vector<1x64xf32> to vector<16x64xf32>
    %482 = arith.addf %480, %481 : vector<16x64xf32>
    %cst_200 = arith.constant dense<0.000000e+00> : vector<16x256xf32>
    %483 = tpu.matmul %482, %403, %cst_200 {dimension_numbers = #tpu.dot_dimension_numbers<[1], [0], [0], [1], [0, 0, 1, 1], [], []>} : vector<16x64xf32>, vector<64x256xf32>, vector<16x256xf32> -> vector<16x256xf32>
    %484 = vector.broadcast %404 : vector<1x256xf32> to vector<16x256xf32>
    %485 = arith.addf %483, %484 : vector<16x256xf32>
    %cst_201 = arith.constant 5.000000e-01 : f32
    %486 = vector.broadcast %cst_201 : f32 to vector<16x256xf32>
    %487 = arith.mulf %486, %485 : vector<16x256xf32>
    %cst_202 = arith.constant 4.471500e-02 : f32
    %488 = vector.broadcast %cst_202 : f32 to vector<16x256xf32>
    %489 = arith.mulf %488, %485 : vector<16x256xf32>
    %490 = arith.mulf %489, %485 : vector<16x256xf32>
    %491 = arith.mulf %490, %485 : vector<16x256xf32>
    %492 = arith.addf %485, %491 : vector<16x256xf32>
    %cst_203 = arith.constant 0.797884583 : f32
    %493 = vector.broadcast %cst_203 : f32 to vector<16x256xf32>
    %494 = arith.mulf %493, %492 : vector<16x256xf32>
    %495 = math.tanh %494 : vector<16x256xf32>
    %cst_204 = arith.constant 1.000000e+00 : f32
    %496 = vector.broadcast %cst_204 : f32 to vector<16x256xf32>
    %497 = arith.addf %496, %495 : vector<16x256xf32>
    %498 = arith.mulf %487, %497 : vector<16x256xf32>
    %cst_205 = arith.constant dense<0.000000e+00> : vector<16x64xf32>
    %499 = tpu.matmul %498, %405, %cst_205 {dimension_numbers = #tpu.dot_dimension_numbers<[1], [0], [0], [1], [0, 0, 1, 1], [], []>} : vector<16x256xf32>, vector<256x64xf32>, vector<16x64xf32> -> vector<16x64xf32>
    %500 = vector.broadcast %406 : vector<1x64xf32> to vector<16x64xf32>
    %501 = arith.addf %499, %500 : vector<16x64xf32>
    %502 = arith.addf %482, %501 : vector<16x64xf32>
    %cst_206 = arith.constant dense<0.000000e+00> : vector<16xf32>
    %503 = vector.multi_reduction <add>, %502, %cst_206 [1] : vector<16x64xf32> to vector<16xf32>
    %504 = vector.shape_cast %503 : vector<16xf32> to vector<16x1xf32>
    %cst_207 = arith.constant 6.400000e+01 : f32
    %505 = vector.broadcast %cst_207 : f32 to vector<16x1xf32>
    %506 = arith.divf %504, %505 : vector<16x1xf32>
    %507 = vector.broadcast %506 : vector<16x1xf32> to vector<16x64xf32>
    %508 = arith.subf %502, %507 : vector<16x64xf32>
    %509 = vector.broadcast %506 : vector<16x1xf32> to vector<16x64xf32>
    %510 = arith.subf %502, %509 : vector<16x64xf32>
    %511 = arith.mulf %508, %510 : vector<16x64xf32>
    %cst_208 = arith.constant dense<0.000000e+00> : vector<16xf32>
    %512 = vector.multi_reduction <add>, %511, %cst_208 [1] : vector<16x64xf32> to vector<16xf32>
    %513 = vector.shape_cast %512 : vector<16xf32> to vector<16x1xf32>
    %cst_209 = arith.constant 6.400000e+01 : f32
    %514 = vector.broadcast %cst_209 : f32 to vector<16x1xf32>
    %515 = arith.divf %513, %514 : vector<16x1xf32>
    %516 = vector.broadcast %506 : vector<16x1xf32> to vector<16x64xf32>
    %517 = arith.subf %502, %516 : vector<16x64xf32>
    %cst_210 = arith.constant 9.99999974E-6 : f32
    %518 = vector.broadcast %cst_210 : f32 to vector<16x1xf32>
    %519 = arith.addf %515, %518 : vector<16x1xf32>
    %520 = math.sqrt %519 : vector<16x1xf32>
    %521 = vector.broadcast %520 : vector<16x1xf32> to vector<16x64xf32>
    %522 = arith.divf %517, %521 : vector<16x64xf32>
    %523 = vector.broadcast %407 : vector<1x64xf32> to vector<16x64xf32>
    %524 = arith.mulf %523, %522 : vector<16x64xf32>
    %525 = vector.broadcast %408 : vector<1x64xf32> to vector<16x64xf32>
    %526 = arith.addf %524, %525 : vector<16x64xf32>
    %cst_211 = arith.constant dense<0.000000e+00> : vector<16x32xf32>
    %527 = tpu.matmul %526, %409, %cst_211 {dimension_numbers = #tpu.dot_dimension_numbers<[1], [0], [0], [1], [0, 0, 1, 1], [], []>} : vector<16x64xf32>, vector<64x32xf32>, vector<16x32xf32> -> vector<16x32xf32>
    %528 = vector.broadcast %410 : vector<1x32xf32> to vector<16x32xf32>
    %529 = arith.addf %527, %528 : vector<16x32xf32>
    %cst_212 = arith.constant 0.000000e+00 : f32
    %530 = vector.broadcast %cst_212 : f32 to vector<16x96xf32>
    %531 = tpu.concatenate %529, %530 in 1 : vector<16x32xf32>, vector<16x96xf32> -> vector<16x128xf32>
    %c0_213 = arith.constant 0 : index
    %c0_214 = arith.constant 0 : index
    %532 = vector.load %arg57[%c0_213, %c0_214] : memref<16x128xf32, #tpu.memory_space<vmem>>, vector<16x128xf32>
    tpu.vector_store %arg57[%c0_213, %c0_214], %531 {strides = array<i32>} : memref<16x128xf32, #tpu.memory_space<vmem>>, vector<16x128xf32>,
    return
  }
}

</mosaic_0001>

<llo_original>
// kernel: tpu_custom_call.1
$region0: #{tpu_custom_call.1}
  #allocation0 [shape = 'u32[]', space=smem, size = 0x4, offset = 0x4, fixed_abs, tag = 'smem constant byte address 0x4 - core index']
  #allocation1 [shape = 'u32[144,128]{1,0:T(1,128)}', space=vmem, size = 0x12000, scoped, tag = 'internal scratch']
  %s0 = inlined_call_operand.smem [shape: u32[58], index: -1, kind: input, shape index: {}]
  %s1 = sld [smem:[%s0]]
  %s2 = scalar_lea.smem %s0, 1
  %s3 = sld [smem:[%s2]]
  %s4 = scalar_lea.smem %s0, 2
  %s5 = sld [smem:[%s4]]
  %s6 = scalar_lea.smem %s0, 3
  %s7 = sld [smem:[%s6]]
  %s8 = scalar_lea.smem %s0, 4
  %s9 = sld [smem:[%s8]]
  %s10 = scalar_lea.smem %s0, 5
  %s11 = sld [smem:[%s10]]
  %s12 = scalar_lea.smem %s0, 6
  %s13 = sld [smem:[%s12]]
  %s14 = scalar_lea.smem %s0, 7
  %s15 = sld [smem:[%s14]]
  %s16 = scalar_lea.smem %s0, 8
  %s17 = sld [smem:[%s16]]
  %s18 = scalar_lea.smem %s0, 9
  %s19 = sld [smem:[%s18]]
  %s20 = scalar_lea.smem %s0, 10
  %s21 = sld [smem:[%s20]]
  %s22 = scalar_lea.smem %s0, 11
  %s23 = sld [smem:[%s22]]
  %s24 = scalar_lea.smem %s0, 12
  %s25 = sld [smem:[%s24]]
  %s26 = scalar_lea.smem %s0, 13
  %s27 = sld [smem:[%s26]]
  %s28 = scalar_lea.smem %s0, 14
  %s29 = sld [smem:[%s28]]
  %s30 = scalar_lea.smem %s0, 15
  %s31 = sld [smem:[%s30]]
  %s32 = scalar_lea.smem %s0, 16
  %s33 = sld [smem:[%s32]]
  %s34 = scalar_lea.smem %s0, 17
  %s35 = sld [smem:[%s34]]
  %s36 = scalar_lea.smem %s0, 18
  %s37 = sld [smem:[%s36]]
  %s38 = scalar_lea.smem %s0, 19
  %s39 = sld [smem:[%s38]]
  %s40 = scalar_lea.smem %s0, 20
  %s41 = sld [smem:[%s40]]
  %s42 = scalar_lea.smem %s0, 21
  %s43 = sld [smem:[%s42]]
  %s44 = scalar_lea.smem %s0, 22
  %s45 = sld [smem:[%s44]]
  %s46 = scalar_lea.smem %s0, 23
  %s47 = sld [smem:[%s46]]
  %s48 = scalar_lea.smem %s0, 24
  %s49 = sld [smem:[%s48]]
  %s50 = scalar_lea.smem %s0, 25
  %s51 = sld [smem:[%s50]]
  %s52 = scalar_lea.smem %s0, 26
  %s53 = sld [smem:[%s52]]
  %s54 = scalar_lea.smem %s0, 27
  %s55 = sld [smem:[%s54]]
  %s56 = scalar_lea.smem %s0, 28
  %s57 = sld [smem:[%s56]]
  %s58 = scalar_lea.smem %s0, 29
  %s59 = sld [smem:[%s58]]
  %s60 = scalar_lea.smem %s0, 30
  %s61 = sld [smem:[%s60]]
  %s62 = scalar_lea.smem %s0, 31
  %s63 = sld [smem:[%s62]]
  %s64 = scalar_lea.smem %s0, 32
  %s65 = sld [smem:[%s64]]
  %s66 = scalar_lea.smem %s0, 33
  %s67 = sld [smem:[%s66]]
  %s68 = scalar_lea.smem %s0, 34
  %s69 = sld [smem:[%s68]]
  %s70 = scalar_lea.smem %s0, 35
  %s71 = sld [smem:[%s70]]
  %s72 = scalar_lea.smem %s0, 36
  %s73 = sld [smem:[%s72]]
  %s74 = scalar_lea.smem %s0, 37
  %s75 = sld [smem:[%s74]]
  %s76 = scalar_lea.smem %s0, 38
  %s77 = sld [smem:[%s76]]
  %s78 = scalar_lea.smem %s0, 39
  %s79 = sld [smem:[%s78]]
  %s80 = scalar_lea.smem %s0, 40
  %s81 = sld [smem:[%s80]]
  %s82 = scalar_lea.smem %s0, 41
  %s83 = sld [smem:[%s82]]
  %s84 = scalar_lea.smem %s0, 42
  %s85 = sld [smem:[%s84]]
  %s86 = scalar_lea.smem %s0, 43
  %s87 = sld [smem:[%s86]]
  %s88 = scalar_lea.smem %s0, 44
  %s89 = sld [smem:[%s88]]
  %s90 = scalar_lea.smem %s0, 45
  %s91 = sld [smem:[%s90]]
  %s92 = scalar_lea.smem %s0, 46
  %s93 = sld [smem:[%s92]]
  %s94 = scalar_lea.smem %s0, 47
  %s95 = sld [smem:[%s94]]
  %s96 = scalar_lea.smem %s0, 48
  %s97 = sld [smem:[%s96]]
  %s98 = scalar_lea.smem %s0, 49
  %s99 = sld [smem:[%s98]]
  %s100 = scalar_lea.smem %s0, 50
  %s101 = sld [smem:[%s100]]
  %s102 = scalar_lea.smem %s0, 51
  %s103 = sld [smem:[%s102]]
  %s104 = scalar_lea.smem %s0, 52
  %s105 = sld [smem:[%s104]]
  %s106 = scalar_lea.smem %s0, 53
  %s107 = sld [smem:[%s106]]
  %s108 = scalar_lea.smem %s0, 54
  %s109 = sld [smem:[%s108]]
  %s110 = scalar_lea.smem %s0, 55
  %s111 = sld [smem:[%s110]]
  %s112 = scalar_lea.smem %s0, 56
  %s113 = sld [smem:[%s112]]
  %s114 = scalar_lea.smem %s0, 57
  %s115 = sld [smem:[%s114]]
  %s116 = sld [smem:[#allocation0]]
  $region318: #{tpu_custom_call.1} parent=0
    _
  %s118 = ssub.s32 1, %s116
  %s119 = scalar_select 0, %s118, %s116
  $region1: #{tpu_custom_call.1} parent=0
    #allocation2 [shape = 'u8[8192]{0}', space=vmem, size = 0x2000, scoped, tag = 'input window, operand 0, single buffered']
    #allocation3 [shape = 's32[1]{0}', space=sflag, size = 0x4, scoped, tag = 'scoped memory for tpu_custom_call.1']
    #allocation4 [shape = 's32[1]{0}', space=sflag, size = 0x4, scoped, tag = 'scoped memory for tpu_custom_call.1']
    #allocation5 [shape = 'u8[512]{0}', space=vmem, size = 0x400, scoped, tag = 'input window, operand 2, single buffered']
    #allocation6 [shape = 's32[1]{0}', space=sflag, size = 0x4, scoped, tag = 'scoped memory for tpu_custom_call.1']
    #allocation7 [shape = 'u8[16384]{0}', space=vmem, size = 0x4000, scoped, tag = 'input window, operand 3, single buffered']
    #allocation8 [shape = 'u8[512]{0}', space=vmem, size = 0x400, scoped, tag = 'input window, operand 4, single buffered']
    #allocation9 [shape = 's32[1]{0}', space=sflag, size = 0x4, scoped, tag = 'scoped memory for tpu_custom_call.1']
    #allocation10 [shape = 'u8[512]{0}', space=vmem, size = 0x400, scoped, tag = 'input window, operand 5, single buffered']
    #allocation11 [shape = 'u8[512]{0}', space=vmem, size = 0x400, scoped, tag = 'input window, operand 6, single buffered']
    #allocation12 [shape = 's32[1]{0}', space=sflag, size = 0x4, scoped, tag = 'scoped memory for tpu_custom_call.1']
    #allocation13 [shape = 'u8[16384]{0}', space=vmem, size = 0x4000, scoped, tag = 'input window, operand 7, single buffered']
    #allocation14 [shape = 'u8[512]{0}', space=vmem, size = 0x400, scoped, tag = 'input window, operand 8, single buffered']
    #allocation15 [shape = 's32[1]{0}', space=sflag, size = 0x4, scoped, tag = 'scoped memory for tpu_custom_call.1']
    #allocation16 [shape = 'u8[512]{0}', space=vmem, size = 0x400, scoped, tag = 'input window, operand 10, single buffered']
    #allocation17 [shape = 'u8[512]{0}', space=vmem, size = 0x400, scoped, tag = 'input window, operand 11, single buffered']
    #allocation18 [shape = 's32[1]{0}', space=sflag, size = 0x4, scoped, tag = 'scoped memory for tpu_custom_call.1']
    #allocation19 [shape = 'u8[512]{0}', space=vmem, size = 0x400, scoped, tag = 'input window, operand 12, single buffered']
    #allocation20 [shape = 'u8[512]{0}', space=vmem, size = 0x400, scoped, tag = 'input window, operand 14, single buffered']
    #allocation21 [shape = 's32[1]{0}', space=sflag, size = 0x4, scoped, tag = 'scoped memory for tpu_custom_call.1']
    #allocation22 [shape = 'u8[1024]{0}', space=vmem, size = 0x400, scoped, tag = 'input window, operand 16, single buffered']
    #allocation23 [shape = 'u8[512]{0}', space=vmem, size = 0x400, scoped, tag = 'input window, operand 18, single buffered']
    #allocation24 [shape = 's32[1]{0}', space=sflag, size = 0x4, scoped, tag = 'scoped memory for tpu_custom_call.1']
    #allocation25 [shape = 'u8[512]{0}', space=vmem, size = 0x400, scoped, tag = 'input window, operand 19, single buffered']
    #allocation26 [shape = 'u8[512]{0}', space=vmem, size = 0x400, scoped, tag = 'input window, operand 20, single buffered']
    #allocation27 [shape = 's32[1]{0}', space=sflag, size = 0x4, scoped, tag = 'scoped memory for tpu_custom_call.1']
    #allocation28 [shape = 'u8[512]{0}', space=vmem, size = 0x400, scoped, tag = 'input window, operand 24, single buffered']
    #allocation29 [shape = 'u8[512]{0}', space=vmem, size = 0x400, scoped, tag = 'input window, operand 25, single buffered']
    #allocation30 [shape = 's32[1]{0}', space=sflag, size = 0x4, scoped, tag = 'scoped memory for tpu_custom_call.1']
    #allocation31 [shape = 'u8[512]{0}', space=vmem, size = 0x400, scoped, tag = 'input window, operand 26, single buffered']
    #allocation32 [shape = 'u8[512]{0}', space=vmem, size = 0x400, scoped, tag = 'input window, operand 28, single buffered']
    #allocation33 [shape = 's32[1]{0}', space=sflag, size = 0x4, scoped, tag = 'scoped memory for tpu_custom_call.1']
    #allocation34 [shape = 'u8[8192]{0}', space=vmem, size = 0x2000, scoped, tag = 'output window, operand 0, single buffered']
    %120 = vsyncpa [#allocation3], 0
    %121 = vsyncpa [#allocation6], 0
    %122 = vsyncpa [#allocation9], 0
    %123 = vsyncpa [#allocation12], 0
    %124 = vsyncpa [#allocation15], 0
    %125 = vsyncpa [#allocation18], 0
    %126 = vsyncpa [#allocation21], 0
    %127 = vsyncpa [#allocation24], 0
    %128 = vsyncpa [#allocation27], 0
    %129 = vsyncpa [#allocation30], 0
    %130 = vsyncpa [#allocation33], 0
    %131 = vsyncpa [#allocation4], 0
    // Predicated region
    $region2: #{tpu_custom_call.1} parent=1 // pred_check
      _
    $region3: #{tpu_custom_call.1} parent=1 // pred_check_branch
      %133 = sbr.rel (0) target = $region5
    $region4: #{tpu_custom_call.1} parent=1 // pred_region
      %s135 = ssub.s32 256, 256
      %136 = vsyncadd [#allocation3], %s135
      %s137 = sshll.u32 [#allocation2], 4
      %s138 = int_to_ptr.vmem [resolvable:$true] %s137
      %143 = dma.hbm_to_vmem [thread:$0]  %s1, 256, %s138, [#allocation3], 128, 128, 8
    $region5: #{tpu_custom_call.1} parent=1 // pred_fallthru
      _
    // Predicated region
    $region6: #{tpu_custom_call.1} parent=1 // pred_check
      _
    $region7: #{tpu_custom_call.1} parent=1 // pred_check_branch
      %145 = sbr.rel (0) target = $region9
    $region8: #{tpu_custom_call.1} parent=1 // pred_region
      _
    $region9: #{tpu_custom_call.1} parent=1 // pred_fallthru
      _
    // Predicated region
    $region10: #{tpu_custom_call.1} parent=1 // pred_check
      _
    $region11: #{tpu_custom_call.1} parent=1 // pred_check_branch
      %147 = sbr.rel (0) target = $region13
    $region12: #{tpu_custom_call.1} parent=1 // pred_region
      %s149 = ssub.s32 16, 16
      %150 = vsyncadd [#allocation6], %s149
      %s152 = sshll.u32 [#allocation5], 4
      %s153 = int_to_ptr.vmem [resolvable:$true] %s152
      %155 = dma.hbm_to_vmem [thread:$0]  %s5, 16, %s153, [#allocation6]
    $region13: #{tpu_custom_call.1} parent=1 // pred_fallthru
      _
    // Predicated region
    $region14: #{tpu_custom_call.1} parent=1 // pred_check
      _
    $region15: #{tpu_custom_call.1} parent=1 // pred_check_branch
      %157 = sbr.rel (0) target = $region17
    $region16: #{tpu_custom_call.1} parent=1 // pred_region
      %s159 = ssub.s32 512, 512
      %160 = vsyncadd [#allocation6], %s159
      %s161 = sshll.u32 [#allocation7], 4
      %s162 = int_to_ptr.vmem [resolvable:$true] %s161
      %167 = dma.hbm_to_vmem [thread:$0]  %s7, 512, %s162, [#allocation6], 128, 128, 8
    $region17: #{tpu_custom_call.1} parent=1 // pred_fallthru
      _
    // Predicated region
    $region18: #{tpu_custom_call.1} parent=1 // pred_check
      _
    $region19: #{tpu_custom_call.1} parent=1 // pred_check_branch
      %169 = sbr.rel (0) target = $region21
    $region20: #{tpu_custom_call.1} parent=1 // pred_region
      %s171 = ssub.s32 16, 16
      %172 = vsyncadd [#allocation9], %s171
      %s174 = sshll.u32 [#allocation8], 4
      %s175 = int_to_ptr.vmem [resolvable:$true] %s174
      %177 = dma.hbm_to_vmem [thread:$0]  %s9, 16, %s175, [#allocation9]
    $region21: #{tpu_custom_call.1} parent=1 // pred_fallthru
      _
    // Predicated region
    $region22: #{tpu_custom_call.1} parent=1 // pred_check
      _
    $region23: #{tpu_custom_call.1} parent=1 // pred_check_branch
      %179 = sbr.rel (0) target = $region25
    $region24: #{tpu_custom_call.1} parent=1 // pred_region
      %s181 = ssub.s32 16, 16
      %182 = vsyncadd [#allocation9], %s181
      %s184 = sshll.u32 [#allocation10], 4
      %s185 = int_to_ptr.vmem [resolvable:$true] %s184
      %187 = dma.hbm_to_vmem [thread:$0]  %s11, 16, %s185, [#allocation9]
    $region25: #{tpu_custom_call.1} parent=1 // pred_fallthru
      _
    // Predicated region
    $region26: #{tpu_custom_call.1} parent=1 // pred_check
      _
    $region27: #{tpu_custom_call.1} parent=1 // pred_check_branch
      %189 = sbr.rel (0) target = $region29
    $region28: #{tpu_custom_call.1} parent=1 // pred_region
      %s191 = ssub.s32 16, 16
      %192 = vsyncadd [#allocation12], %s191
      %s194 = sshll.u32 [#allocation11], 4
      %s195 = int_to_ptr.vmem [resolvable:$true] %s194
      %197 = dma.hbm_to_vmem [thread:$0]  %s13, 16, %s195, [#allocation12]
    $region29: #{tpu_custom_call.1} parent=1 // pred_fallthru
      _
    // Predicated region
    $region30: #{tpu_custom_call.1} parent=1 // pred_check
      _
    $region31: #{tpu_custom_call.1} parent=1 // pred_check_branch
      %199 = sbr.rel (0) target = $region33
    $region32: #{tpu_custom_call.1} parent=1 // pred_region
      %s201 = ssub.s32 512, 512
      %202 = vsyncadd [#allocation12], %s201
      %s203 = sshll.u32 [#allocation13], 4
      %s204 = int_to_ptr.vmem [resolvable:$true] %s203
      %209 = dma.hbm_to_vmem [thread:$0]  %s15, 512, %s204, [#allocation12], 128, 128, 8
    $region33: #{tpu_custom_call.1} parent=1 // pred_fallthru
      _
    // Predicated region
    $region34: #{tpu_custom_call.1} parent=1 // pred_check
      _
    $region35: #{tpu_custom_call.1} parent=1 // pred_check_branch
      %211 = sbr.rel (0) target = $region37
    $region36: #{tpu_custom_call.1} parent=1 // pred_region
      %s213 = ssub.s32 16, 16
      %214 = vsyncadd [#allocation15], %s213
      %s216 = sshll.u32 [#allocation14], 4
      %s217 = int_to_ptr.vmem [resolvable:$true] %s216
      %219 = dma.hbm_to_vmem [thread:$0]  %s17, 16, %s217, [#allocation15]
    $region37: #{tpu_custom_call.1} parent=1 // pred_fallthru
      _
    // Predicated region
    $region38: #{tpu_custom_call.1} parent=1 // pred_check
      _
    $region39: #{tpu_custom_call.1} parent=1 // pred_check_branch
      %221 = sbr.rel (0) target = $region41
    $region40: #{tpu_custom_call.1} parent=1 // pred_region
      _
    $region41: #{tpu_custom_call.1} parent=1 // pred_fallthru
      _
    // Predicated region
    $region42: #{tpu_custom_call.1} parent=1 // pred_check
      _
    $region43: #{tpu_custom_call.1} parent=1 // pred_check_branch
      %223 = sbr.rel (0) target = $region45
    $region44: #{tpu_custom_call.1} parent=1 // pred_region
      %s225 = ssub.s32 16, 16
      %226 = vsyncadd [#allocation15], %s225
      %s228 = sshll.u32 [#allocation16], 4
      %s229 = int_to_ptr.vmem [resolvable:$true] %s228
      %231 = dma.hbm_to_vmem [thread:$0]  %s21, 16, %s229, [#allocation15]
    $region45: #{tpu_custom_call.1} parent=1 // pred_fallthru
      _
    // Predicated region
    $region46: #{tpu_custom_call.1} parent=1 // pred_check
      _
    $region47: #{tpu_custom_call.1} parent=1 // pred_check_branch
      %233 = sbr.rel (0) target = $region49
    $region48: #{tpu_custom_call.1} parent=1 // pred_region
      %s235 = ssub.s32 16, 16
      %236 = vsyncadd [#allocation18], %s235
      %s238 = sshll.u32 [#allocation17], 4
      %s239 = int_to_ptr.vmem [resolvable:$true] %s238
      %241 = dma.hbm_to_vmem [thread:$0]  %s23, 16, %s239, [#allocation18]
    $region49: #{tpu_custom_call.1} parent=1 // pred_fallthru
      _
    // Predicated region
    $region50: #{tpu_custom_call.1} parent=1 // pred_check
      _
    $region51: #{tpu_custom_call.1} parent=1 // pred_check_branch
      %243 = sbr.rel (0) target = $region53
    $region52: #{tpu_custom_call.1} parent=1 // pred_region
      %s245 = ssub.s32 16, 16
      %246 = vsyncadd [#allocation18], %s245
      %s248 = sshll.u32 [#allocation19], 4
      %s249 = int_to_ptr.vmem [resolvable:$true] %s248
      %251 = dma.hbm_to_vmem [thread:$0]  %s25, 16, %s249, [#allocation18]
    $region53: #{tpu_custom_call.1} parent=1 // pred_fallthru
      _
    // Predicated region
    $region54: #{tpu_custom_call.1} parent=1 // pred_check
      _
    $region55: #{tpu_custom_call.1} parent=1 // pred_check_branch
      %253 = sbr.rel (0) target = $region57
    $region56: #{tpu_custom_call.1} parent=1 // pred_region
      _
    $region57: #{tpu_custom_call.1} parent=1 // pred_fallthru
      _
    // Predicated region
    $region58: #{tpu_custom_call.1} parent=1 // pred_check
      _
    $region59: #{tpu_custom_call.1} parent=1 // pred_check_branch
      %255 = sbr.rel (0) target = $region61
    $region60: #{tpu_custom_call.1} parent=1 // pred_region
      %s257 = ssub.s32 16, 16
      %258 = vsyncadd [#allocation21], %s257
      %s260 = sshll.u32 [#allocation20], 4
      %s261 = int_to_ptr.vmem [resolvable:$true] %s260
      %263 = dma.hbm_to_vmem [thread:$0]  %s29, 16, %s261, [#allocation21]
    $region61: #{tpu_custom_call.1} parent=1 // pred_fallthru
      _
    // Predicated region
    $region62: #{tpu_custom_call.1} parent=1 // pred_check
      _
    $region63: #{tpu_custom_call.1} parent=1 // pred_check_branch
      %265 = sbr.rel (0) target = $region65
    $region64: #{tpu_custom_call.1} parent=1 // pred_region
      _
    $region65: #{tpu_custom_call.1} parent=1 // pred_fallthru
      _
    // Predicated region
    $region66: #{tpu_custom_call.1} parent=1 // pred_check
      _
    $region67: #{tpu_custom_call.1} parent=1 // pred_check_branch
      %267 = sbr.rel (0) target = $region69
    $region68: #{tpu_custom_call.1} parent=1 // pred_region
      %s269 = ssub.s32 32, 32
      %270 = vsyncadd [#allocation21], %s269
      %s272 = sshll.u32 [#allocation22], 4
      %s273 = int_to_ptr.vmem [resolvable:$true] %s272
      %275 = dma.hbm_to_vmem [thread:$0]  %s33, 32, %s273, [#allocation21]
    $region69: #{tpu_custom_call.1} parent=1 // pred_fallthru
      _
    // Predicated region
    $region70: #{tpu_custom_call.1} parent=1 // pred_check
      _
    $region71: #{tpu_custom_call.1} parent=1 // pred_check_branch
      %277 = sbr.rel (0) target = $region73
    $region72: #{tpu_custom_call.1} parent=1 // pred_region
      _
    $region73: #{tpu_custom_call.1} parent=1 // pred_fallthru
      _
    // Predicated region
    $region74: #{tpu_custom_call.1} parent=1 // pred_check
      _
    $region75: #{tpu_custom_call.1} parent=1 // pred_check_branch
      %279 = sbr.rel (0) target = $region77
    $region76: #{tpu_custom_call.1} parent=1 // pred_region
      %s281 = ssub.s32 16, 16
      %282 = vsyncadd [#allocation24], %s281
      %s284 = sshll.u32 [#allocation23], 4
      %s285 = int_to_ptr.vmem [resolvable:$true] %s284
      %287 = dma.hbm_to_vmem [thread:$0]  %s37, 16, %s285, [#allocation24]
    $region77: #{tpu_custom_call.1} parent=1 // pred_fallthru
      _
    // Predicated region
    $region78: #{tpu_custom_call.1} parent=1 // pred_check
      _
    $region79: #{tpu_custom_call.1} parent=1 // pred_check_branch
      %289 = sbr.rel (0) target = $region81
    $region80: #{tpu_custom_call.1} parent=1 // pred_region
      %s291 = ssub.s32 16, 16
      %292 = vsyncadd [#allocation24], %s291
      %s294 = sshll.u32 [#allocation25], 4
      %s295 = int_to_ptr.vmem [resolvable:$true] %s294
      %297 = dma.hbm_to_vmem [thread:$0]  %s39, 16, %s295, [#allocation24]
    $region81: #{tpu_custom_call.1} parent=1 // pred_fallthru
      _
    // Predicated region
    $region82: #{tpu_custom_call.1} parent=1 // pred_check
      _
    $region83: #{tpu_custom_call.1} parent=1 // pred_check_branch
      %299 = sbr.rel (0) target = $region85
    $region84: #{tpu_custom_call.1} parent=1 // pred_region
      %s301 = ssub.s32 16, 16
      %302 = vsyncadd [#allocation27], %s301
      %s304 = sshll.u32 [#allocation26], 4
      %s305 = int_to_ptr.vmem [resolvable:$true] %s304
      %307 = dma.hbm_to_vmem [thread:$0]  %s41, 16, %s305, [#allocation27]
    $region85: #{tpu_custom_call.1} parent=1 // pred_fallthru
      _
    // Predicated region
    $region86: #{tpu_custom_call.1} parent=1 // pred_check
      _
    $region87: #{tpu_custom_call.1} parent=1 // pred_check_branch
      %309 = sbr.rel (0) target = $region89
    $region88: #{tpu_custom_call.1} parent=1 // pred_region
      _
    $region89: #{tpu_custom_call.1} parent=1 // pred_fallthru
      _
    // Predicated region
    $region90: #{tpu_custom_call.1} parent=1 // pred_check
      _
    $region91: #{tpu_custom_call.1} parent=1 // pred_check_branch
      %311 = sbr.rel (0) target = $region93
    $region92: #{tpu_custom_call.1} parent=1 // pred_region
      _
    $region93: #{tpu_custom_call.1} parent=1 // pred_fallthru
      _
    // Predicated region
    $region94: #{tpu_custom_call.1} parent=1 // pred_check
      _
    $region95: #{tpu_custom_call.1} parent=1 // pred_check_branch
      %313 = sbr.rel (0) target = $region97
    $region96: #{tpu_custom_call.1} parent=1 // pred_region
      _
    $region97: #{tpu_custom_call.1} parent=1 // pred_fallthru
      _
    // Predicated region
    $region98: #{tpu_custom_call.1} parent=1 // pred_check
      _
    $region99: #{tpu_custom_call.1} parent=1 // pred_check_branch
      %315 = sbr.rel (0) target = $region101
    $region100: #{tpu_custom_call.1} parent=1 // pred_region
      %s317 = ssub.s32 16, 16
      %318 = vsyncadd [#allocation27], %s317
      %s320 = sshll.u32 [#allocation28], 4
      %s321 = int_to_ptr.vmem [resolvable:$true] %s320
      %323 = dma.hbm_to_vmem [thread:$0]  %s49, 16, %s321, [#allocation27]
    $region101: #{tpu_custom_call.1} parent=1 // pred_fallthru
      _
    // Predicated region
    $region102: #{tpu_custom_call.1} parent=1 // pred_check
      _
    $region103: #{tpu_custom_call.1} parent=1 // pred_check_branch
      %325 = sbr.rel (0) target = $region105
    $region104: #{tpu_custom_call.1} parent=1 // pred_region
      %s327 = ssub.s32 16, 16
      %328 = vsyncadd [#allocation30], %s327
      %s330 = sshll.u32 [#allocation29], 4
      %s331 = int_to_ptr.vmem [resolvable:$true] %s330
      %333 = dma.hbm_to_vmem [thread:$0]  %s51, 16, %s331, [#allocation30]
    $region105: #{tpu_custom_call.1} parent=1 // pred_fallthru
      _
    // Predicated region
    $region106: #{tpu_custom_call.1} parent=1 // pred_check
      _
    $region107: #{tpu_custom_call.1} parent=1 // pred_check_branch
      %335 = sbr.rel (0) target = $region109
    $region108: #{tpu_custom_call.1} parent=1 // pred_region
      %s337 = ssub.s32 16, 16
      %338 = vsyncadd [#allocation30], %s337
      %s340 = sshll.u32 [#allocation31], 4
      %s341 = int_to_ptr.vmem [resolvable:$true] %s340
      %343 = dma.hbm_to_vmem [thread:$0]  %s53, 16, %s341, [#allocation30]
    $region109: #{tpu_custom_call.1} parent=1 // pred_fallthru
      _
    // Predicated region
    $region110: #{tpu_custom_call.1} parent=1 // pred_check
      _
    $region111: #{tpu_custom_call.1} parent=1 // pred_check_branch
      %345 = sbr.rel (0) target = $region113
    $region112: #{tpu_custom_call.1} parent=1 // pred_region
      _
    $region113: #{tpu_custom_call.1} parent=1 // pred_fallthru
      _
    // Predicated region
    $region114: #{tpu_custom_call.1} parent=1 // pred_check
      _
    $region115: #{tpu_custom_call.1} parent=1 // pred_check_branch
      %347 = sbr.rel (0) target = $region117
    $region116: #{tpu_custom_call.1} parent=1 // pred_region
      %s349 = ssub.s32 16, 16
      %350 = vsyncadd [#allocation33], %s349
      %s352 = sshll.u32 [#allocation32], 4
      %s353 = int_to_ptr.vmem [resolvable:$true] %s352
      %355 = dma.hbm_to_vmem [thread:$0]  %s57, 16, %s353, [#allocation33]
    $region117: #{tpu_custom_call.1} parent=1 // pred_fallthru
      _
    // Predicated region
    $region118: #{tpu_custom_call.1} parent=1 // pred_check
      _
    $region119: #{tpu_custom_call.1} parent=1 // pred_check_branch
      %357 = sbr.rel (0) target = $region121
    $region120: #{tpu_custom_call.1} parent=1 // pred_region
      _
    $region121: #{tpu_custom_call.1} parent=1 // pred_fallthru
      _
    // Predicated region
    $region122: #{tpu_custom_call.1} parent=1 // pred_check
      _
    $region123: #{tpu_custom_call.1} parent=1 // pred_check_branch
      %359 = sbr.rel (0) target = $region125
    $region124: #{tpu_custom_call.1} parent=1 // pred_region
      _
    $region125: #{tpu_custom_call.1} parent=1 // pred_fallthru
      _
    // Predicated region
    $region126: #{tpu_custom_call.1} parent=1 // pred_check
      _
    $region127: #{tpu_custom_call.1} parent=1 // pred_check_branch
      %361 = sbr.rel (0) target = $region129
    $region128: #{tpu_custom_call.1} parent=1 // pred_region
      _
    $region129: #{tpu_custom_call.1} parent=1 // pred_fallthru
      _
    // Predicated region
    $region130: #{tpu_custom_call.1} parent=1 // pred_check
      _
    $region131: #{tpu_custom_call.1} parent=1 // pred_check_branch
      %363 = sbr.rel (0) target = $region133
    $region132: #{tpu_custom_call.1} parent=1 // pred_region
      _
    $region133: #{tpu_custom_call.1} parent=1 // pred_fallthru
      _
    // Predicated region
    $region134: #{tpu_custom_call.1} parent=1 // pred_check
      _
    $region135: #{tpu_custom_call.1} parent=1 // pred_check_branch
      %365 = sbr.rel (0) target = $region137
    $region136: #{tpu_custom_call.1} parent=1 // pred_region
      _
    $region137: #{tpu_custom_call.1} parent=1 // pred_fallthru
      _
    // Predicated region
    $region138: #{tpu_custom_call.1} parent=1 // pred_check
      _
    $region139: #{tpu_custom_call.1} parent=1 // pred_check_branch
      %367 = sbr.rel (0) target = $region141
    $region140: #{tpu_custom_call.1} parent=1 // pred_region
      _
    $region141: #{tpu_custom_call.1} parent=1 // pred_fallthru
      _
    // Predicated region
    $region142: #{tpu_custom_call.1} parent=1 // pred_check
      _
    $region143: #{tpu_custom_call.1} parent=1 // pred_check_branch
      %369 = sbr.rel (0) target = $region145
    $region144: #{tpu_custom_call.1} parent=1 // pred_region
      _
    $region145: #{tpu_custom_call.1} parent=1 // pred_fallthru
      _
    // Predicated region
    $region146: #{tpu_custom_call.1} parent=1 // pred_check
      _
    $region147: #{tpu_custom_call.1} parent=1 // pred_check_branch
      %371 = sbr.rel (0) target = $region149
    $region148: #{tpu_custom_call.1} parent=1 // pred_region
      _
    $region149: #{tpu_custom_call.1} parent=1 // pred_fallthru
      _
    // Predicated region
    $region150: #{tpu_custom_call.1} parent=1 // pred_check
      _
    $region151: #{tpu_custom_call.1} parent=1 // pred_check_branch
      %373 = sbr.rel (0) target = $region153
    $region152: #{tpu_custom_call.1} parent=1 // pred_region
      _
    $region153: #{tpu_custom_call.1} parent=1 // pred_fallthru
      _
    // Predicated region
    $region154: #{tpu_custom_call.1} parent=1 // pred_check
      _
    $region155: #{tpu_custom_call.1} parent=1 // pred_check_branch
      %375 = sbr.rel (0) target = $region157
    $region156: #{tpu_custom_call.1} parent=1 // pred_region
      _
    $region157: #{tpu_custom_call.1} parent=1 // pred_fallthru
      _
    // Predicated region
    $region158: #{tpu_custom_call.1} parent=1 // pred_check
      _
    $region159: #{tpu_custom_call.1} parent=1 // pred_check_branch
      %377 = sbr.rel (0) target = $region161
    $region160: #{tpu_custom_call.1} parent=1 // pred_region
      _
    $region161: #{tpu_custom_call.1} parent=1 // pred_fallthru
      _
    // Predicated region
    $region162: #{tpu_custom_call.1} parent=1 // pred_check
      _
    $region163: #{tpu_custom_call.1} parent=1 // pred_check_branch
      %379 = sbr.rel (0) target = $region165
    $region164: #{tpu_custom_call.1} parent=1 // pred_region
      _
    $region165: #{tpu_custom_call.1} parent=1 // pred_fallthru
      _
    // Predicated region
    $region166: #{tpu_custom_call.1} parent=1 // pred_check
      _
    $region167: #{tpu_custom_call.1} parent=1 // pred_check_branch
      %381 = sbr.rel (0) target = $region169
    $region168: #{tpu_custom_call.1} parent=1 // pred_region
      _
    $region169: #{tpu_custom_call.1} parent=1 // pred_fallthru
      _
    // Predicated region
    $region170: #{tpu_custom_call.1} parent=1 // pred_check
      _
    $region171: #{tpu_custom_call.1} parent=1 // pred_check_branch
      %383 = sbr.rel (0) target = $region173
    $region172: #{tpu_custom_call.1} parent=1 // pred_region
      _
    $region173: #{tpu_custom_call.1} parent=1 // pred_fallthru
      _
    // Predicated region
    $region174: #{tpu_custom_call.1} parent=1 // pred_check
      _
    $region175: #{tpu_custom_call.1} parent=1 // pred_check_branch
      %385 = sbr.rel (0) target = $region177
    $region176: #{tpu_custom_call.1} parent=1 // pred_region
      _
    $region177: #{tpu_custom_call.1} parent=1 // pred_fallthru
      _
    // Predicated region
    $region178: #{tpu_custom_call.1} parent=1 // pred_check
      _
    $region179: #{tpu_custom_call.1} parent=1 // pred_check_branch
      %387 = sbr.rel (0) target = $region181
    $region180: #{tpu_custom_call.1} parent=1 // pred_region
      _
    $region181: #{tpu_custom_call.1} parent=1 // pred_fallthru
      _
    // Predicated region
    $region182: #{tpu_custom_call.1} parent=1 // pred_check
      _
    $region183: #{tpu_custom_call.1} parent=1 // pred_check_branch
      %389 = sbr.rel (0) target = $region185
    $region184: #{tpu_custom_call.1} parent=1 // pred_region
      _
    $region185: #{tpu_custom_call.1} parent=1 // pred_fallthru
      _
    // Predicated region
    $region186: #{tpu_custom_call.1} parent=1 // pred_check
      _
    $region187: #{tpu_custom_call.1} parent=1 // pred_check_branch
      %391 = sbr.rel (0) target = $region189
    $region188: #{tpu_custom_call.1} parent=1 // pred_region
      _
    $region189: #{tpu_custom_call.1} parent=1 // pred_fallthru
      _
    // Predicated region
    $region190: #{tpu_custom_call.1} parent=1 // pred_check
      _
    $region191: #{tpu_custom_call.1} parent=1 // pred_check_branch
      %393 = sbr.rel (0) target = $region193
    $region192: #{tpu_custom_call.1} parent=1 // pred_region
      _
    $region193: #{tpu_custom_call.1} parent=1 // pred_fallthru
      _
    // Predicated region
    $region194: #{tpu_custom_call.1} parent=1 // pred_check
      _
    $region195: #{tpu_custom_call.1} parent=1 // pred_check_branch
      %395 = sbr.rel (0) target = $region197
    $region196: #{tpu_custom_call.1} parent=1 // pred_region
      _
    $region197: #{tpu_custom_call.1} parent=1 // pred_fallthru
      _
    // Predicated region
    $region198: #{tpu_custom_call.1} parent=1 // pred_check
      _
    $region199: #{tpu_custom_call.1} parent=1 // pred_check_branch
      %397 = sbr.rel (0) target = $region201
    $region200: #{tpu_custom_call.1} parent=1 // pred_region
      _
    $region201: #{tpu_custom_call.1} parent=1 // pred_fallthru
      _
    // Predicated region
    $region202: #{tpu_custom_call.1} parent=1 // pred_check
      _
    $region203: #{tpu_custom_call.1} parent=1 // pred_check_branch
      %399 = sbr.rel (0) target = $region205
    $region204: #{tpu_custom_call.1} parent=1 // pred_region
      _
    $region205: #{tpu_custom_call.1} parent=1 // pred_fallthru
      _
    // Predicated region
    $region206: #{tpu_custom_call.1} parent=1 // pred_check
      _
    $region207: #{tpu_custom_call.1} parent=1 // pred_check_branch
      %401 = sbr.rel (0) target = $region209
    $region208: #{tpu_custom_call.1} parent=1 // pred_region
      _
    $region209: #{tpu_custom_call.1} parent=1 // pred_fallthru
      _
    // Predicated region
    $region210: #{tpu_custom_call.1} parent=1 // pred_check
      _
    $region211: #{tpu_custom_call.1} parent=1 // pred_check_branch
      %403 = sbr.rel (0) target = $region213
    $region212: #{tpu_custom_call.1} parent=1 // pred_region
      _
    $region213: #{tpu_custom_call.1} parent=1 // pred_fallthru
      _
    // Predicated region
    $region214: #{tpu_custom_call.1} parent=1 // pred_check
      _
    $region215: #{tpu_custom_call.1} parent=1 // pred_check_branch
      %405 = sbr.rel (0) target = $region217
    $region216: #{tpu_custom_call.1} parent=1 // pred_region
      _
    $region217: #{tpu_custom_call.1} parent=1 // pred_fallthru
      _
    // Predicated region
    $region218: #{tpu_custom_call.1} parent=1 // pred_check
      _
    $region219: #{tpu_custom_call.1} parent=1 // pred_check_branch
      %407 = sbr.rel (0) target = $region221
    $region220: #{tpu_custom_call.1} parent=1 // pred_region
      _
    $region221: #{tpu_custom_call.1} parent=1 // pred_fallthru
      _
    // Predicated region
    $region222: #{tpu_custom_call.1} parent=1 // pred_check
      _
    $region223: #{tpu_custom_call.1} parent=1 // pred_check_branch
      %409 = sbr.rel (0) target = $region225
    $region224: #{tpu_custom_call.1} parent=1 // pred_region
      _
    $region225: #{tpu_custom_call.1} parent=1 // pred_fallthru
      _
    // Predicated region
    $region226: #{tpu_custom_call.1} parent=1 // pred_check
      _
    $region227: #{tpu_custom_call.1} parent=1 // pred_check_branch
      %411 = sbr.rel (0) target = $region229
    $region228: #{tpu_custom_call.1} parent=1 // pred_region
      _
    $region229: #{tpu_custom_call.1} parent=1 // pred_fallthru
      _
    // Predicated region
    $region230: #{tpu_custom_call.1} parent=1 // pred_check
      _
    $region231: #{tpu_custom_call.1} parent=1 // pred_check_branch
      %413 = sbr.rel (0) target = $region233
    $region232: #{tpu_custom_call.1} parent=1 // pred_region
      %414 = dma.done [#allocation3], 256
    $region233: #{tpu_custom_call.1} parent=1 // pred_fallthru
      _
    // Predicated region
    $region234: #{tpu_custom_call.1} parent=1 // pred_check
      _
    $region235: #{tpu_custom_call.1} parent=1 // pred_check_branch
      %416 = sbr.rel (0) target = $region237
    $region236: #{tpu_custom_call.1} parent=1 // pred_region
      %417 = dma.done [#allocation6], 16
    $region237: #{tpu_custom_call.1} parent=1 // pred_fallthru
      _
    // Predicated region
    $region238: #{tpu_custom_call.1} parent=1 // pred_check
      _
    $region239: #{tpu_custom_call.1} parent=1 // pred_check_branch
      %419 = sbr.rel (0) target = $region241
    $region240: #{tpu_custom_call.1} parent=1 // pred_region
      %420 = dma.done [#allocation6], 512
    $region241: #{tpu_custom_call.1} parent=1 // pred_fallthru
      _
    // Predicated region
    $region242: #{tpu_custom_call.1} parent=1 // pred_check
      _
    $region243: #{tpu_custom_call.1} parent=1 // pred_check_branch
      %422 = sbr.rel (0) target = $region245
    $region244: #{tpu_custom_call.1} parent=1 // pred_region
      %423 = dma.done [#allocation9], 16
    $region245: #{tpu_custom_call.1} parent=1 // pred_fallthru
      _
    // Predicated region
    $region246: #{tpu_custom_call.1} parent=1 // pred_check
      _
    $region247: #{tpu_custom_call.1} parent=1 // pred_check_branch
      %425 = sbr.rel (0) target = $region249
    $region248: #{tpu_custom_call.1} parent=1 // pred_region
      %426 = dma.done [#allocation9], 16
    $region249: #{tpu_custom_call.1} parent=1 // pred_fallthru
      _
    // Predicated region
    $region250: #{tpu_custom_call.1} parent=1 // pred_check
      _
    $region251: #{tpu_custom_call.1} parent=1 // pred_check_branch
      %428 = sbr.rel (0) target = $region253
    $region252: #{tpu_custom_call.1} parent=1 // pred_region
      %429 = dma.done [#allocation12], 16
    $region253: #{tpu_custom_call.1} parent=1 // pred_fallthru
      _
    // Predicated region
    $region254: #{tpu_custom_call.1} parent=1 // pred_check
      _
    $region255: #{tpu_custom_call.1} parent=1 // pred_check_branch
      %431 = sbr.rel (0) target = $region257
    $region256: #{tpu_custom_call.1} parent=1 // pred_region
      %432 = dma.done [#allocation12], 512
    $region257: #{tpu_custom_call.1} parent=1 // pred_fallthru
      _
    // Predicated region
    $region258: #{tpu_custom_call.1} parent=1 // pred_check
      _
    $region259: #{tpu_custom_call.1} parent=1 // pred_check_branch
      %434 = sbr.rel (0) target = $region261
    $region260: #{tpu_custom_call.1} parent=1 // pred_region
      %435 = dma.done [#allocation15], 16
    $region261: #{tpu_custom_call.1} parent=1 // pred_fallthru
      _
    // Predicated region
    $region262: #{tpu_custom_call.1} parent=1 // pred_check
      _
    $region263: #{tpu_custom_call.1} parent=1 // pred_check_branch
      %437 = sbr.rel (0) target = $region265
    $region264: #{tpu_custom_call.1} parent=1 // pred_region
      %438 = dma.done [#allocation15], 16
    $region265: #{tpu_custom_call.1} parent=1 // pred_fallthru
      _
    // Predicated region
    $region266: #{tpu_custom_call.1} parent=1 // pred_check
      _
    $region267: #{tpu_custom_call.1} parent=1 // pred_check_branch
      %440 = sbr.rel (0) target = $region269
    $region268: #{tpu_custom_call.1} parent=1 // pred_region
      %441 = dma.done [#allocation18], 16
    $region269: #{tpu_custom_call.1} parent=1 // pred_fallthru
      _
    // Predicated region
    $region270: #{tpu_custom_call.1} parent=1 // pred_check
      _
    $region271: #{tpu_custom_call.1} parent=1 // pred_check_branch
      %443 = sbr.rel (0) target = $region273
    $region272: #{tpu_custom_call.1} parent=1 // pred_region
      %444 = dma.done [#allocation18], 16
    $region273: #{tpu_custom_call.1} parent=1 // pred_fallthru
      _
    // Predicated region
    $region274: #{tpu_custom_call.1} parent=1 // pred_check
      _
    $region275: #{tpu_custom_call.1} parent=1 // pred_check_branch
      %446 = sbr.rel (0) target = $region277
    $region276: #{tpu_custom_call.1} parent=1 // pred_region
      %447 = dma.done [#allocation21], 16
    $region277: #{tpu_custom_call.1} parent=1 // pred_fallthru
      _
    // Predicated region
    $region278: #{tpu_custom_call.1} parent=1 // pred_check
      _
    $region279: #{tpu_custom_call.1} parent=1 // pred_check_branch
      %449 = sbr.rel (0) target = $region281
    $region280: #{tpu_custom_call.1} parent=1 // pred_region
      %450 = dma.done [#allocation21], 32
    $region281: #{tpu_custom_call.1} parent=1 // pred_fallthru
      _
    // Predicated region
    $region282: #{tpu_custom_call.1} parent=1 // pred_check
      _
    $region283: #{tpu_custom_call.1} parent=1 // pred_check_branch
      %452 = sbr.rel (0) target = $region285
    $region284: #{tpu_custom_call.1} parent=1 // pred_region
      %453 = dma.done [#allocation24], 16
    $region285: #{tpu_custom_call.1} parent=1 // pred_fallthru
      _
    // Predicated region
    $region286: #{tpu_custom_call.1} parent=1 // pred_check
      _
    $region287: #{tpu_custom_call.1} parent=1 // pred_check_branch
      %455 = sbr.rel (0) target = $region289
    $region288: #{tpu_custom_call.1} parent=1 // pred_region
      %456 = dma.done [#allocation24], 16
    $region289: #{tpu_custom_call.1} parent=1 // pred_fallthru
      _
    // Predicated region
    $region290: #{tpu_custom_call.1} parent=1 // pred_check
      _
    $region291: #{tpu_custom_call.1} parent=1 // pred_check_branch
      %458 = sbr.rel (0) target = $region293
    $region292: #{tpu_custom_call.1} parent=1 // pred_region
      %459 = dma.done [#allocation27], 16
    $region293: #{tpu_custom_call.1} parent=1 // pred_fallthru
      _
    // Predicated region
    $region294: #{tpu_custom_call.1} parent=1 // pred_check
      _
    $region295: #{tpu_custom_call.1} parent=1 // pred_check_branch
      %461 = sbr.rel (0) target = $region297
    $region296: #{tpu_custom_call.1} parent=1 // pred_region
      %462 = dma.done [#allocation27], 16
    $region297: #{tpu_custom_call.1} parent=1 // pred_fallthru
      _
    // Predicated region
    $region298: #{tpu_custom_call.1} parent=1 // pred_check
      _
    $region299: #{tpu_custom_call.1} parent=1 // pred_check_branch
      %464 = sbr.rel (0) target = $region301
    $region300: #{tpu_custom_call.1} parent=1 // pred_region
      %465 = dma.done [#allocation30], 16
    $region301: #{tpu_custom_call.1} parent=1 // pred_fallthru
      _
    // Predicated region
    $region302: #{tpu_custom_call.1} parent=1 // pred_check
      _
    $region303: #{tpu_custom_call.1} parent=1 // pred_check_branch
      %467 = sbr.rel (0) target = $region305
    $region304: #{tpu_custom_call.1} parent=1 // pred_region
      %468 = dma.done [#allocation30], 16
    $region305: #{tpu_custom_call.1} parent=1 // pred_fallthru
      _
    // Predicated region
    $region306: #{tpu_custom_call.1} parent=1 // pred_check
      _
    $region307: #{tpu_custom_call.1} parent=1 // pred_check_branch
      %470 = sbr.rel (0) target = $region309
    $region308: #{tpu_custom_call.1} parent=1 // pred_region
      %471 = dma.done [#allocation33], 16
    $region309: #{tpu_custom_call.1} parent=1 // pred_fallthru
      _
    %v472 = vlaneseq
    %v473 = vshrl.u32 %v472, 7
    %v474 = vlaneseq
    %v475 = vand.u32 %v474, 127
    %vm476 = vcmp.le.s32.totalorder %v475, %v473
    %v477 = vld [vmem:[#allocation2] sm:$0xff]
    %v478 = vld [vmem:[#allocation2 + $0x8] sm:$0xff]
    %v479 = vld [vmem:[%s3] sm:$0xff]
    %v480 = vld [vmem:[%s3 + $0x8] sm:$0xff]
    %v481 = vld [vmem:[%s3 + $0x10] sm:$0xff]
    %v482 = vld [vmem:[%s3 + $0x18] sm:$0xff]
    %v483 = vld [vmem:[#allocation5] sm:$0x1]
    %v484 = vld [vmem:[#allocation7] sm:$0xff]
    %v485 = vld [vmem:[#allocation7 + $0x8] sm:$0xff]
    %v486 = vld [vmem:[#allocation7 + $0x10] sm:$0xff]
    %v487 = vld [vmem:[#allocation7 + $0x18] sm:$0xff]
    %v488 = vld [vmem:[#allocation8] sm:$0x1]
    %v489 = vld [vmem:[#allocation10] sm:$0x1]
    %v490 = vld [vmem:[#allocation11] sm:$0x1]
    %v491 = vld [vmem:[#allocation13] sm:$0xff]
    %v492 = vld [vmem:[#allocation13 + $0x8] sm:$0xff]
    %v493 = vld [vmem:[#allocation13 + $0x10] sm:$0xff]
    %v494 = vld [vmem:[#allocation13 + $0x18] sm:$0xff]
    %v495 = vld [vmem:[#allocation14] sm:$0x1]
    %v496 = vld [vmem:[%s19] sm:$0xff]
    %v497 = vld [vmem:[%s19 + $0x8] sm:$0xff]
    %v498 = vld [vmem:[%s19 + $0x10] sm:$0xff]
    %v499 = vld [vmem:[%s19 + $0x18] sm:$0xff]
    %v500 = vld [vmem:[%s19 + $0x20] sm:$0xff]
    %v501 = vld [vmem:[%s19 + $0x28] sm:$0xff]
    %v502 = vld [vmem:[%s19 + $0x30] sm:$0xff]
    %v503 = vld [vmem:[%s19 + $0x38] sm:$0xff]
    %v504 = vld [vmem:[%s19 + $0x40] sm:$0xff]
    %v505 = vld [vmem:[%s19 + $0x48] sm:$0xff]
    %v506 = vld [vmem:[%s19 + $0x50] sm:$0xff]
    %v507 = vld [vmem:[%s19 + $0x58] sm:$0xff]
    %v508 = vld [vmem:[%s19 + $0x60] sm:$0xff]
    %v509 = vld [vmem:[%s19 + $0x68] sm:$0xff]
    %v510 = vld [vmem:[%s19 + $0x70] sm:$0xff]
    %v511 = vld [vmem:[%s19 + $0x78] sm:$0xff]
    %v512 = vld [vmem:[#allocation16] sm:$0x1]
    %v513 = vld [vmem:[#allocation17] sm:$0x1]
    %v514 = vld [vmem:[#allocation19] sm:$0x1]
    %v515 = vld [vmem:[%s27] sm:$0xff]
    %v516 = vld [vmem:[%s27 + $0x8] sm:$0xff]
    %v517 = vld [vmem:[%s27 + $0x10] sm:$0xff]
    %v518 = vld [vmem:[%s27 + $0x18] sm:$0xff]
    %v519 = vld [vmem:[#allocation20] sm:$0x1]
    %v521 = vlaneseq
    %v522 = vshrl.u32 %v521, 7
    %v523 = vsub.s32 0, %v522
    %v524 = vrot.slane %v483, %v523
    %vm526 = vcmask 261120
    %v528 = vsel %vm526, %v477, 0
    %v531 = vsel %vm526, %v478, 0
    %533 = vmatprep.subr.mxu0 0.0
    %534 = vmatpush1.msra.mxu0 %v479
    %535 = vmatprep.subr.mxu0 0.0
    %536 = vmatpush1.msra.mxu0 %v480
    %537 = vmatprep.subr.mxu0 0.0
    %538 = vmatpush1.msra.mxu0 %v481
    %539 = vmatprep.subr.mxu0 0.0
    %540 = vmatpush1.msra.mxu0 %v482
    %541 = vmatprep.subr.mxu0 0.0
    %542 = vmatpush1.msra.mxu0 0.0
    %543 = vmatprep.subr.mxu0 0.0
    %544 = vmatpush1.msra.mxu0 0.0
    %545 = vmatprep.subr.mxu0 0.0
    %546 = vmatpush1.msra.mxu0 0.0
    %547 = vmatprep.subr.mxu0 0.0
    %548 = vmatpush1.msra.mxu0 0.0
    %549 = vmatprep.subr.mxu0 0.0
    %550 = vmatpush1.msra.mxu0 0.0
    %551 = vmatprep.subr.mxu0 0.0
    %552 = vmatpush1.msra.mxu0 0.0
    %553 = vmatprep.subr.mxu0 0.0
    %554 = vmatpush1.msra.mxu0 0.0
    %555 = vmatprep.subr.mxu0 0.0
    %556 = vmatpush1.msra.mxu0 0.0
    %557 = vmatprep.subr.mxu0 0.0
    %558 = vmatpush1.msra.mxu0 0.0
    %559 = vmatprep.subr.mxu0 0.0
    %560 = vmatpush1.msra.mxu0 0.0
    %561 = vmatprep.subr.mxu0 0.0
    %562 = vmatpush1.msra.mxu0 0.0
    %563 = vmatprep.subr.mxu0 0.0
    %564 = vmatpush1.msra.mxu0 0.0
    %565 = vmatprep.subr.mxu0 0.0
    %566 = vmatpush1.msra.mxu0 0.0
    %567 = vmatprep.subr.mxu0 0.0
    %568 = vmatpush1.msra.mxu0 0.0
    %569 = vmatprep.subr.mxu0 0.0
    %570 = vmatpush1.msra.mxu0 0.0
    %571 = vmatprep.subr.mxu0 0.0
    %572 = vmatpush1.msra.mxu0 0.0
    %573 = vmatprep.subr.mxu0 0.0
    %574 = vmatpush1.msra.mxu0 0.0
    %575 = vmatprep.subr.mxu0 0.0
    %576 = vmatpush1.msra.mxu0 0.0
    %577 = vmatprep.subr.mxu0 0.0
    %578 = vmatpush1.msra.mxu0 0.0
    %579 = vmatprep.subr.mxu0 0.0
    %580 = vmatpush1.msra.mxu0 0.0
    %581 = vmatprep.subr.mxu0 0.0
    %582 = vmatpush1.msra.mxu0 0.0
    %583 = vmatprep.subr.mxu0 0.0
    %584 = vmatpush1.msra.mxu0 0.0
    %585 = vmatprep.subr.mxu0 0.0
    %586 = vmatpush1.msra.mxu0 0.0
    %587 = vmatprep.subr.mxu0 0.0
    %588 = vmatpush1.msra.mxu0 0.0
    %589 = vmatprep.subr.mxu0 0.0
    %590 = vmatpush1.msra.mxu0 0.0
    %591 = vmatprep.subr.mxu0 0.0
    %592 = vmatpush1.msra.mxu0 0.0
    %593 = vmatprep.subr.mxu0 0.0
    %594 = vmatpush1.msra.mxu0 0.0
    %595 = vmatprep.subr.mxu0 0.0
    %596 = vmatpush1.msra.mxu0 0.0
    %597 = vmatprep.mubr.f32.mxu0 0.0
    %598 = vmatmul.mubr.f32.gmra.mrb[0].mxu0 %v528
    %v599 = vpop.f32.mrb[0].mxu0
    %v600 = vadd.f32 %v524, %v599
    %v601 = vpop.f32.mrb[0].mxu0
    %602 = vmatprep.mubr.f32.mxu0 0.0
    %603 = vmatmul.mubr.f32.gmra.mrb[0].mxu0 %v531
    %v604 = vpop.f32.mrb[0].mxu0
    %v605 = vadd.f32 %v524, %v604
    %v606 = vpop.f32.mrb[0].mxu0
    %607 = vdwg.mxu0
    %v608 = vmul.f32 %v600, 0.17677669
    %v609 = vmul.f32 %v605, 0.17677669
    %611 = vrot.lane.b32.xlu0 %v600, 96
    %v612 = vpop.permute.xlu0 %611
    %v614 = vsel %vm526, %v608, 0
    %v616 = vsel %vm526, %v612, 0
    %618 = vmatprep.subr.mxu0 0.0
    %619 = vmatpush1.xpose.msra.mxu0 %v616
    %620 = vmatprep.subr.mxu0 0.0
    %621 = vmatpush1.xpose.msra.mxu0 0.0
    %622 = vmatprep.subr.mxu0 0.0
    %623 = vmatpush1.xpose.msra.mxu0 0.0
    %624 = vmatprep.subr.mxu0 0.0
    %625 = vmatpush1.xpose.msra.mxu0 0.0
    %626 = vmatprep.subr.mxu0 0.0
    %627 = vmatpush1.xpose.msra.mxu0 0.0
    %628 = vmatprep.subr.mxu0 0.0
    %629 = vmatpush1.xpose.msra.mxu0 0.0
    %630 = vmatprep.subr.mxu0 0.0
    %631 = vmatpush1.xpose.msra.mxu0 0.0
    %632 = vmatprep.subr.mxu0 0.0
    %633 = vmatpush1.xpose.msra.mxu0 0.0
    %634 = vmatprep.subr.mxu0 0.0
    %635 = vmatpush1.xpose.msra.mxu0 0.0
    %636 = vmatprep.subr.mxu0 0.0
    %637 = vmatpush1.xpose.msra.mxu0 0.0
    %638 = vmatprep.subr.mxu0 0.0
    %639 = vmatpush1.xpose.msra.mxu0 0.0
    %640 = vmatprep.subr.mxu0 0.0
    %641 = vmatpush1.xpose.msra.mxu0 0.0
    %642 = vmatprep.subr.mxu0 0.0
    %643 = vmatpush1.xpose.msra.mxu0 0.0
    %644 = vmatprep.subr.mxu0 0.0
    %645 = vmatpush1.xpose.msra.mxu0 0.0
    %646 = vmatprep.subr.mxu0 0.0
    %647 = vmatpush1.xpose.msra.mxu0 0.0
    %648 = vmatprep.subr.mxu0 0.0
    %649 = vmatpush1.xpose.msra.mxu0 0.0
    %650 = vmatprep.subr.mxu0 0.0
    %651 = vmatpush1.xpose.msra.mxu0 0.0
    %652 = vmatprep.subr.mxu0 0.0
    %653 = vmatpush1.xpose.msra.mxu0 0.0
    %654 = vmatprep.subr.mxu0 0.0
    %655 = vmatpush1.xpose.msra.mxu0 0.0
    %656 = vmatprep.subr.mxu0 0.0
    %657 = vmatpush1.xpose.msra.mxu0 0.0
    %658 = vmatprep.subr.mxu0 0.0
    %659 = vmatpush1.xpose.msra.mxu0 0.0
    %660 = vmatprep.subr.mxu0 0.0
    %661 = vmatpush1.xpose.msra.mxu0 0.0
    %662 = vmatprep.subr.mxu0 0.0
    %663 = vmatpush1.xpose.msra.mxu0 0.0
    %664 = vmatprep.subr.mxu0 0.0
    %665 = vmatpush1.xpose.msra.mxu0 0.0
    %666 = vmatprep.subr.mxu0 0.0
    %667 = vmatpush1.xpose.msra.mxu0 0.0
    %668 = vmatprep.subr.mxu0 0.0
    %669 = vmatpush1.xpose.msra.mxu0 0.0
    %670 = vmatprep.subr.mxu0 0.0
    %671 = vmatpush1.xpose.msra.mxu0 0.0
    %672 = vmatprep.subr.mxu0 0.0
    %673 = vmatpush1.xpose.msra.mxu0 0.0
    %674 = vmatprep.subr.mxu0 0.0
    %675 = vmatpush1.xpose.msra.mxu0 0.0
    %676 = vmatprep.subr.mxu0 0.0
    %677 = vmatpush1.xpose.msra.mxu0 0.0
    %678 = vmatprep.subr.mxu0 0.0
    %679 = vmatpush1.xpose.msra.mxu0 0.0
    %680 = vmatprep.subr.mxu0 0.0
    %681 = vmatpush1.xpose.msra.mxu0 0.0
    %682 = vmatprep.mubr.f32.mxu0 0.0
    %683 = vmatmul.mubr.f32.gmra.mrb[0].mxu0 %v614
    %v684 = vpop.f32.mrb[0].mxu0
    %v685 = vadd.f32 0.0, %v684
    %v686 = vpop.f32.mrb[0].mxu0
    %687 = vdwg.mxu0
    %689 = vrot.lane.b32.xlu0 %v605, 96
    %v690 = vpop.permute.xlu0 %689
    %v692 = vsel %vm526, %v609, 0
    %v694 = vsel %vm526, %v690, 0
    %696 = vmatprep.subr.mxu0 0.0
    %697 = vmatpush1.xpose.msra.mxu0 %v694
    %698 = vmatprep.subr.mxu0 0.0
    %699 = vmatpush1.xpose.msra.mxu0 0.0
    %700 = vmatprep.subr.mxu0 0.0
    %701 = vmatpush1.xpose.msra.mxu0 0.0
    %702 = vmatprep.subr.mxu0 0.0
    %703 = vmatpush1.xpose.msra.mxu0 0.0
    %704 = vmatprep.subr.mxu0 0.0
    %705 = vmatpush1.xpose.msra.mxu0 0.0
    %706 = vmatprep.subr.mxu0 0.0
    %707 = vmatpush1.xpose.msra.mxu0 0.0
    %708 = vmatprep.subr.mxu0 0.0
    %709 = vmatpush1.xpose.msra.mxu0 0.0
    %710 = vmatprep.subr.mxu0 0.0
    %711 = vmatpush1.xpose.msra.mxu0 0.0
    %712 = vmatprep.subr.mxu0 0.0
    %713 = vmatpush1.xpose.msra.mxu0 0.0
    %714 = vmatprep.subr.mxu0 0.0
    %715 = vmatpush1.xpose.msra.mxu0 0.0
    %716 = vmatprep.subr.mxu0 0.0
    %717 = vmatpush1.xpose.msra.mxu0 0.0
    %718 = vmatprep.subr.mxu0 0.0
    %719 = vmatpush1.xpose.msra.mxu0 0.0
    %720 = vmatprep.subr.mxu0 0.0
    %721 = vmatpush1.xpose.msra.mxu0 0.0
    %722 = vmatprep.subr.mxu0 0.0
    %723 = vmatpush1.xpose.msra.mxu0 0.0
    %724 = vmatprep.subr.mxu0 0.0
    %725 = vmatpush1.xpose.msra.mxu0 0.0
    %726 = vmatprep.subr.mxu0 0.0
    %727 = vmatpush1.xpose.msra.mxu0 0.0
    %728 = vmatprep.subr.mxu0 0.0
    %729 = vmatpush1.xpose.msra.mxu0 0.0
    %730 = vmatprep.subr.mxu0 0.0
    %731 = vmatpush1.xpose.msra.mxu0 0.0
    %732 = vmatprep.subr.mxu0 0.0
    %733 = vmatpush1.xpose.msra.mxu0 0.0
    %734 = vmatprep.subr.mxu0 0.0
    %735 = vmatpush1.xpose.msra.mxu0 0.0
    %736 = vmatprep.subr.mxu0 0.0
    %737 = vmatpush1.xpose.msra.mxu0 0.0
    %738 = vmatprep.subr.mxu0 0.0
    %739 = vmatpush1.xpose.msra.mxu0 0.0
    %740 = vmatprep.subr.mxu0 0.0
    %741 = vmatpush1.xpose.msra.mxu0 0.0
    %742 = vmatprep.subr.mxu0 0.0
    %743 = vmatpush1.xpose.msra.mxu0 0.0
    %744 = vmatprep.subr.mxu0 0.0
    %745 = vmatpush1.xpose.msra.mxu0 0.0
    %746 = vmatprep.subr.mxu0 0.0
    %747 = vmatpush1.xpose.msra.mxu0 0.0
    %748 = vmatprep.subr.mxu0 0.0
    %749 = vmatpush1.xpose.msra.mxu0 0.0
    %750 = vmatprep.subr.mxu0 0.0
    %751 = vmatpush1.xpose.msra.mxu0 0.0
    %752 = vmatprep.subr.mxu0 0.0
    %753 = vmatpush1.xpose.msra.mxu0 0.0
    %754 = vmatprep.subr.mxu0 0.0
    %755 = vmatpush1.xpose.msra.mxu0 0.0
    %756 = vmatprep.subr.mxu0 0.0
    %757 = vmatpush1.xpose.msra.mxu0 0.0
    %758 = vmatprep.subr.mxu0 0.0
    %759 = vmatpush1.xpose.msra.mxu0 0.0
    %760 = vmatprep.mubr.f32.mxu0 0.0
    %761 = vmatmul.mubr.f32.gmra.mrb[0].mxu0 %v692
    %v762 = vpop.f32.mrb[0].mxu0
    %v763 = vadd.f32 0.0, %v762
    %v764 = vpop.f32.mrb[0].mxu0
    %765 = vdwg.mxu0
    %v766 = vsel %vm476, 1, 0
    %vm767 = vcmp.eq.s32.totalorder %v766, 1
    %v768 = vsel %vm767, %v685, -1e+09
    %v769 = vsel %vm767, %v763, -1e+09
    %vm770 = vcmask 64512
    %v771 = vsel %vm770, %v768, -inf
    %772 = vmax.xlane.f32.xlu0 %v771
    %v773 = vpop.xlane.xlu0 %772
    %v774 = vsel %vm770, %v769, -inf
    %775 = vmax.xlane.f32.xlu0 %v774
    %v776 = vpop.xlane.xlu0 %775
    %v777 = vsub.f32 %v768, %v773
    %v778 = vsub.f32 %v769, %v776
    %v779 = vmul.f32 %v777, 1.442695
    %v780 = vpow.pop %v779
    %v781 = vmul.f32 %v778, 1.442695
    %v782 = vpow.pop %v781
    %v783 = vsel %vm770, %v780, 0.0
    %784 = vadd.xlane.f32.xlu0 %v783
    %v785 = vpop.xlane.xlu0 %784
    %v786 = vsel %vm770, %v782, 0.0
    %787 = vadd.xlane.f32.xlu0 %v786
    %v788 = vpop.xlane.xlu0 %787
    %v789 = vrcp.pop %v785
    %v790 = vmul.f32 %v780, %v789
    %v791 = vrcp.pop %v788
    %v792 = vmul.f32 %v782, %v791
    %793 = vrot.lane.b32.xlu0 %v600, 64
    %v794 = vpop.permute.xlu0 %793
    %v797 = vsel %vm770, %v790, 0
    %799 = vmatprep.subr.mxu0 0.0
    %800 = vmatpush1.msra.mxu0 %v794
    %801 = vmatprep.subr.mxu0 0.0
    %802 = vmatpush1.msra.mxu0 0.0
    %803 = vmatprep.subr.mxu0 0.0
    %804 = vmatpush1.msra.mxu0 0.0
    %805 = vmatprep.subr.mxu0 0.0
    %806 = vmatpush1.msra.mxu0 0.0
    %807 = vmatprep.subr.mxu0 0.0
    %808 = vmatpush1.msra.mxu0 0.0
    %809 = vmatprep.subr.mxu0 0.0
    %810 = vmatpush1.msra.mxu0 0.0
    %811 = vmatprep.subr.mxu0 0.0
    %812 = vmatpush1.msra.mxu0 0.0
    %813 = vmatprep.subr.mxu0 0.0
    %814 = vmatpush1.msra.mxu0 0.0
    %815 = vmatprep.subr.mxu0 0.0
    %816 = vmatpush1.msra.mxu0 0.0
    %817 = vmatprep.subr.mxu0 0.0
    %818 = vmatpush1.msra.mxu0 0.0
    %819 = vmatprep.subr.mxu0 0.0
    %820 = vmatpush1.msra.mxu0 0.0
    %821 = vmatprep.subr.mxu0 0.0
    %822 = vmatpush1.msra.mxu0 0.0
    %823 = vmatprep.subr.mxu0 0.0
    %824 = vmatpush1.msra.mxu0 0.0
    %825 = vmatprep.subr.mxu0 0.0
    %826 = vmatpush1.msra.mxu0 0.0
    %827 = vmatprep.subr.mxu0 0.0
    %828 = vmatpush1.msra.mxu0 0.0
    %829 = vmatprep.subr.mxu0 0.0
    %830 = vmatpush1.msra.mxu0 0.0
    %831 = vmatprep.subr.mxu0 0.0
    %832 = vmatpush1.msra.mxu0 0.0
    %833 = vmatprep.subr.mxu0 0.0
    %834 = vmatpush1.msra.mxu0 0.0
    %835 = vmatprep.subr.mxu0 0.0
    %836 = vmatpush1.msra.mxu0 0.0
    %837 = vmatprep.subr.mxu0 0.0
    %838 = vmatpush1.msra.mxu0 0.0
    %839 = vmatprep.subr.mxu0 0.0
    %840 = vmatpush1.msra.mxu0 0.0
    %841 = vmatprep.subr.mxu0 0.0
    %842 = vmatpush1.msra.mxu0 0.0
    %843 = vmatprep.subr.mxu0 0.0
    %844 = vmatpush1.msra.mxu0 0.0
    %845 = vmatprep.subr.mxu0 0.0
    %846 = vmatpush1.msra.mxu0 0.0
    %847 = vmatprep.subr.mxu0 0.0
    %848 = vmatpush1.msra.mxu0 0.0
    %849 = vmatprep.subr.mxu0 0.0
    %850 = vmatpush1.msra.mxu0 0.0
    %851 = vmatprep.subr.mxu0 0.0
    %852 = vmatpush1.msra.mxu0 0.0
    %853 = vmatprep.subr.mxu0 0.0
    %854 = vmatpush1.msra.mxu0 0.0
    %855 = vmatprep.subr.mxu0 0.0
    %856 = vmatpush1.msra.mxu0 0.0
    %857 = vmatprep.subr.mxu0 0.0
    %858 = vmatpush1.msra.mxu0 0.0
    %859 = vmatprep.subr.mxu0 0.0
    %860 = vmatpush1.msra.mxu0 0.0
    %861 = vmatprep.subr.mxu0 0.0
    %862 = vmatpush1.msra.mxu0 0.0
    %863 = vmatprep.mubr.f32.mxu0 0.0
    %864 = vmatmul.mubr.f32.gmra.mrb[0].mxu0 %v797
    %v865 = vpop.f32.mrb[0].mxu0
    %v866 = vadd.f32 0.0, %v865
    %v867 = vpop.f32.mrb[0].mxu0
    %868 = vdwg.mxu0
    %869 = vrot.lane.b32.xlu0 %v605, 64
    %v870 = vpop.permute.xlu0 %869
    %v873 = vsel %vm770, %v792, 0
    %875 = vmatprep.subr.mxu0 0.0
    %876 = vmatpush1.msra.mxu0 %v870
    %877 = vmatprep.subr.mxu0 0.0
    %878 = vmatpush1.msra.mxu0 0.0
    %879 = vmatprep.subr.mxu0 0.0
    %880 = vmatpush1.msra.mxu0 0.0
    %881 = vmatprep.subr.mxu0 0.0
    %882 = vmatpush1.msra.mxu0 0.0
    %883 = vmatprep.subr.mxu0 0.0
    %884 = vmatpush1.msra.mxu0 0.0
    %885 = vmatprep.subr.mxu0 0.0
    %886 = vmatpush1.msra.mxu0 0.0
    %887 = vmatprep.subr.mxu0 0.0
    %888 = vmatpush1.msra.mxu0 0.0
    %889 = vmatprep.subr.mxu0 0.0
    %890 = vmatpush1.msra.mxu0 0.0
    %891 = vmatprep.subr.mxu0 0.0
    %892 = vmatpush1.msra.mxu0 0.0
    %893 = vmatprep.subr.mxu0 0.0
    %894 = vmatpush1.msra.mxu0 0.0
    %895 = vmatprep.subr.mxu0 0.0
    %896 = vmatpush1.msra.mxu0 0.0
    %897 = vmatprep.subr.mxu0 0.0
    %898 = vmatpush1.msra.mxu0 0.0
    %899 = vmatprep.subr.mxu0 0.0
    %900 = vmatpush1.msra.mxu0 0.0
    %901 = vmatprep.subr.mxu0 0.0
    %902 = vmatpush1.msra.mxu0 0.0
    %903 = vmatprep.subr.mxu0 0.0
    %904 = vmatpush1.msra.mxu0 0.0
    %905 = vmatprep.subr.mxu0 0.0
    %906 = vmatpush1.msra.mxu0 0.0
    %907 = vmatprep.subr.mxu0 0.0
    %908 = vmatpush1.msra.mxu0 0.0
    %909 = vmatprep.subr.mxu0 0.0
    %910 = vmatpush1.msra.mxu0 0.0
    %911 = vmatprep.subr.mxu0 0.0
    %912 = vmatpush1.msra.mxu0 0.0
    %913 = vmatprep.subr.mxu0 0.0
    %914 = vmatpush1.msra.mxu0 0.0
    %915 = vmatprep.subr.mxu0 0.0
    %916 = vmatpush1.msra.mxu0 0.0
    %917 = vmatprep.subr.mxu0 0.0
    %918 = vmatpush1.msra.mxu0 0.0
    %919 = vmatprep.subr.mxu0 0.0
    %920 = vmatpush1.msra.mxu0 0.0
    %921 = vmatprep.subr.mxu0 0.0
    %922 = vmatpush1.msra.mxu0 0.0
    %923 = vmatprep.subr.mxu0 0.0
    %924 = vmatpush1.msra.mxu0 0.0
    %925 = vmatprep.subr.mxu0 0.0
    %926 = vmatpush1.msra.mxu0 0.0
    %927 = vmatprep.subr.mxu0 0.0
    %928 = vmatpush1.msra.mxu0 0.0
    %929 = vmatprep.subr.mxu0 0.0
    %930 = vmatpush1.msra.mxu0 0.0
    %931 = vmatprep.subr.mxu0 0.0
    %932 = vmatpush1.msra.mxu0 0.0
    %933 = vmatprep.subr.mxu0 0.0
    %934 = vmatpush1.msra.mxu0 0.0
    %935 = vmatprep.subr.mxu0 0.0
    %936 = vmatpush1.msra.mxu0 0.0
    %937 = vmatprep.subr.mxu0 0.0
    %938 = vmatpush1.msra.mxu0 0.0
    %939 = vmatprep.mubr.f32.mxu0 0.0
    %940 = vmatmul.mubr.f32.gmra.mrb[0].mxu0 %v873
    %v941 = vpop.f32.mrb[0].mxu0
    %v942 = vadd.f32 0.0, %v941
    %v943 = vpop.f32.mrb[0].mxu0
    %944 = vdwg.mxu0
    %v946 = vlaneseq
    %v947 = vshrl.u32 %v946, 7
    %v948 = vsub.s32 0, %v947
    %v949 = vrot.slane %v488, %v948
    %v952 = vsel %vm526, %v866, 0
    %v955 = vsel %vm526, %v942, 0
    %957 = vmatprep.subr.mxu0 0.0
    %958 = vmatpush1.msra.mxu0 %v484
    %959 = vmatprep.subr.mxu0 0.0
    %960 = vmatpush1.msra.mxu0 %v485
    %961 = vmatprep.subr.mxu0 0.0
    %962 = vmatpush1.msra.mxu0 %v486
    %963 = vmatprep.subr.mxu0 0.0
    %964 = vmatpush1.msra.mxu0 %v487
    %965 = vmatprep.subr.mxu0 0.0
    %966 = vmatpush1.msra.mxu0 0.0
    %967 = vmatprep.subr.mxu0 0.0
    %968 = vmatpush1.msra.mxu0 0.0
    %969 = vmatprep.subr.mxu0 0.0
    %970 = vmatpush1.msra.mxu0 0.0
    %971 = vmatprep.subr.mxu0 0.0
    %972 = vmatpush1.msra.mxu0 0.0
    %973 = vmatprep.subr.mxu0 0.0
    %974 = vmatpush1.msra.mxu0 0.0
    %975 = vmatprep.subr.mxu0 0.0
    %976 = vmatpush1.msra.mxu0 0.0
    %977 = vmatprep.subr.mxu0 0.0
    %978 = vmatpush1.msra.mxu0 0.0
    %979 = vmatprep.subr.mxu0 0.0
    %980 = vmatpush1.msra.mxu0 0.0
    %981 = vmatprep.subr.mxu0 0.0
    %982 = vmatpush1.msra.mxu0 0.0
    %983 = vmatprep.subr.mxu0 0.0
    %984 = vmatpush1.msra.mxu0 0.0
    %985 = vmatprep.subr.mxu0 0.0
    %986 = vmatpush1.msra.mxu0 0.0
    %987 = vmatprep.subr.mxu0 0.0
    %988 = vmatpush1.msra.mxu0 0.0
    %989 = vmatprep.subr.mxu0 0.0
    %990 = vmatpush1.msra.mxu0 0.0
    %991 = vmatprep.subr.mxu0 0.0
    %992 = vmatpush1.msra.mxu0 0.0
    %993 = vmatprep.subr.mxu0 0.0
    %994 = vmatpush1.msra.mxu0 0.0
    %995 = vmatprep.subr.mxu0 0.0
    %996 = vmatpush1.msra.mxu0 0.0
    %997 = vmatprep.subr.mxu0 0.0
    %998 = vmatpush1.msra.mxu0 0.0
    %999 = vmatprep.subr.mxu0 0.0
    %1000 = vmatpush1.msra.mxu0 0.0
    %1001 = vmatprep.subr.mxu0 0.0
    %1002 = vmatpush1.msra.mxu0 0.0
    %1003 = vmatprep.subr.mxu0 0.0
    %1004 = vmatpush1.msra.mxu0 0.0
    %1005 = vmatprep.subr.mxu0 0.0
    %1006 = vmatpush1.msra.mxu0 0.0
    %1007 = vmatprep.subr.mxu0 0.0
    %1008 = vmatpush1.msra.mxu0 0.0
    %1009 = vmatprep.subr.mxu0 0.0
    %1010 = vmatpush1.msra.mxu0 0.0
    %1011 = vmatprep.subr.mxu0 0.0
    %1012 = vmatpush1.msra.mxu0 0.0
    %1013 = vmatprep.subr.mxu0 0.0
    %1014 = vmatpush1.msra.mxu0 0.0
    %1015 = vmatprep.subr.mxu0 0.0
    %1016 = vmatpush1.msra.mxu0 0.0
    %1017 = vmatprep.subr.mxu0 0.0
    %1018 = vmatpush1.msra.mxu0 0.0
    %1019 = vmatprep.subr.mxu0 0.0
    %1020 = vmatpush1.msra.mxu0 0.0
    %1021 = vmatprep.mubr.f32.mxu0 0.0
    %1022 = vmatmul.mubr.f32.gmra.mrb[0].mxu0 %v952
    %v1023 = vpop.f32.mrb[0].mxu0
    %v1024 = vadd.f32 %v949, %v1023
    %v1025 = vpop.f32.mrb[0].mxu0
    %1026 = vmatprep.mubr.f32.mxu0 0.0
    %1027 = vmatmul.mubr.f32.gmra.mrb[0].mxu0 %v955
    %v1028 = vpop.f32.mrb[0].mxu0
    %v1029 = vadd.f32 %v949, %v1028
    %v1030 = vpop.f32.mrb[0].mxu0
    %1031 = vdwg.mxu0
    %v1032 = vadd.f32 %v477, %v1024
    %v1033 = vadd.f32 %v478, %v1029
    %v1034 = vsel %vm526, %v1032, 0.0
    %1035 = vadd.xlane.f32.xlu0 %v1034
    %v1036 = vpop.xlane.xlu0 %1035
    %v1037 = vsel %vm526, %v1033, 0.0
    %1038 = vadd.xlane.f32.xlu0 %v1037
    %v1039 = vpop.xlane.xlu0 %1038
    %v1040 = vrcp.pop 32.0
    %v1041 = vmul.f32 %v1036, %v1040
    %v1042 = vmul.f32 %v1039, %v1040
    %v1043 = vsub.f32 %v1032, %v1041
    %v1044 = vsub.f32 %v1033, %v1042
    %v1045 = vmul.f32 %v1043, %v1043
    %v1046 = vmul.f32 %v1044, %v1044
    %v1047 = vsel %vm526, %v1045, 0.0
    %1048 = vadd.xlane.f32.xlu0 %v1047
    %v1049 = vpop.xlane.xlu0 %1048
    %v1050 = vsel %vm526, %v1046, 0.0
    %1051 = vadd.xlane.f32.xlu0 %v1050
    %v1052 = vpop.xlane.xlu0 %1051
    %v1053 = vmul.f32 %v1049, %v1040
    %v1054 = vmul.f32 %v1052, %v1040
    %v1055 = vadd.f32 %v1053, 1e-05
    %v1056 = vadd.f32 %v1054, 1e-05
    %v1057 = vrsqrt.pop %v1055
    %v1058 = vmul.f32 %v1055, %v1057
    %vm1059 = vcmp.eq.f32.partialorder %v1055, inf
    %v1060 = vsel %vm1059, %v1055, %v1058
    %vm1061 = vcmp.eq.f32.partialorder %v1055, 0.0
    %v1062 = vand.u32 %v1055, 2147483648
    %v1063 = vsel %vm1061, %v1062, %v1060
    %v1064 = vrsqrt.pop %v1056
    %v1065 = vmul.f32 %v1056, %v1064
    %vm1066 = vcmp.eq.f32.partialorder %v1056, inf
    %v1067 = vsel %vm1066, %v1056, %v1065
    %vm1068 = vcmp.eq.f32.partialorder %v1056, 0.0
    %v1069 = vand.u32 %v1056, 2147483648
    %v1070 = vsel %vm1068, %v1069, %v1067
    %v1071 = vrcp.pop %v1063
    %v1072 = vmul.f32 %v1043, %v1071
    %v1073 = vrcp.pop %v1070
    %v1074 = vmul.f32 %v1044, %v1073
    %v1076 = vlaneseq
    %v1077 = vshrl.u32 %v1076, 7
    %v1078 = vsub.s32 0, %v1077
    %v1079 = vrot.slane %v489, %v1078
    %v1081 = vmul.f32 %v1079, %v1072
    %v1082 = vmul.f32 %v1079, %v1074
    %v1084 = vlaneseq
    %v1085 = vshrl.u32 %v1084, 7
    %v1086 = vsub.s32 0, %v1085
    %v1087 = vrot.slane %v490, %v1086
    %v1089 = vadd.f32 %v1081, %v1087
    %v1090 = vadd.f32 %v1082, %v1087
    %v1092 = vlaneseq
    %v1093 = vshrl.u32 %v1092, 7
    %v1094 = vsub.s32 0, %v1093
    %v1095 = vrot.slane %v495, %v1094
    %v1098 = vsel %vm526, %v1089, 0
    %v1101 = vsel %vm526, %v1090, 0
    %1103 = vmatprep.subr.mxu0 0.0
    %1104 = vmatpush1.msra.mxu0 %v491
    %1105 = vmatprep.subr.mxu0 0.0
    %1106 = vmatpush1.msra.mxu0 %v492
    %1107 = vmatprep.subr.mxu0 0.0
    %1108 = vmatpush1.msra.mxu0 %v493
    %1109 = vmatprep.subr.mxu0 0.0
    %1110 = vmatpush1.msra.mxu0 %v494
    %1111 = vmatprep.subr.mxu0 0.0
    %1112 = vmatpush1.msra.mxu0 0.0
    %1113 = vmatprep.subr.mxu0 0.0
    %1114 = vmatpush1.msra.mxu0 0.0
    %1115 = vmatprep.subr.mxu0 0.0
    %1116 = vmatpush1.msra.mxu0 0.0
    %1117 = vmatprep.subr.mxu0 0.0
    %1118 = vmatpush1.msra.mxu0 0.0
    %1119 = vmatprep.subr.mxu0 0.0
    %1120 = vmatpush1.msra.mxu0 0.0
    %1121 = vmatprep.subr.mxu0 0.0
    %1122 = vmatpush1.msra.mxu0 0.0
    %1123 = vmatprep.subr.mxu0 0.0
    %1124 = vmatpush1.msra.mxu0 0.0
    %1125 = vmatprep.subr.mxu0 0.0
    %1126 = vmatpush1.msra.mxu0 0.0
    %1127 = vmatprep.subr.mxu0 0.0
    %1128 = vmatpush1.msra.mxu0 0.0
    %1129 = vmatprep.subr.mxu0 0.0
    %1130 = vmatpush1.msra.mxu0 0.0
    %1131 = vmatprep.subr.mxu0 0.0
    %1132 = vmatpush1.msra.mxu0 0.0
    %1133 = vmatprep.subr.mxu0 0.0
    %1134 = vmatpush1.msra.mxu0 0.0
    %1135 = vmatprep.subr.mxu0 0.0
    %1136 = vmatpush1.msra.mxu0 0.0
    %1137 = vmatprep.subr.mxu0 0.0
    %1138 = vmatpush1.msra.mxu0 0.0
    %1139 = vmatprep.subr.mxu0 0.0
    %1140 = vmatpush1.msra.mxu0 0.0
    %1141 = vmatprep.subr.mxu0 0.0
    %1142 = vmatpush1.msra.mxu0 0.0
    %1143 = vmatprep.subr.mxu0 0.0
    %1144 = vmatpush1.msra.mxu0 0.0
    %1145 = vmatprep.subr.mxu0 0.0
    %1146 = vmatpush1.msra.mxu0 0.0
    %1147 = vmatprep.subr.mxu0 0.0
    %1148 = vmatpush1.msra.mxu0 0.0
    %1149 = vmatprep.subr.mxu0 0.0
    %1150 = vmatpush1.msra.mxu0 0.0
    %1151 = vmatprep.subr.mxu0 0.0
    %1152 = vmatpush1.msra.mxu0 0.0
    %1153 = vmatprep.subr.mxu0 0.0
    %1154 = vmatpush1.msra.mxu0 0.0
    %1155 = vmatprep.subr.mxu0 0.0
    %1156 = vmatpush1.msra.mxu0 0.0
    %1157 = vmatprep.subr.mxu0 0.0
    %1158 = vmatpush1.msra.mxu0 0.0
    %1159 = vmatprep.subr.mxu0 0.0
    %1160 = vmatpush1.msra.mxu0 0.0
    %1161 = vmatprep.subr.mxu0 0.0
    %1162 = vmatpush1.msra.mxu0 0.0
    %1163 = vmatprep.subr.mxu0 0.0
    %1164 = vmatpush1.msra.mxu0 0.0
    %1165 = vmatprep.subr.mxu0 0.0
    %1166 = vmatpush1.msra.mxu0 0.0
    %1167 = vmatprep.mubr.f32.mxu0 0.0
    %1168 = vmatmul.mubr.f32.gmra.mrb[0].mxu0 %v1098
    %v1169 = vpop.f32.mrb[0].mxu0
    %v1170 = vadd.f32 %v1095, %v1169
    %v1171 = vpop.f32.mrb[0].mxu0
    %1172 = vmatprep.mubr.f32.mxu0 0.0
    %1173 = vmatmul.mubr.f32.gmra.mrb[0].mxu0 %v1101
    %v1174 = vpop.f32.mrb[0].mxu0
    %v1175 = vadd.f32 %v1095, %v1174
    %v1176 = vpop.f32.mrb[0].mxu0
    %1177 = vdwg.mxu0
    %v1178 = vmul.f32 %v1170, 0.5
    %v1179 = vmul.f32 %v1175, 0.5
    %v1180 = vmul.f32 %v1170, 0.044715
    %v1181 = vmul.f32 %v1175, 0.044715
    %v1182 = vmul.f32 %v1180, %v1170
    %v1183 = vmul.f32 %v1181, %v1175
    %v1184 = vmul.f32 %v1182, %v1170
    %v1185 = vmul.f32 %v1183, %v1175
    %v1186 = vadd.f32 %v1170, %v1184
    %v1187 = vadd.f32 %v1175, %v1185
    %v1188 = vmul.f32 %v1186, 0.7978846
    %v1189 = vmul.f32 %v1187, 0.7978846
    %v1190 = vtanh.pop %v1188
    %v1191 = vtanh.pop %v1189
    %v1192 = vadd.f32 %v1190, 1.0
    %v1193 = vadd.f32 %v1191, 1.0
    %v1194 = vmul.f32 %v1178, %v1192
    %v1195 = vmul.f32 %v1179, %v1193
    %v1197 = vlaneseq
    %v1198 = vshrl.u32 %v1197, 7
    %v1199 = vsub.s32 0, %v1198
    %v1200 = vrot.slane %v512, %v1199
    %1202 = vmatprep.subr.mxu0 0.0
    %1203 = vmatpush1.msra.mxu0 %v496
    %1204 = vmatprep.subr.mxu0 0.0
    %1205 = vmatpush1.msra.mxu0 %v497
    %1206 = vmatprep.subr.mxu0 0.0
    %1207 = vmatpush1.msra.mxu0 %v498
    %1208 = vmatprep.subr.mxu0 0.0
    %1209 = vmatpush1.msra.mxu0 %v499
    %1210 = vmatprep.subr.mxu0 0.0
    %1211 = vmatpush1.msra.mxu0 %v500
    %1212 = vmatprep.subr.mxu0 0.0
    %1213 = vmatpush1.msra.mxu0 %v501
    %1214 = vmatprep.subr.mxu0 0.0
    %1215 = vmatpush1.msra.mxu0 %v502
    %1216 = vmatprep.subr.mxu0 0.0
    %1217 = vmatpush1.msra.mxu0 %v503
    %1218 = vmatprep.subr.mxu0 0.0
    %1219 = vmatpush1.msra.mxu0 %v504
    %1220 = vmatprep.subr.mxu0 0.0
    %1221 = vmatpush1.msra.mxu0 %v505
    %1222 = vmatprep.subr.mxu0 0.0
    %1223 = vmatpush1.msra.mxu0 %v506
    %1224 = vmatprep.subr.mxu0 0.0
    %1225 = vmatpush1.msra.mxu0 %v507
    %1226 = vmatprep.subr.mxu0 0.0
    %1227 = vmatpush1.msra.mxu0 %v508
    %1228 = vmatprep.subr.mxu0 0.0
    %1229 = vmatpush1.msra.mxu0 %v509
    %1230 = vmatprep.subr.mxu0 0.0
    %1231 = vmatpush1.msra.mxu0 %v510
    %1232 = vmatprep.subr.mxu0 0.0
    %1233 = vmatpush1.msra.mxu0 %v511
    %1234 = vmatprep.subr.mxu0 0.0
    %1235 = vmatpush1.msra.mxu0 0.0
    %1236 = vmatprep.subr.mxu0 0.0
    %1237 = vmatpush1.msra.mxu0 0.0
    %1238 = vmatprep.subr.mxu0 0.0
    %1239 = vmatpush1.msra.mxu0 0.0
    %1240 = vmatprep.subr.mxu0 0.0
    %1241 = vmatpush1.msra.mxu0 0.0
    %1242 = vmatprep.subr.mxu0 0.0
    %1243 = vmatpush1.msra.mxu0 0.0
    %1244 = vmatprep.subr.mxu0 0.0
    %1245 = vmatpush1.msra.mxu0 0.0
    %1246 = vmatprep.subr.mxu0 0.0
    %1247 = vmatpush1.msra.mxu0 0.0
    %1248 = vmatprep.subr.mxu0 0.0
    %1249 = vmatpush1.msra.mxu0 0.0
    %1250 = vmatprep.subr.mxu0 0.0
    %1251 = vmatpush1.msra.mxu0 0.0
    %1252 = vmatprep.subr.mxu0 0.0
    %1253 = vmatpush1.msra.mxu0 0.0
    %1254 = vmatprep.subr.mxu0 0.0
    %1255 = vmatpush1.msra.mxu0 0.0
    %1256 = vmatprep.subr.mxu0 0.0
    %1257 = vmatpush1.msra.mxu0 0.0
    %1258 = vmatprep.subr.mxu0 0.0
    %1259 = vmatpush1.msra.mxu0 0.0
    %1260 = vmatprep.subr.mxu0 0.0
    %1261 = vmatpush1.msra.mxu0 0.0
    %1262 = vmatprep.subr.mxu0 0.0
    %1263 = vmatpush1.msra.mxu0 0.0
    %1264 = vmatprep.subr.mxu0 0.0
    %1265 = vmatpush1.msra.mxu0 0.0
    %1266 = vmatprep.mubr.f32.mxu0 0.0
    %1267 = vmatmul.mubr.f32.gmra.mrb[0].mxu0 %v1194
    %v1268 = vpop.f32.mrb[0].mxu0
    %v1269 = vadd.f32 %v1200, %v1268
    %v1270 = vpop.f32.mrb[0].mxu0
    %1271 = vmatprep.mubr.f32.mxu0 0.0
    %1272 = vmatmul.mubr.f32.gmra.mrb[0].mxu0 %v1195
    %v1273 = vpop.f32.mrb[0].mxu0
    %v1274 = vadd.f32 %v1200, %v1273
    %v1275 = vpop.f32.mrb[0].mxu0
    %1276 = vdwg.mxu0
    %v1277 = vadd.f32 %v1089, %v1269
    %v1278 = vadd.f32 %v1090, %v1274
    %v1279 = vsel %vm526, %v1277, 0.0
    %1280 = vadd.xlane.f32.xlu0 %v1279
    %v1281 = vpop.xlane.xlu0 %1280
    %v1282 = vsel %vm526, %v1278, 0.0
    %1283 = vadd.xlane.f32.xlu0 %v1282
    %v1284 = vpop.xlane.xlu0 %1283
    %v1285 = vmul.f32 %v1281, %v1040
    %v1286 = vmul.f32 %v1284, %v1040
    %v1287 = vsub.f32 %v1277, %v1285
    %v1288 = vsub.f32 %v1278, %v1286
    %v1289 = vmul.f32 %v1287, %v1287
    %v1290 = vmul.f32 %v1288, %v1288
    %v1291 = vsel %vm526, %v1289, 0.0
    %1292 = vadd.xlane.f32.xlu0 %v1291
    %v1293 = vpop.xlane.xlu0 %1292
    %v1294 = vsel %vm526, %v1290, 0.0
    %1295 = vadd.xlane.f32.xlu0 %v1294
    %v1296 = vpop.xlane.xlu0 %1295
    %v1297 = vmul.f32 %v1293, %v1040
    %v1298 = vmul.f32 %v1296, %v1040
    %v1299 = vadd.f32 %v1297, 1e-05
    %v1300 = vadd.f32 %v1298, 1e-05
    %v1301 = vrsqrt.pop %v1299
    %v1302 = vmul.f32 %v1299, %v1301
    %vm1303 = vcmp.eq.f32.partialorder %v1299, inf
    %v1304 = vsel %vm1303, %v1299, %v1302
    %vm1305 = vcmp.eq.f32.partialorder %v1299, 0.0
    %v1306 = vand.u32 %v1299, 2147483648
    %v1307 = vsel %vm1305, %v1306, %v1304
    %v1308 = vrsqrt.pop %v1300
    %v1309 = vmul.f32 %v1300, %v1308
    %vm1310 = vcmp.eq.f32.partialorder %v1300, inf
    %v1311 = vsel %vm1310, %v1300, %v1309
    %vm1312 = vcmp.eq.f32.partialorder %v1300, 0.0
    %v1313 = vand.u32 %v1300, 2147483648
    %v1314 = vsel %vm1312, %v1313, %v1311
    %v1315 = vrcp.pop %v1307
    %v1316 = vmul.f32 %v1287, %v1315
    %v1317 = vrcp.pop %v1314
    %v1318 = vmul.f32 %v1288, %v1317
    %v1320 = vlaneseq
    %v1321 = vshrl.u32 %v1320, 7
    %v1322 = vsub.s32 0, %v1321
    %v1323 = vrot.slane %v513, %v1322
    %v1325 = vmul.f32 %v1323, %v1316
    %v1326 = vmul.f32 %v1323, %v1318
    %v1328 = vlaneseq
    %v1329 = vshrl.u32 %v1328, 7
    %v1330 = vsub.s32 0, %v1329
    %v1331 = vrot.slane %v514, %v1330
    %v1333 = vadd.f32 %v1325, %v1331
    %v1334 = vadd.f32 %v1326, %v1331
    %v1336 = vlaneseq
    %v1337 = vshrl.u32 %v1336, 7
    %v1338 = vsub.s32 0, %v1337
    %v1339 = vrot.slane %v519, %v1338
    %v1342 = vsel %vm526, %v1333, 0
    %v1345 = vsel %vm526, %v1334, 0
    %1347 = vmatprep.subr.mxu0 0.0
    %1348 = vmatpush1.msra.mxu0 %v515
    %1349 = vmatprep.subr.mxu0 0.0
    %1350 = vmatpush1.msra.mxu0 %v516
    %1351 = vmatprep.subr.mxu0 0.0
    %1352 = vmatpush1.msra.mxu0 %v517
    %1353 = vmatprep.subr.mxu0 0.0
    %1354 = vmatpush1.msra.mxu0 %v518
    %1355 = vmatprep.subr.mxu0 0.0
    %1356 = vmatpush1.msra.mxu0 0.0
    %1357 = vmatprep.subr.mxu0 0.0
    %1358 = vmatpush1.msra.mxu0 0.0
    %1359 = vmatprep.subr.mxu0 0.0
    %1360 = vmatpush1.msra.mxu0 0.0
    %1361 = vmatprep.subr.mxu0 0.0
    %1362 = vmatpush1.msra.mxu0 0.0
    %1363 = vmatprep.subr.mxu0 0.0
    %1364 = vmatpush1.msra.mxu0 0.0
    %1365 = vmatprep.subr.mxu0 0.0
    %1366 = vmatpush1.msra.mxu0 0.0
    %1367 = vmatprep.subr.mxu0 0.0
    %1368 = vmatpush1.msra.mxu0 0.0
    %1369 = vmatprep.subr.mxu0 0.0
    %1370 = vmatpush1.msra.mxu0 0.0
    %1371 = vmatprep.subr.mxu0 0.0
    %1372 = vmatpush1.msra.mxu0 0.0
    %1373 = vmatprep.subr.mxu0 0.0
    %1374 = vmatpush1.msra.mxu0 0.0
    %1375 = vmatprep.subr.mxu0 0.0
    %1376 = vmatpush1.msra.mxu0 0.0
    %1377 = vmatprep.subr.mxu0 0.0
    %1378 = vmatpush1.msra.mxu0 0.0
    %1379 = vmatprep.subr.mxu0 0.0
    %1380 = vmatpush1.msra.mxu0 0.0
    %1381 = vmatprep.subr.mxu0 0.0
    %1382 = vmatpush1.msra.mxu0 0.0
    %1383 = vmatprep.subr.mxu0 0.0
    %1384 = vmatpush1.msra.mxu0 0.0
    %1385 = vmatprep.subr.mxu0 0.0
    %1386 = vmatpush1.msra.mxu0 0.0
    %1387 = vmatprep.subr.mxu0 0.0
    %1388 = vmatpush1.msra.mxu0 0.0
    %1389 = vmatprep.subr.mxu0 0.0
    %1390 = vmatpush1.msra.mxu0 0.0
    %1391 = vmatprep.subr.mxu0 0.0
    %1392 = vmatpush1.msra.mxu0 0.0
    %1393 = vmatprep.subr.mxu0 0.0
    %1394 = vmatpush1.msra.mxu0 0.0
    %1395 = vmatprep.subr.mxu0 0.0
    %1396 = vmatpush1.msra.mxu0 0.0
    %1397 = vmatprep.subr.mxu0 0.0
    %1398 = vmatpush1.msra.mxu0 0.0
    %1399 = vmatprep.subr.mxu0 0.0
    %1400 = vmatpush1.msra.mxu0 0.0
    %1401 = vmatprep.subr.mxu0 0.0
    %1402 = vmatpush1.msra.mxu0 0.0
    %1403 = vmatprep.subr.mxu0 0.0
    %1404 = vmatpush1.msra.mxu0 0.0
    %1405 = vmatprep.subr.mxu0 0.0
    %1406 = vmatpush1.msra.mxu0 0.0
    %1407 = vmatprep.subr.mxu0 0.0
    %1408 = vmatpush1.msra.mxu0 0.0
    %1409 = vmatprep.subr.mxu0 0.0
    %1410 = vmatpush1.msra.mxu0 0.0
    %1411 = vmatprep.mubr.f32.mxu0 0.0
    %1412 = vmatmul.mubr.f32.gmra.mrb[0].mxu0 %v1342
    %v1413 = vpop.f32.mrb[0].mxu0
    %v1414 = vadd.f32 %v1339, %v1413
    %v1415 = vpop.f32.mrb[0].mxu0
    %1416 = vmatprep.mubr.f32.mxu0 0.0
    %1417 = vmatmul.mubr.f32.gmra.mrb[0].mxu0 %v1345
    %v1418 = vpop.f32.mrb[0].mxu0
    %v1419 = vadd.f32 %v1339, %v1418
    %v1420 = vpop.f32.mrb[0].mxu0
    %1421 = vdwg.mxu0
    %1424 = vrot.lane.b32.xlu0 %v1414, 32
    %v1425 = vpop.permute.xlu0 %1424
    %1426 = vrot.lane.b32.xlu0 %v1419, 32
    %v1427 = vpop.permute.xlu0 %1426
    %v1430 = vsel %vm526, %v477, %v1425
    %v1431 = vsel %vm526, %v478, %v1427
    %v1432 = vld [vmem:[%s31] sm:$0xff]
    %v1433 = vld [vmem:[%s31 + $0x8] sm:$0xff]
    %v1434 = vld [vmem:[%s31 + $0x10] sm:$0xff]
    %v1435 = vld [vmem:[%s31 + $0x18] sm:$0xff]
    %v1436 = vld [vmem:[%s31 + $0x20] sm:$0xff]
    %v1437 = vld [vmem:[%s31 + $0x28] sm:$0xff]
    %v1438 = vld [vmem:[%s31 + $0x30] sm:$0xff]
    %v1439 = vld [vmem:[%s31 + $0x38] sm:$0xff]
    %v1440 = vld [vmem:[%s31 + $0x40] sm:$0xff]
    %v1441 = vld [vmem:[%s31 + $0x48] sm:$0xff]
    %v1442 = vld [vmem:[%s31 + $0x50] sm:$0xff]
    %v1443 = vld [vmem:[%s31 + $0x58] sm:$0xff]
    %v1444 = vld [vmem:[%s31 + $0x60] sm:$0xff]
    %v1445 = vld [vmem:[%s31 + $0x68] sm:$0xff]
    %v1446 = vld [vmem:[%s31 + $0x70] sm:$0xff]
    %v1447 = vld [vmem:[%s31 + $0x78] sm:$0xff]
    %v1448 = vld [vmem:[#allocation22] sm:$0x3]
    %v1449 = vld [vmem:[%s35] sm:$0xff]
    %v1450 = vld [vmem:[%s35 + $0x8] sm:$0xff]
    %v1451 = vld [vmem:[%s35 + $0x10] sm:$0xff]
    %v1452 = vld [vmem:[%s35 + $0x18] sm:$0xff]
    %v1453 = vld [vmem:[%s35 + $0x20] sm:$0xff]
    %v1454 = vld [vmem:[%s35 + $0x28] sm:$0xff]
    %v1455 = vld [vmem:[%s35 + $0x30] sm:$0xff]
    %v1456 = vld [vmem:[%s35 + $0x38] sm:$0xff]
    %v1457 = vld [vmem:[#allocation23] sm:$0x1]
    %v1458 = vld [vmem:[#allocation25] sm:$0x1]
    %v1459 = vld [vmem:[#allocation26] sm:$0x1]
    %v1460 = vld [vmem:[%s43] sm:$0xff]
    %v1461 = vld [vmem:[%s43 + $0x8] sm:$0xff]
    %v1462 = vld [vmem:[%s43 + $0x10] sm:$0xff]
    %v1463 = vld [vmem:[%s43 + $0x18] sm:$0xff]
    %v1464 = vld [vmem:[%s43 + $0x20] sm:$0xff]
    %v1465 = vld [vmem:[%s43 + $0x28] sm:$0xff]
    %v1466 = vld [vmem:[%s43 + $0x30] sm:$0xff]
    %v1467 = vld [vmem:[%s43 + $0x38] sm:$0xff]
    %v1468 = vld [vmem:[%s43 + $0x40] sm:$0xff]
    %v1469 = vld [vmem:[%s43 + $0x48] sm:$0xff]
    %v1470 = vld [vmem:[%s43 + $0x50] sm:$0xff]
    %v1471 = vld [vmem:[%s43 + $0x58] sm:$0xff]
    %v1472 = vld [vmem:[%s43 + $0x60] sm:$0xff]
    %v1473 = vld [vmem:[%s43 + $0x68] sm:$0xff]
    %v1474 = vld [vmem:[%s43 + $0x70] sm:$0xff]
    %v1475 = vld [vmem:[%s43 + $0x78] sm:$0xff]
    %v1476 = vld [vmem:[%s45] sm:$0x3]
    %v1477 = vld [vmem:[%s47] sm:$0xff]
    %v1478 = vld [vmem:[%s47 + $0x8] sm:$0xff]
    %v1479 = vld [vmem:[%s47 + $0x10] sm:$0xff]
    %v1480 = vld [vmem:[%s47 + $0x18] sm:$0xff]
    %v1481 = vld [vmem:[%s47 + $0x20] sm:$0xff]
    %v1482 = vld [vmem:[%s47 + $0x28] sm:$0xff]
    %v1483 = vld [vmem:[%s47 + $0x30] sm:$0xff]
    %v1484 = vld [vmem:[%s47 + $0x38] sm:$0xff]
    %v1485 = vld [vmem:[%s47 + $0x40] sm:$0xff]
    %v1486 = vld [vmem:[%s47 + $0x48] sm:$0xff]
    %v1487 = vld [vmem:[%s47 + $0x50] sm:$0xff]
    %v1488 = vld [vmem:[%s47 + $0x58] sm:$0xff]
    %v1489 = vld [vmem:[%s47 + $0x60] sm:$0xff]
    %v1490 = vld [vmem:[%s47 + $0x68] sm:$0xff]
    %v1491 = vld [vmem:[%s47 + $0x70] sm:$0xff]
    %v1492 = vld [vmem:[%s47 + $0x78] sm:$0xff]
    %v1493 = vld [vmem:[%s47 + $0x80] sm:$0xff]
    %v1494 = vld [vmem:[%s47 + $0x88] sm:$0xff]
    %v1495 = vld [vmem:[%s47 + $0x90] sm:$0xff]
    %v1496 = vld [vmem:[%s47 + $0x98] sm:$0xff]
    %v1497 = vld [vmem:[%s47 + $0xa0] sm:$0xff]
    %v1498 = vld [vmem:[%s47 + $0xa8] sm:$0xff]
    %v1499 = vld [vmem:[%s47 + $0xb0] sm:$0xff]
    %v1500 = vld [vmem:[%s47 + $0xb8] sm:$0xff]
    %v1501 = vld [vmem:[%s47 + $0xc0] sm:$0xff]
    %v1502 = vld [vmem:[%s47 + $0xc8] sm:$0xff]
    %v1503 = vld [vmem:[%s47 + $0xd0] sm:$0xff]
    %v1504 = vld [vmem:[%s47 + $0xd8] sm:$0xff]
    %v1505 = vld [vmem:[%s47 + $0xe0] sm:$0xff]
    %v1506 = vld [vmem:[%s47 + $0xe8] sm:$0xff]
    %v1507 = vld [vmem:[%s47 + $0xf0] sm:$0xff]
    %v1508 = vld [vmem:[%s47 + $0xf8] sm:$0xff]
    %v1509 = vld [vmem:[#allocation28] sm:$0x1]
    %v1510 = vld [vmem:[#allocation29] sm:$0x1]
    %v1511 = vld [vmem:[#allocation31] sm:$0x1]
    %v1512 = vld [vmem:[%s55] sm:$0xff]
    %v1513 = vld [vmem:[%s55 + $0x8] sm:$0xff]
    %v1514 = vld [vmem:[%s55 + $0x10] sm:$0xff]
    %v1515 = vld [vmem:[%s55 + $0x18] sm:$0xff]
    %v1516 = vld [vmem:[%s55 + $0x20] sm:$0xff]
    %v1517 = vld [vmem:[%s55 + $0x28] sm:$0xff]
    %v1518 = vld [vmem:[%s55 + $0x30] sm:$0xff]
    %v1519 = vld [vmem:[%s55 + $0x38] sm:$0xff]
    %v1520 = vld [vmem:[#allocation32] sm:$0x1]
    %v1522 = vlaneseq
    %v1523 = vshrl.u32 %v1522, 7
    %v1524 = vsub.s32 0, %v1523
    %v1525 = vrot.slane %v1448, %v1524
    %v1526 = vlaneseq
    %v1527 = vshrl.u32 %v1526, 7
    %v1528 = vsub.s32 1, %v1527
    %v1529 = vrot.slane %v1448, %v1528
    %vm1532 = vcmask 523264
    %v1534 = vsel %vm1532, %v1430, 0
    %v1537 = vsel %vm1532, %v1431, 0
    %1539 = vmatprep.subr.mxu0 %v1433
    %1540 = vmatpush1.msra.mxu0 %v1432
    %1541 = vmatprep.subr.mxu0 %v1435
    %1542 = vmatpush1.msra.mxu0 %v1434
    %1543 = vmatprep.subr.mxu0 %v1437
    %1544 = vmatpush1.msra.mxu0 %v1436
    %1545 = vmatprep.subr.mxu0 %v1439
    %1546 = vmatpush1.msra.mxu0 %v1438
    %1547 = vmatprep.subr.mxu0 %v1441
    %1548 = vmatpush1.msra.mxu0 %v1440
    %1549 = vmatprep.subr.mxu0 %v1443
    %1550 = vmatpush1.msra.mxu0 %v1442
    %1551 = vmatprep.subr.mxu0 %v1445
    %1552 = vmatpush1.msra.mxu0 %v1444
    %1553 = vmatprep.subr.mxu0 %v1447
    %1554 = vmatpush1.msra.mxu0 %v1446
    %1555 = vmatprep.subr.mxu0 0.0
    %1556 = vmatpush1.msra.mxu0 0.0
    %1557 = vmatprep.subr.mxu0 0.0
    %1558 = vmatpush1.msra.mxu0 0.0
    %1559 = vmatprep.subr.mxu0 0.0
    %1560 = vmatpush1.msra.mxu0 0.0
    %1561 = vmatprep.subr.mxu0 0.0
    %1562 = vmatpush1.msra.mxu0 0.0
    %1563 = vmatprep.subr.mxu0 0.0
    %1564 = vmatpush1.msra.mxu0 0.0
    %1565 = vmatprep.subr.mxu0 0.0
    %1566 = vmatpush1.msra.mxu0 0.0
    %1567 = vmatprep.subr.mxu0 0.0
    %1568 = vmatpush1.msra.mxu0 0.0
    %1569 = vmatprep.subr.mxu0 0.0
    %1570 = vmatpush1.msra.mxu0 0.0
    %1571 = vmatprep.subr.mxu0 0.0
    %1572 = vmatpush1.msra.mxu0 0.0
    %1573 = vmatprep.subr.mxu0 0.0
    %1574 = vmatpush1.msra.mxu0 0.0
    %1575 = vmatprep.subr.mxu0 0.0
    %1576 = vmatpush1.msra.mxu0 0.0
    %1577 = vmatprep.subr.mxu0 0.0
    %1578 = vmatpush1.msra.mxu0 0.0
    %1579 = vmatprep.subr.mxu0 0.0
    %1580 = vmatpush1.msra.mxu0 0.0
    %1581 = vmatprep.subr.mxu0 0.0
    %1582 = vmatpush1.msra.mxu0 0.0
    %1583 = vmatprep.subr.mxu0 0.0
    %1584 = vmatpush1.msra.mxu0 0.0
    %1585 = vmatprep.subr.mxu0 0.0
    %1586 = vmatpush1.msra.mxu0 0.0
    %1587 = vmatprep.subr.mxu0 0.0
    %1588 = vmatpush1.msra.mxu0 0.0
    %1589 = vmatprep.subr.mxu0 0.0
    %1590 = vmatpush1.msra.mxu0 0.0
    %1591 = vmatprep.subr.mxu0 0.0
    %1592 = vmatpush1.msra.mxu0 0.0
    %1593 = vmatprep.subr.mxu0 0.0
    %1594 = vmatpush1.msra.mxu0 0.0
    %1595 = vmatprep.subr.mxu0 0.0
    %1596 = vmatpush1.msra.mxu0 0.0
    %1597 = vmatprep.subr.mxu0 0.0
    %1598 = vmatpush1.msra.mxu0 0.0
    %1599 = vmatprep.subr.mxu0 0.0
    %1600 = vmatpush1.msra.mxu0 0.0
    %1601 = vmatprep.subr.mxu0 0.0
    %1602 = vmatpush1.msra.mxu0 0.0
    %1603 = vmatprep.mubr.f32.mxu0 0.0
    %1604 = vmatmul.mubr.f32.gmra.mrb[0].mxu0 %v1534
    %v1605 = vpop.f32.mrb[0].mxu0
    %v1606 = vadd.f32 %v1525, %v1605
    %v1607 = vpop.f32.mrb[0].mxu0
    %v1608 = vadd.f32 %v1529, %v1607
    %1609 = vmatprep.mubr.f32.mxu0 0.0
    %1610 = vmatmul.mubr.f32.gmra.mrb[0].mxu0 %v1537
    %v1611 = vpop.f32.mrb[0].mxu0
    %v1612 = vadd.f32 %v1525, %v1611
    %v1613 = vpop.f32.mrb[0].mxu0
    %v1614 = vadd.f32 %v1529, %v1613
    %1615 = vdwg.mxu0
    %v1616 = vmul.f32 %v1606, 0.17677669
    %v1617 = vmul.f32 %v1612, 0.17677669
    %1620 = vrot.lane.b32.xlu0 %v1616, 96
    %v1621 = vpop.permute.xlu0 %1620
    %1622 = vrot.lane.b32.xlu0 %v1617, 96
    %v1623 = vpop.permute.xlu0 %1622
    %1626 = vrot.lane.b32.xlu0 %v1606, 96
    %v1627 = vpop.permute.xlu0 %1626
    %1628 = vrot.lane.b32.xlu0 %v1612, 96
    %v1629 = vpop.permute.xlu0 %1628
    %1632 = vrot.lane.b32.xlu0 %v1608, 96
    %v1633 = vpop.permute.xlu0 %1632
    %1634 = vrot.lane.b32.xlu0 %v1614, 96
    %v1635 = vpop.permute.xlu0 %1634
    %1638 = vrot.lane.b32.xlu0 %v1606, 64
    %v1639 = vpop.permute.xlu0 %1638
    %v1640 = vsel %vm526, %v1616, 0
    %v1642 = vsel %vm526, %v1639, 0
    %1644 = vmatprep.subr.mxu0 0.0
    %1645 = vmatpush1.xpose.msra.mxu0 %v1642
    %1646 = vmatprep.subr.mxu0 0.0
    %1647 = vmatpush1.xpose.msra.mxu0 0.0
    %1648 = vmatprep.subr.mxu0 0.0
    %1649 = vmatpush1.xpose.msra.mxu0 0.0
    %1650 = vmatprep.subr.mxu0 0.0
    %1651 = vmatpush1.xpose.msra.mxu0 0.0
    %1652 = vmatprep.subr.mxu0 0.0
    %1653 = vmatpush1.xpose.msra.mxu0 0.0
    %1654 = vmatprep.subr.mxu0 0.0
    %1655 = vmatpush1.xpose.msra.mxu0 0.0
    %1656 = vmatprep.subr.mxu0 0.0
    %1657 = vmatpush1.xpose.msra.mxu0 0.0
    %1658 = vmatprep.subr.mxu0 0.0
    %1659 = vmatpush1.xpose.msra.mxu0 0.0
    %1660 = vmatprep.subr.mxu0 0.0
    %1661 = vmatpush1.xpose.msra.mxu0 0.0
    %1662 = vmatprep.subr.mxu0 0.0
    %1663 = vmatpush1.xpose.msra.mxu0 0.0
    %1664 = vmatprep.subr.mxu0 0.0
    %1665 = vmatpush1.xpose.msra.mxu0 0.0
    %1666 = vmatprep.subr.mxu0 0.0
    %1667 = vmatpush1.xpose.msra.mxu0 0.0
    %1668 = vmatprep.subr.mxu0 0.0
    %1669 = vmatpush1.xpose.msra.mxu0 0.0
    %1670 = vmatprep.subr.mxu0 0.0
    %1671 = vmatpush1.xpose.msra.mxu0 0.0
    %1672 = vmatprep.subr.mxu0 0.0
    %1673 = vmatpush1.xpose.msra.mxu0 0.0
    %1674 = vmatprep.subr.mxu0 0.0
    %1675 = vmatpush1.xpose.msra.mxu0 0.0
    %1676 = vmatprep.subr.mxu0 0.0
    %1677 = vmatpush1.xpose.msra.mxu0 0.0
    %1678 = vmatprep.subr.mxu0 0.0
    %1679 = vmatpush1.xpose.msra.mxu0 0.0
    %1680 = vmatprep.subr.mxu0 0.0
    %1681 = vmatpush1.xpose.msra.mxu0 0.0
    %1682 = vmatprep.subr.mxu0 0.0
    %1683 = vmatpush1.xpose.msra.mxu0 0.0
    %1684 = vmatprep.subr.mxu0 0.0
    %1685 = vmatpush1.xpose.msra.mxu0 0.0
    %1686 = vmatprep.subr.mxu0 0.0
    %1687 = vmatpush1.xpose.msra.mxu0 0.0
    %1688 = vmatprep.subr.mxu0 0.0
    %1689 = vmatpush1.xpose.msra.mxu0 0.0
    %1690 = vmatprep.subr.mxu0 0.0
    %1691 = vmatpush1.xpose.msra.mxu0 0.0
    %1692 = vmatprep.subr.mxu0 0.0
    %1693 = vmatpush1.xpose.msra.mxu0 0.0
    %1694 = vmatprep.subr.mxu0 0.0
    %1695 = vmatpush1.xpose.msra.mxu0 0.0
    %1696 = vmatprep.subr.mxu0 0.0
    %1697 = vmatpush1.xpose.msra.mxu0 0.0
    %1698 = vmatprep.subr.mxu0 0.0
    %1699 = vmatpush1.xpose.msra.mxu0 0.0
    %1700 = vmatprep.subr.mxu0 0.0
    %1701 = vmatpush1.xpose.msra.mxu0 0.0
    %1702 = vmatprep.subr.mxu0 0.0
    %1703 = vmatpush1.xpose.msra.mxu0 0.0
    %1704 = vmatprep.subr.mxu0 0.0
    %1705 = vmatpush1.xpose.msra.mxu0 0.0
    %1706 = vmatprep.subr.mxu0 0.0
    %1707 = vmatpush1.xpose.msra.mxu0 0.0
    %1708 = vmatprep.mubr.f32.mxu0 0.0
    %1709 = vmatmul.mubr.f32.gmra.mrb[0].mxu0 %v1640
    %v1710 = vpop.f32.mrb[0].mxu0
    %v1711 = vadd.f32 0.0, %v1710
    %v1712 = vpop.f32.mrb[0].mxu0
    %1713 = vdwg.mxu0
    %1714 = vrot.lane.b32.xlu0 %v1612, 64
    %v1715 = vpop.permute.xlu0 %1714
    %v1716 = vsel %vm526, %v1617, 0
    %v1718 = vsel %vm526, %v1715, 0
    %1720 = vmatprep.subr.mxu0 0.0
    %1721 = vmatpush1.xpose.msra.mxu0 %v1718
    %1722 = vmatprep.subr.mxu0 0.0
    %1723 = vmatpush1.xpose.msra.mxu0 0.0
    %1724 = vmatprep.subr.mxu0 0.0
    %1725 = vmatpush1.xpose.msra.mxu0 0.0
    %1726 = vmatprep.subr.mxu0 0.0
    %1727 = vmatpush1.xpose.msra.mxu0 0.0
    %1728 = vmatprep.subr.mxu0 0.0
    %1729 = vmatpush1.xpose.msra.mxu0 0.0
    %1730 = vmatprep.subr.mxu0 0.0
    %1731 = vmatpush1.xpose.msra.mxu0 0.0
    %1732 = vmatprep.subr.mxu0 0.0
    %1733 = vmatpush1.xpose.msra.mxu0 0.0
    %1734 = vmatprep.subr.mxu0 0.0
    %1735 = vmatpush1.xpose.msra.mxu0 0.0
    %1736 = vmatprep.subr.mxu0 0.0
    %1737 = vmatpush1.xpose.msra.mxu0 0.0
    %1738 = vmatprep.subr.mxu0 0.0
    %1739 = vmatpush1.xpose.msra.mxu0 0.0
    %1740 = vmatprep.subr.mxu0 0.0
    %1741 = vmatpush1.xpose.msra.mxu0 0.0
    %1742 = vmatprep.subr.mxu0 0.0
    %1743 = vmatpush1.xpose.msra.mxu0 0.0
    %1744 = vmatprep.subr.mxu0 0.0
    %1745 = vmatpush1.xpose.msra.mxu0 0.0
    %1746 = vmatprep.subr.mxu0 0.0
    %1747 = vmatpush1.xpose.msra.mxu0 0.0
    %1748 = vmatprep.subr.mxu0 0.0
    %1749 = vmatpush1.xpose.msra.mxu0 0.0
    %1750 = vmatprep.subr.mxu0 0.0
    %1751 = vmatpush1.xpose.msra.mxu0 0.0
    %1752 = vmatprep.subr.mxu0 0.0
    %1753 = vmatpush1.xpose.msra.mxu0 0.0
    %1754 = vmatprep.subr.mxu0 0.0
    %1755 = vmatpush1.xpose.msra.mxu0 0.0
    %1756 = vmatprep.subr.mxu0 0.0
    %1757 = vmatpush1.xpose.msra.mxu0 0.0
    %1758 = vmatprep.subr.mxu0 0.0
    %1759 = vmatpush1.xpose.msra.mxu0 0.0
    %1760 = vmatprep.subr.mxu0 0.0
    %1761 = vmatpush1.xpose.msra.mxu0 0.0
    %1762 = vmatprep.subr.mxu0 0.0
    %1763 = vmatpush1.xpose.msra.mxu0 0.0
    %1764 = vmatprep.subr.mxu0 0.0
    %1765 = vmatpush1.xpose.msra.mxu0 0.0
    %1766 = vmatprep.subr.mxu0 0.0
    %1767 = vmatpush1.xpose.msra.mxu0 0.0
    %1768 = vmatprep.subr.mxu0 0.0
    %1769 = vmatpush1.xpose.msra.mxu0 0.0
    %1770 = vmatprep.subr.mxu0 0.0
    %1771 = vmatpush1.xpose.msra.mxu0 0.0
    %1772 = vmatprep.subr.mxu0 0.0
    %1773 = vmatpush1.xpose.msra.mxu0 0.0
    %1774 = vmatprep.subr.mxu0 0.0
    %1775 = vmatpush1.xpose.msra.mxu0 0.0
    %1776 = vmatprep.subr.mxu0 0.0
    %1777 = vmatpush1.xpose.msra.mxu0 0.0
    %1778 = vmatprep.subr.mxu0 0.0
    %1779 = vmatpush1.xpose.msra.mxu0 0.0
    %1780 = vmatprep.subr.mxu0 0.0
    %1781 = vmatpush1.xpose.msra.mxu0 0.0
    %1782 = vmatprep.subr.mxu0 0.0
    %1783 = vmatpush1.xpose.msra.mxu0 0.0
    %1784 = vmatprep.mubr.f32.mxu0 0.0
    %1785 = vmatmul.mubr.f32.gmra.mrb[0].mxu0 %v1716
    %v1786 = vpop.f32.mrb[0].mxu0
    %v1787 = vadd.f32 0.0, %v1786
    %v1788 = vpop.f32.mrb[0].mxu0
    %1789 = vdwg.mxu0
    %1790 = vrot.lane.b32.xlu0 %v1627, 64
    %v1791 = vpop.permute.xlu0 %1790
    %v1792 = vsel %vm526, %v1621, 0
    %v1794 = vsel %vm526, %v1791, 0
    %1796 = vmatprep.subr.mxu0 0.0
    %1797 = vmatpush1.xpose.msra.mxu0 %v1794
    %1798 = vmatprep.subr.mxu0 0.0
    %1799 = vmatpush1.xpose.msra.mxu0 0.0
    %1800 = vmatprep.subr.mxu0 0.0
    %1801 = vmatpush1.xpose.msra.mxu0 0.0
    %1802 = vmatprep.subr.mxu0 0.0
    %1803 = vmatpush1.xpose.msra.mxu0 0.0
    %1804 = vmatprep.subr.mxu0 0.0
    %1805 = vmatpush1.xpose.msra.mxu0 0.0
    %1806 = vmatprep.subr.mxu0 0.0
    %1807 = vmatpush1.xpose.msra.mxu0 0.0
    %1808 = vmatprep.subr.mxu0 0.0
    %1809 = vmatpush1.xpose.msra.mxu0 0.0
    %1810 = vmatprep.subr.mxu0 0.0
    %1811 = vmatpush1.xpose.msra.mxu0 0.0
    %1812 = vmatprep.subr.mxu0 0.0
    %1813 = vmatpush1.xpose.msra.mxu0 0.0
    %1814 = vmatprep.subr.mxu0 0.0
    %1815 = vmatpush1.xpose.msra.mxu0 0.0
    %1816 = vmatprep.subr.mxu0 0.0
    %1817 = vmatpush1.xpose.msra.mxu0 0.0
    %1818 = vmatprep.subr.mxu0 0.0
    %1819 = vmatpush1.xpose.msra.mxu0 0.0
    %1820 = vmatprep.subr.mxu0 0.0
    %1821 = vmatpush1.xpose.msra.mxu0 0.0
    %1822 = vmatprep.subr.mxu0 0.0
    %1823 = vmatpush1.xpose.msra.mxu0 0.0
    %1824 = vmatprep.subr.mxu0 0.0
    %1825 = vmatpush1.xpose.msra.mxu0 0.0
    %1826 = vmatprep.subr.mxu0 0.0
    %1827 = vmatpush1.xpose.msra.mxu0 0.0
    %1828 = vmatprep.subr.mxu0 0.0
    %1829 = vmatpush1.xpose.msra.mxu0 0.0
    %1830 = vmatprep.subr.mxu0 0.0
    %1831 = vmatpush1.xpose.msra.mxu0 0.0
    %1832 = vmatprep.subr.mxu0 0.0
    %1833 = vmatpush1.xpose.msra.mxu0 0.0
    %1834 = vmatprep.subr.mxu0 0.0
    %1835 = vmatpush1.xpose.msra.mxu0 0.0
    %1836 = vmatprep.subr.mxu0 0.0
    %1837 = vmatpush1.xpose.msra.mxu0 0.0
    %1838 = vmatprep.subr.mxu0 0.0
    %1839 = vmatpush1.xpose.msra.mxu0 0.0
    %1840 = vmatprep.subr.mxu0 0.0
    %1841 = vmatpush1.xpose.msra.mxu0 0.0
    %1842 = vmatprep.subr.mxu0 0.0
    %1843 = vmatpush1.xpose.msra.mxu0 0.0
    %1844 = vmatprep.subr.mxu0 0.0
    %1845 = vmatpush1.xpose.msra.mxu0 0.0
    %1846 = vmatprep.subr.mxu0 0.0
    %1847 = vmatpush1.xpose.msra.mxu0 0.0
    %1848 = vmatprep.subr.mxu0 0.0
    %1849 = vmatpush1.xpose.msra.mxu0 0.0
    %1850 = vmatprep.subr.mxu0 0.0
    %1851 = vmatpush1.xpose.msra.mxu0 0.0
    %1852 = vmatprep.subr.mxu0 0.0
    %1853 = vmatpush1.xpose.msra.mxu0 0.0
    %1854 = vmatprep.subr.mxu0 0.0
    %1855 = vmatpush1.xpose.msra.mxu0 0.0
    %1856 = vmatprep.subr.mxu0 0.0
    %1857 = vmatpush1.xpose.msra.mxu0 0.0
    %1858 = vmatprep.subr.mxu0 0.0
    %1859 = vmatpush1.xpose.msra.mxu0 0.0
    %1860 = vmatprep.mubr.f32.mxu0 0.0
    %1861 = vmatmul.mubr.f32.gmra.mrb[0].mxu0 %v1792
    %v1862 = vpop.f32.mrb[0].mxu0
    %v1863 = vadd.f32 0.0, %v1862
    %v1864 = vpop.f32.mrb[0].mxu0
    %1865 = vdwg.mxu0
    %1866 = vrot.lane.b32.xlu0 %v1629, 64
    %v1867 = vpop.permute.xlu0 %1866
    %v1868 = vsel %vm526, %v1623, 0
    %v1870 = vsel %vm526, %v1867, 0
    %1872 = vmatprep.subr.mxu0 0.0
    %1873 = vmatpush1.xpose.msra.mxu0 %v1870
    %1874 = vmatprep.subr.mxu0 0.0
    %1875 = vmatpush1.xpose.msra.mxu0 0.0
    %1876 = vmatprep.subr.mxu0 0.0
    %1877 = vmatpush1.xpose.msra.mxu0 0.0
    %1878 = vmatprep.subr.mxu0 0.0
    %1879 = vmatpush1.xpose.msra.mxu0 0.0
    %1880 = vmatprep.subr.mxu0 0.0
    %1881 = vmatpush1.xpose.msra.mxu0 0.0
    %1882 = vmatprep.subr.mxu0 0.0
    %1883 = vmatpush1.xpose.msra.mxu0 0.0
    %1884 = vmatprep.subr.mxu0 0.0
    %1885 = vmatpush1.xpose.msra.mxu0 0.0
    %1886 = vmatprep.subr.mxu0 0.0
    %1887 = vmatpush1.xpose.msra.mxu0 0.0
    %1888 = vmatprep.subr.mxu0 0.0
    %1889 = vmatpush1.xpose.msra.mxu0 0.0
    %1890 = vmatprep.subr.mxu0 0.0
    %1891 = vmatpush1.xpose.msra.mxu0 0.0
    %1892 = vmatprep.subr.mxu0 0.0
    %1893 = vmatpush1.xpose.msra.mxu0 0.0
    %1894 = vmatprep.subr.mxu0 0.0
    %1895 = vmatpush1.xpose.msra.mxu0 0.0
    %1896 = vmatprep.subr.mxu0 0.0
    %1897 = vmatpush1.xpose.msra.mxu0 0.0
    %1898 = vmatprep.subr.mxu0 0.0
    %1899 = vmatpush1.xpose.msra.mxu0 0.0
    %1900 = vmatprep.subr.mxu0 0.0
    %1901 = vmatpush1.xpose.msra.mxu0 0.0
    %1902 = vmatprep.subr.mxu0 0.0
    %1903 = vmatpush1.xpose.msra.mxu0 0.0
    %1904 = vmatprep.subr.mxu0 0.0
    %1905 = vmatpush1.xpose.msra.mxu0 0.0
    %1906 = vmatprep.subr.mxu0 0.0
    %1907 = vmatpush1.xpose.msra.mxu0 0.0
    %1908 = vmatprep.subr.mxu0 0.0
    %1909 = vmatpush1.xpose.msra.mxu0 0.0
    %1910 = vmatprep.subr.mxu0 0.0
    %1911 = vmatpush1.xpose.msra.mxu0 0.0
    %1912 = vmatprep.subr.mxu0 0.0
    %1913 = vmatpush1.xpose.msra.mxu0 0.0
    %1914 = vmatprep.subr.mxu0 0.0
    %1915 = vmatpush1.xpose.msra.mxu0 0.0
    %1916 = vmatprep.subr.mxu0 0.0
    %1917 = vmatpush1.xpose.msra.mxu0 0.0
    %1918 = vmatprep.subr.mxu0 0.0
    %1919 = vmatpush1.xpose.msra.mxu0 0.0
    %1920 = vmatprep.subr.mxu0 0.0
    %1921 = vmatpush1.xpose.msra.mxu0 0.0
    %1922 = vmatprep.subr.mxu0 0.0
    %1923 = vmatpush1.xpose.msra.mxu0 0.0
    %1924 = vmatprep.subr.mxu0 0.0
    %1925 = vmatpush1.xpose.msra.mxu0 0.0
    %1926 = vmatprep.subr.mxu0 0.0
    %1927 = vmatpush1.xpose.msra.mxu0 0.0
    %1928 = vmatprep.subr.mxu0 0.0
    %1929 = vmatpush1.xpose.msra.mxu0 0.0
    %1930 = vmatprep.subr.mxu0 0.0
    %1931 = vmatpush1.xpose.msra.mxu0 0.0
    %1932 = vmatprep.subr.mxu0 0.0
    %1933 = vmatpush1.xpose.msra.mxu0 0.0
    %1934 = vmatprep.subr.mxu0 0.0
    %1935 = vmatpush1.xpose.msra.mxu0 0.0
    %1936 = vmatprep.mubr.f32.mxu0 0.0
    %1937 = vmatmul.mubr.f32.gmra.mrb[0].mxu0 %v1868
    %v1938 = vpop.f32.mrb[0].mxu0
    %v1939 = vadd.f32 0.0, %v1938
    %v1940 = vpop.f32.mrb[0].mxu0
    %1941 = vdwg.mxu0
    %v1942 = vsel %vm767, %v1711, -1e+09
    %v1943 = vsel %vm767, %v1787, -1e+09
    %v1944 = vsel %vm767, %v1863, -1e+09
    %v1945 = vsel %vm767, %v1939, -1e+09
    %v1946 = vsel %vm770, %v1942, -inf
    %1947 = vmax.xlane.f32.xlu0 %v1946
    %v1948 = vpop.xlane.xlu0 %1947
    %v1949 = vsel %vm770, %v1943, -inf
    %1950 = vmax.xlane.f32.xlu0 %v1949
    %v1951 = vpop.xlane.xlu0 %1950
    %v1952 = vsel %vm770, %v1944, -inf
    %1953 = vmax.xlane.f32.xlu0 %v1952
    %v1954 = vpop.xlane.xlu0 %1953
    %v1955 = vsel %vm770, %v1945, -inf
    %1956 = vmax.xlane.f32.xlu0 %v1955
    %v1957 = vpop.xlane.xlu0 %1956
    %v1958 = vsub.f32 %v1942, %v1948
    %v1959 = vsub.f32 %v1943, %v1951
    %v1960 = vsub.f32 %v1944, %v1954
    %v1961 = vsub.f32 %v1945, %v1957
    %v1962 = vmul.f32 %v1958, 1.442695
    %v1963 = vpow.pop %v1962
    %v1964 = vmul.f32 %v1959, 1.442695
    %v1965 = vpow.pop %v1964
    %v1966 = vmul.f32 %v1960, 1.442695
    %v1967 = vpow.pop %v1966
    %v1968 = vmul.f32 %v1961, 1.442695
    %v1969 = vpow.pop %v1968
    %v1970 = vsel %vm770, %v1963, 0.0
    %1971 = vadd.xlane.f32.xlu0 %v1970
    %v1972 = vpop.xlane.xlu0 %1971
    %v1973 = vsel %vm770, %v1965, 0.0
    %1974 = vadd.xlane.f32.xlu0 %v1973
    %v1975 = vpop.xlane.xlu0 %1974
    %v1976 = vsel %vm770, %v1967, 0.0
    %1977 = vadd.xlane.f32.xlu0 %v1976
    %v1978 = vpop.xlane.xlu0 %1977
    %v1979 = vsel %vm770, %v1969, 0.0
    %1980 = vadd.xlane.f32.xlu0 %v1979
    %v1981 = vpop.xlane.xlu0 %1980
    %v1982 = vrcp.pop %v1972
    %v1983 = vmul.f32 %v1963, %v1982
    %v1984 = vrcp.pop %v1975
    %v1985 = vmul.f32 %v1965, %v1984
    %v1986 = vrcp.pop %v1978
    %v1987 = vmul.f32 %v1967, %v1986
    %v1988 = vrcp.pop %v1981
    %v1989 = vmul.f32 %v1969, %v1988
    %v1991 = vsel %vm770, %v1983, 0
    %1993 = vmatprep.subr.mxu0 0.0
    %1994 = vmatpush1.msra.mxu0 %v1608
    %1995 = vmatprep.subr.mxu0 0.0
    %1996 = vmatpush1.msra.mxu0 0.0
    %1997 = vmatprep.subr.mxu0 0.0
    %1998 = vmatpush1.msra.mxu0 0.0
    %1999 = vmatprep.subr.mxu0 0.0
    %2000 = vmatpush1.msra.mxu0 0.0
    %2001 = vmatprep.subr.mxu0 0.0
    %2002 = vmatpush1.msra.mxu0 0.0
    %2003 = vmatprep.subr.mxu0 0.0
    %2004 = vmatpush1.msra.mxu0 0.0
    %2005 = vmatprep.subr.mxu0 0.0
    %2006 = vmatpush1.msra.mxu0 0.0
    %2007 = vmatprep.subr.mxu0 0.0
    %2008 = vmatpush1.msra.mxu0 0.0
    %2009 = vmatprep.subr.mxu0 0.0
    %2010 = vmatpush1.msra.mxu0 0.0
    %2011 = vmatprep.subr.mxu0 0.0
    %2012 = vmatpush1.msra.mxu0 0.0
    %2013 = vmatprep.subr.mxu0 0.0
    %2014 = vmatpush1.msra.mxu0 0.0
    %2015 = vmatprep.subr.mxu0 0.0
    %2016 = vmatpush1.msra.mxu0 0.0
    %2017 = vmatprep.subr.mxu0 0.0
    %2018 = vmatpush1.msra.mxu0 0.0
    %2019 = vmatprep.subr.mxu0 0.0
    %2020 = vmatpush1.msra.mxu0 0.0
    %2021 = vmatprep.subr.mxu0 0.0
    %2022 = vmatpush1.msra.mxu0 0.0
    %2023 = vmatprep.subr.mxu0 0.0
    %2024 = vmatpush1.msra.mxu0 0.0
    %2025 = vmatprep.subr.mxu0 0.0
    %2026 = vmatpush1.msra.mxu0 0.0
    %2027 = vmatprep.subr.mxu0 0.0
    %2028 = vmatpush1.msra.mxu0 0.0
    %2029 = vmatprep.subr.mxu0 0.0
    %2030 = vmatpush1.msra.mxu0 0.0
    %2031 = vmatprep.subr.mxu0 0.0
    %2032 = vmatpush1.msra.mxu0 0.0
    %2033 = vmatprep.subr.mxu0 0.0
    %2034 = vmatpush1.msra.mxu0 0.0
    %2035 = vmatprep.subr.mxu0 0.0
    %2036 = vmatpush1.msra.mxu0 0.0
    %2037 = vmatprep.subr.mxu0 0.0
    %2038 = vmatpush1.msra.mxu0 0.0
    %2039 = vmatprep.subr.mxu0 0.0
    %2040 = vmatpush1.msra.mxu0 0.0
    %2041 = vmatprep.subr.mxu0 0.0
    %2042 = vmatpush1.msra.mxu0 0.0
    %2043 = vmatprep.subr.mxu0 0.0
    %2044 = vmatpush1.msra.mxu0 0.0
    %2045 = vmatprep.subr.mxu0 0.0
    %2046 = vmatpush1.msra.mxu0 0.0
    %2047 = vmatprep.subr.mxu0 0.0
    %2048 = vmatpush1.msra.mxu0 0.0
    %2049 = vmatprep.subr.mxu0 0.0
    %2050 = vmatpush1.msra.mxu0 0.0
    %2051 = vmatprep.subr.mxu0 0.0
    %2052 = vmatpush1.msra.mxu0 0.0
    %2053 = vmatprep.subr.mxu0 0.0
    %2054 = vmatpush1.msra.mxu0 0.0
    %2055 = vmatprep.subr.mxu0 0.0
    %2056 = vmatpush1.msra.mxu0 0.0
    %2057 = vmatprep.mubr.f32.mxu0 0.0
    %2058 = vmatmul.mubr.f32.gmra.mrb[0].mxu0 %v1991
    %v2059 = vpop.f32.mrb[0].mxu0
    %v2060 = vadd.f32 0.0, %v2059
    %v2061 = vpop.f32.mrb[0].mxu0
    %2062 = vdwg.mxu0
    %v2064 = vsel %vm770, %v1985, 0
    %2066 = vmatprep.subr.mxu0 0.0
    %2067 = vmatpush1.msra.mxu0 %v1614
    %2068 = vmatprep.subr.mxu0 0.0
    %2069 = vmatpush1.msra.mxu0 0.0
    %2070 = vmatprep.subr.mxu0 0.0
    %2071 = vmatpush1.msra.mxu0 0.0
    %2072 = vmatprep.subr.mxu0 0.0
    %2073 = vmatpush1.msra.mxu0 0.0
    %2074 = vmatprep.subr.mxu0 0.0
    %2075 = vmatpush1.msra.mxu0 0.0
    %2076 = vmatprep.subr.mxu0 0.0
    %2077 = vmatpush1.msra.mxu0 0.0
    %2078 = vmatprep.subr.mxu0 0.0
    %2079 = vmatpush1.msra.mxu0 0.0
    %2080 = vmatprep.subr.mxu0 0.0
    %2081 = vmatpush1.msra.mxu0 0.0
    %2082 = vmatprep.subr.mxu0 0.0
    %2083 = vmatpush1.msra.mxu0 0.0
    %2084 = vmatprep.subr.mxu0 0.0
    %2085 = vmatpush1.msra.mxu0 0.0
    %2086 = vmatprep.subr.mxu0 0.0
    %2087 = vmatpush1.msra.mxu0 0.0
    %2088 = vmatprep.subr.mxu0 0.0
    %2089 = vmatpush1.msra.mxu0 0.0
    %2090 = vmatprep.subr.mxu0 0.0
    %2091 = vmatpush1.msra.mxu0 0.0
    %2092 = vmatprep.subr.mxu0 0.0
    %2093 = vmatpush1.msra.mxu0 0.0
    %2094 = vmatprep.subr.mxu0 0.0
    %2095 = vmatpush1.msra.mxu0 0.0
    %2096 = vmatprep.subr.mxu0 0.0
    %2097 = vmatpush1.msra.mxu0 0.0
    %2098 = vmatprep.subr.mxu0 0.0
    %2099 = vmatpush1.msra.mxu0 0.0
    %2100 = vmatprep.subr.mxu0 0.0
    %2101 = vmatpush1.msra.mxu0 0.0
    %2102 = vmatprep.subr.mxu0 0.0
    %2103 = vmatpush1.msra.mxu0 0.0
    %2104 = vmatprep.subr.mxu0 0.0
    %2105 = vmatpush1.msra.mxu0 0.0
    %2106 = vmatprep.subr.mxu0 0.0
    %2107 = vmatpush1.msra.mxu0 0.0
    %2108 = vmatprep.subr.mxu0 0.0
    %2109 = vmatpush1.msra.mxu0 0.0
    %2110 = vmatprep.subr.mxu0 0.0
    %2111 = vmatpush1.msra.mxu0 0.0
    %2112 = vmatprep.subr.mxu0 0.0
    %2113 = vmatpush1.msra.mxu0 0.0
    %2114 = vmatprep.subr.mxu0 0.0
    %2115 = vmatpush1.msra.mxu0 0.0
    %2116 = vmatprep.subr.mxu0 0.0
    %2117 = vmatpush1.msra.mxu0 0.0
    %2118 = vmatprep.subr.mxu0 0.0
    %2119 = vmatpush1.msra.mxu0 0.0
    %2120 = vmatprep.subr.mxu0 0.0
    %2121 = vmatpush1.msra.mxu0 0.0
    %2122 = vmatprep.subr.mxu0 0.0
    %2123 = vmatpush1.msra.mxu0 0.0
    %2124 = vmatprep.subr.mxu0 0.0
    %2125 = vmatpush1.msra.mxu0 0.0
    %2126 = vmatprep.subr.mxu0 0.0
    %2127 = vmatpush1.msra.mxu0 0.0
    %2128 = vmatprep.subr.mxu0 0.0
    %2129 = vmatpush1.msra.mxu0 0.0
    %2130 = vmatprep.mubr.f32.mxu0 0.0
    %2131 = vmatmul.mubr.f32.gmra.mrb[0].mxu0 %v2064
    %v2132 = vpop.f32.mrb[0].mxu0
    %v2133 = vadd.f32 0.0, %v2132
    %v2134 = vpop.f32.mrb[0].mxu0
    %2135 = vdwg.mxu0
    %v2137 = vsel %vm770, %v1987, 0
    %2139 = vmatprep.subr.mxu0 0.0
    %2140 = vmatpush1.msra.mxu0 %v1633
    %2141 = vmatprep.subr.mxu0 0.0
    %2142 = vmatpush1.msra.mxu0 0.0
    %2143 = vmatprep.subr.mxu0 0.0
    %2144 = vmatpush1.msra.mxu0 0.0
    %2145 = vmatprep.subr.mxu0 0.0
    %2146 = vmatpush1.msra.mxu0 0.0
    %2147 = vmatprep.subr.mxu0 0.0
    %2148 = vmatpush1.msra.mxu0 0.0
    %2149 = vmatprep.subr.mxu0 0.0
    %2150 = vmatpush1.msra.mxu0 0.0
    %2151 = vmatprep.subr.mxu0 0.0
    %2152 = vmatpush1.msra.mxu0 0.0
    %2153 = vmatprep.subr.mxu0 0.0
    %2154 = vmatpush1.msra.mxu0 0.0
    %2155 = vmatprep.subr.mxu0 0.0
    %2156 = vmatpush1.msra.mxu0 0.0
    %2157 = vmatprep.subr.mxu0 0.0
    %2158 = vmatpush1.msra.mxu0 0.0
    %2159 = vmatprep.subr.mxu0 0.0
    %2160 = vmatpush1.msra.mxu0 0.0
    %2161 = vmatprep.subr.mxu0 0.0
    %2162 = vmatpush1.msra.mxu0 0.0
    %2163 = vmatprep.subr.mxu0 0.0
    %2164 = vmatpush1.msra.mxu0 0.0
    %2165 = vmatprep.subr.mxu0 0.0
    %2166 = vmatpush1.msra.mxu0 0.0
    %2167 = vmatprep.subr.mxu0 0.0
    %2168 = vmatpush1.msra.mxu0 0.0
    %2169 = vmatprep.subr.mxu0 0.0
    %2170 = vmatpush1.msra.mxu0 0.0
    %2171 = vmatprep.subr.mxu0 0.0
    %2172 = vmatpush1.msra.mxu0 0.0
    %2173 = vmatprep.subr.mxu0 0.0
    %2174 = vmatpush1.msra.mxu0 0.0
    %2175 = vmatprep.subr.mxu0 0.0
    %2176 = vmatpush1.msra.mxu0 0.0
    %2177 = vmatprep.subr.mxu0 0.0
    %2178 = vmatpush1.msra.mxu0 0.0
    %2179 = vmatprep.subr.mxu0 0.0
    %2180 = vmatpush1.msra.mxu0 0.0
    %2181 = vmatprep.subr.mxu0 0.0
    %2182 = vmatpush1.msra.mxu0 0.0
    %2183 = vmatprep.subr.mxu0 0.0
    %2184 = vmatpush1.msra.mxu0 0.0
    %2185 = vmatprep.subr.mxu0 0.0
    %2186 = vmatpush1.msra.mxu0 0.0
    %2187 = vmatprep.subr.mxu0 0.0
    %2188 = vmatpush1.msra.mxu0 0.0
    %2189 = vmatprep.subr.mxu0 0.0
    %2190 = vmatpush1.msra.mxu0 0.0
    %2191 = vmatprep.subr.mxu0 0.0
    %2192 = vmatpush1.msra.mxu0 0.0
    %2193 = vmatprep.subr.mxu0 0.0
    %2194 = vmatpush1.msra.mxu0 0.0
    %2195 = vmatprep.subr.mxu0 0.0
    %2196 = vmatpush1.msra.mxu0 0.0
    %2197 = vmatprep.subr.mxu0 0.0
    %2198 = vmatpush1.msra.mxu0 0.0
    %2199 = vmatprep.subr.mxu0 0.0
    %2200 = vmatpush1.msra.mxu0 0.0
    %2201 = vmatprep.subr.mxu0 0.0
    %2202 = vmatpush1.msra.mxu0 0.0
    %2203 = vmatprep.mubr.f32.mxu0 0.0
    %2204 = vmatmul.mubr.f32.gmra.mrb[0].mxu0 %v2137
    %v2205 = vpop.f32.mrb[0].mxu0
    %v2206 = vadd.f32 0.0, %v2205
    %v2207 = vpop.f32.mrb[0].mxu0
    %2208 = vdwg.mxu0
    %v2210 = vsel %vm770, %v1989, 0
    %2212 = vmatprep.subr.mxu0 0.0
    %2213 = vmatpush1.msra.mxu0 %v1635
    %2214 = vmatprep.subr.mxu0 0.0
    %2215 = vmatpush1.msra.mxu0 0.0
    %2216 = vmatprep.subr.mxu0 0.0
    %2217 = vmatpush1.msra.mxu0 0.0
    %2218 = vmatprep.subr.mxu0 0.0
    %2219 = vmatpush1.msra.mxu0 0.0
    %2220 = vmatprep.subr.mxu0 0.0
    %2221 = vmatpush1.msra.mxu0 0.0
    %2222 = vmatprep.subr.mxu0 0.0
    %2223 = vmatpush1.msra.mxu0 0.0
    %2224 = vmatprep.subr.mxu0 0.0
    %2225 = vmatpush1.msra.mxu0 0.0
    %2226 = vmatprep.subr.mxu0 0.0
    %2227 = vmatpush1.msra.mxu0 0.0
    %2228 = vmatprep.subr.mxu0 0.0
    %2229 = vmatpush1.msra.mxu0 0.0
    %2230 = vmatprep.subr.mxu0 0.0
    %2231 = vmatpush1.msra.mxu0 0.0
    %2232 = vmatprep.subr.mxu0 0.0
    %2233 = vmatpush1.msra.mxu0 0.0
    %2234 = vmatprep.subr.mxu0 0.0
    %2235 = vmatpush1.msra.mxu0 0.0
    %2236 = vmatprep.subr.mxu0 0.0
    %2237 = vmatpush1.msra.mxu0 0.0
    %2238 = vmatprep.subr.mxu0 0.0
    %2239 = vmatpush1.msra.mxu0 0.0
    %2240 = vmatprep.subr.mxu0 0.0
    %2241 = vmatpush1.msra.mxu0 0.0
    %2242 = vmatprep.subr.mxu0 0.0
    %2243 = vmatpush1.msra.mxu0 0.0
    %2244 = vmatprep.subr.mxu0 0.0
    %2245 = vmatpush1.msra.mxu0 0.0
    %2246 = vmatprep.subr.mxu0 0.0
    %2247 = vmatpush1.msra.mxu0 0.0
    %2248 = vmatprep.subr.mxu0 0.0
    %2249 = vmatpush1.msra.mxu0 0.0
    %2250 = vmatprep.subr.mxu0 0.0
    %2251 = vmatpush1.msra.mxu0 0.0
    %2252 = vmatprep.subr.mxu0 0.0
    %2253 = vmatpush1.msra.mxu0 0.0
    %2254 = vmatprep.subr.mxu0 0.0
    %2255 = vmatpush1.msra.mxu0 0.0
    %2256 = vmatprep.subr.mxu0 0.0
    %2257 = vmatpush1.msra.mxu0 0.0
    %2258 = vmatprep.subr.mxu0 0.0
    %2259 = vmatpush1.msra.mxu0 0.0
    %2260 = vmatprep.subr.mxu0 0.0
    %2261 = vmatpush1.msra.mxu0 0.0
    %2262 = vmatprep.subr.mxu0 0.0
    %2263 = vmatpush1.msra.mxu0 0.0
    %2264 = vmatprep.subr.mxu0 0.0
    %2265 = vmatpush1.msra.mxu0 0.0
    %2266 = vmatprep.subr.mxu0 0.0
    %2267 = vmatpush1.msra.mxu0 0.0
    %2268 = vmatprep.subr.mxu0 0.0
    %2269 = vmatpush1.msra.mxu0 0.0
    %2270 = vmatprep.subr.mxu0 0.0
    %2271 = vmatpush1.msra.mxu0 0.0
    %2272 = vmatprep.subr.mxu0 0.0
    %2273 = vmatpush1.msra.mxu0 0.0
    %2274 = vmatprep.subr.mxu0 0.0
    %2275 = vmatpush1.msra.mxu0 0.0
    %2276 = vmatprep.mubr.f32.mxu0 0.0
    %2277 = vmatmul.mubr.f32.gmra.mrb[0].mxu0 %v2210
    %v2278 = vpop.f32.mrb[0].mxu0
    %v2279 = vadd.f32 0.0, %v2278
    %v2280 = vpop.f32.mrb[0].mxu0
    %2281 = vdwg.mxu0
    %2284 = vrot.lane.b32.xlu0 %v2206, 32
    %v2285 = vpop.permute.xlu0 %2284
    %2286 = vrot.lane.b32.xlu0 %v2279, 32
    %v2287 = vpop.permute.xlu0 %2286
    %v2290 = vsel %vm526, %v2060, %v2285
    %v2291 = vsel %vm526, %v2133, %v2287
    %v2293 = vlaneseq
    %v2294 = vshrl.u32 %v2293, 7
    %v2295 = vsub.s32 0, %v2294
    %v2296 = vrot.slane %v1457, %v2295
    %v2299 = vsel %vm1532, %v2290, 0
    %v2302 = vsel %vm1532, %v2291, 0
    %2304 = vmatprep.subr.mxu0 0.0
    %2305 = vmatpush1.msra.mxu0 %v1449
    %2306 = vmatprep.subr.mxu0 0.0
    %2307 = vmatpush1.msra.mxu0 %v1450
    %2308 = vmatprep.subr.mxu0 0.0
    %2309 = vmatpush1.msra.mxu0 %v1451
    %2310 = vmatprep.subr.mxu0 0.0
    %2311 = vmatpush1.msra.mxu0 %v1452
    %2312 = vmatprep.subr.mxu0 0.0
    %2313 = vmatpush1.msra.mxu0 %v1453
    %2314 = vmatprep.subr.mxu0 0.0
    %2315 = vmatpush1.msra.mxu0 %v1454
    %2316 = vmatprep.subr.mxu0 0.0
    %2317 = vmatpush1.msra.mxu0 %v1455
    %2318 = vmatprep.subr.mxu0 0.0
    %2319 = vmatpush1.msra.mxu0 %v1456
    %2320 = vmatprep.subr.mxu0 0.0
    %2321 = vmatpush1.msra.mxu0 0.0
    %2322 = vmatprep.subr.mxu0 0.0
    %2323 = vmatpush1.msra.mxu0 0.0
    %2324 = vmatprep.subr.mxu0 0.0
    %2325 = vmatpush1.msra.mxu0 0.0
    %2326 = vmatprep.subr.mxu0 0.0
    %2327 = vmatpush1.msra.mxu0 0.0
    %2328 = vmatprep.subr.mxu0 0.0
    %2329 = vmatpush1.msra.mxu0 0.0
    %2330 = vmatprep.subr.mxu0 0.0
    %2331 = vmatpush1.msra.mxu0 0.0
    %2332 = vmatprep.subr.mxu0 0.0
    %2333 = vmatpush1.msra.mxu0 0.0
    %2334 = vmatprep.subr.mxu0 0.0
    %2335 = vmatpush1.msra.mxu0 0.0
    %2336 = vmatprep.subr.mxu0 0.0
    %2337 = vmatpush1.msra.mxu0 0.0
    %2338 = vmatprep.subr.mxu0 0.0
    %2339 = vmatpush1.msra.mxu0 0.0
    %2340 = vmatprep.subr.mxu0 0.0
    %2341 = vmatpush1.msra.mxu0 0.0
    %2342 = vmatprep.subr.mxu0 0.0
    %2343 = vmatpush1.msra.mxu0 0.0
    %2344 = vmatprep.subr.mxu0 0.0
    %2345 = vmatpush1.msra.mxu0 0.0
    %2346 = vmatprep.subr.mxu0 0.0
    %2347 = vmatpush1.msra.mxu0 0.0
    %2348 = vmatprep.subr.mxu0 0.0
    %2349 = vmatpush1.msra.mxu0 0.0
    %2350 = vmatprep.subr.mxu0 0.0
    %2351 = vmatpush1.msra.mxu0 0.0
    %2352 = vmatprep.subr.mxu0 0.0
    %2353 = vmatpush1.msra.mxu0 0.0
    %2354 = vmatprep.subr.mxu0 0.0
    %2355 = vmatpush1.msra.mxu0 0.0
    %2356 = vmatprep.subr.mxu0 0.0
    %2357 = vmatpush1.msra.mxu0 0.0
    %2358 = vmatprep.subr.mxu0 0.0
    %2359 = vmatpush1.msra.mxu0 0.0
    %2360 = vmatprep.subr.mxu0 0.0
    %2361 = vmatpush1.msra.mxu0 0.0
    %2362 = vmatprep.subr.mxu0 0.0
    %2363 = vmatpush1.msra.mxu0 0.0
    %2364 = vmatprep.subr.mxu0 0.0
    %2365 = vmatpush1.msra.mxu0 0.0
    %2366 = vmatprep.subr.mxu0 0.0
    %2367 = vmatpush1.msra.mxu0 0.0
    %2368 = vmatprep.mubr.f32.mxu0 0.0
    %2369 = vmatmul.mubr.f32.gmra.mrb[0].mxu0 %v2299
    %v2370 = vpop.f32.mrb[0].mxu0
    %v2371 = vadd.f32 %v2296, %v2370
    %v2372 = vpop.f32.mrb[0].mxu0
    %2373 = vmatprep.mubr.f32.mxu0 0.0
    %2374 = vmatmul.mubr.f32.gmra.mrb[0].mxu0 %v2302
    %v2375 = vpop.f32.mrb[0].mxu0
    %v2376 = vadd.f32 %v2296, %v2375
    %v2377 = vpop.f32.mrb[0].mxu0
    %2378 = vdwg.mxu0
    %v2379 = vadd.f32 %v1430, %v2371
    %v2380 = vadd.f32 %v1431, %v2376
    %v2381 = vsel %vm1532, %v2379, 0.0
    %2382 = vadd.xlane.f32.xlu0 %v2381
    %v2383 = vpop.xlane.xlu0 %2382
    %v2384 = vsel %vm1532, %v2380, 0.0
    %2385 = vadd.xlane.f32.xlu0 %v2384
    %v2386 = vpop.xlane.xlu0 %2385
    %v2387 = vrcp.pop 64.0
    %v2388 = vmul.f32 %v2383, %v2387
    %v2389 = vmul.f32 %v2386, %v2387
    %v2390 = vsub.f32 %v2379, %v2388
    %v2391 = vsub.f32 %v2380, %v2389
    %v2392 = vmul.f32 %v2390, %v2390
    %v2393 = vmul.f32 %v2391, %v2391
    %v2394 = vsel %vm1532, %v2392, 0.0
    %2395 = vadd.xlane.f32.xlu0 %v2394
    %v2396 = vpop.xlane.xlu0 %2395
    %v2397 = vsel %vm1532, %v2393, 0.0
    %2398 = vadd.xlane.f32.xlu0 %v2397
    %v2399 = vpop.xlane.xlu0 %2398
    %v2400 = vmul.f32 %v2396, %v2387
    %v2401 = vmul.f32 %v2399, %v2387
    %v2402 = vadd.f32 %v2400, 1e-05
    %v2403 = vadd.f32 %v2401, 1e-05
    %v2404 = vrsqrt.pop %v2402
    %v2405 = vmul.f32 %v2402, %v2404
    %vm2406 = vcmp.eq.f32.partialorder %v2402, inf
    %v2407 = vsel %vm2406, %v2402, %v2405
    %vm2408 = vcmp.eq.f32.partialorder %v2402, 0.0
    %v2409 = vand.u32 %v2402, 2147483648
    %v2410 = vsel %vm2408, %v2409, %v2407
    %v2411 = vrsqrt.pop %v2403
    %v2412 = vmul.f32 %v2403, %v2411
    %vm2413 = vcmp.eq.f32.partialorder %v2403, inf
    %v2414 = vsel %vm2413, %v2403, %v2412
    %vm2415 = vcmp.eq.f32.partialorder %v2403, 0.0
    %v2416 = vand.u32 %v2403, 2147483648
    %v2417 = vsel %vm2415, %v2416, %v2414
    %v2418 = vrcp.pop %v2410
    %v2419 = vmul.f32 %v2390, %v2418
    %v2420 = vrcp.pop %v2417
    %v2421 = vmul.f32 %v2391, %v2420
    %v2423 = vlaneseq
    %v2424 = vshrl.u32 %v2423, 7
    %v2425 = vsub.s32 0, %v2424
    %v2426 = vrot.slane %v1458, %v2425
    %v2428 = vmul.f32 %v2426, %v2419
    %v2429 = vmul.f32 %v2426, %v2421
    %v2431 = vlaneseq
    %v2432 = vshrl.u32 %v2431, 7
    %v2433 = vsub.s32 0, %v2432
    %v2434 = vrot.slane %v1459, %v2433
    %v2436 = vadd.f32 %v2428, %v2434
    %v2437 = vadd.f32 %v2429, %v2434
    %v2439 = vlaneseq
    %v2440 = vshrl.u32 %v2439, 7
    %v2441 = vsub.s32 0, %v2440
    %v2442 = vrot.slane %v1476, %v2441
    %v2443 = vlaneseq
    %v2444 = vshrl.u32 %v2443, 7
    %v2445 = vsub.s32 1, %v2444
    %v2446 = vrot.slane %v1476, %v2445
    %v2450 = vsel %vm1532, %v2436, 0
    %v2453 = vsel %vm1532, %v2437, 0
    %2455 = vmatprep.subr.mxu0 %v1461
    %2456 = vmatpush1.msra.mxu0 %v1460
    %2457 = vmatprep.subr.mxu0 %v1463
    %2458 = vmatpush1.msra.mxu0 %v1462
    %2459 = vmatprep.subr.mxu0 %v1465
    %2460 = vmatpush1.msra.mxu0 %v1464
    %2461 = vmatprep.subr.mxu0 %v1467
    %2462 = vmatpush1.msra.mxu0 %v1466
    %2463 = vmatprep.subr.mxu0 %v1469
    %2464 = vmatpush1.msra.mxu0 %v1468
    %2465 = vmatprep.subr.mxu0 %v1471
    %2466 = vmatpush1.msra.mxu0 %v1470
    %2467 = vmatprep.subr.mxu0 %v1473
    %2468 = vmatpush1.msra.mxu0 %v1472
    %2469 = vmatprep.subr.mxu0 %v1475
    %2470 = vmatpush1.msra.mxu0 %v1474
    %2471 = vmatprep.subr.mxu0 0.0
    %2472 = vmatpush1.msra.mxu0 0.0
    %2473 = vmatprep.subr.mxu0 0.0
    %2474 = vmatpush1.msra.mxu0 0.0
    %2475 = vmatprep.subr.mxu0 0.0
    %2476 = vmatpush1.msra.mxu0 0.0
    %2477 = vmatprep.subr.mxu0 0.0
    %2478 = vmatpush1.msra.mxu0 0.0
    %2479 = vmatprep.subr.mxu0 0.0
    %2480 = vmatpush1.msra.mxu0 0.0
    %2481 = vmatprep.subr.mxu0 0.0
    %2482 = vmatpush1.msra.mxu0 0.0
    %2483 = vmatprep.subr.mxu0 0.0
    %2484 = vmatpush1.msra.mxu0 0.0
    %2485 = vmatprep.subr.mxu0 0.0
    %2486 = vmatpush1.msra.mxu0 0.0
    %2487 = vmatprep.subr.mxu0 0.0
    %2488 = vmatpush1.msra.mxu0 0.0
    %2489 = vmatprep.subr.mxu0 0.0
    %2490 = vmatpush1.msra.mxu0 0.0
    %2491 = vmatprep.subr.mxu0 0.0
    %2492 = vmatpush1.msra.mxu0 0.0
    %2493 = vmatprep.subr.mxu0 0.0
    %2494 = vmatpush1.msra.mxu0 0.0
    %2495 = vmatprep.subr.mxu0 0.0
    %2496 = vmatpush1.msra.mxu0 0.0
    %2497 = vmatprep.subr.mxu0 0.0
    %2498 = vmatpush1.msra.mxu0 0.0
    %2499 = vmatprep.subr.mxu0 0.0
    %2500 = vmatpush1.msra.mxu0 0.0
    %2501 = vmatprep.subr.mxu0 0.0
    %2502 = vmatpush1.msra.mxu0 0.0
    %2503 = vmatprep.subr.mxu0 0.0
    %2504 = vmatpush1.msra.mxu0 0.0
    %2505 = vmatprep.subr.mxu0 0.0
    %2506 = vmatpush1.msra.mxu0 0.0
    %2507 = vmatprep.subr.mxu0 0.0
    %2508 = vmatpush1.msra.mxu0 0.0
    %2509 = vmatprep.subr.mxu0 0.0
    %2510 = vmatpush1.msra.mxu0 0.0
    %2511 = vmatprep.subr.mxu0 0.0
    %2512 = vmatpush1.msra.mxu0 0.0
    %2513 = vmatprep.subr.mxu0 0.0
    %2514 = vmatpush1.msra.mxu0 0.0
    %2515 = vmatprep.subr.mxu0 0.0
    %2516 = vmatpush1.msra.mxu0 0.0
    %2517 = vmatprep.subr.mxu0 0.0
    %2518 = vmatpush1.msra.mxu0 0.0
    %2519 = vmatprep.mubr.f32.mxu0 0.0
    %2520 = vmatmul.mubr.f32.gmra.mrb[0].mxu0 %v2450
    %v2521 = vpop.f32.mrb[0].mxu0
    %v2522 = vadd.f32 %v2442, %v2521
    %v2523 = vpop.f32.mrb[0].mxu0
    %v2524 = vadd.f32 %v2446, %v2523
    %2525 = vmatprep.mubr.f32.mxu0 0.0
    %2526 = vmatmul.mubr.f32.gmra.mrb[0].mxu0 %v2453
    %v2527 = vpop.f32.mrb[0].mxu0
    %v2528 = vadd.f32 %v2442, %v2527
    %v2529 = vpop.f32.mrb[0].mxu0
    %v2530 = vadd.f32 %v2446, %v2529
    %2531 = vdwg.mxu0
    %v2532 = vmul.f32 %v2522, 0.5
    %v2533 = vmul.f32 %v2524, 0.5
    %v2534 = vmul.f32 %v2528, 0.5
    %v2535 = vmul.f32 %v2530, 0.5
    %v2536 = vmul.f32 %v2522, 0.044715
    %v2537 = vmul.f32 %v2524, 0.044715
    %v2538 = vmul.f32 %v2528, 0.044715
    %v2539 = vmul.f32 %v2530, 0.044715
    %v2540 = vmul.f32 %v2536, %v2522
    %v2541 = vmul.f32 %v2537, %v2524
    %v2542 = vmul.f32 %v2538, %v2528
    %v2543 = vmul.f32 %v2539, %v2530
    %v2544 = vmul.f32 %v2540, %v2522
    %v2545 = vmul.f32 %v2541, %v2524
    %v2546 = vmul.f32 %v2542, %v2528
    %v2547 = vmul.f32 %v2543, %v2530
    %v2548 = vadd.f32 %v2522, %v2544
    %v2549 = vadd.f32 %v2524, %v2545
    %v2550 = vadd.f32 %v2528, %v2546
    %v2551 = vadd.f32 %v2530, %v2547
    %v2552 = vmul.f32 %v2548, 0.7978846
    %v2553 = vmul.f32 %v2549, 0.7978846
    %v2554 = vmul.f32 %v2550, 0.7978846
    %v2555 = vmul.f32 %v2551, 0.7978846
    %v2556 = vtanh.pop %v2552
    %v2557 = vtanh.pop %v2553
    %v2558 = vtanh.pop %v2554
    %v2559 = vtanh.pop %v2555
    %v2560 = vadd.f32 %v2556, 1.0
    %v2561 = vadd.f32 %v2557, 1.0
    %v2562 = vadd.f32 %v2558, 1.0
    %v2563 = vadd.f32 %v2559, 1.0
    %v2564 = vmul.f32 %v2532, %v2560
    %v2565 = vmul.f32 %v2533, %v2561
    %v2566 = vmul.f32 %v2534, %v2562
    %v2567 = vmul.f32 %v2535, %v2563
    %v2569 = vlaneseq
    %v2570 = vshrl.u32 %v2569, 7
    %v2571 = vsub.s32 0, %v2570
    %v2572 = vrot.slane %v1509, %v2571
    %2574 = vmatprep.subr.mxu0 0.0
    %2575 = vmatpush1.msra.mxu0 %v1477
    %2576 = vmatprep.subr.mxu0 0.0
    %2577 = vmatpush1.msra.mxu0 %v1478
    %2578 = vmatprep.subr.mxu0 0.0
    %2579 = vmatpush1.msra.mxu0 %v1479
    %2580 = vmatprep.subr.mxu0 0.0
    %2581 = vmatpush1.msra.mxu0 %v1480
    %2582 = vmatprep.subr.mxu0 0.0
    %2583 = vmatpush1.msra.mxu0 %v1481
    %2584 = vmatprep.subr.mxu0 0.0
    %2585 = vmatpush1.msra.mxu0 %v1482
    %2586 = vmatprep.subr.mxu0 0.0
    %2587 = vmatpush1.msra.mxu0 %v1483
    %2588 = vmatprep.subr.mxu0 0.0
    %2589 = vmatpush1.msra.mxu0 %v1484
    %2590 = vmatprep.subr.mxu0 0.0
    %2591 = vmatpush1.msra.mxu0 %v1485
    %2592 = vmatprep.subr.mxu0 0.0
    %2593 = vmatpush1.msra.mxu0 %v1486
    %2594 = vmatprep.subr.mxu0 0.0
    %2595 = vmatpush1.msra.mxu0 %v1487
    %2596 = vmatprep.subr.mxu0 0.0
    %2597 = vmatpush1.msra.mxu0 %v1488
    %2598 = vmatprep.subr.mxu0 0.0
    %2599 = vmatpush1.msra.mxu0 %v1489
    %2600 = vmatprep.subr.mxu0 0.0
    %2601 = vmatpush1.msra.mxu0 %v1490
    %2602 = vmatprep.subr.mxu0 0.0
    %2603 = vmatpush1.msra.mxu0 %v1491
    %2604 = vmatprep.subr.mxu0 0.0
    %2605 = vmatpush1.msra.mxu0 %v1492
    %2606 = vmatprep.subr.mxu0 0.0
    %2607 = vmatpush1.msra.mxu0 %v1493
    %2608 = vmatprep.subr.mxu0 0.0
    %2609 = vmatpush1.msra.mxu0 %v1494
    %2610 = vmatprep.subr.mxu0 0.0
    %2611 = vmatpush1.msra.mxu0 %v1495
    %2612 = vmatprep.subr.mxu0 0.0
    %2613 = vmatpush1.msra.mxu0 %v1496
    %2614 = vmatprep.subr.mxu0 0.0
    %2615 = vmatpush1.msra.mxu0 %v1497
    %2616 = vmatprep.subr.mxu0 0.0
    %2617 = vmatpush1.msra.mxu0 %v1498
    %2618 = vmatprep.subr.mxu0 0.0
    %2619 = vmatpush1.msra.mxu0 %v1499
    %2620 = vmatprep.subr.mxu0 0.0
    %2621 = vmatpush1.msra.mxu0 %v1500
    %2622 = vmatprep.subr.mxu0 0.0
    %2623 = vmatpush1.msra.mxu0 %v1501
    %2624 = vmatprep.subr.mxu0 0.0
    %2625 = vmatpush1.msra.mxu0 %v1502
    %2626 = vmatprep.subr.mxu0 0.0
    %2627 = vmatpush1.msra.mxu0 %v1503
    %2628 = vmatprep.subr.mxu0 0.0
    %2629 = vmatpush1.msra.mxu0 %v1504
    %2630 = vmatprep.subr.mxu0 0.0
    %2631 = vmatpush1.msra.mxu0 %v1505
    %2632 = vmatprep.subr.mxu0 0.0
    %2633 = vmatpush1.msra.mxu0 %v1506
    %2634 = vmatprep.subr.mxu0 0.0
    %2635 = vmatpush1.msra.mxu0 %v1507
    %2636 = vmatprep.subr.mxu0 0.0
    %2637 = vmatpush1.msra.mxu0 %v1508
    %2638 = vmatprep.mubr.f32.mxu0 %v2565
    %2639 = vmatmul.mubr.f32.gmra.mrb[0].mxu0 %v2564
    %v2640 = vpop.f32.mrb[0].mxu0
    %v2641 = vadd.f32 %v2572, %v2640
    %v2642 = vpop.f32.mrb[0].mxu0
    %2643 = vmatprep.mubr.f32.mxu0 %v2567
    %2644 = vmatmul.mubr.f32.gmra.mrb[0].mxu0 %v2566
    %v2645 = vpop.f32.mrb[0].mxu0
    %v2646 = vadd.f32 %v2572, %v2645
    %v2647 = vpop.f32.mrb[0].mxu0
    %2648 = vdwg.mxu0
    %v2649 = vadd.f32 %v2436, %v2641
    %v2650 = vadd.f32 %v2437, %v2646
    %v2651 = vsel %vm1532, %v2649, 0.0
    %2652 = vadd.xlane.f32.xlu0 %v2651
    %v2653 = vpop.xlane.xlu0 %2652
    %v2654 = vsel %vm1532, %v2650, 0.0
    %2655 = vadd.xlane.f32.xlu0 %v2654
    %v2656 = vpop.xlane.xlu0 %2655
    %v2657 = vmul.f32 %v2653, %v2387
    %v2658 = vmul.f32 %v2656, %v2387
    %v2659 = vsub.f32 %v2649, %v2657
    %v2660 = vsub.f32 %v2650, %v2658
    %v2661 = vmul.f32 %v2659, %v2659
    %v2662 = vmul.f32 %v2660, %v2660
    %v2663 = vsel %vm1532, %v2661, 0.0
    %2664 = vadd.xlane.f32.xlu0 %v2663
    %v2665 = vpop.xlane.xlu0 %2664
    %v2666 = vsel %vm1532, %v2662, 0.0
    %2667 = vadd.xlane.f32.xlu0 %v2666
    %v2668 = vpop.xlane.xlu0 %2667
    %v2669 = vmul.f32 %v2665, %v2387
    %v2670 = vmul.f32 %v2668, %v2387
    %v2671 = vadd.f32 %v2669, 1e-05
    %v2672 = vadd.f32 %v2670, 1e-05
    %v2673 = vrsqrt.pop %v2671
    %v2674 = vmul.f32 %v2671, %v2673
    %vm2675 = vcmp.eq.f32.partialorder %v2671, inf
    %v2676 = vsel %vm2675, %v2671, %v2674
    %vm2677 = vcmp.eq.f32.partialorder %v2671, 0.0
    %v2678 = vand.u32 %v2671, 2147483648
    %v2679 = vsel %vm2677, %v2678, %v2676
    %v2680 = vrsqrt.pop %v2672
    %v2681 = vmul.f32 %v2672, %v2680
    %vm2682 = vcmp.eq.f32.partialorder %v2672, inf
    %v2683 = vsel %vm2682, %v2672, %v2681
    %vm2684 = vcmp.eq.f32.partialorder %v2672, 0.0
    %v2685 = vand.u32 %v2672, 2147483648
    %v2686 = vsel %vm2684, %v2685, %v2683
    %v2687 = vrcp.pop %v2679
    %v2688 = vmul.f32 %v2659, %v2687
    %v2689 = vrcp.pop %v2686
    %v2690 = vmul.f32 %v2660, %v2689
    %v2692 = vlaneseq
    %v2693 = vshrl.u32 %v2692, 7
    %v2694 = vsub.s32 0, %v2693
    %v2695 = vrot.slane %v1510, %v2694
    %v2697 = vmul.f32 %v2695, %v2688
    %v2698 = vmul.f32 %v2695, %v2690
    %v2700 = vlaneseq
    %v2701 = vshrl.u32 %v2700, 7
    %v2702 = vsub.s32 0, %v2701
    %v2703 = vrot.slane %v1511, %v2702
    %v2705 = vadd.f32 %v2697, %v2703
    %v2706 = vadd.f32 %v2698, %v2703
    %v2708 = vlaneseq
    %v2709 = vshrl.u32 %v2708, 7
    %v2710 = vsub.s32 0, %v2709
    %v2711 = vrot.slane %v1520, %v2710
    %v2714 = vsel %vm1532, %v2705, 0
    %v2717 = vsel %vm1532, %v2706, 0
    %2719 = vmatprep.subr.mxu0 0.0
    %2720 = vmatpush1.msra.mxu0 %v1512
    %2721 = vmatprep.subr.mxu0 0.0
    %2722 = vmatpush1.msra.mxu0 %v1513
    %2723 = vmatprep.subr.mxu0 0.0
    %2724 = vmatpush1.msra.mxu0 %v1514
    %2725 = vmatprep.subr.mxu0 0.0
    %2726 = vmatpush1.msra.mxu0 %v1515
    %2727 = vmatprep.subr.mxu0 0.0
    %2728 = vmatpush1.msra.mxu0 %v1516
    %2729 = vmatprep.subr.mxu0 0.0
    %2730 = vmatpush1.msra.mxu0 %v1517
    %2731 = vmatprep.subr.mxu0 0.0
    %2732 = vmatpush1.msra.mxu0 %v1518
    %2733 = vmatprep.subr.mxu0 0.0
    %2734 = vmatpush1.msra.mxu0 %v1519
    %2735 = vmatprep.subr.mxu0 0.0
    %2736 = vmatpush1.msra.mxu0 0.0
    %2737 = vmatprep.subr.mxu0 0.0
    %2738 = vmatpush1.msra.mxu0 0.0
    %2739 = vmatprep.subr.mxu0 0.0
    %2740 = vmatpush1.msra.mxu0 0.0
    %2741 = vmatprep.subr.mxu0 0.0
    %2742 = vmatpush1.msra.mxu0 0.0
    %2743 = vmatprep.subr.mxu0 0.0
    %2744 = vmatpush1.msra.mxu0 0.0
    %2745 = vmatprep.subr.mxu0 0.0
    %2746 = vmatpush1.msra.mxu0 0.0
    %2747 = vmatprep.subr.mxu0 0.0
    %2748 = vmatpush1.msra.mxu0 0.0
    %2749 = vmatprep.subr.mxu0 0.0
    %2750 = vmatpush1.msra.mxu0 0.0
    %2751 = vmatprep.subr.mxu0 0.0
    %2752 = vmatpush1.msra.mxu0 0.0
    %2753 = vmatprep.subr.mxu0 0.0
    %2754 = vmatpush1.msra.mxu0 0.0
    %2755 = vmatprep.subr.mxu0 0.0
    %2756 = vmatpush1.msra.mxu0 0.0
    %2757 = vmatprep.subr.mxu0 0.0
    %2758 = vmatpush1.msra.mxu0 0.0
    %2759 = vmatprep.subr.mxu0 0.0
    %2760 = vmatpush1.msra.mxu0 0.0
    %2761 = vmatprep.subr.mxu0 0.0
    %2762 = vmatpush1.msra.mxu0 0.0
    %2763 = vmatprep.subr.mxu0 0.0
    %2764 = vmatpush1.msra.mxu0 0.0
    %2765 = vmatprep.subr.mxu0 0.0
    %2766 = vmatpush1.msra.mxu0 0.0
    %2767 = vmatprep.subr.mxu0 0.0
    %2768 = vmatpush1.msra.mxu0 0.0
    %2769 = vmatprep.subr.mxu0 0.0
    %2770 = vmatpush1.msra.mxu0 0.0
    %2771 = vmatprep.subr.mxu0 0.0
    %2772 = vmatpush1.msra.mxu0 0.0
    %2773 = vmatprep.subr.mxu0 0.0
    %2774 = vmatpush1.msra.mxu0 0.0
    %2775 = vmatprep.subr.mxu0 0.0
    %2776 = vmatpush1.msra.mxu0 0.0
    %2777 = vmatprep.subr.mxu0 0.0
    %2778 = vmatpush1.msra.mxu0 0.0
    %2779 = vmatprep.subr.mxu0 0.0
    %2780 = vmatpush1.msra.mxu0 0.0
    %2781 = vmatprep.subr.mxu0 0.0
    %2782 = vmatpush1.msra.mxu0 0.0
    %2783 = vmatprep.mubr.f32.mxu0 0.0
    %2784 = vmatmul.mubr.f32.gmra.mrb[0].mxu0 %v2714
    %v2785 = vpop.f32.mrb[0].mxu0
    %v2786 = vadd.f32 %v2711, %v2785
    %v2787 = vpop.f32.mrb[0].mxu0
    %2788 = vmatprep.mubr.f32.mxu0 0.0
    %2789 = vmatmul.mubr.f32.gmra.mrb[0].mxu0 %v2717
    %v2790 = vpop.f32.mrb[0].mxu0
    %v2791 = vadd.f32 %v2711, %v2790
    %v2792 = vpop.f32.mrb[0].mxu0
    %2793 = vdwg.mxu0
    %2796 = vrot.lane.b32.xlu0 %v2786, 64
    %v2797 = vpop.permute.xlu0 %2796
    %2798 = vrot.lane.b32.xlu0 %v2791, 64
    %v2799 = vpop.permute.xlu0 %2798
    %v2802 = vsel %vm1532, %v1430, %v2797
    %v2803 = vsel %vm1532, %v1431, %v2799
    %v2804 = vld [vmem:[%s59] sm:$0xff]
    %v2805 = vld [vmem:[%s59 + $0x8] sm:$0xff]
    %v2806 = vld [vmem:[%s59 + $0x10] sm:$0xff]
    %v2807 = vld [vmem:[%s59 + $0x18] sm:$0xff]
    %v2808 = vld [vmem:[%s59 + $0x20] sm:$0xff]
    %v2809 = vld [vmem:[%s59 + $0x28] sm:$0xff]
    %v2810 = vld [vmem:[%s59 + $0x30] sm:$0xff]
    %v2811 = vld [vmem:[%s59 + $0x38] sm:$0xff]
    %v2812 = vld [vmem:[%s59 + $0x40] sm:$0xff]
    %v2813 = vld [vmem:[%s59 + $0x48] sm:$0xff]
    %v2814 = vld [vmem:[%s59 + $0x50] sm:$0xff]
    %v2815 = vld [vmem:[%s59 + $0x58] sm:$0xff]
    %v2816 = vld [vmem:[%s59 + $0x60] sm:$0xff]
    %v2817 = vld [vmem:[%s59 + $0x68] sm:$0xff]
    %v2818 = vld [vmem:[%s59 + $0x70] sm:$0xff]
    %v2819 = vld [vmem:[%s59 + $0x78] sm:$0xff]
    %v2820 = vld [vmem:[%s59 + $0x80] sm:$0xff]
    %v2821 = vld [vmem:[%s59 + $0x88] sm:$0xff]
    %v2822 = vld [vmem:[%s59 + $0x90] sm:$0xff]
    %v2823 = vld [vmem:[%s59 + $0x98] sm:$0xff]
    %v2824 = vld [vmem:[%s59 + $0xa0] sm:$0xff]
    %v2825 = vld [vmem:[%s59 + $0xa8] sm:$0xff]
    %v2826 = vld [vmem:[%s59 + $0xb0] sm:$0xff]
    %v2827 = vld [vmem:[%s59 + $0xb8] sm:$0xff]
    %v2828 = vld [vmem:[%s59 + $0xc0] sm:$0xff]
    %v2829 = vld [vmem:[%s59 + $0xc8] sm:$0xff]
    %v2830 = vld [vmem:[%s59 + $0xd0] sm:$0xff]
    %v2831 = vld [vmem:[%s59 + $0xd8] sm:$0xff]
    %v2832 = vld [vmem:[%s59 + $0xe0] sm:$0xff]
    %v2833 = vld [vmem:[%s59 + $0xe8] sm:$0xff]
    %v2834 = vld [vmem:[%s59 + $0xf0] sm:$0xff]
    %v2835 = vld [vmem:[%s59 + $0xf8] sm:$0xff]
    %v2836 = vld [vmem:[%s59 + $0x100] sm:$0xff]
    %v2837 = vld [vmem:[%s59 + $0x108] sm:$0xff]
    %v2838 = vld [vmem:[%s59 + $0x110] sm:$0xff]
    %v2839 = vld [vmem:[%s59 + $0x118] sm:$0xff]
    %v2840 = vld [vmem:[%s61] sm:$0x7]
    %v2841 = vld [vmem:[%s63] sm:$0xff]
    %v2842 = vld [vmem:[%s63 + $0x8] sm:$0xff]
    %v2843 = vld [vmem:[%s63 + $0x10] sm:$0xff]
    %v2844 = vld [vmem:[%s63 + $0x18] sm:$0xff]
    %v2845 = vld [vmem:[%s63 + $0x20] sm:$0xff]
    %v2846 = vld [vmem:[%s63 + $0x28] sm:$0xff]
    %v2847 = vld [vmem:[%s63 + $0x30] sm:$0xff]
    %v2848 = vld [vmem:[%s63 + $0x38] sm:$0xff]
    %v2849 = vld [vmem:[%s63 + $0x40] sm:$0xff]
    %v2850 = vld [vmem:[%s63 + $0x48] sm:$0xff]
    %v2851 = vld [vmem:[%s63 + $0x50] sm:$0xff]
    %v2852 = vld [vmem:[%s63 + $0x58] sm:$0xff]
    %v2853 = vld [vmem:[%s65] sm:$0x1]
    %v2854 = vld [vmem:[%s67] sm:$0x1]
    %v2855 = vld [vmem:[%s69] sm:$0x1]
    %v2856 = vld [vmem:[%s71] sm:$0xff]
    %v2857 = vld [vmem:[%s71 + $0x8] sm:$0xff]
    %v2858 = vld [vmem:[%s71 + $0x10] sm:$0xff]
    %v2859 = vld [vmem:[%s71 + $0x18] sm:$0xff]
    %v2860 = vld [vmem:[%s71 + $0x20] sm:$0xff]
    %v2861 = vld [vmem:[%s71 + $0x28] sm:$0xff]
    %v2862 = vld [vmem:[%s71 + $0x30] sm:$0xff]
    %v2863 = vld [vmem:[%s71 + $0x38] sm:$0xff]
    %v2864 = vld [vmem:[%s71 + $0x40] sm:$0xff]
    %v2865 = vld [vmem:[%s71 + $0x48] sm:$0xff]
    %v2866 = vld [vmem:[%s71 + $0x50] sm:$0xff]
    %v2867 = vld [vmem:[%s71 + $0x58] sm:$0xff]
    %v2868 = vld [vmem:[%s71 + $0x60] sm:$0xff]
    %v2869 = vld [vmem:[%s71 + $0x68] sm:$0xff]
    %v2870 = vld [vmem:[%s71 + $0x70] sm:$0xff]
    %v2871 = vld [vmem:[%s71 + $0x78] sm:$0xff]
    %v2872 = vld [vmem:[%s71 + $0x80] sm:$0xff]
    %v2873 = vld [vmem:[%s71 + $0x88] sm:$0xff]
    %v2874 = vld [vmem:[%s71 + $0x90] sm:$0xff]
    %v2875 = vld [vmem:[%s71 + $0x98] sm:$0xff]
    %v2876 = vld [vmem:[%s71 + $0xa0] sm:$0xff]
    %v2877 = vld [vmem:[%s71 + $0xa8] sm:$0xff]
    %v2878 = vld [vmem:[%s71 + $0xb0] sm:$0xff]
    %v2879 = vld [vmem:[%s71 + $0xb8] sm:$0xff]
    %v2880 = vld [vmem:[%s71 + $0xc0] sm:$0xff]
    %v2881 = vld [vmem:[%s71 + $0xc8] sm:$0xff]
    %v2882 = vld [vmem:[%s71 + $0xd0] sm:$0xff]
    %v2883 = vld [vmem:[%s71 + $0xd8] sm:$0xff]
    %v2884 = vld [vmem:[%s71 + $0xe0] sm:$0xff]
    %v2885 = vld [vmem:[%s71 + $0xe8] sm:$0xff]
    %v2886 = vld [vmem:[%s71 + $0xf0] sm:$0xff]
    %v2887 = vld [vmem:[%s71 + $0xf8] sm:$0xff]
    %v2888 = vld [vmem:[%s71 + $0x100] sm:$0xff]
    %v2889 = vld [vmem:[%s71 + $0x108] sm:$0xff]
    %v2890 = vld [vmem:[%s71 + $0x110] sm:$0xff]
    %v2891 = vld [vmem:[%s71 + $0x118] sm:$0xff]
    %v2892 = vld [vmem:[%s73] sm:$0x7]
    %v2893 = vld [vmem:[%s75] sm:$0xff]
    %v2894 = vld [vmem:[%s75 + $0x8] sm:$0xff]
    %v2895 = vld [vmem:[%s75 + $0x10] sm:$0xff]
    %v2896 = vld [vmem:[%s75 + $0x18] sm:$0xff]
    %v2897 = vld [vmem:[%s75 + $0x20] sm:$0xff]
    %v2898 = vld [vmem:[%s75 + $0x28] sm:$0xff]
    %v2899 = vld [vmem:[%s75 + $0x30] sm:$0xff]
    %v2900 = vld [vmem:[%s75 + $0x38] sm:$0xff]
    %v2901 = vld [vmem:[%s75 + $0x40] sm:$0xff]
    %v2902 = vld [vmem:[%s75 + $0x48] sm:$0xff]
    %v2903 = vld [vmem:[%s75 + $0x50] sm:$0xff]
    %v2904 = vld [vmem:[%s75 + $0x58] sm:$0xff]
    %v2905 = vld [vmem:[%s75 + $0x60] sm:$0xff]
    %v2906 = vld [vmem:[%s75 + $0x68] sm:$0xff]
    %v2907 = vld [vmem:[%s75 + $0x70] sm:$0xff]
    %v2908 = vld [vmem:[%s75 + $0x78] sm:$0xff]
    %v2909 = vld [vmem:[%s75 + $0x80] sm:$0xff]
    %v2910 = vld [vmem:[%s75 + $0x88] sm:$0xff]
    %v2911 = vld [vmem:[%s75 + $0x90] sm:$0xff]
    %v2912 = vld [vmem:[%s75 + $0x98] sm:$0xff]
    %v2913 = vld [vmem:[%s75 + $0xa0] sm:$0xff]
    %v2914 = vld [vmem:[%s75 + $0xa8] sm:$0xff]
    %v2915 = vld [vmem:[%s75 + $0xb0] sm:$0xff]
    %v2916 = vld [vmem:[%s75 + $0xb8] sm:$0xff]
    %v2917 = vld [vmem:[%s75 + $0xc0] sm:$0xff]
    %v2918 = vld [vmem:[%s75 + $0xc8] sm:$0xff]
    %v2919 = vld [vmem:[%s75 + $0xd0] sm:$0xff]
    %v2920 = vld [vmem:[%s75 + $0xd8] sm:$0xff]
    %v2921 = vld [vmem:[%s75 + $0xe0] sm:$0xff]
    %v2922 = vld [vmem:[%s75 + $0xe8] sm:$0xff]
    %v2923 = vld [vmem:[%s75 + $0xf0] sm:$0xff]
    %v2924 = vld [vmem:[%s75 + $0xf8] sm:$0xff]
    %v2925 = vld [vmem:[%s75 + $0x100] sm:$0xff]
    %v2926 = vld [vmem:[%s75 + $0x108] sm:$0xff]
    %v2927 = vld [vmem:[%s75 + $0x110] sm:$0xff]
    %v2928 = vld [vmem:[%s75 + $0x118] sm:$0xff]
    %v2929 = vld [vmem:[%s75 + $0x120] sm:$0xff]
    %v2930 = vld [vmem:[%s75 + $0x128] sm:$0xff]
    %v2931 = vld [vmem:[%s75 + $0x130] sm:$0xff]
    %v2932 = vld [vmem:[%s75 + $0x138] sm:$0xff]
    %v2933 = vld [vmem:[%s75 + $0x140] sm:$0xff]
    %v2934 = vld [vmem:[%s75 + $0x148] sm:$0xff]
    %v2935 = vld [vmem:[%s75 + $0x150] sm:$0xff]
    %v2936 = vld [vmem:[%s75 + $0x158] sm:$0xff]
    %v2937 = vld [vmem:[%s75 + $0x160] sm:$0xff]
    %v2938 = vld [vmem:[%s75 + $0x168] sm:$0xff]
    %v2939 = vld [vmem:[%s75 + $0x170] sm:$0xff]
    %v2940 = vld [vmem:[%s75 + $0x178] sm:$0xff]
    %v2941 = vld [vmem:[%s77] sm:$0x1]
    %v2942 = vld [vmem:[%s79] sm:$0x1]
    %v2943 = vld [vmem:[%s81] sm:$0x1]
    %v2944 = vld [vmem:[%s83] sm:$0xff]
    %v2945 = vld [vmem:[%s83 + $0x8] sm:$0xff]
    %v2946 = vld [vmem:[%s83 + $0x10] sm:$0xff]
    %v2947 = vld [vmem:[%s83 + $0x18] sm:$0xff]
    %v2948 = vld [vmem:[%s83 + $0x20] sm:$0xff]
    %v2949 = vld [vmem:[%s83 + $0x28] sm:$0xff]
    %v2950 = vld [vmem:[%s83 + $0x30] sm:$0xff]
    %v2951 = vld [vmem:[%s83 + $0x38] sm:$0xff]
    %v2952 = vld [vmem:[%s83 + $0x40] sm:$0xff]
    %v2953 = vld [vmem:[%s83 + $0x48] sm:$0xff]
    %v2954 = vld [vmem:[%s83 + $0x50] sm:$0xff]
    %v2955 = vld [vmem:[%s83 + $0x58] sm:$0xff]
    %v2956 = vld [vmem:[%s85] sm:$0x1]
    %v2958 = vlaneseq
    %v2959 = vshrl.u32 %v2958, 7
    %v2960 = vsub.s32 0, %v2959
    %v2961 = vrot.slane %v2840, %v2960
    %v2962 = vlaneseq
    %v2963 = vshrl.u32 %v2962, 7
    %v2964 = vsub.s32 1, %v2963
    %v2965 = vrot.slane %v2840, %v2964
    %v2966 = vlaneseq
    %v2967 = vshrl.u32 %v2966, 7
    %v2968 = vsub.s32 2, %v2967
    %v2969 = vrot.slane %v2840, %v2968
    %vm2973 = vcmask 785408
    %v2975 = vsel %vm2973, %v2802, 0
    %v2978 = vsel %vm2973, %v2803, 0
    %2980 = vmatprep.subr.mxu0 %v2805
    %2981 = vmatpush1.msra.mxu0 %v2804
    %2982 = vmatprep.subr.mxu0 %v2808
    %2983 = vmatpush1.msra.mxu0 %v2807
    %2984 = vmatprep.subr.mxu0 %v2811
    %2985 = vmatpush1.msra.mxu0 %v2810
    %2986 = vmatprep.subr.mxu0 %v2814
    %2987 = vmatpush1.msra.mxu0 %v2813
    %2988 = vmatprep.subr.mxu0 %v2817
    %2989 = vmatpush1.msra.mxu0 %v2816
    %2990 = vmatprep.subr.mxu0 %v2820
    %2991 = vmatpush1.msra.mxu0 %v2819
    %2992 = vmatprep.subr.mxu0 %v2823
    %2993 = vmatpush1.msra.mxu0 %v2822
    %2994 = vmatprep.subr.mxu0 %v2826
    %2995 = vmatpush1.msra.mxu0 %v2825
    %2996 = vmatprep.subr.mxu0 %v2829
    %2997 = vmatpush1.msra.mxu0 %v2828
    %2998 = vmatprep.subr.mxu0 %v2832
    %2999 = vmatpush1.msra.mxu0 %v2831
    %3000 = vmatprep.subr.mxu0 %v2835
    %3001 = vmatpush1.msra.mxu0 %v2834
    %3002 = vmatprep.subr.mxu0 %v2838
    %3003 = vmatpush1.msra.mxu0 %v2837
    %3004 = vmatprep.subr.mxu0 0.0
    %3005 = vmatpush1.msra.mxu0 0.0
    %3006 = vmatprep.subr.mxu0 0.0
    %3007 = vmatpush1.msra.mxu0 0.0
    %3008 = vmatprep.subr.mxu0 0.0
    %3009 = vmatpush1.msra.mxu0 0.0
    %3010 = vmatprep.subr.mxu0 0.0
    %3011 = vmatpush1.msra.mxu0 0.0
    %3012 = vmatprep.subr.mxu0 0.0
    %3013 = vmatpush1.msra.mxu0 0.0
    %3014 = vmatprep.subr.mxu0 0.0
    %3015 = vmatpush1.msra.mxu0 0.0
    %3016 = vmatprep.subr.mxu0 0.0
    %3017 = vmatpush1.msra.mxu0 0.0
    %3018 = vmatprep.subr.mxu0 0.0
    %3019 = vmatpush1.msra.mxu0 0.0
    %3020 = vmatprep.subr.mxu0 0.0
    %3021 = vmatpush1.msra.mxu0 0.0
    %3022 = vmatprep.subr.mxu0 0.0
    %3023 = vmatpush1.msra.mxu0 0.0
    %3024 = vmatprep.subr.mxu0 0.0
    %3025 = vmatpush1.msra.mxu0 0.0
    %3026 = vmatprep.subr.mxu0 0.0
    %3027 = vmatpush1.msra.mxu0 0.0
    %3028 = vmatprep.subr.mxu0 0.0
    %3029 = vmatpush1.msra.mxu0 0.0
    %3030 = vmatprep.subr.mxu0 0.0
    %3031 = vmatpush1.msra.mxu0 0.0
    %3032 = vmatprep.subr.mxu0 0.0
    %3033 = vmatpush1.msra.mxu0 0.0
    %3034 = vmatprep.subr.mxu0 0.0
    %3035 = vmatpush1.msra.mxu0 0.0
    %3036 = vmatprep.subr.mxu0 0.0
    %3037 = vmatpush1.msra.mxu0 0.0
    %3038 = vmatprep.subr.mxu0 0.0
    %3039 = vmatpush1.msra.mxu0 0.0
    %3040 = vmatprep.subr.mxu0 0.0
    %3041 = vmatpush1.msra.mxu0 0.0
    %3042 = vmatprep.subr.mxu0 0.0
    %3043 = vmatpush1.msra.mxu0 0.0
    %3044 = vmatprep.mubr.f32.mxu0 0.0
    %3045 = vmatmul.mubr.f32.gmra.mrb[0].mxu0 %v2975
    %v3046 = vpop.f32.mrb[0].mxu0
    %v3047 = vadd.f32 %v2961, %v3046
    %v3048 = vpop.f32.mrb[0].mxu0
    %v3049 = vadd.f32 %v2965, %v3048
    %3050 = vmatprep.mubr.f32.mxu0 0.0
    %3051 = vmatmul.mubr.f32.gmra.mrb[0].mxu0 %v2978
    %v3052 = vpop.f32.mrb[0].mxu0
    %v3053 = vadd.f32 %v2961, %v3052
    %v3054 = vpop.f32.mrb[0].mxu0
    %v3055 = vadd.f32 %v2965, %v3054
    %3056 = vdwg.mxu0
    %3057 = vmatprep.subr.mxu0 0.0
    %3058 = vmatpush1.msra.mxu0 %v2806
    %3059 = vmatprep.subr.mxu0 0.0
    %3060 = vmatpush1.msra.mxu0 %v2809
    %3061 = vmatprep.subr.mxu0 0.0
    %3062 = vmatpush1.msra.mxu0 %v2812
    %3063 = vmatprep.subr.mxu0 0.0
    %3064 = vmatpush1.msra.mxu0 %v2815
    %3065 = vmatprep.subr.mxu0 0.0
    %3066 = vmatpush1.msra.mxu0 %v2818
    %3067 = vmatprep.subr.mxu0 0.0
    %3068 = vmatpush1.msra.mxu0 %v2821
    %3069 = vmatprep.subr.mxu0 0.0
    %3070 = vmatpush1.msra.mxu0 %v2824
    %3071 = vmatprep.subr.mxu0 0.0
    %3072 = vmatpush1.msra.mxu0 %v2827
    %3073 = vmatprep.subr.mxu0 0.0
    %3074 = vmatpush1.msra.mxu0 %v2830
    %3075 = vmatprep.subr.mxu0 0.0
    %3076 = vmatpush1.msra.mxu0 %v2833
    %3077 = vmatprep.subr.mxu0 0.0
    %3078 = vmatpush1.msra.mxu0 %v2836
    %3079 = vmatprep.subr.mxu0 0.0
    %3080 = vmatpush1.msra.mxu0 %v2839
    %3081 = vmatprep.subr.mxu0 0.0
    %3082 = vmatpush1.msra.mxu0 0.0
    %3083 = vmatprep.subr.mxu0 0.0
    %3084 = vmatpush1.msra.mxu0 0.0
    %3085 = vmatprep.subr.mxu0 0.0
    %3086 = vmatpush1.msra.mxu0 0.0
    %3087 = vmatprep.subr.mxu0 0.0
    %3088 = vmatpush1.msra.mxu0 0.0
    %3089 = vmatprep.subr.mxu0 0.0
    %3090 = vmatpush1.msra.mxu0 0.0
    %3091 = vmatprep.subr.mxu0 0.0
    %3092 = vmatpush1.msra.mxu0 0.0
    %3093 = vmatprep.subr.mxu0 0.0
    %3094 = vmatpush1.msra.mxu0 0.0
    %3095 = vmatprep.subr.mxu0 0.0
    %3096 = vmatpush1.msra.mxu0 0.0
    %3097 = vmatprep.subr.mxu0 0.0
    %3098 = vmatpush1.msra.mxu0 0.0
    %3099 = vmatprep.subr.mxu0 0.0
    %3100 = vmatpush1.msra.mxu0 0.0
    %3101 = vmatprep.subr.mxu0 0.0
    %3102 = vmatpush1.msra.mxu0 0.0
    %3103 = vmatprep.subr.mxu0 0.0
    %3104 = vmatpush1.msra.mxu0 0.0
    %3105 = vmatprep.subr.mxu0 0.0
    %3106 = vmatpush1.msra.mxu0 0.0
    %3107 = vmatprep.subr.mxu0 0.0
    %3108 = vmatpush1.msra.mxu0 0.0
    %3109 = vmatprep.subr.mxu0 0.0
    %3110 = vmatpush1.msra.mxu0 0.0
    %3111 = vmatprep.subr.mxu0 0.0
    %3112 = vmatpush1.msra.mxu0 0.0
    %3113 = vmatprep.subr.mxu0 0.0
    %3114 = vmatpush1.msra.mxu0 0.0
    %3115 = vmatprep.subr.mxu0 0.0
    %3116 = vmatpush1.msra.mxu0 0.0
    %3117 = vmatprep.subr.mxu0 0.0
    %3118 = vmatpush1.msra.mxu0 0.0
    %3119 = vmatprep.subr.mxu0 0.0
    %3120 = vmatpush1.msra.mxu0 0.0
    %3121 = vmatprep.mubr.f32.mxu0 0.0
    %3122 = vmatmul.mubr.f32.gmra.mrb[0].mxu0 %v2975
    %v3123 = vpop.f32.mrb[0].mxu0
    %v3124 = vadd.f32 %v2969, %v3123
    %v3125 = vpop.f32.mrb[0].mxu0
    %3126 = vmatprep.mubr.f32.mxu0 0.0
    %3127 = vmatmul.mubr.f32.gmra.mrb[0].mxu0 %v2978
    %v3128 = vpop.f32.mrb[0].mxu0
    %v3129 = vadd.f32 %v2969, %v3128
    %v3130 = vpop.f32.mrb[0].mxu0
    %3131 = vdwg.mxu0
    %v3132 = vmul.f32 %v3047, 0.17677669
    %v3133 = vmul.f32 %v3053, 0.17677669
    %3136 = vrot.lane.b32.xlu0 %v3132, 96
    %v3137 = vpop.permute.xlu0 %3136
    %3138 = vrot.lane.b32.xlu0 %v3133, 96
    %v3139 = vpop.permute.xlu0 %3138
    %3140 = vrot.lane.b32.xlu0 %v3132, 64
    %v3141 = vpop.permute.xlu0 %3140
    %3142 = vrot.lane.b32.xlu0 %v3133, 64
    %v3143 = vpop.permute.xlu0 %3142
    %3146 = vrot.lane.b32.xlu0 %v3049, 96
    %v3147 = vpop.permute.xlu0 %3146
    %3148 = vrot.lane.b32.xlu0 %v3055, 96
    %v3149 = vpop.permute.xlu0 %3148
    %3150 = vrot.lane.b32.xlu0 %v3049, 64
    %v3151 = vpop.permute.xlu0 %3150
    %3152 = vrot.lane.b32.xlu0 %v3055, 64
    %v3153 = vpop.permute.xlu0 %3152
    %3156 = vrot.lane.b32.xlu0 %v3124, 64
    %v3157 = vpop.permute.xlu0 %3156
    %3158 = vrot.lane.b32.xlu0 %v3129, 64
    %v3159 = vpop.permute.xlu0 %3158
    %3161 = vrot.lane.b32.xlu0 %v3047, 32
    %v3162 = vpop.permute.xlu0 %3161
    %v3163 = vsel %vm526, %v3132, 0
    %v3165 = vsel %vm526, %v3162, 0
    %3167 = vmatprep.subr.mxu0 0.0
    %3168 = vmatpush1.xpose.msra.mxu0 %v3165
    %3169 = vmatprep.subr.mxu0 0.0
    %3170 = vmatpush1.xpose.msra.mxu0 0.0
    %3171 = vmatprep.subr.mxu0 0.0
    %3172 = vmatpush1.xpose.msra.mxu0 0.0
    %3173 = vmatprep.subr.mxu0 0.0
    %3174 = vmatpush1.xpose.msra.mxu0 0.0
    %3175 = vmatprep.subr.mxu0 0.0
    %3176 = vmatpush1.xpose.msra.mxu0 0.0
    %3177 = vmatprep.subr.mxu0 0.0
    %3178 = vmatpush1.xpose.msra.mxu0 0.0
    %3179 = vmatprep.subr.mxu0 0.0
    %3180 = vmatpush1.xpose.msra.mxu0 0.0
    %3181 = vmatprep.subr.mxu0 0.0
    %3182 = vmatpush1.xpose.msra.mxu0 0.0
    %3183 = vmatprep.subr.mxu0 0.0
    %3184 = vmatpush1.xpose.msra.mxu0 0.0
    %3185 = vmatprep.subr.mxu0 0.0
    %3186 = vmatpush1.xpose.msra.mxu0 0.0
    %3187 = vmatprep.subr.mxu0 0.0
    %3188 = vmatpush1.xpose.msra.mxu0 0.0
    %3189 = vmatprep.subr.mxu0 0.0
    %3190 = vmatpush1.xpose.msra.mxu0 0.0
    %3191 = vmatprep.subr.mxu0 0.0
    %3192 = vmatpush1.xpose.msra.mxu0 0.0
    %3193 = vmatprep.subr.mxu0 0.0
    %3194 = vmatpush1.xpose.msra.mxu0 0.0
    %3195 = vmatprep.subr.mxu0 0.0
    %3196 = vmatpush1.xpose.msra.mxu0 0.0
    %3197 = vmatprep.subr.mxu0 0.0
    %3198 = vmatpush1.xpose.msra.mxu0 0.0
    %3199 = vmatprep.subr.mxu0 0.0
    %3200 = vmatpush1.xpose.msra.mxu0 0.0
    %3201 = vmatprep.subr.mxu0 0.0
    %3202 = vmatpush1.xpose.msra.mxu0 0.0
    %3203 = vmatprep.subr.mxu0 0.0
    %3204 = vmatpush1.xpose.msra.mxu0 0.0
    %3205 = vmatprep.subr.mxu0 0.0
    %3206 = vmatpush1.xpose.msra.mxu0 0.0
    %3207 = vmatprep.subr.mxu0 0.0
    %3208 = vmatpush1.xpose.msra.mxu0 0.0
    %3209 = vmatprep.subr.mxu0 0.0
    %3210 = vmatpush1.xpose.msra.mxu0 0.0
    %3211 = vmatprep.subr.mxu0 0.0
    %3212 = vmatpush1.xpose.msra.mxu0 0.0
    %3213 = vmatprep.subr.mxu0 0.0
    %3214 = vmatpush1.xpose.msra.mxu0 0.0
    %3215 = vmatprep.subr.mxu0 0.0
    %3216 = vmatpush1.xpose.msra.mxu0 0.0
    %3217 = vmatprep.subr.mxu0 0.0
    %3218 = vmatpush1.xpose.msra.mxu0 0.0
    %3219 = vmatprep.subr.mxu0 0.0
    %3220 = vmatpush1.xpose.msra.mxu0 0.0
    %3221 = vmatprep.subr.mxu0 0.0
    %3222 = vmatpush1.xpose.msra.mxu0 0.0
    %3223 = vmatprep.subr.mxu0 0.0
    %3224 = vmatpush1.xpose.msra.mxu0 0.0
    %3225 = vmatprep.subr.mxu0 0.0
    %3226 = vmatpush1.xpose.msra.mxu0 0.0
    %3227 = vmatprep.subr.mxu0 0.0
    %3228 = vmatpush1.xpose.msra.mxu0 0.0
    %3229 = vmatprep.subr.mxu0 0.0
    %3230 = vmatpush1.xpose.msra.mxu0 0.0
    %3231 = vmatprep.mubr.f32.mxu0 0.0
    %3232 = vmatmul.mubr.f32.gmra.mrb[0].mxu0 %v3163
    %v3233 = vpop.f32.mrb[0].mxu0
    %v3234 = vadd.f32 0.0, %v3233
    %v3235 = vpop.f32.mrb[0].mxu0
    %3236 = vdwg.mxu0
    %3238 = vrot.lane.b32.xlu0 %v3053, 32
    %v3239 = vpop.permute.xlu0 %3238
    %v3240 = vsel %vm526, %v3133, 0
    %v3242 = vsel %vm526, %v3239, 0
    %3244 = vmatprep.subr.mxu0 0.0
    %3245 = vmatpush1.xpose.msra.mxu0 %v3242
    %3246 = vmatprep.subr.mxu0 0.0
    %3247 = vmatpush1.xpose.msra.mxu0 0.0
    %3248 = vmatprep.subr.mxu0 0.0
    %3249 = vmatpush1.xpose.msra.mxu0 0.0
    %3250 = vmatprep.subr.mxu0 0.0
    %3251 = vmatpush1.xpose.msra.mxu0 0.0
    %3252 = vmatprep.subr.mxu0 0.0
    %3253 = vmatpush1.xpose.msra.mxu0 0.0
    %3254 = vmatprep.subr.mxu0 0.0
    %3255 = vmatpush1.xpose.msra.mxu0 0.0
    %3256 = vmatprep.subr.mxu0 0.0
    %3257 = vmatpush1.xpose.msra.mxu0 0.0
    %3258 = vmatprep.subr.mxu0 0.0
    %3259 = vmatpush1.xpose.msra.mxu0 0.0
    %3260 = vmatprep.subr.mxu0 0.0
    %3261 = vmatpush1.xpose.msra.mxu0 0.0
    %3262 = vmatprep.subr.mxu0 0.0
    %3263 = vmatpush1.xpose.msra.mxu0 0.0
    %3264 = vmatprep.subr.mxu0 0.0
    %3265 = vmatpush1.xpose.msra.mxu0 0.0
    %3266 = vmatprep.subr.mxu0 0.0
    %3267 = vmatpush1.xpose.msra.mxu0 0.0
    %3268 = vmatprep.subr.mxu0 0.0
    %3269 = vmatpush1.xpose.msra.mxu0 0.0
    %3270 = vmatprep.subr.mxu0 0.0
    %3271 = vmatpush1.xpose.msra.mxu0 0.0
    %3272 = vmatprep.subr.mxu0 0.0
    %3273 = vmatpush1.xpose.msra.mxu0 0.0
    %3274 = vmatprep.subr.mxu0 0.0
    %3275 = vmatpush1.xpose.msra.mxu0 0.0
    %3276 = vmatprep.subr.mxu0 0.0
    %3277 = vmatpush1.xpose.msra.mxu0 0.0
    %3278 = vmatprep.subr.mxu0 0.0
    %3279 = vmatpush1.xpose.msra.mxu0 0.0
    %3280 = vmatprep.subr.mxu0 0.0
    %3281 = vmatpush1.xpose.msra.mxu0 0.0
    %3282 = vmatprep.subr.mxu0 0.0
    %3283 = vmatpush1.xpose.msra.mxu0 0.0
    %3284 = vmatprep.subr.mxu0 0.0
    %3285 = vmatpush1.xpose.msra.mxu0 0.0
    %3286 = vmatprep.subr.mxu0 0.0
    %3287 = vmatpush1.xpose.msra.mxu0 0.0
    %3288 = vmatprep.subr.mxu0 0.0
    %3289 = vmatpush1.xpose.msra.mxu0 0.0
    %3290 = vmatprep.subr.mxu0 0.0
    %3291 = vmatpush1.xpose.msra.mxu0 0.0
    %3292 = vmatprep.subr.mxu0 0.0
    %3293 = vmatpush1.xpose.msra.mxu0 0.0
    %3294 = vmatprep.subr.mxu0 0.0
    %3295 = vmatpush1.xpose.msra.mxu0 0.0
    %3296 = vmatprep.subr.mxu0 0.0
    %3297 = vmatpush1.xpose.msra.mxu0 0.0
    %3298 = vmatprep.subr.mxu0 0.0
    %3299 = vmatpush1.xpose.msra.mxu0 0.0
    %3300 = vmatprep.subr.mxu0 0.0
    %3301 = vmatpush1.xpose.msra.mxu0 0.0
    %3302 = vmatprep.subr.mxu0 0.0
    %3303 = vmatpush1.xpose.msra.mxu0 0.0
    %3304 = vmatprep.subr.mxu0 0.0
    %3305 = vmatpush1.xpose.msra.mxu0 0.0
    %3306 = vmatprep.subr.mxu0 0.0
    %3307 = vmatpush1.xpose.msra.mxu0 0.0
    %3308 = vmatprep.mubr.f32.mxu0 0.0
    %3309 = vmatmul.mubr.f32.gmra.mrb[0].mxu0 %v3240
    %v3310 = vpop.f32.mrb[0].mxu0
    %v3311 = vadd.f32 0.0, %v3310
    %v3312 = vpop.f32.mrb[0].mxu0
    %3313 = vdwg.mxu0
    %3314 = vrot.lane.b32.xlu0 %v3147, 32
    %v3315 = vpop.permute.xlu0 %3314
    %v3316 = vsel %vm526, %v3137, 0
    %v3318 = vsel %vm526, %v3315, 0
    %3320 = vmatprep.subr.mxu0 0.0
    %3321 = vmatpush1.xpose.msra.mxu0 %v3318
    %3322 = vmatprep.subr.mxu0 0.0
    %3323 = vmatpush1.xpose.msra.mxu0 0.0
    %3324 = vmatprep.subr.mxu0 0.0
    %3325 = vmatpush1.xpose.msra.mxu0 0.0
    %3326 = vmatprep.subr.mxu0 0.0
    %3327 = vmatpush1.xpose.msra.mxu0 0.0
    %3328 = vmatprep.subr.mxu0 0.0
    %3329 = vmatpush1.xpose.msra.mxu0 0.0
    %3330 = vmatprep.subr.mxu0 0.0
    %3331 = vmatpush1.xpose.msra.mxu0 0.0
    %3332 = vmatprep.subr.mxu0 0.0
    %3333 = vmatpush1.xpose.msra.mxu0 0.0
    %3334 = vmatprep.subr.mxu0 0.0
    %3335 = vmatpush1.xpose.msra.mxu0 0.0
    %3336 = vmatprep.subr.mxu0 0.0
    %3337 = vmatpush1.xpose.msra.mxu0 0.0
    %3338 = vmatprep.subr.mxu0 0.0
    %3339 = vmatpush1.xpose.msra.mxu0 0.0
    %3340 = vmatprep.subr.mxu0 0.0
    %3341 = vmatpush1.xpose.msra.mxu0 0.0
    %3342 = vmatprep.subr.mxu0 0.0
    %3343 = vmatpush1.xpose.msra.mxu0 0.0
    %3344 = vmatprep.subr.mxu0 0.0
    %3345 = vmatpush1.xpose.msra.mxu0 0.0
    %3346 = vmatprep.subr.mxu0 0.0
    %3347 = vmatpush1.xpose.msra.mxu0 0.0
    %3348 = vmatprep.subr.mxu0 0.0
    %3349 = vmatpush1.xpose.msra.mxu0 0.0
    %3350 = vmatprep.subr.mxu0 0.0
    %3351 = vmatpush1.xpose.msra.mxu0 0.0
    %3352 = vmatprep.subr.mxu0 0.0
    %3353 = vmatpush1.xpose.msra.mxu0 0.0
    %3354 = vmatprep.subr.mxu0 0.0
    %3355 = vmatpush1.xpose.msra.mxu0 0.0
    %3356 = vmatprep.subr.mxu0 0.0
    %3357 = vmatpush1.xpose.msra.mxu0 0.0
    %3358 = vmatprep.subr.mxu0 0.0
    %3359 = vmatpush1.xpose.msra.mxu0 0.0
    %3360 = vmatprep.subr.mxu0 0.0
    %3361 = vmatpush1.xpose.msra.mxu0 0.0
    %3362 = vmatprep.subr.mxu0 0.0
    %3363 = vmatpush1.xpose.msra.mxu0 0.0
    %3364 = vmatprep.subr.mxu0 0.0
    %3365 = vmatpush1.xpose.msra.mxu0 0.0
    %3366 = vmatprep.subr.mxu0 0.0
    %3367 = vmatpush1.xpose.msra.mxu0 0.0
    %3368 = vmatprep.subr.mxu0 0.0
    %3369 = vmatpush1.xpose.msra.mxu0 0.0
    %3370 = vmatprep.subr.mxu0 0.0
    %3371 = vmatpush1.xpose.msra.mxu0 0.0
    %3372 = vmatprep.subr.mxu0 0.0
    %3373 = vmatpush1.xpose.msra.mxu0 0.0
    %3374 = vmatprep.subr.mxu0 0.0
    %3375 = vmatpush1.xpose.msra.mxu0 0.0
    %3376 = vmatprep.subr.mxu0 0.0
    %3377 = vmatpush1.xpose.msra.mxu0 0.0
    %3378 = vmatprep.subr.mxu0 0.0
    %3379 = vmatpush1.xpose.msra.mxu0 0.0
    %3380 = vmatprep.subr.mxu0 0.0
    %3381 = vmatpush1.xpose.msra.mxu0 0.0
    %3382 = vmatprep.subr.mxu0 0.0
    %3383 = vmatpush1.xpose.msra.mxu0 0.0
    %3384 = vmatprep.mubr.f32.mxu0 0.0
    %3385 = vmatmul.mubr.f32.gmra.mrb[0].mxu0 %v3316
    %v3386 = vpop.f32.mrb[0].mxu0
    %v3387 = vadd.f32 0.0, %v3386
    %v3388 = vpop.f32.mrb[0].mxu0
    %3389 = vdwg.mxu0
    %3390 = vrot.lane.b32.xlu0 %v3149, 32
    %v3391 = vpop.permute.xlu0 %3390
    %v3392 = vsel %vm526, %v3139, 0
    %v3394 = vsel %vm526, %v3391, 0
    %3396 = vmatprep.subr.mxu0 0.0
    %3397 = vmatpush1.xpose.msra.mxu0 %v3394
    %3398 = vmatprep.subr.mxu0 0.0
    %3399 = vmatpush1.xpose.msra.mxu0 0.0
    %3400 = vmatprep.subr.mxu0 0.0
    %3401 = vmatpush1.xpose.msra.mxu0 0.0
    %3402 = vmatprep.subr.mxu0 0.0
    %3403 = vmatpush1.xpose.msra.mxu0 0.0
    %3404 = vmatprep.subr.mxu0 0.0
    %3405 = vmatpush1.xpose.msra.mxu0 0.0
    %3406 = vmatprep.subr.mxu0 0.0
    %3407 = vmatpush1.xpose.msra.mxu0 0.0
    %3408 = vmatprep.subr.mxu0 0.0
    %3409 = vmatpush1.xpose.msra.mxu0 0.0
    %3410 = vmatprep.subr.mxu0 0.0
    %3411 = vmatpush1.xpose.msra.mxu0 0.0
    %3412 = vmatprep.subr.mxu0 0.0
    %3413 = vmatpush1.xpose.msra.mxu0 0.0
    %3414 = vmatprep.subr.mxu0 0.0
    %3415 = vmatpush1.xpose.msra.mxu0 0.0
    %3416 = vmatprep.subr.mxu0 0.0
    %3417 = vmatpush1.xpose.msra.mxu0 0.0
    %3418 = vmatprep.subr.mxu0 0.0
    %3419 = vmatpush1.xpose.msra.mxu0 0.0
    %3420 = vmatprep.subr.mxu0 0.0
    %3421 = vmatpush1.xpose.msra.mxu0 0.0
    %3422 = vmatprep.subr.mxu0 0.0
    %3423 = vmatpush1.xpose.msra.mxu0 0.0
    %3424 = vmatprep.subr.mxu0 0.0
    %3425 = vmatpush1.xpose.msra.mxu0 0.0
    %3426 = vmatprep.subr.mxu0 0.0
    %3427 = vmatpush1.xpose.msra.mxu0 0.0
    %3428 = vmatprep.subr.mxu0 0.0
    %3429 = vmatpush1.xpose.msra.mxu0 0.0
    %3430 = vmatprep.subr.mxu0 0.0
    %3431 = vmatpush1.xpose.msra.mxu0 0.0
    %3432 = vmatprep.subr.mxu0 0.0
    %3433 = vmatpush1.xpose.msra.mxu0 0.0
    %3434 = vmatprep.subr.mxu0 0.0
    %3435 = vmatpush1.xpose.msra.mxu0 0.0
    %3436 = vmatprep.subr.mxu0 0.0
    %3437 = vmatpush1.xpose.msra.mxu0 0.0
    %3438 = vmatprep.subr.mxu0 0.0
    %3439 = vmatpush1.xpose.msra.mxu0 0.0
    %3440 = vmatprep.subr.mxu0 0.0
    %3441 = vmatpush1.xpose.msra.mxu0 0.0
    %3442 = vmatprep.subr.mxu0 0.0
    %3443 = vmatpush1.xpose.msra.mxu0 0.0
    %3444 = vmatprep.subr.mxu0 0.0
    %3445 = vmatpush1.xpose.msra.mxu0 0.0
    %3446 = vmatprep.subr.mxu0 0.0
    %3447 = vmatpush1.xpose.msra.mxu0 0.0
    %3448 = vmatprep.subr.mxu0 0.0
    %3449 = vmatpush1.xpose.msra.mxu0 0.0
    %3450 = vmatprep.subr.mxu0 0.0
    %3451 = vmatpush1.xpose.msra.mxu0 0.0
    %3452 = vmatprep.subr.mxu0 0.0
    %3453 = vmatpush1.xpose.msra.mxu0 0.0
    %3454 = vmatprep.subr.mxu0 0.0
    %3455 = vmatpush1.xpose.msra.mxu0 0.0
    %3456 = vmatprep.subr.mxu0 0.0
    %3457 = vmatpush1.xpose.msra.mxu0 0.0
    %3458 = vmatprep.subr.mxu0 0.0
    %3459 = vmatpush1.xpose.msra.mxu0 0.0
    %3460 = vmatprep.mubr.f32.mxu0 0.0
    %3461 = vmatmul.mubr.f32.gmra.mrb[0].mxu0 %v3392
    %v3462 = vpop.f32.mrb[0].mxu0
    %v3463 = vadd.f32 0.0, %v3462
    %v3464 = vpop.f32.mrb[0].mxu0
    %3465 = vdwg.mxu0
    %3466 = vrot.lane.b32.xlu0 %v3151, 32
    %v3467 = vpop.permute.xlu0 %3466
    %v3468 = vsel %vm526, %v3141, 0
    %v3470 = vsel %vm526, %v3467, 0
    %3472 = vmatprep.subr.mxu0 0.0
    %3473 = vmatpush1.xpose.msra.mxu0 %v3470
    %3474 = vmatprep.subr.mxu0 0.0
    %3475 = vmatpush1.xpose.msra.mxu0 0.0
    %3476 = vmatprep.subr.mxu0 0.0
    %3477 = vmatpush1.xpose.msra.mxu0 0.0
    %3478 = vmatprep.subr.mxu0 0.0
    %3479 = vmatpush1.xpose.msra.mxu0 0.0
    %3480 = vmatprep.subr.mxu0 0.0
    %3481 = vmatpush1.xpose.msra.mxu0 0.0
    %3482 = vmatprep.subr.mxu0 0.0
    %3483 = vmatpush1.xpose.msra.mxu0 0.0
    %3484 = vmatprep.subr.mxu0 0.0
    %3485 = vmatpush1.xpose.msra.mxu0 0.0
    %3486 = vmatprep.subr.mxu0 0.0
    %3487 = vmatpush1.xpose.msra.mxu0 0.0
    %3488 = vmatprep.subr.mxu0 0.0
    %3489 = vmatpush1.xpose.msra.mxu0 0.0
    %3490 = vmatprep.subr.mxu0 0.0
    %3491 = vmatpush1.xpose.msra.mxu0 0.0
    %3492 = vmatprep.subr.mxu0 0.0
    %3493 = vmatpush1.xpose.msra.mxu0 0.0
    %3494 = vmatprep.subr.mxu0 0.0
    %3495 = vmatpush1.xpose.msra.mxu0 0.0
    %3496 = vmatprep.subr.mxu0 0.0
    %3497 = vmatpush1.xpose.msra.mxu0 0.0
    %3498 = vmatprep.subr.mxu0 0.0
    %3499 = vmatpush1.xpose.msra.mxu0 0.0
    %3500 = vmatprep.subr.mxu0 0.0
    %3501 = vmatpush1.xpose.msra.mxu0 0.0
    %3502 = vmatprep.subr.mxu0 0.0
    %3503 = vmatpush1.xpose.msra.mxu0 0.0
    %3504 = vmatprep.subr.mxu0 0.0
    %3505 = vmatpush1.xpose.msra.mxu0 0.0
    %3506 = vmatprep.subr.mxu0 0.0
    %3507 = vmatpush1.xpose.msra.mxu0 0.0
    %3508 = vmatprep.subr.mxu0 0.0
    %3509 = vmatpush1.xpose.msra.mxu0 0.0
    %3510 = vmatprep.subr.mxu0 0.0
    %3511 = vmatpush1.xpose.msra.mxu0 0.0
    %3512 = vmatprep.subr.mxu0 0.0
    %3513 = vmatpush1.xpose.msra.mxu0 0.0
    %3514 = vmatprep.subr.mxu0 0.0
    %3515 = vmatpush1.xpose.msra.mxu0 0.0
    %3516 = vmatprep.subr.mxu0 0.0
    %3517 = vmatpush1.xpose.msra.mxu0 0.0
    %3518 = vmatprep.subr.mxu0 0.0
    %3519 = vmatpush1.xpose.msra.mxu0 0.0
    %3520 = vmatprep.subr.mxu0 0.0
    %3521 = vmatpush1.xpose.msra.mxu0 0.0
    %3522 = vmatprep.subr.mxu0 0.0
    %3523 = vmatpush1.xpose.msra.mxu0 0.0
    %3524 = vmatprep.subr.mxu0 0.0
    %3525 = vmatpush1.xpose.msra.mxu0 0.0
    %3526 = vmatprep.subr.mxu0 0.0
    %3527 = vmatpush1.xpose.msra.mxu0 0.0
    %3528 = vmatprep.subr.mxu0 0.0
    %3529 = vmatpush1.xpose.msra.mxu0 0.0
    %3530 = vmatprep.subr.mxu0 0.0
    %3531 = vmatpush1.xpose.msra.mxu0 0.0
    %3532 = vmatprep.subr.mxu0 0.0
    %3533 = vmatpush1.xpose.msra.mxu0 0.0
    %3534 = vmatprep.subr.mxu0 0.0
    %3535 = vmatpush1.xpose.msra.mxu0 0.0
    %3536 = vmatprep.mubr.f32.mxu0 0.0
    %3537 = vmatmul.mubr.f32.gmra.mrb[0].mxu0 %v3468
    %v3538 = vpop.f32.mrb[0].mxu0
    %v3539 = vadd.f32 0.0, %v3538
    %v3540 = vpop.f32.mrb[0].mxu0
    %3541 = vdwg.mxu0
    %3542 = vrot.lane.b32.xlu0 %v3153, 32
    %v3543 = vpop.permute.xlu0 %3542
    %v3544 = vsel %vm526, %v3143, 0
    %v3546 = vsel %vm526, %v3543, 0
    %3548 = vmatprep.subr.mxu0 0.0
    %3549 = vmatpush1.xpose.msra.mxu0 %v3546
    %3550 = vmatprep.subr.mxu0 0.0
    %3551 = vmatpush1.xpose.msra.mxu0 0.0
    %3552 = vmatprep.subr.mxu0 0.0
    %3553 = vmatpush1.xpose.msra.mxu0 0.0
    %3554 = vmatprep.subr.mxu0 0.0
    %3555 = vmatpush1.xpose.msra.mxu0 0.0
    %3556 = vmatprep.subr.mxu0 0.0
    %3557 = vmatpush1.xpose.msra.mxu0 0.0
    %3558 = vmatprep.subr.mxu0 0.0
    %3559 = vmatpush1.xpose.msra.mxu0 0.0
    %3560 = vmatprep.subr.mxu0 0.0
    %3561 = vmatpush1.xpose.msra.mxu0 0.0
    %3562 = vmatprep.subr.mxu0 0.0
    %3563 = vmatpush1.xpose.msra.mxu0 0.0
    %3564 = vmatprep.subr.mxu0 0.0
    %3565 = vmatpush1.xpose.msra.mxu0 0.0
    %3566 = vmatprep.subr.mxu0 0.0
    %3567 = vmatpush1.xpose.msra.mxu0 0.0
    %3568 = vmatprep.subr.mxu0 0.0
    %3569 = vmatpush1.xpose.msra.mxu0 0.0
    %3570 = vmatprep.subr.mxu0 0.0
    %3571 = vmatpush1.xpose.msra.mxu0 0.0
    %3572 = vmatprep.subr.mxu0 0.0
    %3573 = vmatpush1.xpose.msra.mxu0 0.0
    %3574 = vmatprep.subr.mxu0 0.0
    %3575 = vmatpush1.xpose.msra.mxu0 0.0
    %3576 = vmatprep.subr.mxu0 0.0
    %3577 = vmatpush1.xpose.msra.mxu0 0.0
    %3578 = vmatprep.subr.mxu0 0.0
    %3579 = vmatpush1.xpose.msra.mxu0 0.0
    %3580 = vmatprep.subr.mxu0 0.0
    %3581 = vmatpush1.xpose.msra.mxu0 0.0
    %3582 = vmatprep.subr.mxu0 0.0
    %3583 = vmatpush1.xpose.msra.mxu0 0.0
    %3584 = vmatprep.subr.mxu0 0.0
    %3585 = vmatpush1.xpose.msra.mxu0 0.0
    %3586 = vmatprep.subr.mxu0 0.0
    %3587 = vmatpush1.xpose.msra.mxu0 0.0
    %3588 = vmatprep.subr.mxu0 0.0
    %3589 = vmatpush1.xpose.msra.mxu0 0.0
    %3590 = vmatprep.subr.mxu0 0.0
    %3591 = vmatpush1.xpose.msra.mxu0 0.0
    %3592 = vmatprep.subr.mxu0 0.0
    %3593 = vmatpush1.xpose.msra.mxu0 0.0
    %3594 = vmatprep.subr.mxu0 0.0
    %3595 = vmatpush1.xpose.msra.mxu0 0.0
    %3596 = vmatprep.subr.mxu0 0.0
    %3597 = vmatpush1.xpose.msra.mxu0 0.0
    %3598 = vmatprep.subr.mxu0 0.0
    %3599 = vmatpush1.xpose.msra.mxu0 0.0
    %3600 = vmatprep.subr.mxu0 0.0
    %3601 = vmatpush1.xpose.msra.mxu0 0.0
    %3602 = vmatprep.subr.mxu0 0.0
    %3603 = vmatpush1.xpose.msra.mxu0 0.0
    %3604 = vmatprep.subr.mxu0 0.0
    %3605 = vmatpush1.xpose.msra.mxu0 0.0
    %3606 = vmatprep.subr.mxu0 0.0
    %3607 = vmatpush1.xpose.msra.mxu0 0.0
    %3608 = vmatprep.subr.mxu0 0.0
    %3609 = vmatpush1.xpose.msra.mxu0 0.0
    %3610 = vmatprep.subr.mxu0 0.0
    %3611 = vmatpush1.xpose.msra.mxu0 0.0
    %3612 = vmatprep.mubr.f32.mxu0 0.0
    %3613 = vmatmul.mubr.f32.gmra.mrb[0].mxu0 %v3544
    %v3614 = vpop.f32.mrb[0].mxu0
    %v3615 = vadd.f32 0.0, %v3614
    %v3616 = vpop.f32.mrb[0].mxu0
    %3617 = vdwg.mxu0
    %v3618 = vsel %vm767, %v3234, -1e+09
    %v3619 = vsel %vm767, %v3311, -1e+09
    %v3620 = vsel %vm767, %v3387, -1e+09
    %v3621 = vsel %vm767, %v3463, -1e+09
    %v3622 = vsel %vm767, %v3539, -1e+09
    %v3623 = vsel %vm767, %v3615, -1e+09
    %v3624 = vsel %vm770, %v3618, -inf
    %3625 = vmax.xlane.f32.xlu0 %v3624
    %v3626 = vpop.xlane.xlu0 %3625
    %v3627 = vsel %vm770, %v3619, -inf
    %3628 = vmax.xlane.f32.xlu0 %v3627
    %v3629 = vpop.xlane.xlu0 %3628
    %v3630 = vsel %vm770, %v3620, -inf
    %3631 = vmax.xlane.f32.xlu0 %v3630
    %v3632 = vpop.xlane.xlu0 %3631
    %v3633 = vsel %vm770, %v3621, -inf
    %3634 = vmax.xlane.f32.xlu0 %v3633
    %v3635 = vpop.xlane.xlu0 %3634
    %v3636 = vsel %vm770, %v3622, -inf
    %3637 = vmax.xlane.f32.xlu0 %v3636
    %v3638 = vpop.xlane.xlu0 %3637
    %v3639 = vsel %vm770, %v3623, -inf
    %3640 = vmax.xlane.f32.xlu0 %v3639
    %v3641 = vpop.xlane.xlu0 %3640
    %v3642 = vsub.f32 %v3618, %v3626
    %v3643 = vsub.f32 %v3619, %v3629
    %v3644 = vsub.f32 %v3620, %v3632
    %v3645 = vsub.f32 %v3621, %v3635
    %v3646 = vsub.f32 %v3622, %v3638
    %v3647 = vsub.f32 %v3623, %v3641
    %v3648 = vmul.f32 %v3642, 1.442695
    %v3649 = vpow.pop %v3648
    %v3650 = vmul.f32 %v3643, 1.442695
    %v3651 = vpow.pop %v3650
    %v3652 = vmul.f32 %v3644, 1.442695
    %v3653 = vpow.pop %v3652
    %v3654 = vmul.f32 %v3645, 1.442695
    %v3655 = vpow.pop %v3654
    %v3656 = vmul.f32 %v3646, 1.442695
    %v3657 = vpow.pop %v3656
    %v3658 = vmul.f32 %v3647, 1.442695
    %v3659 = vpow.pop %v3658
    %v3660 = vsel %vm770, %v3649, 0.0
    %3661 = vadd.xlane.f32.xlu0 %v3660
    %v3662 = vpop.xlane.xlu0 %3661
    %v3663 = vsel %vm770, %v3651, 0.0
    %3664 = vadd.xlane.f32.xlu0 %v3663
    %v3665 = vpop.xlane.xlu0 %3664
    %v3666 = vsel %vm770, %v3653, 0.0
    %3667 = vadd.xlane.f32.xlu0 %v3666
    %v3668 = vpop.xlane.xlu0 %3667
    %v3669 = vsel %vm770, %v3655, 0.0
    %3670 = vadd.xlane.f32.xlu0 %v3669
    %v3671 = vpop.xlane.xlu0 %3670
    %v3672 = vsel %vm770, %v3657, 0.0
    %3673 = vadd.xlane.f32.xlu0 %v3672
    %v3674 = vpop.xlane.xlu0 %3673
    %v3675 = vsel %vm770, %v3659, 0.0
    %3676 = vadd.xlane.f32.xlu0 %v3675
    %v3677 = vpop.xlane.xlu0 %3676
    %v3678 = vrcp.pop %v3662
    %v3679 = vmul.f32 %v3649, %v3678
    %v3680 = vrcp.pop %v3665
    %v3681 = vmul.f32 %v3651, %v3680
    %v3682 = vrcp.pop %v3668
    %v3683 = vmul.f32 %v3653, %v3682
    %v3684 = vrcp.pop %v3671
    %v3685 = vmul.f32 %v3655, %v3684
    %v3686 = vrcp.pop %v3674
    %v3687 = vmul.f32 %v3657, %v3686
    %v3688 = vrcp.pop %v3677
    %v3689 = vmul.f32 %v3659, %v3688
    %v3692 = vsel %vm770, %v3679, 0
    %3694 = vmatprep.subr.mxu0 0.0
    %3695 = vmatpush1.msra.mxu0 %v3151
    %3696 = vmatprep.subr.mxu0 0.0
    %3697 = vmatpush1.msra.mxu0 0.0
    %3698 = vmatprep.subr.mxu0 0.0
    %3699 = vmatpush1.msra.mxu0 0.0
    %3700 = vmatprep.subr.mxu0 0.0
    %3701 = vmatpush1.msra.mxu0 0.0
    %3702 = vmatprep.subr.mxu0 0.0
    %3703 = vmatpush1.msra.mxu0 0.0
    %3704 = vmatprep.subr.mxu0 0.0
    %3705 = vmatpush1.msra.mxu0 0.0
    %3706 = vmatprep.subr.mxu0 0.0
    %3707 = vmatpush1.msra.mxu0 0.0
    %3708 = vmatprep.subr.mxu0 0.0
    %3709 = vmatpush1.msra.mxu0 0.0
    %3710 = vmatprep.subr.mxu0 0.0
    %3711 = vmatpush1.msra.mxu0 0.0
    %3712 = vmatprep.subr.mxu0 0.0
    %3713 = vmatpush1.msra.mxu0 0.0
    %3714 = vmatprep.subr.mxu0 0.0
    %3715 = vmatpush1.msra.mxu0 0.0
    %3716 = vmatprep.subr.mxu0 0.0
    %3717 = vmatpush1.msra.mxu0 0.0
    %3718 = vmatprep.subr.mxu0 0.0
    %3719 = vmatpush1.msra.mxu0 0.0
    %3720 = vmatprep.subr.mxu0 0.0
    %3721 = vmatpush1.msra.mxu0 0.0
    %3722 = vmatprep.subr.mxu0 0.0
    %3723 = vmatpush1.msra.mxu0 0.0
    %3724 = vmatprep.subr.mxu0 0.0
    %3725 = vmatpush1.msra.mxu0 0.0
    %3726 = vmatprep.subr.mxu0 0.0
    %3727 = vmatpush1.msra.mxu0 0.0
    %3728 = vmatprep.subr.mxu0 0.0
    %3729 = vmatpush1.msra.mxu0 0.0
    %3730 = vmatprep.subr.mxu0 0.0
    %3731 = vmatpush1.msra.mxu0 0.0
    %3732 = vmatprep.subr.mxu0 0.0
    %3733 = vmatpush1.msra.mxu0 0.0
    %3734 = vmatprep.subr.mxu0 0.0
    %3735 = vmatpush1.msra.mxu0 0.0
    %3736 = vmatprep.subr.mxu0 0.0
    %3737 = vmatpush1.msra.mxu0 0.0
    %3738 = vmatprep.subr.mxu0 0.0
    %3739 = vmatpush1.msra.mxu0 0.0
    %3740 = vmatprep.subr.mxu0 0.0
    %3741 = vmatpush1.msra.mxu0 0.0
    %3742 = vmatprep.subr.mxu0 0.0
    %3743 = vmatpush1.msra.mxu0 0.0
    %3744 = vmatprep.subr.mxu0 0.0
    %3745 = vmatpush1.msra.mxu0 0.0
    %3746 = vmatprep.subr.mxu0 0.0
    %3747 = vmatpush1.msra.mxu0 0.0
    %3748 = vmatprep.subr.mxu0 0.0
    %3749 = vmatpush1.msra.mxu0 0.0
    %3750 = vmatprep.subr.mxu0 0.0
    %3751 = vmatpush1.msra.mxu0 0.0
    %3752 = vmatprep.subr.mxu0 0.0
    %3753 = vmatpush1.msra.mxu0 0.0
    %3754 = vmatprep.subr.mxu0 0.0
    %3755 = vmatpush1.msra.mxu0 0.0
    %3756 = vmatprep.subr.mxu0 0.0
    %3757 = vmatpush1.msra.mxu0 0.0
    %3758 = vmatprep.mubr.f32.mxu0 0.0
    %3759 = vmatmul.mubr.f32.gmra.mrb[0].mxu0 %v3692
    %v3760 = vpop.f32.mrb[0].mxu0
    %v3761 = vadd.f32 0.0, %v3760
    %v3762 = vpop.f32.mrb[0].mxu0
    %3763 = vdwg.mxu0
    %v3766 = vsel %vm770, %v3681, 0
    %3768 = vmatprep.subr.mxu0 0.0
    %3769 = vmatpush1.msra.mxu0 %v3153
    %3770 = vmatprep.subr.mxu0 0.0
    %3771 = vmatpush1.msra.mxu0 0.0
    %3772 = vmatprep.subr.mxu0 0.0
    %3773 = vmatpush1.msra.mxu0 0.0
    %3774 = vmatprep.subr.mxu0 0.0
    %3775 = vmatpush1.msra.mxu0 0.0
    %3776 = vmatprep.subr.mxu0 0.0
    %3777 = vmatpush1.msra.mxu0 0.0
    %3778 = vmatprep.subr.mxu0 0.0
    %3779 = vmatpush1.msra.mxu0 0.0
    %3780 = vmatprep.subr.mxu0 0.0
    %3781 = vmatpush1.msra.mxu0 0.0
    %3782 = vmatprep.subr.mxu0 0.0
    %3783 = vmatpush1.msra.mxu0 0.0
    %3784 = vmatprep.subr.mxu0 0.0
    %3785 = vmatpush1.msra.mxu0 0.0
    %3786 = vmatprep.subr.mxu0 0.0
    %3787 = vmatpush1.msra.mxu0 0.0
    %3788 = vmatprep.subr.mxu0 0.0
    %3789 = vmatpush1.msra.mxu0 0.0
    %3790 = vmatprep.subr.mxu0 0.0
    %3791 = vmatpush1.msra.mxu0 0.0
    %3792 = vmatprep.subr.mxu0 0.0
    %3793 = vmatpush1.msra.mxu0 0.0
    %3794 = vmatprep.subr.mxu0 0.0
    %3795 = vmatpush1.msra.mxu0 0.0
    %3796 = vmatprep.subr.mxu0 0.0
    %3797 = vmatpush1.msra.mxu0 0.0
    %3798 = vmatprep.subr.mxu0 0.0
    %3799 = vmatpush1.msra.mxu0 0.0
    %3800 = vmatprep.subr.mxu0 0.0
    %3801 = vmatpush1.msra.mxu0 0.0
    %3802 = vmatprep.subr.mxu0 0.0
    %3803 = vmatpush1.msra.mxu0 0.0
    %3804 = vmatprep.subr.mxu0 0.0
    %3805 = vmatpush1.msra.mxu0 0.0
    %3806 = vmatprep.subr.mxu0 0.0
    %3807 = vmatpush1.msra.mxu0 0.0
    %3808 = vmatprep.subr.mxu0 0.0
    %3809 = vmatpush1.msra.mxu0 0.0
    %3810 = vmatprep.subr.mxu0 0.0
    %3811 = vmatpush1.msra.mxu0 0.0
    %3812 = vmatprep.subr.mxu0 0.0
    %3813 = vmatpush1.msra.mxu0 0.0
    %3814 = vmatprep.subr.mxu0 0.0
    %3815 = vmatpush1.msra.mxu0 0.0
    %3816 = vmatprep.subr.mxu0 0.0
    %3817 = vmatpush1.msra.mxu0 0.0
    %3818 = vmatprep.subr.mxu0 0.0
    %3819 = vmatpush1.msra.mxu0 0.0
    %3820 = vmatprep.subr.mxu0 0.0
    %3821 = vmatpush1.msra.mxu0 0.0
    %3822 = vmatprep.subr.mxu0 0.0
    %3823 = vmatpush1.msra.mxu0 0.0
    %3824 = vmatprep.subr.mxu0 0.0
    %3825 = vmatpush1.msra.mxu0 0.0
    %3826 = vmatprep.subr.mxu0 0.0
    %3827 = vmatpush1.msra.mxu0 0.0
    %3828 = vmatprep.subr.mxu0 0.0
    %3829 = vmatpush1.msra.mxu0 0.0
    %3830 = vmatprep.subr.mxu0 0.0
    %3831 = vmatpush1.msra.mxu0 0.0
    %3832 = vmatprep.mubr.f32.mxu0 0.0
    %3833 = vmatmul.mubr.f32.gmra.mrb[0].mxu0 %v3766
    %v3834 = vpop.f32.mrb[0].mxu0
    %v3835 = vadd.f32 0.0, %v3834
    %v3836 = vpop.f32.mrb[0].mxu0
    %3837 = vdwg.mxu0
    %3838 = vrot.lane.b32.xlu0 %v3147, 64
    %v3839 = vpop.permute.xlu0 %3838
    %v3842 = vsel %vm770, %v3683, 0
    %3844 = vmatprep.subr.mxu0 0.0
    %3845 = vmatpush1.msra.mxu0 %v3839
    %3846 = vmatprep.subr.mxu0 0.0
    %3847 = vmatpush1.msra.mxu0 0.0
    %3848 = vmatprep.subr.mxu0 0.0
    %3849 = vmatpush1.msra.mxu0 0.0
    %3850 = vmatprep.subr.mxu0 0.0
    %3851 = vmatpush1.msra.mxu0 0.0
    %3852 = vmatprep.subr.mxu0 0.0
    %3853 = vmatpush1.msra.mxu0 0.0
    %3854 = vmatprep.subr.mxu0 0.0
    %3855 = vmatpush1.msra.mxu0 0.0
    %3856 = vmatprep.subr.mxu0 0.0
    %3857 = vmatpush1.msra.mxu0 0.0
    %3858 = vmatprep.subr.mxu0 0.0
    %3859 = vmatpush1.msra.mxu0 0.0
    %3860 = vmatprep.subr.mxu0 0.0
    %3861 = vmatpush1.msra.mxu0 0.0
    %3862 = vmatprep.subr.mxu0 0.0
    %3863 = vmatpush1.msra.mxu0 0.0
    %3864 = vmatprep.subr.mxu0 0.0
    %3865 = vmatpush1.msra.mxu0 0.0
    %3866 = vmatprep.subr.mxu0 0.0
    %3867 = vmatpush1.msra.mxu0 0.0
    %3868 = vmatprep.subr.mxu0 0.0
    %3869 = vmatpush1.msra.mxu0 0.0
    %3870 = vmatprep.subr.mxu0 0.0
    %3871 = vmatpush1.msra.mxu0 0.0
    %3872 = vmatprep.subr.mxu0 0.0
    %3873 = vmatpush1.msra.mxu0 0.0
    %3874 = vmatprep.subr.mxu0 0.0
    %3875 = vmatpush1.msra.mxu0 0.0
    %3876 = vmatprep.subr.mxu0 0.0
    %3877 = vmatpush1.msra.mxu0 0.0
    %3878 = vmatprep.subr.mxu0 0.0
    %3879 = vmatpush1.msra.mxu0 0.0
    %3880 = vmatprep.subr.mxu0 0.0
    %3881 = vmatpush1.msra.mxu0 0.0
    %3882 = vmatprep.subr.mxu0 0.0
    %3883 = vmatpush1.msra.mxu0 0.0
    %3884 = vmatprep.subr.mxu0 0.0
    %3885 = vmatpush1.msra.mxu0 0.0
    %3886 = vmatprep.subr.mxu0 0.0
    %3887 = vmatpush1.msra.mxu0 0.0
    %3888 = vmatprep.subr.mxu0 0.0
    %3889 = vmatpush1.msra.mxu0 0.0
    %3890 = vmatprep.subr.mxu0 0.0
    %3891 = vmatpush1.msra.mxu0 0.0
    %3892 = vmatprep.subr.mxu0 0.0
    %3893 = vmatpush1.msra.mxu0 0.0
    %3894 = vmatprep.subr.mxu0 0.0
    %3895 = vmatpush1.msra.mxu0 0.0
    %3896 = vmatprep.subr.mxu0 0.0
    %3897 = vmatpush1.msra.mxu0 0.0
    %3898 = vmatprep.subr.mxu0 0.0
    %3899 = vmatpush1.msra.mxu0 0.0
    %3900 = vmatprep.subr.mxu0 0.0
    %3901 = vmatpush1.msra.mxu0 0.0
    %3902 = vmatprep.subr.mxu0 0.0
    %3903 = vmatpush1.msra.mxu0 0.0
    %3904 = vmatprep.subr.mxu0 0.0
    %3905 = vmatpush1.msra.mxu0 0.0
    %3906 = vmatprep.subr.mxu0 0.0
    %3907 = vmatpush1.msra.mxu0 0.0
    %3908 = vmatprep.mubr.f32.mxu0 0.0
    %3909 = vmatmul.mubr.f32.gmra.mrb[0].mxu0 %v3842
    %v3910 = vpop.f32.mrb[0].mxu0
    %v3911 = vadd.f32 0.0, %v3910
    %v3912 = vpop.f32.mrb[0].mxu0
    %3913 = vdwg.mxu0
    %3914 = vrot.lane.b32.xlu0 %v3149, 64
    %v3915 = vpop.permute.xlu0 %3914
    %v3918 = vsel %vm770, %v3685, 0
    %3920 = vmatprep.subr.mxu0 0.0
    %3921 = vmatpush1.msra.mxu0 %v3915
    %3922 = vmatprep.subr.mxu0 0.0
    %3923 = vmatpush1.msra.mxu0 0.0
    %3924 = vmatprep.subr.mxu0 0.0
    %3925 = vmatpush1.msra.mxu0 0.0
    %3926 = vmatprep.subr.mxu0 0.0
    %3927 = vmatpush1.msra.mxu0 0.0
    %3928 = vmatprep.subr.mxu0 0.0
    %3929 = vmatpush1.msra.mxu0 0.0
    %3930 = vmatprep.subr.mxu0 0.0
    %3931 = vmatpush1.msra.mxu0 0.0
    %3932 = vmatprep.subr.mxu0 0.0
    %3933 = vmatpush1.msra.mxu0 0.0
    %3934 = vmatprep.subr.mxu0 0.0
    %3935 = vmatpush1.msra.mxu0 0.0
    %3936 = vmatprep.subr.mxu0 0.0
    %3937 = vmatpush1.msra.mxu0 0.0
    %3938 = vmatprep.subr.mxu0 0.0
    %3939 = vmatpush1.msra.mxu0 0.0
    %3940 = vmatprep.subr.mxu0 0.0
    %3941 = vmatpush1.msra.mxu0 0.0
    %3942 = vmatprep.subr.mxu0 0.0
    %3943 = vmatpush1.msra.mxu0 0.0
    %3944 = vmatprep.subr.mxu0 0.0
    %3945 = vmatpush1.msra.mxu0 0.0
    %3946 = vmatprep.subr.mxu0 0.0
    %3947 = vmatpush1.msra.mxu0 0.0
    %3948 = vmatprep.subr.mxu0 0.0
    %3949 = vmatpush1.msra.mxu0 0.0
    %3950 = vmatprep.subr.mxu0 0.0
    %3951 = vmatpush1.msra.mxu0 0.0
    %3952 = vmatprep.subr.mxu0 0.0
    %3953 = vmatpush1.msra.mxu0 0.0
    %3954 = vmatprep.subr.mxu0 0.0
    %3955 = vmatpush1.msra.mxu0 0.0
    %3956 = vmatprep.subr.mxu0 0.0
    %3957 = vmatpush1.msra.mxu0 0.0
    %3958 = vmatprep.subr.mxu0 0.0
    %3959 = vmatpush1.msra.mxu0 0.0
    %3960 = vmatprep.subr.mxu0 0.0
    %3961 = vmatpush1.msra.mxu0 0.0
    %3962 = vmatprep.subr.mxu0 0.0
    %3963 = vmatpush1.msra.mxu0 0.0
    %3964 = vmatprep.subr.mxu0 0.0
    %3965 = vmatpush1.msra.mxu0 0.0
    %3966 = vmatprep.subr.mxu0 0.0
    %3967 = vmatpush1.msra.mxu0 0.0
    %3968 = vmatprep.subr.mxu0 0.0
    %3969 = vmatpush1.msra.mxu0 0.0
    %3970 = vmatprep.subr.mxu0 0.0
    %3971 = vmatpush1.msra.mxu0 0.0
    %3972 = vmatprep.subr.mxu0 0.0
    %3973 = vmatpush1.msra.mxu0 0.0
    %3974 = vmatprep.subr.mxu0 0.0
    %3975 = vmatpush1.msra.mxu0 0.0
    %3976 = vmatprep.subr.mxu0 0.0
    %3977 = vmatpush1.msra.mxu0 0.0
    %3978 = vmatprep.subr.mxu0 0.0
    %3979 = vmatpush1.msra.mxu0 0.0
    %3980 = vmatprep.subr.mxu0 0.0
    %3981 = vmatpush1.msra.mxu0 0.0
    %3982 = vmatprep.subr.mxu0 0.0
    %3983 = vmatpush1.msra.mxu0 0.0
    %3984 = vmatprep.mubr.f32.mxu0 0.0
    %3985 = vmatmul.mubr.f32.gmra.mrb[0].mxu0 %v3918
    %v3986 = vpop.f32.mrb[0].mxu0
    %v3987 = vadd.f32 0.0, %v3986
    %v3988 = vpop.f32.mrb[0].mxu0
    %3989 = vdwg.mxu0
    %3990 = vrot.lane.b32.xlu0 %v3157, 64
    %v3991 = vpop.permute.xlu0 %3990
    %v3994 = vsel %vm770, %v3687, 0
    %3996 = vmatprep.subr.mxu0 0.0
    %3997 = vmatpush1.msra.mxu0 %v3991
    %3998 = vmatprep.subr.mxu0 0.0
    %3999 = vmatpush1.msra.mxu0 0.0
    %4000 = vmatprep.subr.mxu0 0.0
    %4001 = vmatpush1.msra.mxu0 0.0
    %4002 = vmatprep.subr.mxu0 0.0
    %4003 = vmatpush1.msra.mxu0 0.0
    %4004 = vmatprep.subr.mxu0 0.0
    %4005 = vmatpush1.msra.mxu0 0.0
    %4006 = vmatprep.subr.mxu0 0.0
    %4007 = vmatpush1.msra.mxu0 0.0
    %4008 = vmatprep.subr.mxu0 0.0
    %4009 = vmatpush1.msra.mxu0 0.0
    %4010 = vmatprep.subr.mxu0 0.0
    %4011 = vmatpush1.msra.mxu0 0.0
    %4012 = vmatprep.subr.mxu0 0.0
    %4013 = vmatpush1.msra.mxu0 0.0
    %4014 = vmatprep.subr.mxu0 0.0
    %4015 = vmatpush1.msra.mxu0 0.0
    %4016 = vmatprep.subr.mxu0 0.0
    %4017 = vmatpush1.msra.mxu0 0.0
    %4018 = vmatprep.subr.mxu0 0.0
    %4019 = vmatpush1.msra.mxu0 0.0
    %4020 = vmatprep.subr.mxu0 0.0
    %4021 = vmatpush1.msra.mxu0 0.0
    %4022 = vmatprep.subr.mxu0 0.0
    %4023 = vmatpush1.msra.mxu0 0.0
    %4024 = vmatprep.subr.mxu0 0.0
    %4025 = vmatpush1.msra.mxu0 0.0
    %4026 = vmatprep.subr.mxu0 0.0
    %4027 = vmatpush1.msra.mxu0 0.0
    %4028 = vmatprep.subr.mxu0 0.0
    %4029 = vmatpush1.msra.mxu0 0.0
    %4030 = vmatprep.subr.mxu0 0.0
    %4031 = vmatpush1.msra.mxu0 0.0
    %4032 = vmatprep.subr.mxu0 0.0
    %4033 = vmatpush1.msra.mxu0 0.0
    %4034 = vmatprep.subr.mxu0 0.0
    %4035 = vmatpush1.msra.mxu0 0.0
    %4036 = vmatprep.subr.mxu0 0.0
    %4037 = vmatpush1.msra.mxu0 0.0
    %4038 = vmatprep.subr.mxu0 0.0
    %4039 = vmatpush1.msra.mxu0 0.0
    %4040 = vmatprep.subr.mxu0 0.0
    %4041 = vmatpush1.msra.mxu0 0.0
    %4042 = vmatprep.subr.mxu0 0.0
    %4043 = vmatpush1.msra.mxu0 0.0
    %4044 = vmatprep.subr.mxu0 0.0
    %4045 = vmatpush1.msra.mxu0 0.0
    %4046 = vmatprep.subr.mxu0 0.0
    %4047 = vmatpush1.msra.mxu0 0.0
    %4048 = vmatprep.subr.mxu0 0.0
    %4049 = vmatpush1.msra.mxu0 0.0
    %4050 = vmatprep.subr.mxu0 0.0
    %4051 = vmatpush1.msra.mxu0 0.0
    %4052 = vmatprep.subr.mxu0 0.0
    %4053 = vmatpush1.msra.mxu0 0.0
    %4054 = vmatprep.subr.mxu0 0.0
    %4055 = vmatpush1.msra.mxu0 0.0
    %4056 = vmatprep.subr.mxu0 0.0
    %4057 = vmatpush1.msra.mxu0 0.0
    %4058 = vmatprep.subr.mxu0 0.0
    %4059 = vmatpush1.msra.mxu0 0.0
    %4060 = vmatprep.mubr.f32.mxu0 0.0
    %4061 = vmatmul.mubr.f32.gmra.mrb[0].mxu0 %v3994
    %v4062 = vpop.f32.mrb[0].mxu0
    %v4063 = vadd.f32 0.0, %v4062
    %v4064 = vpop.f32.mrb[0].mxu0
    %4065 = vdwg.mxu0
    %4066 = vrot.lane.b32.xlu0 %v3159, 64
    %v4067 = vpop.permute.xlu0 %4066
    %v4070 = vsel %vm770, %v3689, 0
    %4072 = vmatprep.subr.mxu0 0.0
    %4073 = vmatpush1.msra.mxu0 %v4067
    %4074 = vmatprep.subr.mxu0 0.0
    %4075 = vmatpush1.msra.mxu0 0.0
    %4076 = vmatprep.subr.mxu0 0.0
    %4077 = vmatpush1.msra.mxu0 0.0
    %4078 = vmatprep.subr.mxu0 0.0
    %4079 = vmatpush1.msra.mxu0 0.0
    %4080 = vmatprep.subr.mxu0 0.0
    %4081 = vmatpush1.msra.mxu0 0.0
    %4082 = vmatprep.subr.mxu0 0.0
    %4083 = vmatpush1.msra.mxu0 0.0
    %4084 = vmatprep.subr.mxu0 0.0
    %4085 = vmatpush1.msra.mxu0 0.0
    %4086 = vmatprep.subr.mxu0 0.0
    %4087 = vmatpush1.msra.mxu0 0.0
    %4088 = vmatprep.subr.mxu0 0.0
    %4089 = vmatpush1.msra.mxu0 0.0
    %4090 = vmatprep.subr.mxu0 0.0
    %4091 = vmatpush1.msra.mxu0 0.0
    %4092 = vmatprep.subr.mxu0 0.0
    %4093 = vmatpush1.msra.mxu0 0.0
    %4094 = vmatprep.subr.mxu0 0.0
    %4095 = vmatpush1.msra.mxu0 0.0
    %4096 = vmatprep.subr.mxu0 0.0
    %4097 = vmatpush1.msra.mxu0 0.0
    %4098 = vmatprep.subr.mxu0 0.0
    %4099 = vmatpush1.msra.mxu0 0.0
    %4100 = vmatprep.subr.mxu0 0.0
    %4101 = vmatpush1.msra.mxu0 0.0
    %4102 = vmatprep.subr.mxu0 0.0
    %4103 = vmatpush1.msra.mxu0 0.0
    %4104 = vmatprep.subr.mxu0 0.0
    %4105 = vmatpush1.msra.mxu0 0.0
    %4106 = vmatprep.subr.mxu0 0.0
    %4107 = vmatpush1.msra.mxu0 0.0
    %4108 = vmatprep.subr.mxu0 0.0
    %4109 = vmatpush1.msra.mxu0 0.0
    %4110 = vmatprep.subr.mxu0 0.0
    %4111 = vmatpush1.msra.mxu0 0.0
    %4112 = vmatprep.subr.mxu0 0.0
    %4113 = vmatpush1.msra.mxu0 0.0
    %4114 = vmatprep.subr.mxu0 0.0
    %4115 = vmatpush1.msra.mxu0 0.0
    %4116 = vmatprep.subr.mxu0 0.0
    %4117 = vmatpush1.msra.mxu0 0.0
    %4118 = vmatprep.subr.mxu0 0.0
    %4119 = vmatpush1.msra.mxu0 0.0
    %4120 = vmatprep.subr.mxu0 0.0
    %4121 = vmatpush1.msra.mxu0 0.0
    %4122 = vmatprep.subr.mxu0 0.0
    %4123 = vmatpush1.msra.mxu0 0.0
    %4124 = vmatprep.subr.mxu0 0.0
    %4125 = vmatpush1.msra.mxu0 0.0
    %4126 = vmatprep.subr.mxu0 0.0
    %4127 = vmatpush1.msra.mxu0 0.0
    %4128 = vmatprep.subr.mxu0 0.0
    %4129 = vmatpush1.msra.mxu0 0.0
    %4130 = vmatprep.subr.mxu0 0.0
    %4131 = vmatpush1.msra.mxu0 0.0
    %4132 = vmatprep.subr.mxu0 0.0
    %4133 = vmatpush1.msra.mxu0 0.0
    %4134 = vmatprep.subr.mxu0 0.0
    %4135 = vmatpush1.msra.mxu0 0.0
    %4136 = vmatprep.mubr.f32.mxu0 0.0
    %4137 = vmatmul.mubr.f32.gmra.mrb[0].mxu0 %v4070
    %v4138 = vpop.f32.mrb[0].mxu0
    %v4139 = vadd.f32 0.0, %v4138
    %v4140 = vpop.f32.mrb[0].mxu0
    %4141 = vdwg.mxu0
    %4144 = vrot.lane.b32.xlu0 %v3911, 32
    %v4145 = vpop.permute.xlu0 %4144
    %4146 = vrot.lane.b32.xlu0 %v3987, 32
    %v4147 = vpop.permute.xlu0 %4146
    %4152 = vrot.lane.b32.xlu0 %v4063, 64
    %v4153 = vpop.permute.xlu0 %4152
    %4154 = vrot.lane.b32.xlu0 %v4139, 64
    %v4155 = vpop.permute.xlu0 %4154
    %v4158 = vsel %vm526, %v3761, %v4145
    %v4159 = vsel %vm526, %v3835, %v4147
    %v4160 = vsel %vm1532, %v4158, %v4153
    %v4161 = vsel %vm1532, %v4159, %v4155
    %v4163 = vlaneseq
    %v4164 = vshrl.u32 %v4163, 7
    %v4165 = vsub.s32 0, %v4164
    %v4166 = vrot.slane %v2853, %v4165
    %v4169 = vsel %vm2973, %v4160, 0
    %v4172 = vsel %vm2973, %v4161, 0
    %4174 = vmatprep.subr.mxu0 0.0
    %4175 = vmatpush1.msra.mxu0 %v2841
    %4176 = vmatprep.subr.mxu0 0.0
    %4177 = vmatpush1.msra.mxu0 %v2842
    %4178 = vmatprep.subr.mxu0 0.0
    %4179 = vmatpush1.msra.mxu0 %v2843
    %4180 = vmatprep.subr.mxu0 0.0
    %4181 = vmatpush1.msra.mxu0 %v2844
    %4182 = vmatprep.subr.mxu0 0.0
    %4183 = vmatpush1.msra.mxu0 %v2845
    %4184 = vmatprep.subr.mxu0 0.0
    %4185 = vmatpush1.msra.mxu0 %v2846
    %4186 = vmatprep.subr.mxu0 0.0
    %4187 = vmatpush1.msra.mxu0 %v2847
    %4188 = vmatprep.subr.mxu0 0.0
    %4189 = vmatpush1.msra.mxu0 %v2848
    %4190 = vmatprep.subr.mxu0 0.0
    %4191 = vmatpush1.msra.mxu0 %v2849
    %4192 = vmatprep.subr.mxu0 0.0
    %4193 = vmatpush1.msra.mxu0 %v2850
    %4194 = vmatprep.subr.mxu0 0.0
    %4195 = vmatpush1.msra.mxu0 %v2851
    %4196 = vmatprep.subr.mxu0 0.0
    %4197 = vmatpush1.msra.mxu0 %v2852
    %4198 = vmatprep.subr.mxu0 0.0
    %4199 = vmatpush1.msra.mxu0 0.0
    %4200 = vmatprep.subr.mxu0 0.0
    %4201 = vmatpush1.msra.mxu0 0.0
    %4202 = vmatprep.subr.mxu0 0.0
    %4203 = vmatpush1.msra.mxu0 0.0
    %4204 = vmatprep.subr.mxu0 0.0
    %4205 = vmatpush1.msra.mxu0 0.0
    %4206 = vmatprep.subr.mxu0 0.0
    %4207 = vmatpush1.msra.mxu0 0.0
    %4208 = vmatprep.subr.mxu0 0.0
    %4209 = vmatpush1.msra.mxu0 0.0
    %4210 = vmatprep.subr.mxu0 0.0
    %4211 = vmatpush1.msra.mxu0 0.0
    %4212 = vmatprep.subr.mxu0 0.0
    %4213 = vmatpush1.msra.mxu0 0.0
    %4214 = vmatprep.subr.mxu0 0.0
    %4215 = vmatpush1.msra.mxu0 0.0
    %4216 = vmatprep.subr.mxu0 0.0
    %4217 = vmatpush1.msra.mxu0 0.0
    %4218 = vmatprep.subr.mxu0 0.0
    %4219 = vmatpush1.msra.mxu0 0.0
    %4220 = vmatprep.subr.mxu0 0.0
    %4221 = vmatpush1.msra.mxu0 0.0
    %4222 = vmatprep.subr.mxu0 0.0
    %4223 = vmatpush1.msra.mxu0 0.0
    %4224 = vmatprep.subr.mxu0 0.0
    %4225 = vmatpush1.msra.mxu0 0.0
    %4226 = vmatprep.subr.mxu0 0.0
    %4227 = vmatpush1.msra.mxu0 0.0
    %4228 = vmatprep.subr.mxu0 0.0
    %4229 = vmatpush1.msra.mxu0 0.0
    %4230 = vmatprep.subr.mxu0 0.0
    %4231 = vmatpush1.msra.mxu0 0.0
    %4232 = vmatprep.subr.mxu0 0.0
    %4233 = vmatpush1.msra.mxu0 0.0
    %4234 = vmatprep.subr.mxu0 0.0
    %4235 = vmatpush1.msra.mxu0 0.0
    %4236 = vmatprep.subr.mxu0 0.0
    %4237 = vmatpush1.msra.mxu0 0.0
    %4238 = vmatprep.mubr.f32.mxu0 0.0
    %4239 = vmatmul.mubr.f32.gmra.mrb[0].mxu0 %v4169
    %v4240 = vpop.f32.mrb[0].mxu0
    %v4241 = vadd.f32 %v4166, %v4240
    %v4242 = vpop.f32.mrb[0].mxu0
    %4243 = vmatprep.mubr.f32.mxu0 0.0
    %4244 = vmatmul.mubr.f32.gmra.mrb[0].mxu0 %v4172
    %v4245 = vpop.f32.mrb[0].mxu0
    %v4246 = vadd.f32 %v4166, %v4245
    %v4247 = vpop.f32.mrb[0].mxu0
    %4248 = vdwg.mxu0
    %v4249 = vadd.f32 %v2802, %v4241
    %v4250 = vadd.f32 %v2803, %v4246
    %v4251 = vsel %vm2973, %v4249, 0.0
    %4252 = vadd.xlane.f32.xlu0 %v4251
    %v4253 = vpop.xlane.xlu0 %4252
    %v4254 = vsel %vm2973, %v4250, 0.0
    %4255 = vadd.xlane.f32.xlu0 %v4254
    %v4256 = vpop.xlane.xlu0 %4255
    %v4257 = vrcp.pop 96.0
    %v4258 = vmul.f32 %v4253, %v4257
    %v4259 = vmul.f32 %v4256, %v4257
    %v4260 = vsub.f32 %v4249, %v4258
    %v4261 = vsub.f32 %v4250, %v4259
    %v4262 = vmul.f32 %v4260, %v4260
    %v4263 = vmul.f32 %v4261, %v4261
    %v4264 = vsel %vm2973, %v4262, 0.0
    %4265 = vadd.xlane.f32.xlu0 %v4264
    %v4266 = vpop.xlane.xlu0 %4265
    %v4267 = vsel %vm2973, %v4263, 0.0
    %4268 = vadd.xlane.f32.xlu0 %v4267
    %v4269 = vpop.xlane.xlu0 %4268
    %v4270 = vmul.f32 %v4266, %v4257
    %v4271 = vmul.f32 %v4269, %v4257
    %v4272 = vadd.f32 %v4270, 1e-05
    %v4273 = vadd.f32 %v4271, 1e-05
    %v4274 = vrsqrt.pop %v4272
    %v4275 = vmul.f32 %v4272, %v4274
    %vm4276 = vcmp.eq.f32.partialorder %v4272, inf
    %v4277 = vsel %vm4276, %v4272, %v4275
    %vm4278 = vcmp.eq.f32.partialorder %v4272, 0.0
    %v4279 = vand.u32 %v4272, 2147483648
    %v4280 = vsel %vm4278, %v4279, %v4277
    %v4281 = vrsqrt.pop %v4273
    %v4282 = vmul.f32 %v4273, %v4281
    %vm4283 = vcmp.eq.f32.partialorder %v4273, inf
    %v4284 = vsel %vm4283, %v4273, %v4282
    %vm4285 = vcmp.eq.f32.partialorder %v4273, 0.0
    %v4286 = vand.u32 %v4273, 2147483648
    %v4287 = vsel %vm4285, %v4286, %v4284
    %v4288 = vrcp.pop %v4280
    %v4289 = vmul.f32 %v4260, %v4288
    %v4290 = vrcp.pop %v4287
    %v4291 = vmul.f32 %v4261, %v4290
    %v4293 = vlaneseq
    %v4294 = vshrl.u32 %v4293, 7
    %v4295 = vsub.s32 0, %v4294
    %v4296 = vrot.slane %v2854, %v4295
    %v4298 = vmul.f32 %v4296, %v4289
    %v4299 = vmul.f32 %v4296, %v4291
    %v4301 = vlaneseq
    %v4302 = vshrl.u32 %v4301, 7
    %v4303 = vsub.s32 0, %v4302
    %v4304 = vrot.slane %v2855, %v4303
    %v4306 = vadd.f32 %v4298, %v4304
    %v4307 = vadd.f32 %v4299, %v4304
    %v4309 = vlaneseq
    %v4310 = vshrl.u32 %v4309, 7
    %v4311 = vsub.s32 0, %v4310
    %v4312 = vrot.slane %v2892, %v4311
    %v4313 = vlaneseq
    %v4314 = vshrl.u32 %v4313, 7
    %v4315 = vsub.s32 1, %v4314
    %v4316 = vrot.slane %v2892, %v4315
    %v4317 = vlaneseq
    %v4318 = vshrl.u32 %v4317, 7
    %v4319 = vsub.s32 2, %v4318
    %v4320 = vrot.slane %v2892, %v4319
    %v4325 = vsel %vm2973, %v4306, 0
    %v4328 = vsel %vm2973, %v4307, 0
    %4330 = vmatprep.subr.mxu0 %v2857
    %4331 = vmatpush1.msra.mxu0 %v2856
    %4332 = vmatprep.subr.mxu0 %v2860
    %4333 = vmatpush1.msra.mxu0 %v2859
    %4334 = vmatprep.subr.mxu0 %v2863
    %4335 = vmatpush1.msra.mxu0 %v2862
    %4336 = vmatprep.subr.mxu0 %v2866
    %4337 = vmatpush1.msra.mxu0 %v2865
    %4338 = vmatprep.subr.mxu0 %v2869
    %4339 = vmatpush1.msra.mxu0 %v2868
    %4340 = vmatprep.subr.mxu0 %v2872
    %4341 = vmatpush1.msra.mxu0 %v2871
    %4342 = vmatprep.subr.mxu0 %v2875
    %4343 = vmatpush1.msra.mxu0 %v2874
    %4344 = vmatprep.subr.mxu0 %v2878
    %4345 = vmatpush1.msra.mxu0 %v2877
    %4346 = vmatprep.subr.mxu0 %v2881
    %4347 = vmatpush1.msra.mxu0 %v2880
    %4348 = vmatprep.subr.mxu0 %v2884
    %4349 = vmatpush1.msra.mxu0 %v2883
    %4350 = vmatprep.subr.mxu0 %v2887
    %4351 = vmatpush1.msra.mxu0 %v2886
    %4352 = vmatprep.subr.mxu0 %v2890
    %4353 = vmatpush1.msra.mxu0 %v2889
    %4354 = vmatprep.subr.mxu0 0.0
    %4355 = vmatpush1.msra.mxu0 0.0
    %4356 = vmatprep.subr.mxu0 0.0
    %4357 = vmatpush1.msra.mxu0 0.0
    %4358 = vmatprep.subr.mxu0 0.0
    %4359 = vmatpush1.msra.mxu0 0.0
    %4360 = vmatprep.subr.mxu0 0.0
    %4361 = vmatpush1.msra.mxu0 0.0
    %4362 = vmatprep.subr.mxu0 0.0
    %4363 = vmatpush1.msra.mxu0 0.0
    %4364 = vmatprep.subr.mxu0 0.0
    %4365 = vmatpush1.msra.mxu0 0.0
    %4366 = vmatprep.subr.mxu0 0.0
    %4367 = vmatpush1.msra.mxu0 0.0
    %4368 = vmatprep.subr.mxu0 0.0
    %4369 = vmatpush1.msra.mxu0 0.0
    %4370 = vmatprep.subr.mxu0 0.0
    %4371 = vmatpush1.msra.mxu0 0.0
    %4372 = vmatprep.subr.mxu0 0.0
    %4373 = vmatpush1.msra.mxu0 0.0
    %4374 = vmatprep.subr.mxu0 0.0
    %4375 = vmatpush1.msra.mxu0 0.0
    %4376 = vmatprep.subr.mxu0 0.0
    %4377 = vmatpush1.msra.mxu0 0.0
    %4378 = vmatprep.subr.mxu0 0.0
    %4379 = vmatpush1.msra.mxu0 0.0
    %4380 = vmatprep.subr.mxu0 0.0
    %4381 = vmatpush1.msra.mxu0 0.0
    %4382 = vmatprep.subr.mxu0 0.0
    %4383 = vmatpush1.msra.mxu0 0.0
    %4384 = vmatprep.subr.mxu0 0.0
    %4385 = vmatpush1.msra.mxu0 0.0
    %4386 = vmatprep.subr.mxu0 0.0
    %4387 = vmatpush1.msra.mxu0 0.0
    %4388 = vmatprep.subr.mxu0 0.0
    %4389 = vmatpush1.msra.mxu0 0.0
    %4390 = vmatprep.subr.mxu0 0.0
    %4391 = vmatpush1.msra.mxu0 0.0
    %4392 = vmatprep.subr.mxu0 0.0
    %4393 = vmatpush1.msra.mxu0 0.0
    %4394 = vmatprep.mubr.f32.mxu0 0.0
    %4395 = vmatmul.mubr.f32.gmra.mrb[0].mxu0 %v4325
    %v4396 = vpop.f32.mrb[0].mxu0
    %v4397 = vadd.f32 %v4312, %v4396
    %v4398 = vpop.f32.mrb[0].mxu0
    %v4399 = vadd.f32 %v4316, %v4398
    %4400 = vmatprep.mubr.f32.mxu0 0.0
    %4401 = vmatmul.mubr.f32.gmra.mrb[0].mxu0 %v4328
    %v4402 = vpop.f32.mrb[0].mxu0
    %v4403 = vadd.f32 %v4312, %v4402
    %v4404 = vpop.f32.mrb[0].mxu0
    %v4405 = vadd.f32 %v4316, %v4404
    %4406 = vdwg.mxu0
    %4407 = vmatprep.subr.mxu0 0.0
    %4408 = vmatpush1.msra.mxu0 %v2858
    %4409 = vmatprep.subr.mxu0 0.0
    %4410 = vmatpush1.msra.mxu0 %v2861
    %4411 = vmatprep.subr.mxu0 0.0
    %4412 = vmatpush1.msra.mxu0 %v2864
    %4413 = vmatprep.subr.mxu0 0.0
    %4414 = vmatpush1.msra.mxu0 %v2867
    %4415 = vmatprep.subr.mxu0 0.0
    %4416 = vmatpush1.msra.mxu0 %v2870
    %4417 = vmatprep.subr.mxu0 0.0
    %4418 = vmatpush1.msra.mxu0 %v2873
    %4419 = vmatprep.subr.mxu0 0.0
    %4420 = vmatpush1.msra.mxu0 %v2876
    %4421 = vmatprep.subr.mxu0 0.0
    %4422 = vmatpush1.msra.mxu0 %v2879
    %4423 = vmatprep.subr.mxu0 0.0
    %4424 = vmatpush1.msra.mxu0 %v2882
    %4425 = vmatprep.subr.mxu0 0.0
    %4426 = vmatpush1.msra.mxu0 %v2885
    %4427 = vmatprep.subr.mxu0 0.0
    %4428 = vmatpush1.msra.mxu0 %v2888
    %4429 = vmatprep.subr.mxu0 0.0
    %4430 = vmatpush1.msra.mxu0 %v2891
    %4431 = vmatprep.subr.mxu0 0.0
    %4432 = vmatpush1.msra.mxu0 0.0
    %4433 = vmatprep.subr.mxu0 0.0
    %4434 = vmatpush1.msra.mxu0 0.0
    %4435 = vmatprep.subr.mxu0 0.0
    %4436 = vmatpush1.msra.mxu0 0.0
    %4437 = vmatprep.subr.mxu0 0.0
    %4438 = vmatpush1.msra.mxu0 0.0
    %4439 = vmatprep.subr.mxu0 0.0
    %4440 = vmatpush1.msra.mxu0 0.0
    %4441 = vmatprep.subr.mxu0 0.0
    %4442 = vmatpush1.msra.mxu0 0.0
    %4443 = vmatprep.subr.mxu0 0.0
    %4444 = vmatpush1.msra.mxu0 0.0
    %4445 = vmatprep.subr.mxu0 0.0
    %4446 = vmatpush1.msra.mxu0 0.0
    %4447 = vmatprep.subr.mxu0 0.0
    %4448 = vmatpush1.msra.mxu0 0.0
    %4449 = vmatprep.subr.mxu0 0.0
    %4450 = vmatpush1.msra.mxu0 0.0
    %4451 = vmatprep.subr.mxu0 0.0
    %4452 = vmatpush1.msra.mxu0 0.0
    %4453 = vmatprep.subr.mxu0 0.0
    %4454 = vmatpush1.msra.mxu0 0.0
    %4455 = vmatprep.subr.mxu0 0.0
    %4456 = vmatpush1.msra.mxu0 0.0
    %4457 = vmatprep.subr.mxu0 0.0
    %4458 = vmatpush1.msra.mxu0 0.0
    %4459 = vmatprep.subr.mxu0 0.0
    %4460 = vmatpush1.msra.mxu0 0.0
    %4461 = vmatprep.subr.mxu0 0.0
    %4462 = vmatpush1.msra.mxu0 0.0
    %4463 = vmatprep.subr.mxu0 0.0
    %4464 = vmatpush1.msra.mxu0 0.0
    %4465 = vmatprep.subr.mxu0 0.0
    %4466 = vmatpush1.msra.mxu0 0.0
    %4467 = vmatprep.subr.mxu0 0.0
    %4468 = vmatpush1.msra.mxu0 0.0
    %4469 = vmatprep.subr.mxu0 0.0
    %4470 = vmatpush1.msra.mxu0 0.0
    %4471 = vmatprep.mubr.f32.mxu0 0.0
    %4472 = vmatmul.mubr.f32.gmra.mrb[0].mxu0 %v4325
    %v4473 = vpop.f32.mrb[0].mxu0
    %v4474 = vadd.f32 %v4320, %v4473
    %v4475 = vpop.f32.mrb[0].mxu0
    %4476 = vmatprep.mubr.f32.mxu0 0.0
    %4477 = vmatmul.mubr.f32.gmra.mrb[0].mxu0 %v4328
    %v4478 = vpop.f32.mrb[0].mxu0
    %v4479 = vadd.f32 %v4320, %v4478
    %v4480 = vpop.f32.mrb[0].mxu0
    %4481 = vdwg.mxu0
    %v4482 = vmul.f32 %v4397, 0.5
    %v4483 = vmul.f32 %v4399, 0.5
    %v4484 = vmul.f32 %v4474, 0.5
    %v4485 = vmul.f32 %v4403, 0.5
    %v4486 = vmul.f32 %v4405, 0.5
    %v4487 = vmul.f32 %v4479, 0.5
    %v4488 = vmul.f32 %v4397, 0.044715
    %v4489 = vmul.f32 %v4399, 0.044715
    %v4490 = vmul.f32 %v4474, 0.044715
    %v4491 = vmul.f32 %v4403, 0.044715
    %v4492 = vmul.f32 %v4405, 0.044715
    %v4493 = vmul.f32 %v4479, 0.044715
    %v4494 = vmul.f32 %v4488, %v4397
    %v4495 = vmul.f32 %v4489, %v4399
    %v4496 = vmul.f32 %v4490, %v4474
    %v4497 = vmul.f32 %v4491, %v4403
    %v4498 = vmul.f32 %v4492, %v4405
    %v4499 = vmul.f32 %v4493, %v4479
    %v4500 = vmul.f32 %v4494, %v4397
    %v4501 = vmul.f32 %v4495, %v4399
    %v4502 = vmul.f32 %v4496, %v4474
    %v4503 = vmul.f32 %v4497, %v4403
    %v4504 = vmul.f32 %v4498, %v4405
    %v4505 = vmul.f32 %v4499, %v4479
    %v4506 = vadd.f32 %v4397, %v4500
    %v4507 = vadd.f32 %v4399, %v4501
    %v4508 = vadd.f32 %v4474, %v4502
    %v4509 = vadd.f32 %v4403, %v4503
    %v4510 = vadd.f32 %v4405, %v4504
    %v4511 = vadd.f32 %v4479, %v4505
    %v4512 = vmul.f32 %v4506, 0.7978846
    %v4513 = vmul.f32 %v4507, 0.7978846
    %v4514 = vmul.f32 %v4508, 0.7978846
    %v4515 = vmul.f32 %v4509, 0.7978846
    %v4516 = vmul.f32 %v4510, 0.7978846
    %v4517 = vmul.f32 %v4511, 0.7978846
    %v4518 = vtanh.pop %v4512
    %v4519 = vtanh.pop %v4513
    %v4520 = vtanh.pop %v4514
    %v4521 = vtanh.pop %v4515
    %v4522 = vtanh.pop %v4516
    %v4523 = vtanh.pop %v4517
    %v4524 = vadd.f32 %v4518, 1.0
    %v4525 = vadd.f32 %v4519, 1.0
    %v4526 = vadd.f32 %v4520, 1.0
    %v4527 = vadd.f32 %v4521, 1.0
    %v4528 = vadd.f32 %v4522, 1.0
    %v4529 = vadd.f32 %v4523, 1.0
    %v4530 = vmul.f32 %v4482, %v4524
    %v4531 = vmul.f32 %v4483, %v4525
    %v4532 = vmul.f32 %v4484, %v4526
    %v4533 = vmul.f32 %v4485, %v4527
    %v4534 = vmul.f32 %v4486, %v4528
    %v4535 = vmul.f32 %v4487, %v4529
    %v4537 = vlaneseq
    %v4538 = vshrl.u32 %v4537, 7
    %v4539 = vsub.s32 0, %v4538
    %v4540 = vrot.slane %v2941, %v4539
    %4542 = vmatprep.subr.mxu0 0.0
    %4543 = vmatpush1.msra.mxu0 %v2893
    %4544 = vmatprep.subr.mxu0 0.0
    %4545 = vmatpush1.msra.mxu0 %v2894
    %4546 = vmatprep.subr.mxu0 0.0
    %4547 = vmatpush1.msra.mxu0 %v2895
    %4548 = vmatprep.subr.mxu0 0.0
    %4549 = vmatpush1.msra.mxu0 %v2896
    %4550 = vmatprep.subr.mxu0 0.0
    %4551 = vmatpush1.msra.mxu0 %v2897
    %4552 = vmatprep.subr.mxu0 0.0
    %4553 = vmatpush1.msra.mxu0 %v2898
    %4554 = vmatprep.subr.mxu0 0.0
    %4555 = vmatpush1.msra.mxu0 %v2899
    %4556 = vmatprep.subr.mxu0 0.0
    %4557 = vmatpush1.msra.mxu0 %v2900
    %4558 = vmatprep.subr.mxu0 0.0
    %4559 = vmatpush1.msra.mxu0 %v2901
    %4560 = vmatprep.subr.mxu0 0.0
    %4561 = vmatpush1.msra.mxu0 %v2902
    %4562 = vmatprep.subr.mxu0 0.0
    %4563 = vmatpush1.msra.mxu0 %v2903
    %4564 = vmatprep.subr.mxu0 0.0
    %4565 = vmatpush1.msra.mxu0 %v2904
    %4566 = vmatprep.subr.mxu0 0.0
    %4567 = vmatpush1.msra.mxu0 %v2905
    %4568 = vmatprep.subr.mxu0 0.0
    %4569 = vmatpush1.msra.mxu0 %v2906
    %4570 = vmatprep.subr.mxu0 0.0
    %4571 = vmatpush1.msra.mxu0 %v2907
    %4572 = vmatprep.subr.mxu0 0.0
    %4573 = vmatpush1.msra.mxu0 %v2908
    %4574 = vmatprep.subr.mxu0 0.0
    %4575 = vmatpush1.msra.mxu0 %v2909
    %4576 = vmatprep.subr.mxu0 0.0
    %4577 = vmatpush1.msra.mxu0 %v2910
    %4578 = vmatprep.subr.mxu0 0.0
    %4579 = vmatpush1.msra.mxu0 %v2911
    %4580 = vmatprep.subr.mxu0 0.0
    %4581 = vmatpush1.msra.mxu0 %v2912
    %4582 = vmatprep.subr.mxu0 0.0
    %4583 = vmatpush1.msra.mxu0 %v2913
    %4584 = vmatprep.subr.mxu0 0.0
    %4585 = vmatpush1.msra.mxu0 %v2914
    %4586 = vmatprep.subr.mxu0 0.0
    %4587 = vmatpush1.msra.mxu0 %v2915
    %4588 = vmatprep.subr.mxu0 0.0
    %4589 = vmatpush1.msra.mxu0 %v2916
    %4590 = vmatprep.subr.mxu0 0.0
    %4591 = vmatpush1.msra.mxu0 %v2917
    %4592 = vmatprep.subr.mxu0 0.0
    %4593 = vmatpush1.msra.mxu0 %v2918
    %4594 = vmatprep.subr.mxu0 0.0
    %4595 = vmatpush1.msra.mxu0 %v2919
    %4596 = vmatprep.subr.mxu0 0.0
    %4597 = vmatpush1.msra.mxu0 %v2920
    %4598 = vmatprep.subr.mxu0 0.0
    %4599 = vmatpush1.msra.mxu0 %v2921
    %4600 = vmatprep.subr.mxu0 0.0
    %4601 = vmatpush1.msra.mxu0 %v2922
    %4602 = vmatprep.subr.mxu0 0.0
    %4603 = vmatpush1.msra.mxu0 %v2923
    %4604 = vmatprep.subr.mxu0 0.0
    %4605 = vmatpush1.msra.mxu0 %v2924
    %4606 = vmatprep.mubr.f32.mxu0 %v4531
    %4607 = vmatmul.mubr.f32.gmra.mrb[0].mxu0 %v4530
    %v4608 = vpop.f32.mrb[0].mxu0
    %v4609 = vadd.f32 %v4540, %v4608
    %v4610 = vpop.f32.mrb[0].mxu0
    %4611 = vmatprep.mubr.f32.mxu0 %v4534
    %4612 = vmatmul.mubr.f32.gmra.mrb[0].mxu0 %v4533
    %v4613 = vpop.f32.mrb[0].mxu0
    %v4614 = vadd.f32 %v4540, %v4613
    %v4615 = vpop.f32.mrb[0].mxu0
    %4616 = vdwg.mxu0
    %4617 = vmatprep.subr.mxu0 0.0
    %4618 = vmatpush1.msra.mxu0 %v2925
    %4619 = vmatprep.subr.mxu0 0.0
    %4620 = vmatpush1.msra.mxu0 %v2926
    %4621 = vmatprep.subr.mxu0 0.0
    %4622 = vmatpush1.msra.mxu0 %v2927
    %4623 = vmatprep.subr.mxu0 0.0
    %4624 = vmatpush1.msra.mxu0 %v2928
    %4625 = vmatprep.subr.mxu0 0.0
    %4626 = vmatpush1.msra.mxu0 %v2929
    %4627 = vmatprep.subr.mxu0 0.0
    %4628 = vmatpush1.msra.mxu0 %v2930
    %4629 = vmatprep.subr.mxu0 0.0
    %4630 = vmatpush1.msra.mxu0 %v2931
    %4631 = vmatprep.subr.mxu0 0.0
    %4632 = vmatpush1.msra.mxu0 %v2932
    %4633 = vmatprep.subr.mxu0 0.0
    %4634 = vmatpush1.msra.mxu0 %v2933
    %4635 = vmatprep.subr.mxu0 0.0
    %4636 = vmatpush1.msra.mxu0 %v2934
    %4637 = vmatprep.subr.mxu0 0.0
    %4638 = vmatpush1.msra.mxu0 %v2935
    %4639 = vmatprep.subr.mxu0 0.0
    %4640 = vmatpush1.msra.mxu0 %v2936
    %4641 = vmatprep.subr.mxu0 0.0
    %4642 = vmatpush1.msra.mxu0 %v2937
    %4643 = vmatprep.subr.mxu0 0.0
    %4644 = vmatpush1.msra.mxu0 %v2938
    %4645 = vmatprep.subr.mxu0 0.0
    %4646 = vmatpush1.msra.mxu0 %v2939
    %4647 = vmatprep.subr.mxu0 0.0
    %4648 = vmatpush1.msra.mxu0 %v2940
    %4649 = vmatprep.subr.mxu0 0.0
    %4650 = vmatpush1.msra.mxu0 0.0
    %4651 = vmatprep.subr.mxu0 0.0
    %4652 = vmatpush1.msra.mxu0 0.0
    %4653 = vmatprep.subr.mxu0 0.0
    %4654 = vmatpush1.msra.mxu0 0.0
    %4655 = vmatprep.subr.mxu0 0.0
    %4656 = vmatpush1.msra.mxu0 0.0
    %4657 = vmatprep.subr.mxu0 0.0
    %4658 = vmatpush1.msra.mxu0 0.0
    %4659 = vmatprep.subr.mxu0 0.0
    %4660 = vmatpush1.msra.mxu0 0.0
    %4661 = vmatprep.subr.mxu0 0.0
    %4662 = vmatpush1.msra.mxu0 0.0
    %4663 = vmatprep.subr.mxu0 0.0
    %4664 = vmatpush1.msra.mxu0 0.0
    %4665 = vmatprep.subr.mxu0 0.0
    %4666 = vmatpush1.msra.mxu0 0.0
    %4667 = vmatprep.subr.mxu0 0.0
    %4668 = vmatpush1.msra.mxu0 0.0
    %4669 = vmatprep.subr.mxu0 0.0
    %4670 = vmatpush1.msra.mxu0 0.0
    %4671 = vmatprep.subr.mxu0 0.0
    %4672 = vmatpush1.msra.mxu0 0.0
    %4673 = vmatprep.subr.mxu0 0.0
    %4674 = vmatpush1.msra.mxu0 0.0
    %4675 = vmatprep.subr.mxu0 0.0
    %4676 = vmatpush1.msra.mxu0 0.0
    %4677 = vmatprep.subr.mxu0 0.0
    %4678 = vmatpush1.msra.mxu0 0.0
    %4679 = vmatprep.subr.mxu0 0.0
    %4680 = vmatpush1.msra.mxu0 0.0
    %4681 = vmatprep.mubr.f32.mxu0 0.0
    %4682 = vmatmul.mubr.f32.gmra.mrb[0].mxu0 %v4532
    %v4683 = vpop.f32.mrb[0].mxu0
    %v4684 = vadd.f32 %v4609, %v4683
    %v4685 = vpop.f32.mrb[0].mxu0
    %4686 = vmatprep.mubr.f32.mxu0 0.0
    %4687 = vmatmul.mubr.f32.gmra.mrb[0].mxu0 %v4535
    %v4688 = vpop.f32.mrb[0].mxu0
    %v4689 = vadd.f32 %v4614, %v4688
    %v4690 = vpop.f32.mrb[0].mxu0
    %4691 = vdwg.mxu0
    %v4692 = vadd.f32 %v4306, %v4684
    %v4693 = vadd.f32 %v4307, %v4689
    %v4694 = vsel %vm2973, %v4692, 0.0
    %4695 = vadd.xlane.f32.xlu0 %v4694
    %v4696 = vpop.xlane.xlu0 %4695
    %v4697 = vsel %vm2973, %v4693, 0.0
    %4698 = vadd.xlane.f32.xlu0 %v4697
    %v4699 = vpop.xlane.xlu0 %4698
    %v4700 = vmul.f32 %v4696, %v4257
    %v4701 = vmul.f32 %v4699, %v4257
    %v4702 = vsub.f32 %v4692, %v4700
    %v4703 = vsub.f32 %v4693, %v4701
    %v4704 = vmul.f32 %v4702, %v4702
    %v4705 = vmul.f32 %v4703, %v4703
    %v4706 = vsel %vm2973, %v4704, 0.0
    %4707 = vadd.xlane.f32.xlu0 %v4706
    %v4708 = vpop.xlane.xlu0 %4707
    %v4709 = vsel %vm2973, %v4705, 0.0
    %4710 = vadd.xlane.f32.xlu0 %v4709
    %v4711 = vpop.xlane.xlu0 %4710
    %v4712 = vmul.f32 %v4708, %v4257
    %v4713 = vmul.f32 %v4711, %v4257
    %v4714 = vadd.f32 %v4712, 1e-05
    %v4715 = vadd.f32 %v4713, 1e-05
    %v4716 = vrsqrt.pop %v4714
    %v4717 = vmul.f32 %v4714, %v4716
    %vm4718 = vcmp.eq.f32.partialorder %v4714, inf
    %v4719 = vsel %vm4718, %v4714, %v4717
    %vm4720 = vcmp.eq.f32.partialorder %v4714, 0.0
    %v4721 = vand.u32 %v4714, 2147483648
    %v4722 = vsel %vm4720, %v4721, %v4719
    %v4723 = vrsqrt.pop %v4715
    %v4724 = vmul.f32 %v4715, %v4723
    %vm4725 = vcmp.eq.f32.partialorder %v4715, inf
    %v4726 = vsel %vm4725, %v4715, %v4724
    %vm4727 = vcmp.eq.f32.partialorder %v4715, 0.0
    %v4728 = vand.u32 %v4715, 2147483648
    %v4729 = vsel %vm4727, %v4728, %v4726
    %v4730 = vrcp.pop %v4722
    %v4731 = vmul.f32 %v4702, %v4730
    %v4732 = vrcp.pop %v4729
    %v4733 = vmul.f32 %v4703, %v4732
    %v4735 = vlaneseq
    %v4736 = vshrl.u32 %v4735, 7
    %v4737 = vsub.s32 0, %v4736
    %v4738 = vrot.slane %v2942, %v4737
    %v4740 = vmul.f32 %v4738, %v4731
    %v4741 = vmul.f32 %v4738, %v4733
    %v4743 = vlaneseq
    %v4744 = vshrl.u32 %v4743, 7
    %v4745 = vsub.s32 0, %v4744
    %v4746 = vrot.slane %v2943, %v4745
    %v4748 = vadd.f32 %v4740, %v4746
    %v4749 = vadd.f32 %v4741, %v4746
    %v4751 = vlaneseq
    %v4752 = vshrl.u32 %v4751, 7
    %v4753 = vsub.s32 0, %v4752
    %v4754 = vrot.slane %v2956, %v4753
    %v4757 = vsel %vm2973, %v4748, 0
    %v4760 = vsel %vm2973, %v4749, 0
    %4762 = vmatprep.subr.mxu0 0.0
    %4763 = vmatpush1.msra.mxu0 %v2944
    %4764 = vmatprep.subr.mxu0 0.0
    %4765 = vmatpush1.msra.mxu0 %v2945
    %4766 = vmatprep.subr.mxu0 0.0
    %4767 = vmatpush1.msra.mxu0 %v2946
    %4768 = vmatprep.subr.mxu0 0.0
    %4769 = vmatpush1.msra.mxu0 %v2947
    %4770 = vmatprep.subr.mxu0 0.0
    %4771 = vmatpush1.msra.mxu0 %v2948
    %4772 = vmatprep.subr.mxu0 0.0
    %4773 = vmatpush1.msra.mxu0 %v2949
    %4774 = vmatprep.subr.mxu0 0.0
    %4775 = vmatpush1.msra.mxu0 %v2950
    %4776 = vmatprep.subr.mxu0 0.0
    %4777 = vmatpush1.msra.mxu0 %v2951
    %4778 = vmatprep.subr.mxu0 0.0
    %4779 = vmatpush1.msra.mxu0 %v2952
    %4780 = vmatprep.subr.mxu0 0.0
    %4781 = vmatpush1.msra.mxu0 %v2953
    %4782 = vmatprep.subr.mxu0 0.0
    %4783 = vmatpush1.msra.mxu0 %v2954
    %4784 = vmatprep.subr.mxu0 0.0
    %4785 = vmatpush1.msra.mxu0 %v2955
    %4786 = vmatprep.subr.mxu0 0.0
    %4787 = vmatpush1.msra.mxu0 0.0
    %4788 = vmatprep.subr.mxu0 0.0
    %4789 = vmatpush1.msra.mxu0 0.0
    %4790 = vmatprep.subr.mxu0 0.0
    %4791 = vmatpush1.msra.mxu0 0.0
    %4792 = vmatprep.subr.mxu0 0.0
    %4793 = vmatpush1.msra.mxu0 0.0
    %4794 = vmatprep.subr.mxu0 0.0
    %4795 = vmatpush1.msra.mxu0 0.0
    %4796 = vmatprep.subr.mxu0 0.0
    %4797 = vmatpush1.msra.mxu0 0.0
    %4798 = vmatprep.subr.mxu0 0.0
    %4799 = vmatpush1.msra.mxu0 0.0
    %4800 = vmatprep.subr.mxu0 0.0
    %4801 = vmatpush1.msra.mxu0 0.0
    %4802 = vmatprep.subr.mxu0 0.0
    %4803 = vmatpush1.msra.mxu0 0.0
    %4804 = vmatprep.subr.mxu0 0.0
    %4805 = vmatpush1.msra.mxu0 0.0
    %4806 = vmatprep.subr.mxu0 0.0
    %4807 = vmatpush1.msra.mxu0 0.0
    %4808 = vmatprep.subr.mxu0 0.0
    %4809 = vmatpush1.msra.mxu0 0.0
    %4810 = vmatprep.subr.mxu0 0.0
    %4811 = vmatpush1.msra.mxu0 0.0
    %4812 = vmatprep.subr.mxu0 0.0
    %4813 = vmatpush1.msra.mxu0 0.0
    %4814 = vmatprep.subr.mxu0 0.0
    %4815 = vmatpush1.msra.mxu0 0.0
    %4816 = vmatprep.subr.mxu0 0.0
    %4817 = vmatpush1.msra.mxu0 0.0
    %4818 = vmatprep.subr.mxu0 0.0
    %4819 = vmatpush1.msra.mxu0 0.0
    %4820 = vmatprep.subr.mxu0 0.0
    %4821 = vmatpush1.msra.mxu0 0.0
    %4822 = vmatprep.subr.mxu0 0.0
    %4823 = vmatpush1.msra.mxu0 0.0
    %4824 = vmatprep.subr.mxu0 0.0
    %4825 = vmatpush1.msra.mxu0 0.0
    %4826 = vmatprep.mubr.f32.mxu0 0.0
    %4827 = vmatmul.mubr.f32.gmra.mrb[0].mxu0 %v4757
    %v4828 = vpop.f32.mrb[0].mxu0
    %v4829 = vadd.f32 %v4754, %v4828
    %v4830 = vpop.f32.mrb[0].mxu0
    %4831 = vmatprep.mubr.f32.mxu0 0.0
    %4832 = vmatmul.mubr.f32.gmra.mrb[0].mxu0 %v4760
    %v4833 = vpop.f32.mrb[0].mxu0
    %v4834 = vadd.f32 %v4754, %v4833
    %v4835 = vpop.f32.mrb[0].mxu0
    %4836 = vdwg.mxu0
    %v4837 = vld [vmem:[%s87] sm:$0xff]
    %v4838 = vld [vmem:[%s87 + $0x8] sm:$0xff]
    %v4839 = vld [vmem:[%s87 + $0x10] sm:$0xff]
    %v4840 = vld [vmem:[%s87 + $0x18] sm:$0xff]
    %v4841 = vld [vmem:[%s87 + $0x20] sm:$0xff]
    %v4842 = vld [vmem:[%s87 + $0x28] sm:$0xff]
    %v4843 = vld [vmem:[%s87 + $0x30] sm:$0xff]
    %v4844 = vld [vmem:[%s87 + $0x38] sm:$0xff]
    %v4845 = vld [vmem:[%s87 + $0x40] sm:$0xff]
    %v4846 = vld [vmem:[%s87 + $0x48] sm:$0xff]
    %v4847 = vld [vmem:[%s87 + $0x50] sm:$0xff]
    %v4848 = vld [vmem:[%s87 + $0x58] sm:$0xff]
    %v4849 = vld [vmem:[%s87 + $0x60] sm:$0xff]
    %v4850 = vld [vmem:[%s87 + $0x68] sm:$0xff]
    %v4851 = vld [vmem:[%s87 + $0x70] sm:$0xff]
    %v4852 = vld [vmem:[%s87 + $0x78] sm:$0xff]
    %v4853 = vld [vmem:[%s89] sm:$0x3]
    %v4854 = vld [vmem:[%s91] sm:$0xff]
    %v4855 = vld [vmem:[%s91 + $0x8] sm:$0xff]
    %v4856 = vld [vmem:[%s91 + $0x10] sm:$0xff]
    %v4857 = vld [vmem:[%s91 + $0x18] sm:$0xff]
    %v4858 = vld [vmem:[%s91 + $0x20] sm:$0xff]
    %v4859 = vld [vmem:[%s91 + $0x28] sm:$0xff]
    %v4860 = vld [vmem:[%s91 + $0x30] sm:$0xff]
    %v4861 = vld [vmem:[%s91 + $0x38] sm:$0xff]
    %v4862 = vld [vmem:[%s93] sm:$0x1]
    %v4863 = vld [vmem:[%s95] sm:$0x1]
    %v4864 = vld [vmem:[%s97] sm:$0x1]
    %v4865 = vld [vmem:[%s99] sm:$0xff]
    %v4866 = vld [vmem:[%s99 + $0x8] sm:$0xff]
    %v4867 = vld [vmem:[%s99 + $0x10] sm:$0xff]
    %v4868 = vld [vmem:[%s99 + $0x18] sm:$0xff]
    %v4869 = vld [vmem:[%s99 + $0x20] sm:$0xff]
    %v4870 = vld [vmem:[%s99 + $0x28] sm:$0xff]
    %v4871 = vld [vmem:[%s99 + $0x30] sm:$0xff]
    %v4872 = vld [vmem:[%s99 + $0x38] sm:$0xff]
    %v4873 = vld [vmem:[%s99 + $0x40] sm:$0xff]
    %v4874 = vld [vmem:[%s99 + $0x48] sm:$0xff]
    %v4875 = vld [vmem:[%s99 + $0x50] sm:$0xff]
    %v4876 = vld [vmem:[%s99 + $0x58] sm:$0xff]
    %v4877 = vld [vmem:[%s99 + $0x60] sm:$0xff]
    %v4878 = vld [vmem:[%s99 + $0x68] sm:$0xff]
    %v4879 = vld [vmem:[%s99 + $0x70] sm:$0xff]
    %v4880 = vld [vmem:[%s99 + $0x78] sm:$0xff]
    %v4881 = vld [vmem:[%s101] sm:$0x3]
    %v4882 = vld [vmem:[%s103] sm:$0xff]
    %v4883 = vld [vmem:[%s103 + $0x8] sm:$0xff]
    %v4884 = vld [vmem:[%s103 + $0x10] sm:$0xff]
    %v4885 = vld [vmem:[%s103 + $0x18] sm:$0xff]
    %v4886 = vld [vmem:[%s103 + $0x20] sm:$0xff]
    %v4887 = vld [vmem:[%s103 + $0x28] sm:$0xff]
    %v4888 = vld [vmem:[%s103 + $0x30] sm:$0xff]
    %v4889 = vld [vmem:[%s103 + $0x38] sm:$0xff]
    %v4890 = vld [vmem:[%s103 + $0x40] sm:$0xff]
    %v4891 = vld [vmem:[%s103 + $0x48] sm:$0xff]
    %v4892 = vld [vmem:[%s103 + $0x50] sm:$0xff]
    %v4893 = vld [vmem:[%s103 + $0x58] sm:$0xff]
    %v4894 = vld [vmem:[%s103 + $0x60] sm:$0xff]
    %v4895 = vld [vmem:[%s103 + $0x68] sm:$0xff]
    %v4896 = vld [vmem:[%s103 + $0x70] sm:$0xff]
    %v4897 = vld [vmem:[%s103 + $0x78] sm:$0xff]
    %v4898 = vld [vmem:[%s103 + $0x80] sm:$0xff]
    %v4899 = vld [vmem:[%s103 + $0x88] sm:$0xff]
    %v4900 = vld [vmem:[%s103 + $0x90] sm:$0xff]
    %v4901 = vld [vmem:[%s103 + $0x98] sm:$0xff]
    %v4902 = vld [vmem:[%s103 + $0xa0] sm:$0xff]
    %v4903 = vld [vmem:[%s103 + $0xa8] sm:$0xff]
    %v4904 = vld [vmem:[%s103 + $0xb0] sm:$0xff]
    %v4905 = vld [vmem:[%s103 + $0xb8] sm:$0xff]
    %v4906 = vld [vmem:[%s103 + $0xc0] sm:$0xff]
    %v4907 = vld [vmem:[%s103 + $0xc8] sm:$0xff]
    %v4908 = vld [vmem:[%s103 + $0xd0] sm:$0xff]
    %v4909 = vld [vmem:[%s103 + $0xd8] sm:$0xff]
    %v4910 = vld [vmem:[%s103 + $0xe0] sm:$0xff]
    %v4911 = vld [vmem:[%s103 + $0xe8] sm:$0xff]
    %v4912 = vld [vmem:[%s103 + $0xf0] sm:$0xff]
    %v4913 = vld [vmem:[%s103 + $0xf8] sm:$0xff]
    %v4914 = vld [vmem:[%s105] sm:$0x1]
    %v4915 = vld [vmem:[%s107] sm:$0x1]
    %v4916 = vld [vmem:[%s109] sm:$0x1]
    %v4917 = vld [vmem:[%s111] sm:$0xff]
    %v4918 = vld [vmem:[%s111 + $0x8] sm:$0xff]
    %v4919 = vld [vmem:[%s111 + $0x10] sm:$0xff]
    %v4920 = vld [vmem:[%s111 + $0x18] sm:$0xff]
    %v4921 = vld [vmem:[%s111 + $0x20] sm:$0xff]
    %v4922 = vld [vmem:[%s111 + $0x28] sm:$0xff]
    %v4923 = vld [vmem:[%s111 + $0x30] sm:$0xff]
    %v4924 = vld [vmem:[%s111 + $0x38] sm:$0xff]
    %v4925 = vld [vmem:[%s113] sm:$0x1]
    %v4927 = vlaneseq
    %v4928 = vshrl.u32 %v4927, 7
    %v4929 = vsub.s32 0, %v4928
    %v4930 = vrot.slane %v4853, %v4929
    %v4931 = vlaneseq
    %v4932 = vshrl.u32 %v4931, 7
    %v4933 = vsub.s32 1, %v4932
    %v4934 = vrot.slane %v4853, %v4933
    %v4938 = vsel %vm1532, %v4829, 0
    %v4941 = vsel %vm1532, %v4834, 0
    %4943 = vmatprep.subr.mxu0 %v4838
    %4944 = vmatpush1.msra.mxu0 %v4837
    %4945 = vmatprep.subr.mxu0 %v4840
    %4946 = vmatpush1.msra.mxu0 %v4839
    %4947 = vmatprep.subr.mxu0 %v4842
    %4948 = vmatpush1.msra.mxu0 %v4841
    %4949 = vmatprep.subr.mxu0 %v4844
    %4950 = vmatpush1.msra.mxu0 %v4843
    %4951 = vmatprep.subr.mxu0 %v4846
    %4952 = vmatpush1.msra.mxu0 %v4845
    %4953 = vmatprep.subr.mxu0 %v4848
    %4954 = vmatpush1.msra.mxu0 %v4847
    %4955 = vmatprep.subr.mxu0 %v4850
    %4956 = vmatpush1.msra.mxu0 %v4849
    %4957 = vmatprep.subr.mxu0 %v4852
    %4958 = vmatpush1.msra.mxu0 %v4851
    %4959 = vmatprep.subr.mxu0 0.0
    %4960 = vmatpush1.msra.mxu0 0.0
    %4961 = vmatprep.subr.mxu0 0.0
    %4962 = vmatpush1.msra.mxu0 0.0
    %4963 = vmatprep.subr.mxu0 0.0
    %4964 = vmatpush1.msra.mxu0 0.0
    %4965 = vmatprep.subr.mxu0 0.0
    %4966 = vmatpush1.msra.mxu0 0.0
    %4967 = vmatprep.subr.mxu0 0.0
    %4968 = vmatpush1.msra.mxu0 0.0
    %4969 = vmatprep.subr.mxu0 0.0
    %4970 = vmatpush1.msra.mxu0 0.0
    %4971 = vmatprep.subr.mxu0 0.0
    %4972 = vmatpush1.msra.mxu0 0.0
    %4973 = vmatprep.subr.mxu0 0.0
    %4974 = vmatpush1.msra.mxu0 0.0
    %4975 = vmatprep.subr.mxu0 0.0
    %4976 = vmatpush1.msra.mxu0 0.0
    %4977 = vmatprep.subr.mxu0 0.0
    %4978 = vmatpush1.msra.mxu0 0.0
    %4979 = vmatprep.subr.mxu0 0.0
    %4980 = vmatpush1.msra.mxu0 0.0
    %4981 = vmatprep.subr.mxu0 0.0
    %4982 = vmatpush1.msra.mxu0 0.0
    %4983 = vmatprep.subr.mxu0 0.0
    %4984 = vmatpush1.msra.mxu0 0.0
    %4985 = vmatprep.subr.mxu0 0.0
    %4986 = vmatpush1.msra.mxu0 0.0
    %4987 = vmatprep.subr.mxu0 0.0
    %4988 = vmatpush1.msra.mxu0 0.0
    %4989 = vmatprep.subr.mxu0 0.0
    %4990 = vmatpush1.msra.mxu0 0.0
    %4991 = vmatprep.subr.mxu0 0.0
    %4992 = vmatpush1.msra.mxu0 0.0
    %4993 = vmatprep.subr.mxu0 0.0
    %4994 = vmatpush1.msra.mxu0 0.0
    %4995 = vmatprep.subr.mxu0 0.0
    %4996 = vmatpush1.msra.mxu0 0.0
    %4997 = vmatprep.subr.mxu0 0.0
    %4998 = vmatpush1.msra.mxu0 0.0
    %4999 = vmatprep.subr.mxu0 0.0
    %5000 = vmatpush1.msra.mxu0 0.0
    %5001 = vmatprep.subr.mxu0 0.0
    %5002 = vmatpush1.msra.mxu0 0.0
    %5003 = vmatprep.subr.mxu0 0.0
    %5004 = vmatpush1.msra.mxu0 0.0
    %5005 = vmatprep.subr.mxu0 0.0
    %5006 = vmatpush1.msra.mxu0 0.0
    %5007 = vmatprep.mubr.f32.mxu0 0.0
    %5008 = vmatmul.mubr.f32.gmra.mrb[0].mxu0 %v4938
    %v5009 = vpop.f32.mrb[0].mxu0
    %v5010 = vadd.f32 %v4930, %v5009
    %v5011 = vpop.f32.mrb[0].mxu0
    %v5012 = vadd.f32 %v4934, %v5011
    %5013 = vmatprep.mubr.f32.mxu0 0.0
    %5014 = vmatmul.mubr.f32.gmra.mrb[0].mxu0 %v4941
    %v5015 = vpop.f32.mrb[0].mxu0
    %v5016 = vadd.f32 %v4930, %v5015
    %v5017 = vpop.f32.mrb[0].mxu0
    %v5018 = vadd.f32 %v4934, %v5017
    %5019 = vdwg.mxu0
    %v5020 = vmul.f32 %v5010, 0.17677669
    %v5021 = vmul.f32 %v5016, 0.17677669
    %5024 = vrot.lane.b32.xlu0 %v5020, 96
    %v5025 = vpop.permute.xlu0 %5024
    %5026 = vrot.lane.b32.xlu0 %v5021, 96
    %v5027 = vpop.permute.xlu0 %5026
    %5030 = vrot.lane.b32.xlu0 %v5010, 96
    %v5031 = vpop.permute.xlu0 %5030
    %5032 = vrot.lane.b32.xlu0 %v5016, 96
    %v5033 = vpop.permute.xlu0 %5032
    %5036 = vrot.lane.b32.xlu0 %v5012, 96
    %v5037 = vpop.permute.xlu0 %5036
    %5038 = vrot.lane.b32.xlu0 %v5018, 96
    %v5039 = vpop.permute.xlu0 %5038
    %5042 = vrot.lane.b32.xlu0 %v5010, 64
    %v5043 = vpop.permute.xlu0 %5042
    %v5044 = vsel %vm526, %v5020, 0
    %v5046 = vsel %vm526, %v5043, 0
    %5048 = vmatprep.subr.mxu0 0.0
    %5049 = vmatpush1.xpose.msra.mxu0 %v5046
    %5050 = vmatprep.subr.mxu0 0.0
    %5051 = vmatpush1.xpose.msra.mxu0 0.0
    %5052 = vmatprep.subr.mxu0 0.0
    %5053 = vmatpush1.xpose.msra.mxu0 0.0
    %5054 = vmatprep.subr.mxu0 0.0
    %5055 = vmatpush1.xpose.msra.mxu0 0.0
    %5056 = vmatprep.subr.mxu0 0.0
    %5057 = vmatpush1.xpose.msra.mxu0 0.0
    %5058 = vmatprep.subr.mxu0 0.0
    %5059 = vmatpush1.xpose.msra.mxu0 0.0
    %5060 = vmatprep.subr.mxu0 0.0
    %5061 = vmatpush1.xpose.msra.mxu0 0.0
    %5062 = vmatprep.subr.mxu0 0.0
    %5063 = vmatpush1.xpose.msra.mxu0 0.0
    %5064 = vmatprep.subr.mxu0 0.0
    %5065 = vmatpush1.xpose.msra.mxu0 0.0
    %5066 = vmatprep.subr.mxu0 0.0
    %5067 = vmatpush1.xpose.msra.mxu0 0.0
    %5068 = vmatprep.subr.mxu0 0.0
    %5069 = vmatpush1.xpose.msra.mxu0 0.0
    %5070 = vmatprep.subr.mxu0 0.0
    %5071 = vmatpush1.xpose.msra.mxu0 0.0
    %5072 = vmatprep.subr.mxu0 0.0
    %5073 = vmatpush1.xpose.msra.mxu0 0.0
    %5074 = vmatprep.subr.mxu0 0.0
    %5075 = vmatpush1.xpose.msra.mxu0 0.0
    %5076 = vmatprep.subr.mxu0 0.0
    %5077 = vmatpush1.xpose.msra.mxu0 0.0
    %5078 = vmatprep.subr.mxu0 0.0
    %5079 = vmatpush1.xpose.msra.mxu0 0.0
    %5080 = vmatprep.subr.mxu0 0.0
    %5081 = vmatpush1.xpose.msra.mxu0 0.0
    %5082 = vmatprep.subr.mxu0 0.0
    %5083 = vmatpush1.xpose.msra.mxu0 0.0
    %5084 = vmatprep.subr.mxu0 0.0
    %5085 = vmatpush1.xpose.msra.mxu0 0.0
    %5086 = vmatprep.subr.mxu0 0.0
    %5087 = vmatpush1.xpose.msra.mxu0 0.0
    %5088 = vmatprep.subr.mxu0 0.0
    %5089 = vmatpush1.xpose.msra.mxu0 0.0
    %5090 = vmatprep.subr.mxu0 0.0
    %5091 = vmatpush1.xpose.msra.mxu0 0.0
    %5092 = vmatprep.subr.mxu0 0.0
    %5093 = vmatpush1.xpose.msra.mxu0 0.0
    %5094 = vmatprep.subr.mxu0 0.0
    %5095 = vmatpush1.xpose.msra.mxu0 0.0
    %5096 = vmatprep.subr.mxu0 0.0
    %5097 = vmatpush1.xpose.msra.mxu0 0.0
    %5098 = vmatprep.subr.mxu0 0.0
    %5099 = vmatpush1.xpose.msra.mxu0 0.0
    %5100 = vmatprep.subr.mxu0 0.0
    %5101 = vmatpush1.xpose.msra.mxu0 0.0
    %5102 = vmatprep.subr.mxu0 0.0
    %5103 = vmatpush1.xpose.msra.mxu0 0.0
    %5104 = vmatprep.subr.mxu0 0.0
    %5105 = vmatpush1.xpose.msra.mxu0 0.0
    %5106 = vmatprep.subr.mxu0 0.0
    %5107 = vmatpush1.xpose.msra.mxu0 0.0
    %5108 = vmatprep.subr.mxu0 0.0
    %5109 = vmatpush1.xpose.msra.mxu0 0.0
    %5110 = vmatprep.subr.mxu0 0.0
    %5111 = vmatpush1.xpose.msra.mxu0 0.0
    %5112 = vmatprep.mubr.f32.mxu0 0.0
    %5113 = vmatmul.mubr.f32.gmra.mrb[0].mxu0 %v5044
    %v5114 = vpop.f32.mrb[0].mxu0
    %v5115 = vadd.f32 0.0, %v5114
    %v5116 = vpop.f32.mrb[0].mxu0
    %5117 = vdwg.mxu0
    %5118 = vrot.lane.b32.xlu0 %v5016, 64
    %v5119 = vpop.permute.xlu0 %5118
    %v5120 = vsel %vm526, %v5021, 0
    %v5122 = vsel %vm526, %v5119, 0
    %5124 = vmatprep.subr.mxu0 0.0
    %5125 = vmatpush1.xpose.msra.mxu0 %v5122
    %5126 = vmatprep.subr.mxu0 0.0
    %5127 = vmatpush1.xpose.msra.mxu0 0.0
    %5128 = vmatprep.subr.mxu0 0.0
    %5129 = vmatpush1.xpose.msra.mxu0 0.0
    %5130 = vmatprep.subr.mxu0 0.0
    %5131 = vmatpush1.xpose.msra.mxu0 0.0
    %5132 = vmatprep.subr.mxu0 0.0
    %5133 = vmatpush1.xpose.msra.mxu0 0.0
    %5134 = vmatprep.subr.mxu0 0.0
    %5135 = vmatpush1.xpose.msra.mxu0 0.0
    %5136 = vmatprep.subr.mxu0 0.0
    %5137 = vmatpush1.xpose.msra.mxu0 0.0
    %5138 = vmatprep.subr.mxu0 0.0
    %5139 = vmatpush1.xpose.msra.mxu0 0.0
    %5140 = vmatprep.subr.mxu0 0.0
    %5141 = vmatpush1.xpose.msra.mxu0 0.0
    %5142 = vmatprep.subr.mxu0 0.0
    %5143 = vmatpush1.xpose.msra.mxu0 0.0
    %5144 = vmatprep.subr.mxu0 0.0
    %5145 = vmatpush1.xpose.msra.mxu0 0.0
    %5146 = vmatprep.subr.mxu0 0.0
    %5147 = vmatpush1.xpose.msra.mxu0 0.0
    %5148 = vmatprep.subr.mxu0 0.0
    %5149 = vmatpush1.xpose.msra.mxu0 0.0
    %5150 = vmatprep.subr.mxu0 0.0
    %5151 = vmatpush1.xpose.msra.mxu0 0.0
    %5152 = vmatprep.subr.mxu0 0.0
    %5153 = vmatpush1.xpose.msra.mxu0 0.0
    %5154 = vmatprep.subr.mxu0 0.0
    %5155 = vmatpush1.xpose.msra.mxu0 0.0
    %5156 = vmatprep.subr.mxu0 0.0
    %5157 = vmatpush1.xpose.msra.mxu0 0.0
    %5158 = vmatprep.subr.mxu0 0.0
    %5159 = vmatpush1.xpose.msra.mxu0 0.0
    %5160 = vmatprep.subr.mxu0 0.0
    %5161 = vmatpush1.xpose.msra.mxu0 0.0
    %5162 = vmatprep.subr.mxu0 0.0
    %5163 = vmatpush1.xpose.msra.mxu0 0.0
    %5164 = vmatprep.subr.mxu0 0.0
    %5165 = vmatpush1.xpose.msra.mxu0 0.0
    %5166 = vmatprep.subr.mxu0 0.0
    %5167 = vmatpush1.xpose.msra.mxu0 0.0
    %5168 = vmatprep.subr.mxu0 0.0
    %5169 = vmatpush1.xpose.msra.mxu0 0.0
    %5170 = vmatprep.subr.mxu0 0.0
    %5171 = vmatpush1.xpose.msra.mxu0 0.0
    %5172 = vmatprep.subr.mxu0 0.0
    %5173 = vmatpush1.xpose.msra.mxu0 0.0
    %5174 = vmatprep.subr.mxu0 0.0
    %5175 = vmatpush1.xpose.msra.mxu0 0.0
    %5176 = vmatprep.subr.mxu0 0.0
    %5177 = vmatpush1.xpose.msra.mxu0 0.0
    %5178 = vmatprep.subr.mxu0 0.0
    %5179 = vmatpush1.xpose.msra.mxu0 0.0
    %5180 = vmatprep.subr.mxu0 0.0
    %5181 = vmatpush1.xpose.msra.mxu0 0.0
    %5182 = vmatprep.subr.mxu0 0.0
    %5183 = vmatpush1.xpose.msra.mxu0 0.0
    %5184 = vmatprep.subr.mxu0 0.0
    %5185 = vmatpush1.xpose.msra.mxu0 0.0
    %5186 = vmatprep.subr.mxu0 0.0
    %5187 = vmatpush1.xpose.msra.mxu0 0.0
    %5188 = vmatprep.mubr.f32.mxu0 0.0
    %5189 = vmatmul.mubr.f32.gmra.mrb[0].mxu0 %v5120
    %v5190 = vpop.f32.mrb[0].mxu0
    %v5191 = vadd.f32 0.0, %v5190
    %v5192 = vpop.f32.mrb[0].mxu0
    %5193 = vdwg.mxu0
    %5194 = vrot.lane.b32.xlu0 %v5031, 64
    %v5195 = vpop.permute.xlu0 %5194
    %v5196 = vsel %vm526, %v5025, 0
    %v5198 = vsel %vm526, %v5195, 0
    %5200 = vmatprep.subr.mxu0 0.0
    %5201 = vmatpush1.xpose.msra.mxu0 %v5198
    %5202 = vmatprep.subr.mxu0 0.0
    %5203 = vmatpush1.xpose.msra.mxu0 0.0
    %5204 = vmatprep.subr.mxu0 0.0
    %5205 = vmatpush1.xpose.msra.mxu0 0.0
    %5206 = vmatprep.subr.mxu0 0.0
    %5207 = vmatpush1.xpose.msra.mxu0 0.0
    %5208 = vmatprep.subr.mxu0 0.0
    %5209 = vmatpush1.xpose.msra.mxu0 0.0
    %5210 = vmatprep.subr.mxu0 0.0
    %5211 = vmatpush1.xpose.msra.mxu0 0.0
    %5212 = vmatprep.subr.mxu0 0.0
    %5213 = vmatpush1.xpose.msra.mxu0 0.0
    %5214 = vmatprep.subr.mxu0 0.0
    %5215 = vmatpush1.xpose.msra.mxu0 0.0
    %5216 = vmatprep.subr.mxu0 0.0
    %5217 = vmatpush1.xpose.msra.mxu0 0.0
    %5218 = vmatprep.subr.mxu0 0.0
    %5219 = vmatpush1.xpose.msra.mxu0 0.0
    %5220 = vmatprep.subr.mxu0 0.0
    %5221 = vmatpush1.xpose.msra.mxu0 0.0
    %5222 = vmatprep.subr.mxu0 0.0
    %5223 = vmatpush1.xpose.msra.mxu0 0.0
    %5224 = vmatprep.subr.mxu0 0.0
    %5225 = vmatpush1.xpose.msra.mxu0 0.0
    %5226 = vmatprep.subr.mxu0 0.0
    %5227 = vmatpush1.xpose.msra.mxu0 0.0
    %5228 = vmatprep.subr.mxu0 0.0
    %5229 = vmatpush1.xpose.msra.mxu0 0.0
    %5230 = vmatprep.subr.mxu0 0.0
    %5231 = vmatpush1.xpose.msra.mxu0 0.0
    %5232 = vmatprep.subr.mxu0 0.0
    %5233 = vmatpush1.xpose.msra.mxu0 0.0
    %5234 = vmatprep.subr.mxu0 0.0
    %5235 = vmatpush1.xpose.msra.mxu0 0.0
    %5236 = vmatprep.subr.mxu0 0.0
    %5237 = vmatpush1.xpose.msra.mxu0 0.0
    %5238 = vmatprep.subr.mxu0 0.0
    %5239 = vmatpush1.xpose.msra.mxu0 0.0
    %5240 = vmatprep.subr.mxu0 0.0
    %5241 = vmatpush1.xpose.msra.mxu0 0.0
    %5242 = vmatprep.subr.mxu0 0.0
    %5243 = vmatpush1.xpose.msra.mxu0 0.0
    %5244 = vmatprep.subr.mxu0 0.0
    %5245 = vmatpush1.xpose.msra.mxu0 0.0
    %5246 = vmatprep.subr.mxu0 0.0
    %5247 = vmatpush1.xpose.msra.mxu0 0.0
    %5248 = vmatprep.subr.mxu0 0.0
    %5249 = vmatpush1.xpose.msra.mxu0 0.0
    %5250 = vmatprep.subr.mxu0 0.0
    %5251 = vmatpush1.xpose.msra.mxu0 0.0
    %5252 = vmatprep.subr.mxu0 0.0
    %5253 = vmatpush1.xpose.msra.mxu0 0.0
    %5254 = vmatprep.subr.mxu0 0.0
    %5255 = vmatpush1.xpose.msra.mxu0 0.0
    %5256 = vmatprep.subr.mxu0 0.0
    %5257 = vmatpush1.xpose.msra.mxu0 0.0
    %5258 = vmatprep.subr.mxu0 0.0
    %5259 = vmatpush1.xpose.msra.mxu0 0.0
    %5260 = vmatprep.subr.mxu0 0.0
    %5261 = vmatpush1.xpose.msra.mxu0 0.0
    %5262 = vmatprep.subr.mxu0 0.0
    %5263 = vmatpush1.xpose.msra.mxu0 0.0
    %5264 = vmatprep.mubr.f32.mxu0 0.0
    %5265 = vmatmul.mubr.f32.gmra.mrb[0].mxu0 %v5196
    %v5266 = vpop.f32.mrb[0].mxu0
    %v5267 = vadd.f32 0.0, %v5266
    %v5268 = vpop.f32.mrb[0].mxu0
    %5269 = vdwg.mxu0
    %5270 = vrot.lane.b32.xlu0 %v5033, 64
    %v5271 = vpop.permute.xlu0 %5270
    %v5272 = vsel %vm526, %v5027, 0
    %v5274 = vsel %vm526, %v5271, 0
    %5276 = vmatprep.subr.mxu0 0.0
    %5277 = vmatpush1.xpose.msra.mxu0 %v5274
    %5278 = vmatprep.subr.mxu0 0.0
    %5279 = vmatpush1.xpose.msra.mxu0 0.0
    %5280 = vmatprep.subr.mxu0 0.0
    %5281 = vmatpush1.xpose.msra.mxu0 0.0
    %5282 = vmatprep.subr.mxu0 0.0
    %5283 = vmatpush1.xpose.msra.mxu0 0.0
    %5284 = vmatprep.subr.mxu0 0.0
    %5285 = vmatpush1.xpose.msra.mxu0 0.0
    %5286 = vmatprep.subr.mxu0 0.0
    %5287 = vmatpush1.xpose.msra.mxu0 0.0
    %5288 = vmatprep.subr.mxu0 0.0
    %5289 = vmatpush1.xpose.msra.mxu0 0.0
    %5290 = vmatprep.subr.mxu0 0.0
    %5291 = vmatpush1.xpose.msra.mxu0 0.0
    %5292 = vmatprep.subr.mxu0 0.0
    %5293 = vmatpush1.xpose.msra.mxu0 0.0
    %5294 = vmatprep.subr.mxu0 0.0
    %5295 = vmatpush1.xpose.msra.mxu0 0.0
    %5296 = vmatprep.subr.mxu0 0.0
    %5297 = vmatpush1.xpose.msra.mxu0 0.0
    %5298 = vmatprep.subr.mxu0 0.0
    %5299 = vmatpush1.xpose.msra.mxu0 0.0
    %5300 = vmatprep.subr.mxu0 0.0
    %5301 = vmatpush1.xpose.msra.mxu0 0.0
    %5302 = vmatprep.subr.mxu0 0.0
    %5303 = vmatpush1.xpose.msra.mxu0 0.0
    %5304 = vmatprep.subr.mxu0 0.0
    %5305 = vmatpush1.xpose.msra.mxu0 0.0
    %5306 = vmatprep.subr.mxu0 0.0
    %5307 = vmatpush1.xpose.msra.mxu0 0.0
    %5308 = vmatprep.subr.mxu0 0.0
    %5309 = vmatpush1.xpose.msra.mxu0 0.0
    %5310 = vmatprep.subr.mxu0 0.0
    %5311 = vmatpush1.xpose.msra.mxu0 0.0
    %5312 = vmatprep.subr.mxu0 0.0
    %5313 = vmatpush1.xpose.msra.mxu0 0.0
    %5314 = vmatprep.subr.mxu0 0.0
    %5315 = vmatpush1.xpose.msra.mxu0 0.0
    %5316 = vmatprep.subr.mxu0 0.0
    %5317 = vmatpush1.xpose.msra.mxu0 0.0
    %5318 = vmatprep.subr.mxu0 0.0
    %5319 = vmatpush1.xpose.msra.mxu0 0.0
    %5320 = vmatprep.subr.mxu0 0.0
    %5321 = vmatpush1.xpose.msra.mxu0 0.0
    %5322 = vmatprep.subr.mxu0 0.0
    %5323 = vmatpush1.xpose.msra.mxu0 0.0
    %5324 = vmatprep.subr.mxu0 0.0
    %5325 = vmatpush1.xpose.msra.mxu0 0.0
    %5326 = vmatprep.subr.mxu0 0.0
    %5327 = vmatpush1.xpose.msra.mxu0 0.0
    %5328 = vmatprep.subr.mxu0 0.0
    %5329 = vmatpush1.xpose.msra.mxu0 0.0
    %5330 = vmatprep.subr.mxu0 0.0
    %5331 = vmatpush1.xpose.msra.mxu0 0.0
    %5332 = vmatprep.subr.mxu0 0.0
    %5333 = vmatpush1.xpose.msra.mxu0 0.0
    %5334 = vmatprep.subr.mxu0 0.0
    %5335 = vmatpush1.xpose.msra.mxu0 0.0
    %5336 = vmatprep.subr.mxu0 0.0
    %5337 = vmatpush1.xpose.msra.mxu0 0.0
    %5338 = vmatprep.subr.mxu0 0.0
    %5339 = vmatpush1.xpose.msra.mxu0 0.0
    %5340 = vmatprep.mubr.f32.mxu0 0.0
    %5341 = vmatmul.mubr.f32.gmra.mrb[0].mxu0 %v5272
    %v5342 = vpop.f32.mrb[0].mxu0
    %v5343 = vadd.f32 0.0, %v5342
    %v5344 = vpop.f32.mrb[0].mxu0
    %5345 = vdwg.mxu0
    %v5346 = vsel %vm767, %v5115, -1e+09
    %v5347 = vsel %vm767, %v5191, -1e+09
    %v5348 = vsel %vm767, %v5267, -1e+09
    %v5349 = vsel %vm767, %v5343, -1e+09
    %v5350 = vsel %vm770, %v5346, -inf
    %5351 = vmax.xlane.f32.xlu0 %v5350
    %v5352 = vpop.xlane.xlu0 %5351
    %v5353 = vsel %vm770, %v5347, -inf
    %5354 = vmax.xlane.f32.xlu0 %v5353
    %v5355 = vpop.xlane.xlu0 %5354
    %v5356 = vsel %vm770, %v5348, -inf
    %5357 = vmax.xlane.f32.xlu0 %v5356
    %v5358 = vpop.xlane.xlu0 %5357
    %v5359 = vsel %vm770, %v5349, -inf
    %5360 = vmax.xlane.f32.xlu0 %v5359
    %v5361 = vpop.xlane.xlu0 %5360
    %v5362 = vsub.f32 %v5346, %v5352
    %v5363 = vsub.f32 %v5347, %v5355
    %v5364 = vsub.f32 %v5348, %v5358
    %v5365 = vsub.f32 %v5349, %v5361
    %v5366 = vmul.f32 %v5362, 1.442695
    %v5367 = vpow.pop %v5366
    %v5368 = vmul.f32 %v5363, 1.442695
    %v5369 = vpow.pop %v5368
    %v5370 = vmul.f32 %v5364, 1.442695
    %v5371 = vpow.pop %v5370
    %v5372 = vmul.f32 %v5365, 1.442695
    %v5373 = vpow.pop %v5372
    %v5374 = vsel %vm770, %v5367, 0.0
    %5375 = vadd.xlane.f32.xlu0 %v5374
    %v5376 = vpop.xlane.xlu0 %5375
    %v5377 = vsel %vm770, %v5369, 0.0
    %5378 = vadd.xlane.f32.xlu0 %v5377
    %v5379 = vpop.xlane.xlu0 %5378
    %v5380 = vsel %vm770, %v5371, 0.0
    %5381 = vadd.xlane.f32.xlu0 %v5380
    %v5382 = vpop.xlane.xlu0 %5381
    %v5383 = vsel %vm770, %v5373, 0.0
    %5384 = vadd.xlane.f32.xlu0 %v5383
    %v5385 = vpop.xlane.xlu0 %5384
    %v5386 = vrcp.pop %v5376
    %v5387 = vmul.f32 %v5367, %v5386
    %v5388 = vrcp.pop %v5379
    %v5389 = vmul.f32 %v5369, %v5388
    %v5390 = vrcp.pop %v5382
    %v5391 = vmul.f32 %v5371, %v5390
    %v5392 = vrcp.pop %v5385
    %v5393 = vmul.f32 %v5373, %v5392
    %v5395 = vsel %vm770, %v5387, 0
    %5397 = vmatprep.subr.mxu0 0.0
    %5398 = vmatpush1.msra.mxu0 %v5012
    %5399 = vmatprep.subr.mxu0 0.0
    %5400 = vmatpush1.msra.mxu0 0.0
    %5401 = vmatprep.subr.mxu0 0.0
    %5402 = vmatpush1.msra.mxu0 0.0
    %5403 = vmatprep.subr.mxu0 0.0
    %5404 = vmatpush1.msra.mxu0 0.0
    %5405 = vmatprep.subr.mxu0 0.0
    %5406 = vmatpush1.msra.mxu0 0.0
    %5407 = vmatprep.subr.mxu0 0.0
    %5408 = vmatpush1.msra.mxu0 0.0
    %5409 = vmatprep.subr.mxu0 0.0
    %5410 = vmatpush1.msra.mxu0 0.0
    %5411 = vmatprep.subr.mxu0 0.0
    %5412 = vmatpush1.msra.mxu0 0.0
    %5413 = vmatprep.subr.mxu0 0.0
    %5414 = vmatpush1.msra.mxu0 0.0
    %5415 = vmatprep.subr.mxu0 0.0
    %5416 = vmatpush1.msra.mxu0 0.0
    %5417 = vmatprep.subr.mxu0 0.0
    %5418 = vmatpush1.msra.mxu0 0.0
    %5419 = vmatprep.subr.mxu0 0.0
    %5420 = vmatpush1.msra.mxu0 0.0
    %5421 = vmatprep.subr.mxu0 0.0
    %5422 = vmatpush1.msra.mxu0 0.0
    %5423 = vmatprep.subr.mxu0 0.0
    %5424 = vmatpush1.msra.mxu0 0.0
    %5425 = vmatprep.subr.mxu0 0.0
    %5426 = vmatpush1.msra.mxu0 0.0
    %5427 = vmatprep.subr.mxu0 0.0
    %5428 = vmatpush1.msra.mxu0 0.0
    %5429 = vmatprep.subr.mxu0 0.0
    %5430 = vmatpush1.msra.mxu0 0.0
    %5431 = vmatprep.subr.mxu0 0.0
    %5432 = vmatpush1.msra.mxu0 0.0
    %5433 = vmatprep.subr.mxu0 0.0
    %5434 = vmatpush1.msra.mxu0 0.0
    %5435 = vmatprep.subr.mxu0 0.0
    %5436 = vmatpush1.msra.mxu0 0.0
    %5437 = vmatprep.subr.mxu0 0.0
    %5438 = vmatpush1.msra.mxu0 0.0
    %5439 = vmatprep.subr.mxu0 0.0
    %5440 = vmatpush1.msra.mxu0 0.0
    %5441 = vmatprep.subr.mxu0 0.0
    %5442 = vmatpush1.msra.mxu0 0.0
    %5443 = vmatprep.subr.mxu0 0.0
    %5444 = vmatpush1.msra.mxu0 0.0
    %5445 = vmatprep.subr.mxu0 0.0
    %5446 = vmatpush1.msra.mxu0 0.0
    %5447 = vmatprep.subr.mxu0 0.0
    %5448 = vmatpush1.msra.mxu0 0.0
    %5449 = vmatprep.subr.mxu0 0.0
    %5450 = vmatpush1.msra.mxu0 0.0
    %5451 = vmatprep.subr.mxu0 0.0
    %5452 = vmatpush1.msra.mxu0 0.0
    %5453 = vmatprep.subr.mxu0 0.0
    %5454 = vmatpush1.msra.mxu0 0.0
    %5455 = vmatprep.subr.mxu0 0.0
    %5456 = vmatpush1.msra.mxu0 0.0
    %5457 = vmatprep.subr.mxu0 0.0
    %5458 = vmatpush1.msra.mxu0 0.0
    %5459 = vmatprep.subr.mxu0 0.0
    %5460 = vmatpush1.msra.mxu0 0.0
    %5461 = vmatprep.mubr.f32.mxu0 0.0
    %5462 = vmatmul.mubr.f32.gmra.mrb[0].mxu0 %v5395
    %v5463 = vpop.f32.mrb[0].mxu0
    %v5464 = vadd.f32 0.0, %v5463
    %v5465 = vpop.f32.mrb[0].mxu0
    %5466 = vdwg.mxu0
    %v5468 = vsel %vm770, %v5389, 0
    %5470 = vmatprep.subr.mxu0 0.0
    %5471 = vmatpush1.msra.mxu0 %v5018
    %5472 = vmatprep.subr.mxu0 0.0
    %5473 = vmatpush1.msra.mxu0 0.0
    %5474 = vmatprep.subr.mxu0 0.0
    %5475 = vmatpush1.msra.mxu0 0.0
    %5476 = vmatprep.subr.mxu0 0.0
    %5477 = vmatpush1.msra.mxu0 0.0
    %5478 = vmatprep.subr.mxu0 0.0
    %5479 = vmatpush1.msra.mxu0 0.0
    %5480 = vmatprep.subr.mxu0 0.0
    %5481 = vmatpush1.msra.mxu0 0.0
    %5482 = vmatprep.subr.mxu0 0.0
    %5483 = vmatpush1.msra.mxu0 0.0
    %5484 = vmatprep.subr.mxu0 0.0
    %5485 = vmatpush1.msra.mxu0 0.0
    %5486 = vmatprep.subr.mxu0 0.0
    %5487 = vmatpush1.msra.mxu0 0.0
    %5488 = vmatprep.subr.mxu0 0.0
    %5489 = vmatpush1.msra.mxu0 0.0
    %5490 = vmatprep.subr.mxu0 0.0
    %5491 = vmatpush1.msra.mxu0 0.0
    %5492 = vmatprep.subr.mxu0 0.0
    %5493 = vmatpush1.msra.mxu0 0.0
    %5494 = vmatprep.subr.mxu0 0.0
    %5495 = vmatpush1.msra.mxu0 0.0
    %5496 = vmatprep.subr.mxu0 0.0
    %5497 = vmatpush1.msra.mxu0 0.0
    %5498 = vmatprep.subr.mxu0 0.0
    %5499 = vmatpush1.msra.mxu0 0.0
    %5500 = vmatprep.subr.mxu0 0.0
    %5501 = vmatpush1.msra.mxu0 0.0
    %5502 = vmatprep.subr.mxu0 0.0
    %5503 = vmatpush1.msra.mxu0 0.0
    %5504 = vmatprep.subr.mxu0 0.0
    %5505 = vmatpush1.msra.mxu0 0.0
    %5506 = vmatprep.subr.mxu0 0.0
    %5507 = vmatpush1.msra.mxu0 0.0
    %5508 = vmatprep.subr.mxu0 0.0
    %5509 = vmatpush1.msra.mxu0 0.0
    %5510 = vmatprep.subr.mxu0 0.0
    %5511 = vmatpush1.msra.mxu0 0.0
    %5512 = vmatprep.subr.mxu0 0.0
    %5513 = vmatpush1.msra.mxu0 0.0
    %5514 = vmatprep.subr.mxu0 0.0
    %5515 = vmatpush1.msra.mxu0 0.0
    %5516 = vmatprep.subr.mxu0 0.0
    %5517 = vmatpush1.msra.mxu0 0.0
    %5518 = vmatprep.subr.mxu0 0.0
    %5519 = vmatpush1.msra.mxu0 0.0
    %5520 = vmatprep.subr.mxu0 0.0
    %5521 = vmatpush1.msra.mxu0 0.0
    %5522 = vmatprep.subr.mxu0 0.0
    %5523 = vmatpush1.msra.mxu0 0.0
    %5524 = vmatprep.subr.mxu0 0.0
    %5525 = vmatpush1.msra.mxu0 0.0
    %5526 = vmatprep.subr.mxu0 0.0
    %5527 = vmatpush1.msra.mxu0 0.0
    %5528 = vmatprep.subr.mxu0 0.0
    %5529 = vmatpush1.msra.mxu0 0.0
    %5530 = vmatprep.subr.mxu0 0.0
    %5531 = vmatpush1.msra.mxu0 0.0
    %5532 = vmatprep.subr.mxu0 0.0
    %5533 = vmatpush1.msra.mxu0 0.0
    %5534 = vmatprep.mubr.f32.mxu0 0.0
    %5535 = vmatmul.mubr.f32.gmra.mrb[0].mxu0 %v5468
    %v5536 = vpop.f32.mrb[0].mxu0
    %v5537 = vadd.f32 0.0, %v5536
    %v5538 = vpop.f32.mrb[0].mxu0
    %5539 = vdwg.mxu0
    %v5541 = vsel %vm770, %v5391, 0
    %5543 = vmatprep.subr.mxu0 0.0
    %5544 = vmatpush1.msra.mxu0 %v5037
    %5545 = vmatprep.subr.mxu0 0.0
    %5546 = vmatpush1.msra.mxu0 0.0
    %5547 = vmatprep.subr.mxu0 0.0
    %5548 = vmatpush1.msra.mxu0 0.0
    %5549 = vmatprep.subr.mxu0 0.0
    %5550 = vmatpush1.msra.mxu0 0.0
    %5551 = vmatprep.subr.mxu0 0.0
    %5552 = vmatpush1.msra.mxu0 0.0
    %5553 = vmatprep.subr.mxu0 0.0
    %5554 = vmatpush1.msra.mxu0 0.0
    %5555 = vmatprep.subr.mxu0 0.0
    %5556 = vmatpush1.msra.mxu0 0.0
    %5557 = vmatprep.subr.mxu0 0.0
    %5558 = vmatpush1.msra.mxu0 0.0
    %5559 = vmatprep.subr.mxu0 0.0
    %5560 = vmatpush1.msra.mxu0 0.0
    %5561 = vmatprep.subr.mxu0 0.0
    %5562 = vmatpush1.msra.mxu0 0.0
    %5563 = vmatprep.subr.mxu0 0.0
    %5564 = vmatpush1.msra.mxu0 0.0
    %5565 = vmatprep.subr.mxu0 0.0
    %5566 = vmatpush1.msra.mxu0 0.0
    %5567 = vmatprep.subr.mxu0 0.0
    %5568 = vmatpush1.msra.mxu0 0.0
    %5569 = vmatprep.subr.mxu0 0.0
    %5570 = vmatpush1.msra.mxu0 0.0
    %5571 = vmatprep.subr.mxu0 0.0
    %5572 = vmatpush1.msra.mxu0 0.0
    %5573 = vmatprep.subr.mxu0 0.0
    %5574 = vmatpush1.msra.mxu0 0.0
    %5575 = vmatprep.subr.mxu0 0.0
    %5576 = vmatpush1.msra.mxu0 0.0
    %5577 = vmatprep.subr.mxu0 0.0
    %5578 = vmatpush1.msra.mxu0 0.0
    %5579 = vmatprep.subr.mxu0 0.0
    %5580 = vmatpush1.msra.mxu0 0.0
    %5581 = vmatprep.subr.mxu0 0.0
    %5582 = vmatpush1.msra.mxu0 0.0
    %5583 = vmatprep.subr.mxu0 0.0
    %5584 = vmatpush1.msra.mxu0 0.0
    %5585 = vmatprep.subr.mxu0 0.0
    %5586 = vmatpush1.msra.mxu0 0.0
    %5587 = vmatprep.subr.mxu0 0.0
    %5588 = vmatpush1.msra.mxu0 0.0
    %5589 = vmatprep.subr.mxu0 0.0
    %5590 = vmatpush1.msra.mxu0 0.0
    %5591 = vmatprep.subr.mxu0 0.0
    %5592 = vmatpush1.msra.mxu0 0.0
    %5593 = vmatprep.subr.mxu0 0.0
    %5594 = vmatpush1.msra.mxu0 0.0
    %5595 = vmatprep.subr.mxu0 0.0
    %5596 = vmatpush1.msra.mxu0 0.0
    %5597 = vmatprep.subr.mxu0 0.0
    %5598 = vmatpush1.msra.mxu0 0.0
    %5599 = vmatprep.subr.mxu0 0.0
    %5600 = vmatpush1.msra.mxu0 0.0
    %5601 = vmatprep.subr.mxu0 0.0
    %5602 = vmatpush1.msra.mxu0 0.0
    %5603 = vmatprep.subr.mxu0 0.0
    %5604 = vmatpush1.msra.mxu0 0.0
    %5605 = vmatprep.subr.mxu0 0.0
    %5606 = vmatpush1.msra.mxu0 0.0
    %5607 = vmatprep.mubr.f32.mxu0 0.0
    %5608 = vmatmul.mubr.f32.gmra.mrb[0].mxu0 %v5541
    %v5609 = vpop.f32.mrb[0].mxu0
    %v5610 = vadd.f32 0.0, %v5609
    %v5611 = vpop.f32.mrb[0].mxu0
    %5612 = vdwg.mxu0
    %v5614 = vsel %vm770, %v5393, 0
    %5616 = vmatprep.subr.mxu0 0.0
    %5617 = vmatpush1.msra.mxu0 %v5039
    %5618 = vmatprep.subr.mxu0 0.0
    %5619 = vmatpush1.msra.mxu0 0.0
    %5620 = vmatprep.subr.mxu0 0.0
    %5621 = vmatpush1.msra.mxu0 0.0
    %5622 = vmatprep.subr.mxu0 0.0
    %5623 = vmatpush1.msra.mxu0 0.0
    %5624 = vmatprep.subr.mxu0 0.0
    %5625 = vmatpush1.msra.mxu0 0.0
    %5626 = vmatprep.subr.mxu0 0.0
    %5627 = vmatpush1.msra.mxu0 0.0
    %5628 = vmatprep.subr.mxu0 0.0
    %5629 = vmatpush1.msra.mxu0 0.0
    %5630 = vmatprep.subr.mxu0 0.0
    %5631 = vmatpush1.msra.mxu0 0.0
    %5632 = vmatprep.subr.mxu0 0.0
    %5633 = vmatpush1.msra.mxu0 0.0
    %5634 = vmatprep.subr.mxu0 0.0
    %5635 = vmatpush1.msra.mxu0 0.0
    %5636 = vmatprep.subr.mxu0 0.0
    %5637 = vmatpush1.msra.mxu0 0.0
    %5638 = vmatprep.subr.mxu0 0.0
    %5639 = vmatpush1.msra.mxu0 0.0
    %5640 = vmatprep.subr.mxu0 0.0
    %5641 = vmatpush1.msra.mxu0 0.0
    %5642 = vmatprep.subr.mxu0 0.0
    %5643 = vmatpush1.msra.mxu0 0.0
    %5644 = vmatprep.subr.mxu0 0.0
    %5645 = vmatpush1.msra.mxu0 0.0
    %5646 = vmatprep.subr.mxu0 0.0
    %5647 = vmatpush1.msra.mxu0 0.0
    %5648 = vmatprep.subr.mxu0 0.0
    %5649 = vmatpush1.msra.mxu0 0.0
    %5650 = vmatprep.subr.mxu0 0.0
    %5651 = vmatpush1.msra.mxu0 0.0
    %5652 = vmatprep.subr.mxu0 0.0
    %5653 = vmatpush1.msra.mxu0 0.0
    %5654 = vmatprep.subr.mxu0 0.0
    %5655 = vmatpush1.msra.mxu0 0.0
    %5656 = vmatprep.subr.mxu0 0.0
    %5657 = vmatpush1.msra.mxu0 0.0
    %5658 = vmatprep.subr.mxu0 0.0
    %5659 = vmatpush1.msra.mxu0 0.0
    %5660 = vmatprep.subr.mxu0 0.0
    %5661 = vmatpush1.msra.mxu0 0.0
    %5662 = vmatprep.subr.mxu0 0.0
    %5663 = vmatpush1.msra.mxu0 0.0
    %5664 = vmatprep.subr.mxu0 0.0
    %5665 = vmatpush1.msra.mxu0 0.0
    %5666 = vmatprep.subr.mxu0 0.0
    %5667 = vmatpush1.msra.mxu0 0.0
    %5668 = vmatprep.subr.mxu0 0.0
    %5669 = vmatpush1.msra.mxu0 0.0
    %5670 = vmatprep.subr.mxu0 0.0
    %5671 = vmatpush1.msra.mxu0 0.0
    %5672 = vmatprep.subr.mxu0 0.0
    %5673 = vmatpush1.msra.mxu0 0.0
    %5674 = vmatprep.subr.mxu0 0.0
    %5675 = vmatpush1.msra.mxu0 0.0
    %5676 = vmatprep.subr.mxu0 0.0
    %5677 = vmatpush1.msra.mxu0 0.0
    %5678 = vmatprep.subr.mxu0 0.0
    %5679 = vmatpush1.msra.mxu0 0.0
    %5680 = vmatprep.mubr.f32.mxu0 0.0
    %5681 = vmatmul.mubr.f32.gmra.mrb[0].mxu0 %v5614
    %v5682 = vpop.f32.mrb[0].mxu0
    %v5683 = vadd.f32 0.0, %v5682
    %v5684 = vpop.f32.mrb[0].mxu0
    %5685 = vdwg.mxu0
    %5688 = vrot.lane.b32.xlu0 %v5610, 32
    %v5689 = vpop.permute.xlu0 %5688
    %5690 = vrot.lane.b32.xlu0 %v5683, 32
    %v5691 = vpop.permute.xlu0 %5690
    %v5694 = vsel %vm526, %v5464, %v5689
    %v5695 = vsel %vm526, %v5537, %v5691
    %v5697 = vlaneseq
    %v5698 = vshrl.u32 %v5697, 7
    %v5699 = vsub.s32 0, %v5698
    %v5700 = vrot.slane %v4862, %v5699
    %v5703 = vsel %vm1532, %v5694, 0
    %v5706 = vsel %vm1532, %v5695, 0
    %5708 = vmatprep.subr.mxu0 0.0
    %5709 = vmatpush1.msra.mxu0 %v4854
    %5710 = vmatprep.subr.mxu0 0.0
    %5711 = vmatpush1.msra.mxu0 %v4855
    %5712 = vmatprep.subr.mxu0 0.0
    %5713 = vmatpush1.msra.mxu0 %v4856
    %5714 = vmatprep.subr.mxu0 0.0
    %5715 = vmatpush1.msra.mxu0 %v4857
    %5716 = vmatprep.subr.mxu0 0.0
    %5717 = vmatpush1.msra.mxu0 %v4858
    %5718 = vmatprep.subr.mxu0 0.0
    %5719 = vmatpush1.msra.mxu0 %v4859
    %5720 = vmatprep.subr.mxu0 0.0
    %5721 = vmatpush1.msra.mxu0 %v4860
    %5722 = vmatprep.subr.mxu0 0.0
    %5723 = vmatpush1.msra.mxu0 %v4861
    %5724 = vmatprep.subr.mxu0 0.0
    %5725 = vmatpush1.msra.mxu0 0.0
    %5726 = vmatprep.subr.mxu0 0.0
    %5727 = vmatpush1.msra.mxu0 0.0
    %5728 = vmatprep.subr.mxu0 0.0
    %5729 = vmatpush1.msra.mxu0 0.0
    %5730 = vmatprep.subr.mxu0 0.0
    %5731 = vmatpush1.msra.mxu0 0.0
    %5732 = vmatprep.subr.mxu0 0.0
    %5733 = vmatpush1.msra.mxu0 0.0
    %5734 = vmatprep.subr.mxu0 0.0
    %5735 = vmatpush1.msra.mxu0 0.0
    %5736 = vmatprep.subr.mxu0 0.0
    %5737 = vmatpush1.msra.mxu0 0.0
    %5738 = vmatprep.subr.mxu0 0.0
    %5739 = vmatpush1.msra.mxu0 0.0
    %5740 = vmatprep.subr.mxu0 0.0
    %5741 = vmatpush1.msra.mxu0 0.0
    %5742 = vmatprep.subr.mxu0 0.0
    %5743 = vmatpush1.msra.mxu0 0.0
    %5744 = vmatprep.subr.mxu0 0.0
    %5745 = vmatpush1.msra.mxu0 0.0
    %5746 = vmatprep.subr.mxu0 0.0
    %5747 = vmatpush1.msra.mxu0 0.0
    %5748 = vmatprep.subr.mxu0 0.0
    %5749 = vmatpush1.msra.mxu0 0.0
    %5750 = vmatprep.subr.mxu0 0.0
    %5751 = vmatpush1.msra.mxu0 0.0
    %5752 = vmatprep.subr.mxu0 0.0
    %5753 = vmatpush1.msra.mxu0 0.0
    %5754 = vmatprep.subr.mxu0 0.0
    %5755 = vmatpush1.msra.mxu0 0.0
    %5756 = vmatprep.subr.mxu0 0.0
    %5757 = vmatpush1.msra.mxu0 0.0
    %5758 = vmatprep.subr.mxu0 0.0
    %5759 = vmatpush1.msra.mxu0 0.0
    %5760 = vmatprep.subr.mxu0 0.0
    %5761 = vmatpush1.msra.mxu0 0.0
    %5762 = vmatprep.subr.mxu0 0.0
    %5763 = vmatpush1.msra.mxu0 0.0
    %5764 = vmatprep.subr.mxu0 0.0
    %5765 = vmatpush1.msra.mxu0 0.0
    %5766 = vmatprep.subr.mxu0 0.0
    %5767 = vmatpush1.msra.mxu0 0.0
    %5768 = vmatprep.subr.mxu0 0.0
    %5769 = vmatpush1.msra.mxu0 0.0
    %5770 = vmatprep.subr.mxu0 0.0
    %5771 = vmatpush1.msra.mxu0 0.0
    %5772 = vmatprep.mubr.f32.mxu0 0.0
    %5773 = vmatmul.mubr.f32.gmra.mrb[0].mxu0 %v5703
    %v5774 = vpop.f32.mrb[0].mxu0
    %v5775 = vadd.f32 %v5700, %v5774
    %v5776 = vpop.f32.mrb[0].mxu0
    %5777 = vmatprep.mubr.f32.mxu0 0.0
    %5778 = vmatmul.mubr.f32.gmra.mrb[0].mxu0 %v5706
    %v5779 = vpop.f32.mrb[0].mxu0
    %v5780 = vadd.f32 %v5700, %v5779
    %v5781 = vpop.f32.mrb[0].mxu0
    %5782 = vdwg.mxu0
    %v5783 = vadd.f32 %v4829, %v5775
    %v5784 = vadd.f32 %v4834, %v5780
    %v5785 = vsel %vm1532, %v5783, 0.0
    %5786 = vadd.xlane.f32.xlu0 %v5785
    %v5787 = vpop.xlane.xlu0 %5786
    %v5788 = vsel %vm1532, %v5784, 0.0
    %5789 = vadd.xlane.f32.xlu0 %v5788
    %v5790 = vpop.xlane.xlu0 %5789
    %v5791 = vmul.f32 %v5787, %v2387
    %v5792 = vmul.f32 %v5790, %v2387
    %v5793 = vsub.f32 %v5783, %v5791
    %v5794 = vsub.f32 %v5784, %v5792
    %v5795 = vmul.f32 %v5793, %v5793
    %v5796 = vmul.f32 %v5794, %v5794
    %v5797 = vsel %vm1532, %v5795, 0.0
    %5798 = vadd.xlane.f32.xlu0 %v5797
    %v5799 = vpop.xlane.xlu0 %5798
    %v5800 = vsel %vm1532, %v5796, 0.0
    %5801 = vadd.xlane.f32.xlu0 %v5800
    %v5802 = vpop.xlane.xlu0 %5801
    %v5803 = vmul.f32 %v5799, %v2387
    %v5804 = vmul.f32 %v5802, %v2387
    %v5805 = vadd.f32 %v5803, 1e-05
    %v5806 = vadd.f32 %v5804, 1e-05
    %v5807 = vrsqrt.pop %v5805
    %v5808 = vmul.f32 %v5805, %v5807
    %vm5809 = vcmp.eq.f32.partialorder %v5805, inf
    %v5810 = vsel %vm5809, %v5805, %v5808
    %vm5811 = vcmp.eq.f32.partialorder %v5805, 0.0
    %v5812 = vand.u32 %v5805, 2147483648
    %v5813 = vsel %vm5811, %v5812, %v5810
    %v5814 = vrsqrt.pop %v5806
    %v5815 = vmul.f32 %v5806, %v5814
    %vm5816 = vcmp.eq.f32.partialorder %v5806, inf
    %v5817 = vsel %vm5816, %v5806, %v5815
    %vm5818 = vcmp.eq.f32.partialorder %v5806, 0.0
    %v5819 = vand.u32 %v5806, 2147483648
    %v5820 = vsel %vm5818, %v5819, %v5817
    %v5821 = vrcp.pop %v5813
    %v5822 = vmul.f32 %v5793, %v5821
    %v5823 = vrcp.pop %v5820
    %v5824 = vmul.f32 %v5794, %v5823
    %v5826 = vlaneseq
    %v5827 = vshrl.u32 %v5826, 7
    %v5828 = vsub.s32 0, %v5827
    %v5829 = vrot.slane %v4863, %v5828
    %v5831 = vmul.f32 %v5829, %v5822
    %v5832 = vmul.f32 %v5829, %v5824
    %v5834 = vlaneseq
    %v5835 = vshrl.u32 %v5834, 7
    %v5836 = vsub.s32 0, %v5835
    %v5837 = vrot.slane %v4864, %v5836
    %v5839 = vadd.f32 %v5831, %v5837
    %v5840 = vadd.f32 %v5832, %v5837
    %v5842 = vlaneseq
    %v5843 = vshrl.u32 %v5842, 7
    %v5844 = vsub.s32 0, %v5843
    %v5845 = vrot.slane %v4881, %v5844
    %v5846 = vlaneseq
    %v5847 = vshrl.u32 %v5846, 7
    %v5848 = vsub.s32 1, %v5847
    %v5849 = vrot.slane %v4881, %v5848
    %v5853 = vsel %vm1532, %v5839, 0
    %v5856 = vsel %vm1532, %v5840, 0
    %5858 = vmatprep.subr.mxu0 %v4866
    %5859 = vmatpush1.msra.mxu0 %v4865
    %5860 = vmatprep.subr.mxu0 %v4868
    %5861 = vmatpush1.msra.mxu0 %v4867
    %5862 = vmatprep.subr.mxu0 %v4870
    %5863 = vmatpush1.msra.mxu0 %v4869
    %5864 = vmatprep.subr.mxu0 %v4872
    %5865 = vmatpush1.msra.mxu0 %v4871
    %5866 = vmatprep.subr.mxu0 %v4874
    %5867 = vmatpush1.msra.mxu0 %v4873
    %5868 = vmatprep.subr.mxu0 %v4876
    %5869 = vmatpush1.msra.mxu0 %v4875
    %5870 = vmatprep.subr.mxu0 %v4878
    %5871 = vmatpush1.msra.mxu0 %v4877
    %5872 = vmatprep.subr.mxu0 %v4880
    %5873 = vmatpush1.msra.mxu0 %v4879
    %5874 = vmatprep.subr.mxu0 0.0
    %5875 = vmatpush1.msra.mxu0 0.0
    %5876 = vmatprep.subr.mxu0 0.0
    %5877 = vmatpush1.msra.mxu0 0.0
    %5878 = vmatprep.subr.mxu0 0.0
    %5879 = vmatpush1.msra.mxu0 0.0
    %5880 = vmatprep.subr.mxu0 0.0
    %5881 = vmatpush1.msra.mxu0 0.0
    %5882 = vmatprep.subr.mxu0 0.0
    %5883 = vmatpush1.msra.mxu0 0.0
    %5884 = vmatprep.subr.mxu0 0.0
    %5885 = vmatpush1.msra.mxu0 0.0
    %5886 = vmatprep.subr.mxu0 0.0
    %5887 = vmatpush1.msra.mxu0 0.0
    %5888 = vmatprep.subr.mxu0 0.0
    %5889 = vmatpush1.msra.mxu0 0.0
    %5890 = vmatprep.subr.mxu0 0.0
    %5891 = vmatpush1.msra.mxu0 0.0
    %5892 = vmatprep.subr.mxu0 0.0
    %5893 = vmatpush1.msra.mxu0 0.0
    %5894 = vmatprep.subr.mxu0 0.0
    %5895 = vmatpush1.msra.mxu0 0.0
    %5896 = vmatprep.subr.mxu0 0.0
    %5897 = vmatpush1.msra.mxu0 0.0
    %5898 = vmatprep.subr.mxu0 0.0
    %5899 = vmatpush1.msra.mxu0 0.0
    %5900 = vmatprep.subr.mxu0 0.0
    %5901 = vmatpush1.msra.mxu0 0.0
    %5902 = vmatprep.subr.mxu0 0.0
    %5903 = vmatpush1.msra.mxu0 0.0
    %5904 = vmatprep.subr.mxu0 0.0
    %5905 = vmatpush1.msra.mxu0 0.0
    %5906 = vmatprep.subr.mxu0 0.0
    %5907 = vmatpush1.msra.mxu0 0.0
    %5908 = vmatprep.subr.mxu0 0.0
    %5909 = vmatpush1.msra.mxu0 0.0
    %5910 = vmatprep.subr.mxu0 0.0
    %5911 = vmatpush1.msra.mxu0 0.0
    %5912 = vmatprep.subr.mxu0 0.0
    %5913 = vmatpush1.msra.mxu0 0.0
    %5914 = vmatprep.subr.mxu0 0.0
    %5915 = vmatpush1.msra.mxu0 0.0
    %5916 = vmatprep.subr.mxu0 0.0
    %5917 = vmatpush1.msra.mxu0 0.0
    %5918 = vmatprep.subr.mxu0 0.0
    %5919 = vmatpush1.msra.mxu0 0.0
    %5920 = vmatprep.subr.mxu0 0.0
    %5921 = vmatpush1.msra.mxu0 0.0
    %5922 = vmatprep.mubr.f32.mxu0 0.0
    %5923 = vmatmul.mubr.f32.gmra.mrb[0].mxu0 %v5853
    %v5924 = vpop.f32.mrb[0].mxu0
    %v5925 = vadd.f32 %v5845, %v5924
    %v5926 = vpop.f32.mrb[0].mxu0
    %v5927 = vadd.f32 %v5849, %v5926
    %5928 = vmatprep.mubr.f32.mxu0 0.0
    %5929 = vmatmul.mubr.f32.gmra.mrb[0].mxu0 %v5856
    %v5930 = vpop.f32.mrb[0].mxu0
    %v5931 = vadd.f32 %v5845, %v5930
    %v5932 = vpop.f32.mrb[0].mxu0
    %v5933 = vadd.f32 %v5849, %v5932
    %5934 = vdwg.mxu0
    %v5935 = vmul.f32 %v5925, 0.5
    %v5936 = vmul.f32 %v5927, 0.5
    %v5937 = vmul.f32 %v5931, 0.5
    %v5938 = vmul.f32 %v5933, 0.5
    %v5939 = vmul.f32 %v5925, 0.044715
    %v5940 = vmul.f32 %v5927, 0.044715
    %v5941 = vmul.f32 %v5931, 0.044715
    %v5942 = vmul.f32 %v5933, 0.044715
    %v5943 = vmul.f32 %v5939, %v5925
    %v5944 = vmul.f32 %v5940, %v5927
    %v5945 = vmul.f32 %v5941, %v5931
    %v5946 = vmul.f32 %v5942, %v5933
    %v5947 = vmul.f32 %v5943, %v5925
    %v5948 = vmul.f32 %v5944, %v5927
    %v5949 = vmul.f32 %v5945, %v5931
    %v5950 = vmul.f32 %v5946, %v5933
    %v5951 = vadd.f32 %v5925, %v5947
    %v5952 = vadd.f32 %v5927, %v5948
    %v5953 = vadd.f32 %v5931, %v5949
    %v5954 = vadd.f32 %v5933, %v5950
    %v5955 = vmul.f32 %v5951, 0.7978846
    %v5956 = vmul.f32 %v5952, 0.7978846
    %v5957 = vmul.f32 %v5953, 0.7978846
    %v5958 = vmul.f32 %v5954, 0.7978846
    %v5959 = vtanh.pop %v5955
    %v5960 = vtanh.pop %v5956
    %v5961 = vtanh.pop %v5957
    %v5962 = vtanh.pop %v5958
    %v5963 = vadd.f32 %v5959, 1.0
    %v5964 = vadd.f32 %v5960, 1.0
    %v5965 = vadd.f32 %v5961, 1.0
    %v5966 = vadd.f32 %v5962, 1.0
    %v5967 = vmul.f32 %v5935, %v5963
    %v5968 = vmul.f32 %v5936, %v5964
    %v5969 = vmul.f32 %v5937, %v5965
    %v5970 = vmul.f32 %v5938, %v5966
    %v5972 = vlaneseq
    %v5973 = vshrl.u32 %v5972, 7
    %v5974 = vsub.s32 0, %v5973
    %v5975 = vrot.slane %v4914, %v5974
    %5977 = vmatprep.subr.mxu0 0.0
    %5978 = vmatpush1.msra.mxu0 %v4882
    %5979 = vmatprep.subr.mxu0 0.0
    %5980 = vmatpush1.msra.mxu0 %v4883
    %5981 = vmatprep.subr.mxu0 0.0
    %5982 = vmatpush1.msra.mxu0 %v4884
    %5983 = vmatprep.subr.mxu0 0.0
    %5984 = vmatpush1.msra.mxu0 %v4885
    %5985 = vmatprep.subr.mxu0 0.0
    %5986 = vmatpush1.msra.mxu0 %v4886
    %5987 = vmatprep.subr.mxu0 0.0
    %5988 = vmatpush1.msra.mxu0 %v4887
    %5989 = vmatprep.subr.mxu0 0.0
    %5990 = vmatpush1.msra.mxu0 %v4888
    %5991 = vmatprep.subr.mxu0 0.0
    %5992 = vmatpush1.msra.mxu0 %v4889
    %5993 = vmatprep.subr.mxu0 0.0
    %5994 = vmatpush1.msra.mxu0 %v4890
    %5995 = vmatprep.subr.mxu0 0.0
    %5996 = vmatpush1.msra.mxu0 %v4891
    %5997 = vmatprep.subr.mxu0 0.0
    %5998 = vmatpush1.msra.mxu0 %v4892
    %5999 = vmatprep.subr.mxu0 0.0
    %6000 = vmatpush1.msra.mxu0 %v4893
    %6001 = vmatprep.subr.mxu0 0.0
    %6002 = vmatpush1.msra.mxu0 %v4894
    %6003 = vmatprep.subr.mxu0 0.0
    %6004 = vmatpush1.msra.mxu0 %v4895
    %6005 = vmatprep.subr.mxu0 0.0
    %6006 = vmatpush1.msra.mxu0 %v4896
    %6007 = vmatprep.subr.mxu0 0.0
    %6008 = vmatpush1.msra.mxu0 %v4897
    %6009 = vmatprep.subr.mxu0 0.0
    %6010 = vmatpush1.msra.mxu0 %v4898
    %6011 = vmatprep.subr.mxu0 0.0
    %6012 = vmatpush1.msra.mxu0 %v4899
    %6013 = vmatprep.subr.mxu0 0.0
    %6014 = vmatpush1.msra.mxu0 %v4900
    %6015 = vmatprep.subr.mxu0 0.0
    %6016 = vmatpush1.msra.mxu0 %v4901
    %6017 = vmatprep.subr.mxu0 0.0
    %6018 = vmatpush1.msra.mxu0 %v4902
    %6019 = vmatprep.subr.mxu0 0.0
    %6020 = vmatpush1.msra.mxu0 %v4903
    %6021 = vmatprep.subr.mxu0 0.0
    %6022 = vmatpush1.msra.mxu0 %v4904
    %6023 = vmatprep.subr.mxu0 0.0
    %6024 = vmatpush1.msra.mxu0 %v4905
    %6025 = vmatprep.subr.mxu0 0.0
    %6026 = vmatpush1.msra.mxu0 %v4906
    %6027 = vmatprep.subr.mxu0 0.0
    %6028 = vmatpush1.msra.mxu0 %v4907
    %6029 = vmatprep.subr.mxu0 0.0
    %6030 = vmatpush1.msra.mxu0 %v4908
    %6031 = vmatprep.subr.mxu0 0.0
    %6032 = vmatpush1.msra.mxu0 %v4909
    %6033 = vmatprep.subr.mxu0 0.0
    %6034 = vmatpush1.msra.mxu0 %v4910
    %6035 = vmatprep.subr.mxu0 0.0
    %6036 = vmatpush1.msra.mxu0 %v4911
    %6037 = vmatprep.subr.mxu0 0.0
    %6038 = vmatpush1.msra.mxu0 %v4912
    %6039 = vmatprep.subr.mxu0 0.0
    %6040 = vmatpush1.msra.mxu0 %v4913
    %6041 = vmatprep.mubr.f32.mxu0 %v5968
    %6042 = vmatmul.mubr.f32.gmra.mrb[0].mxu0 %v5967
    %v6043 = vpop.f32.mrb[0].mxu0
    %v6044 = vadd.f32 %v5975, %v6043
    %v6045 = vpop.f32.mrb[0].mxu0
    %6046 = vmatprep.mubr.f32.mxu0 %v5970
    %6047 = vmatmul.mubr.f32.gmra.mrb[0].mxu0 %v5969
    %v6048 = vpop.f32.mrb[0].mxu0
    %v6049 = vadd.f32 %v5975, %v6048
    %v6050 = vpop.f32.mrb[0].mxu0
    %6051 = vdwg.mxu0
    %v6052 = vadd.f32 %v5839, %v6044
    %v6053 = vadd.f32 %v5840, %v6049
    %v6054 = vsel %vm1532, %v6052, 0.0
    %6055 = vadd.xlane.f32.xlu0 %v6054
    %v6056 = vpop.xlane.xlu0 %6055
    %v6057 = vsel %vm1532, %v6053, 0.0
    %6058 = vadd.xlane.f32.xlu0 %v6057
    %v6059 = vpop.xlane.xlu0 %6058
    %v6060 = vmul.f32 %v6056, %v2387
    %v6061 = vmul.f32 %v6059, %v2387
    %v6062 = vsub.f32 %v6052, %v6060
    %v6063 = vsub.f32 %v6053, %v6061
    %v6064 = vmul.f32 %v6062, %v6062
    %v6065 = vmul.f32 %v6063, %v6063
    %v6066 = vsel %vm1532, %v6064, 0.0
    %6067 = vadd.xlane.f32.xlu0 %v6066
    %v6068 = vpop.xlane.xlu0 %6067
    %v6069 = vsel %vm1532, %v6065, 0.0
    %6070 = vadd.xlane.f32.xlu0 %v6069
    %v6071 = vpop.xlane.xlu0 %6070
    %v6072 = vmul.f32 %v6068, %v2387
    %v6073 = vmul.f32 %v6071, %v2387
    %v6074 = vadd.f32 %v6072, 1e-05
    %v6075 = vadd.f32 %v6073, 1e-05
    %v6076 = vrsqrt.pop %v6074
    %v6077 = vmul.f32 %v6074, %v6076
    %vm6078 = vcmp.eq.f32.partialorder %v6074, inf
    %v6079 = vsel %vm6078, %v6074, %v6077
    %vm6080 = vcmp.eq.f32.partialorder %v6074, 0.0
    %v6081 = vand.u32 %v6074, 2147483648
    %v6082 = vsel %vm6080, %v6081, %v6079
    %v6083 = vrsqrt.pop %v6075
    %v6084 = vmul.f32 %v6075, %v6083
    %vm6085 = vcmp.eq.f32.partialorder %v6075, inf
    %v6086 = vsel %vm6085, %v6075, %v6084
    %vm6087 = vcmp.eq.f32.partialorder %v6075, 0.0
    %v6088 = vand.u32 %v6075, 2147483648
    %v6089 = vsel %vm6087, %v6088, %v6086
    %v6090 = vrcp.pop %v6082
    %v6091 = vmul.f32 %v6062, %v6090
    %v6092 = vrcp.pop %v6089
    %v6093 = vmul.f32 %v6063, %v6092
    %v6095 = vlaneseq
    %v6096 = vshrl.u32 %v6095, 7
    %v6097 = vsub.s32 0, %v6096
    %v6098 = vrot.slane %v4915, %v6097
    %v6100 = vmul.f32 %v6098, %v6091
    %v6101 = vmul.f32 %v6098, %v6093
    %v6103 = vlaneseq
    %v6104 = vshrl.u32 %v6103, 7
    %v6105 = vsub.s32 0, %v6104
    %v6106 = vrot.slane %v4916, %v6105
    %v6108 = vadd.f32 %v6100, %v6106
    %v6109 = vadd.f32 %v6101, %v6106
    %v6111 = vlaneseq
    %v6112 = vshrl.u32 %v6111, 7
    %v6113 = vsub.s32 0, %v6112
    %v6114 = vrot.slane %v4925, %v6113
    %v6117 = vsel %vm1532, %v6108, 0
    %v6120 = vsel %vm1532, %v6109, 0
    %6122 = vmatprep.subr.mxu0 0.0
    %6123 = vmatpush1.msra.mxu0 %v4917
    %6124 = vmatprep.subr.mxu0 0.0
    %6125 = vmatpush1.msra.mxu0 %v4918
    %6126 = vmatprep.subr.mxu0 0.0
    %6127 = vmatpush1.msra.mxu0 %v4919
    %6128 = vmatprep.subr.mxu0 0.0
    %6129 = vmatpush1.msra.mxu0 %v4920
    %6130 = vmatprep.subr.mxu0 0.0
    %6131 = vmatpush1.msra.mxu0 %v4921
    %6132 = vmatprep.subr.mxu0 0.0
    %6133 = vmatpush1.msra.mxu0 %v4922
    %6134 = vmatprep.subr.mxu0 0.0
    %6135 = vmatpush1.msra.mxu0 %v4923
    %6136 = vmatprep.subr.mxu0 0.0
    %6137 = vmatpush1.msra.mxu0 %v4924
    %6138 = vmatprep.subr.mxu0 0.0
    %6139 = vmatpush1.msra.mxu0 0.0
    %6140 = vmatprep.subr.mxu0 0.0
    %6141 = vmatpush1.msra.mxu0 0.0
    %6142 = vmatprep.subr.mxu0 0.0
    %6143 = vmatpush1.msra.mxu0 0.0
    %6144 = vmatprep.subr.mxu0 0.0
    %6145 = vmatpush1.msra.mxu0 0.0
    %6146 = vmatprep.subr.mxu0 0.0
    %6147 = vmatpush1.msra.mxu0 0.0
    %6148 = vmatprep.subr.mxu0 0.0
    %6149 = vmatpush1.msra.mxu0 0.0
    %6150 = vmatprep.subr.mxu0 0.0
    %6151 = vmatpush1.msra.mxu0 0.0
    %6152 = vmatprep.subr.mxu0 0.0
    %6153 = vmatpush1.msra.mxu0 0.0
    %6154 = vmatprep.subr.mxu0 0.0
    %6155 = vmatpush1.msra.mxu0 0.0
    %6156 = vmatprep.subr.mxu0 0.0
    %6157 = vmatpush1.msra.mxu0 0.0
    %6158 = vmatprep.subr.mxu0 0.0
    %6159 = vmatpush1.msra.mxu0 0.0
    %6160 = vmatprep.subr.mxu0 0.0
    %6161 = vmatpush1.msra.mxu0 0.0
    %6162 = vmatprep.subr.mxu0 0.0
    %6163 = vmatpush1.msra.mxu0 0.0
    %6164 = vmatprep.subr.mxu0 0.0
    %6165 = vmatpush1.msra.mxu0 0.0
    %6166 = vmatprep.subr.mxu0 0.0
    %6167 = vmatpush1.msra.mxu0 0.0
    %6168 = vmatprep.subr.mxu0 0.0
    %6169 = vmatpush1.msra.mxu0 0.0
    %6170 = vmatprep.subr.mxu0 0.0
    %6171 = vmatpush1.msra.mxu0 0.0
    %6172 = vmatprep.subr.mxu0 0.0
    %6173 = vmatpush1.msra.mxu0 0.0
    %6174 = vmatprep.subr.mxu0 0.0
    %6175 = vmatpush1.msra.mxu0 0.0
    %6176 = vmatprep.subr.mxu0 0.0
    %6177 = vmatpush1.msra.mxu0 0.0
    %6178 = vmatprep.subr.mxu0 0.0
    %6179 = vmatpush1.msra.mxu0 0.0
    %6180 = vmatprep.subr.mxu0 0.0
    %6181 = vmatpush1.msra.mxu0 0.0
    %6182 = vmatprep.subr.mxu0 0.0
    %6183 = vmatpush1.msra.mxu0 0.0
    %6184 = vmatprep.subr.mxu0 0.0
    %6185 = vmatpush1.msra.mxu0 0.0
    %6186 = vmatprep.mubr.f32.mxu0 0.0
    %6187 = vmatmul.mubr.f32.gmra.mrb[0].mxu0 %v6117
    %v6188 = vpop.f32.mrb[0].mxu0
    %v6189 = vadd.f32 %v6114, %v6188
    %v6190 = vpop.f32.mrb[0].mxu0
    %6191 = vmatprep.mubr.f32.mxu0 0.0
    %6192 = vmatmul.mubr.f32.gmra.mrb[0].mxu0 %v6120
    %v6193 = vpop.f32.mrb[0].mxu0
    %v6194 = vadd.f32 %v6114, %v6193
    %v6195 = vpop.f32.mrb[0].mxu0
    %6196 = vdwg.mxu0
    %v6197 = vsel %vm526, %v6189, 0.0
    %v6198 = vsel %vm526, %v6194, 0.0
    %6199 = vst [vmem:[#allocation34] sm:$0xff] %v6197
    %6200 = vst [vmem:[#allocation34 + $0x8] sm:$0xff] %v6198
    // Predicated region
    $region310: #{tpu_custom_call.1} parent=1 // pred_check
      _
    $region311: #{tpu_custom_call.1} parent=1 // pred_check_branch
      %6202 = sbr.rel (0) target = $region313
    $region312: #{tpu_custom_call.1} parent=1 // pred_region
      %s6204 = ssub.s32 256, 256
      %6205 = vsyncadd [#allocation4], %s6204
      %s6206 = sshll.u32 [#allocation34], 4
      %s6207 = int_to_ptr.vmem [resolvable:$true] %s6206
      %6212 = dma.vmem_to_hbm [thread:$0]  %s6207, 256, %s115, [#allocation4], 128, 128, 8
    $region313: #{tpu_custom_call.1} parent=1 // pred_fallthru
      _
    // Predicated region
    $region314: #{tpu_custom_call.1} parent=1 // pred_check
      _
    $region315: #{tpu_custom_call.1} parent=1 // pred_check_branch
      %6214 = sbr.rel (0) target = $region317
    $region316: #{tpu_custom_call.1} parent=1 // pred_region
      %6215 = dma.done [#allocation4], 256
    $region317: #{tpu_custom_call.1} parent=1 // pred_fallthru
      _
    %6216 = vsyncpa [#allocation3], 1
    %6217 = vsyncpa [#allocation6], 1
    %6218 = vsyncpa [#allocation9], 1
    %6219 = vsyncpa [#allocation12], 1
    %6220 = vsyncpa [#allocation15], 1
    %6221 = vsyncpa [#allocation18], 1
    %6222 = vsyncpa [#allocation21], 1
    %6223 = vsyncpa [#allocation24], 1
    %6224 = vsyncpa [#allocation27], 1
    %6225 = vsyncpa [#allocation30], 1
    %6226 = vsyncpa [#allocation33], 1
    %6227 = vsyncpa [#allocation4], 1

</llo_original>
